<compile_context>
chip_gen: v5e
topology: v5e:2x2
jax: 0.10.0
libtpu: 0.0.40
codegen_flags: <defaults>
</compile_context>

<pallas_src>
import functools

import jax
import jax.numpy as jnp
from jax.experimental import pallas as pl
from jax.experimental.pallas import tpu as pltpu

NEG_SLOPE = 0.01  # torch nn.LeakyReLU default negative_slope


def _vmem(n):
    return [pl.BlockSpec(memory_space=pltpu.MemorySpace.VMEM) for _ in range(n)]


def _lrelu(x):
    return jnp.where(x >= 0.0, x, NEG_SLOPE * x)


# ----------------------------- Pallas kernels -----------------------------

def _matmul_bias_lrelu_kernel(x_ref, w_ref, b_ref, o_ref):
    acc = jnp.dot(x_ref[...], w_ref[...], preferred_element_type=jnp.float32)
    o_ref[...] = _lrelu(acc + b_ref[...])


def matmul_bias_lrelu(x, w, b):
    """y = leaky_relu(x @ w + b); x:(M,K), w:(K,N) pre-packed, b:(N,)."""
    M, K = x.shape
    N = w.shape[1]
    x = x.astype(jnp.float32)
    w = w.astype(jnp.float32)
    b2 = b.reshape(1, N).astype(jnp.float32)
    # At the small sizes used here the cheapest thing is one whole-array block
    # (the workload is launch/latency bound).  Only tile rows when M is large.
    bm = M
    if M > 2048:
        for cand in (1024, 512, 256):
            if M % cand == 0:
                bm = cand
                break
    if bm == M:
        return pl.pallas_call(
            _matmul_bias_lrelu_kernel,
            out_shape=jax.ShapeDtypeStruct((M, N), jnp.float32),
            in_specs=_vmem(3),
            out_specs=pl.BlockSpec(memory_space=pltpu.MemorySpace.VMEM),
        )(x, w, b2)
    return pl.pallas_call(
        _matmul_bias_lrelu_kernel,
        grid=(M // bm,),
        in_specs=[pl.BlockSpec((bm, K), lambda i: (i, 0)),
                  pl.BlockSpec((K, N), lambda i: (0, 0)),
                  pl.BlockSpec((1, N), lambda i: (0, 0))],
        out_specs=pl.BlockSpec((bm, N), lambda i: (i, 0)),
        out_shape=jax.ShapeDtypeStruct((M, N), jnp.float32),
        compiler_params=pltpu.CompilerParams(
            dimension_semantics=("parallel",)),
    )(x, w, b2)


def _fused_cell_kernel(h3_ref, gx_ref, gy_ref, xio_ref, hprev_ref, uprev_ref,
                       wio_ref, wenc_ref, wh_ref, a_ref, b_ref, wd_ref, bd_ref,
                       h_ref, u_ref, kx_ref, ky_ref, d_ref,
                       *, K, B, inv_temp, fast_cols):
    """SpatialSoftmax + dual-arm MTRNN cell + per-modality decoder heads."""
    h3 = h3_ref[...]                                  # (2B, HW, 2K) NHWC-flat
    gx = gx_ref[...]                                  # (1, HW, K)
    gy = gy_ref[...]

    # --- SpatialSoftmax on pos-branch channels: softmax over the HW axis ---
    l = h3[:, :, K:] * inv_temp
    m = jnp.max(l, axis=1, keepdims=True)             # (2B, 1, K)
    e = jnp.exp(l - m)                                 # (2B, HW, K)
    inv_den = pl.reciprocal(jnp.sum(e, axis=1), approx=True)   # (2B, K)
    kx = jnp.sum(e * gx, axis=1) * inv_den             # (2B, K)  x keypoints
    ky = jnp.sum(e * gy, axis=1) * inv_den             # (2B, K)  y keypoints
    kx_ref[...] = kx
    ky_ref[...] = ky

    # --- fused both-arm + union MTRNN cell (use_bias=False everywhere) ---
    # 6 tiny MXU matmuls instead of one concat+matmul: avoids in-kernel
    # concatenation / unaligned slicing; compute cost is negligible.
    z = jnp.dot(xio_ref[...], wio_ref[...], preferred_element_type=jnp.float32)
    z += jnp.dot(kx[:B], wenc_ref[0], preferred_element_type=jnp.float32)   # left x
    z += jnp.dot(ky[:B], wenc_ref[1], preferred_element_type=jnp.float32)   # left y
    z += jnp.dot(kx[B:], wenc_ref[2], preferred_element_type=jnp.float32)   # right x
    z += jnp.dot(ky[B:], wenc_ref[3], preferred_element_type=jnp.float32)   # right y
    z += jnp.dot(hprev_ref[...], wh_ref[...], preferred_element_type=jnp.float32)
    u = a_ref[...] * uprev_ref[...] + b_ref[...] * z
    h = _lrelu(u)
    u_ref[...] = u
    h_ref[...] = h

    # --- fused per-modality output decoders (Linear + LeakyReLU) ---
    d = jnp.dot(h[:, :fast_cols], wd_ref[...], preferred_element_type=jnp.float32)
    d_ref[...] = _lrelu(d + bd_ref[...])


def _issm_kernel(h3_ref, kx_ref, ky_ref, gx_ref, gy_ref, o_ref, *, K, inv_hm):
    """hid = exp(-||grid - keypoint||^2 / hm) * im_hid   (im branch of h3)."""
    im = h3_ref[...][:, :, :K]                         # (2B, HW, K)
    d2 = (gx_ref[...] - kx_ref[...]) ** 2 + (gy_ref[...] - ky_ref[...]) ** 2
    o_ref[...] = jnp.exp(-d2 * inv_hm) * im


# ----------------------------- conv glue (NHWC im2col) -----------------------------

def _im2col_nhwc(x, k=3):
    """x: (B, H, W, C) -> patches (B*Ho*Wo, 9*C), tap-major / C-minor rows."""
    B, H, W, C = x.shape
    Ho, Wo = H - k + 1, W - k + 1
    cols = [x[:, dy:dy + Ho, dx:dx + Wo, :] for dy in range(k) for dx in range(k)]
    p = jnp.concatenate(cols, axis=-1)                 # (B, Ho, Wo, 9*C)
    return p.reshape(B * Ho * Wo, k * k * C), (B, Ho, Wo)


def conv3x3_lrelu(x_nhwc, w_packed, b):
    """valid 3x3 conv + LeakyReLU; w_packed: (9*Cin, Cout), tap-major rows."""
    patches, (B, Ho, Wo) = _im2col_nhwc(x_nhwc, 3)
    y = matmul_bias_lrelu(patches, w_packed, b)
    return y.reshape(B, Ho, Wo, -1)


def deconv3x3_lrelu(x_nhwc, w_packed, b):
    """ConvTranspose2d(k=3, s=1, p=0) + LeakyReLU via pad-2 + flipped conv."""
    xp = jnp.pad(x_nhwc, ((0, 0), (2, 2), (2, 2), (0, 0)))
    return conv3x3_lrelu(xp, w_packed, b)


# ----------------------------- forward pass -----------------------------

def mtrnn_forward(cfg, params, xi, xpos, xf, xprox, state=None):
    F, S, U, K = cfg['fast_dim'], cfg['slow_dim'], cfg['union_dim'], cfg['k_dim']
    pd, fd, xd = cfg['pose_dim'], cfg['force_dim'], cfg['prox_dim']
    Hs, Ws = cfg['sub_im_size']
    HW = Hs * Ws
    B = xi.shape[1]
    B2 = 2 * B
    n_ctx = 8 * F + 2 * S + U
    dw = pd + 2 * K + fd + xd

    # ---- fused dual-arm, dual-branch image encoder (NHWC, 3 pallas_calls) ----
    x_all = jnp.concatenate([xi[0], xi[1]], axis=0).transpose(0, 2, 3, 1)
    x_all = x_all.astype(jnp.float32)                                    # (2B,H,W,3)
    h = conv3x3_lrelu(x_all, params['enc1_W'], params['enc1_b'])         # (2B,.,.,32)
    h = conv3x3_lrelu(h, params['enc2_W'], params['enc2_b'])             # (2B,.,.,64)
    h = conv3x3_lrelu(h, params['enc3_W'], params['enc3_b'])             # (2B,Hs,Ws,2K)
    h3_flat = h.reshape(B2, HW, 2 * K)   # [..., :K] = im branch, [..., K:] = pos logits

    # ---- pack previous state (column layout == kernel output layout) ----
    if state is None or any(s is None for s in state):
        h_prev = jnp.zeros((B, n_ctx), jnp.float32)
        u_prev = jnp.zeros((B, n_ctx), jnp.float32)
    else:
        L, R, un = state
        h_prev = jnp.concatenate([L[0], L[1], L[2], L[3], R[0], R[1], R[2], R[3],
                                  L[4], R[4], un[0]], axis=1)
        u_prev = jnp.concatenate([L[5], L[6], L[7], L[8], R[5], R[6], R[7], R[8],
                                  L[9], R[9], un[1]], axis=1)

    x_io = jnp.concatenate([xpos[0], xf[0], xprox[0],
                            xpos[1], xf[1], xprox[1]], axis=1).astype(jnp.float32)

    # ---- fused SpatialSoftmax + MTRNN cell + decoder heads (1 pallas_call) ----
    n_dec = 2 * dw + 4 * K
    h_new, u_new, kx_e, ky_e, dec = pl.pallas_call(
        functools.partial(_fused_cell_kernel, K=K, B=B,
                          inv_temp=1.0 / cfg['temperature'], fast_cols=8 * F),
        out_shape=(jax.ShapeDtypeStruct((B, n_ctx), jnp.float32),
                   jax.ShapeDtypeStruct((B, n_ctx), jnp.float32),
                   jax.ShapeDtypeStruct((B2, K), jnp.float32),
                   jax.ShapeDtypeStruct((B2, K), jnp.float32),
                   jax.ShapeDtypeStruct((B, n_dec), jnp.float32)),
        in_specs=_vmem(13),
        out_specs=tuple(_vmem(5)),
    )(h3_flat, params['grid_x'], params['grid_y'], x_io, h_prev, u_prev,
      params['cell_W_io'], params['cell_W_enc'], params['cell_W_h'],
      params['cell_alpha'], params['cell_beta'],
      params['dec_head_W'], params['dec_head_b'])

    enc_pts_all = jnp.stack([kx_e, ky_e], axis=-1).reshape(B2, 2 * K)
    left_enc_pts, right_enc_pts = enc_pts_all[:B], enc_pts_all[B:]

    def side_hid(fast_off, slow_off):
        parts = [h_new[:, fast_off + i * F:fast_off + (i + 1) * F] for i in range(4)]
        parts.append(h_new[:, slow_off:slow_off + S])
        parts += [u_new[:, fast_off + i * F:fast_off + (i + 1) * F] for i in range(4)]
        parts.append(u_new[:, slow_off:slow_off + S])
        return parts

    left_hid = side_hid(0, 8 * F)
    right_hid = side_hid(4 * F, 8 * F + S)
    new_state = [left_hid, right_hid,
                 [h_new[:, 8 * F + 2 * S:], u_new[:, 8 * F + 2 * S:]]]

    def split_dec(base):
        o1, o2, o3 = base + pd, base + pd + 2 * K, base + pd + 2 * K + fd
        return dec[:, base:o1], dec[:, o1:o2], dec[:, o2:o3], dec[:, o3:base + dw]

    y_left_pose, left_dec_pts, y_left_force, y_left_prox = split_dec(0)
    y_right_pose, right_dec_pts, y_right_force, y_right_prox = split_dec(dw)

    # ---- fused dual-arm image decoder: ISSM + 3 deconvs (4 pallas_calls) ----
    cx = 2 * dw   # de-interleaved keypoint columns: [Lx(K) Ly(K) Rx(K) Ry(K)]
    kx_d = jnp.concatenate([dec[:, cx:cx + K],
                            dec[:, cx + 2 * K:cx + 3 * K]], axis=0)[:, None, :]
    ky_d = jnp.concatenate([dec[:, cx + K:cx + 2 * K],
                            dec[:, cx + 3 * K:cx + 4 * K]], axis=0)[:, None, :]
    hid = pl.pallas_call(
        functools.partial(_issm_kernel, K=K, inv_hm=1.0 / cfg['heatmap_size']),
        out_shape=jax.ShapeDtypeStruct((B2, HW, K), jnp.float32),
        in_specs=_vmem(5),
        out_specs=pl.BlockSpec(memory_space=pltpu.MemorySpace.VMEM),
    )(h3_flat, kx_d, ky_d, params['grid_x'], params['grid_y'])

    hid = hid.reshape(B2, Hs, Ws, K)
    y = deconv3x3_lrelu(hid, params['dec1_W'], params['dec1_b'])
    y = deconv3x3_lrelu(y, params['dec2_W'], params['dec2_b'])
    y = deconv3x3_lrelu(y, params['dec3_W'], params['dec3_b'])             # (2B,H,W,3)
    y = y.transpose(0, 3, 1, 2)                                            # NCHW
    y_left_image, y_right_image = y[:B], y[B:]

    return ([y_left_image, y_right_image],
            [y_left_pose, y_right_pose],
            [y_left_force, y_right_force],
            [y_left_prox, y_right_prox],
            [left_enc_pts, right_enc_pts],
            [left_dec_pts, right_dec_pts],
            new_state)


# ----------------------------- parameters (pre-packed) -----------------------------

def init_params(key, cfg):
    F, S, U, K = cfg['fast_dim'], cfg['slow_dim'], cfg['union_dim'], cfg['k_dim']
    pd, fd, xd = cfg['pose_dim'], cfg['force_dim'], cfg['prox_dim']
    Hs, Ws = cfg['sub_im_size']
    keys = iter(jax.random.split(key, 128))

    def uni(shape, fan_in):
        bnd = 1.0 / (fan_in ** 0.5)
        return jax.random.uniform(next(keys), shape, jnp.float32, -bnd, bnd)

    def pack_conv(w):           # torch (Cout, Cin, 3, 3) -> (9*Cin, Cout), tap-major
        Cout, Cin = w.shape[0], w.shape[1]
        return w.transpose(2, 3, 1, 0).reshape(9 * Cin, Cout)

    def pack_deconv(wt):        # torch ConvTranspose (Cin, Cout, 3, 3) -> flipped conv
        Cin, Cout = wt.shape[0], wt.shape[1]
        return jnp.flip(wt, axis=(2, 3)).transpose(2, 3, 0, 1).reshape(9 * Cin, Cout)

    def pack_branch_pair(wa, wb):   # per-tap block-diagonal packing of two branches
        Ca, Na = wa.shape[0] // 9, wa.shape[1]
        Cb, Nb = wb.shape[0] // 9, wb.shape[1]
        Wm = jnp.zeros((9 * (Ca + Cb), Na + Nb), jnp.float32)
        for t in range(9):
            r = t * (Ca + Cb)
            Wm = Wm.at[r:r + Ca, :Na].set(wa[t * Ca:(t + 1) * Ca])
            Wm = Wm.at[r + Ca:r + Ca + Cb, Na:].set(wb[t * Cb:(t + 1) * Cb])
        return Wm

    p = {}

    # --- encoder convs (im + pos branches, both arms share weights) ---
    conv = {}
    for name in ('im', 'pos'):
        conv[f'{name}1_w'] = uni((16, 3, 3, 3), 3 * 9)
        conv[f'{name}1_b'] = uni((16,), 3 * 9)
        conv[f'{name}2_w'] = uni((32, 16, 3, 3), 16 * 9)
        conv[f'{name}2_b'] = uni((32,), 16 * 9)
        conv[f'{name}3_w'] = uni((K, 32, 3, 3), 32 * 9)
        conv[f'{name}3_b'] = uni((K,), 32 * 9)
    p['enc1_W'] = jnp.concatenate([pack_conv(conv['im1_w']),
                                   pack_conv(conv['pos1_w'])], axis=1)
    p['enc1_b'] = jnp.concatenate([conv['im1_b'], conv['pos1_b']])
    p['enc2_W'] = pack_branch_pair(pack_conv(conv['im2_w']), pack_conv(conv['pos2_w']))
    p['enc2_b'] = jnp.concatenate([conv['im2_b'], conv['pos2_b']])
    p['enc3_W'] = pack_branch_pair(pack_conv(conv['im3_w']), pack_conv(conv['pos3_w']))
    p['enc3_b'] = jnp.concatenate([conv['im3_b'], conv['pos3_b']])

    # --- image decoder (shared by both arms) ---
    p['dec1_W'] = pack_deconv(uni((K, 32, 3, 3), K * 9))
    p['dec1_b'] = uni((32,), K * 9)
    p['dec2_W'] = pack_deconv(uni((32, 16, 3, 3), 32 * 9))
    p['dec2_b'] = uni((16,), 32 * 9)
    p['dec3_W'] = pack_deconv(uni((16, 3, 3, 3), 16 * 9))
    p['dec3_b'] = uni((3,), 16 * 9)

    # --- MTRNN cell packed as dense blocks (use_bias=False everywhere) ---
    in_dims = {'pose': pd, 'enc': 2 * K, 'force': fd, 'prox': xd}
    mods = ('pose', 'enc', 'force', 'prox')
    raw = {}
    for side in ('left', 'right'):
        for m in mods:
            raw[f'{side}_{m}_i2f'] = uni((F, in_dims[m]), in_dims[m])
            raw[f'{side}_{m}_f2f'] = uni((F, F), F)
            raw[f'{side}_{m}_s2f'] = uni((F, S), S)
            raw[f'{side}_{m}_f2s'] = uni((S, F), F)
        raw[f'{side}_s2s'] = uni((S, S), S)
        raw[f'{side}_s2u'] = uni((U, S), S)
        raw[f'{side}_u2s'] = uni((S, U), U)
    raw['u2u'] = uni((U, U), U)

    n_ctx = 8 * F + 2 * S + U
    # u/h column layout (also W_h's row layout, so prev h needs no repacking):
    # [Lpose Lenc Lforce Lprox Rpose Renc Rforce Rprox](F each) [Lslow Rslow](S) [union](U)
    col_f = {'left': {}, 'right': {}}
    c = 0
    for side in ('left', 'right'):
        for m in mods:
            col_f[side][m] = c
            c += F
    col_slow = {'left': c, 'right': c + S}
    col_un = c + 2 * S

    d_io = 2 * (pd + fd + xd)
    base_r = pd + fd + xd
    row_io = {'left': {'pose': 0, 'force': pd, 'prox': pd + fd},
              'right': {'pose': base_r, 'force': base_r + pd, 'prox': base_r + pd + fd}}

    W_io = jnp.zeros((d_io, n_ctx), jnp.float32)
    W_enc = jnp.zeros((4, K, n_ctx), jnp.float32)   # blocks: [Lx, Ly, Rx, Ry]
    W_h = jnp.zeros((n_ctx, n_ctx), jnp.float32)
    enc_blk = {'left': (0, 1), 'right': (2, 3)}
    for side in ('left', 'right'):
        cs = col_slow[side]
        for m in mods:
            cf = col_f[side][m]
            rh = col_f[side][m]
            i2f = raw[f'{side}_{m}_i2f']
            if m == 'enc':
                bx, by = enc_blk[side]
                W_enc = W_enc.at[bx, :, cf:cf + F].set(i2f[:, 0::2].T)   # x coords
                W_enc = W_enc.at[by, :, cf:cf + F].set(i2f[:, 1::2].T)   # y coords
            else:
                r0 = row_io[side][m]
                W_io = W_io.at[r0:r0 + in_dims[m], cf:cf + F].set(i2f.T)
            W_h = W_h.at[rh:rh + F, cf:cf + F].set(raw[f'{side}_{m}_f2f'].T)
            W_h = W_h.at[cs:cs + S, cf:cf + F].set(raw[f'{side}_{m}_s2f'].T)
            W_h = W_h.at[rh:rh + F, cs:cs + S].set(raw[f'{side}_{m}_f2s'].T)
        W_h = W_h.at[cs:cs + S, cs:cs + S].set(raw[f'{side}_s2s'].T)
        W_h = W_h.at[col_un:col_un + U, cs:cs + S].set(raw[f'{side}_u2s'].T)
        W_h = W_h.at[cs:cs + S, col_un:col_un + U].set(raw[f'{side}_s2u'].T)
    W_h = W_h.at[col_un:col_un + U, col_un:col_un + U].set(raw['u2u'].T)
    p['cell_W_io'] = W_io
    p['cell_W_enc'] = W_enc
    p['cell_W_h'] = W_h

    ft, st, ut = cfg['fast_tau'], cfg['slow_tau'], cfg['union_tau']
    alpha = jnp.concatenate([jnp.full((8 * F,), 1.0 - 1.0 / ft),
                             jnp.full((2 * S,), 1.0 - 1.0 / st),
                             jnp.full((U,), 1.0 - 1.0 / ut)])
    # reference code uses 1/slow_tau as the union mixing gain — reproduced
    beta = jnp.concatenate([jnp.full((8 * F,), 1.0 / ft),
                            jnp.full((2 * S,), 1.0 / st),
                            jnp.full((U,), 1.0 / st)])
    p['cell_alpha'] = alpha.reshape(1, -1).astype(jnp.float32)
    p['cell_beta'] = beta.reshape(1, -1).astype(jnp.float32)

    # --- fused per-modality decoders (Linear + LeakyReLU, bias=True).
    # Columns: [left pose|pts|force|prox][right ...] plus duplicate
    # de-interleaved point columns [Lx Ly Rx Ry] for the in-kernel ISSM feed.
    dw = pd + 2 * K + fd + xd
    out_dim = {'pose': pd, 'point': 2 * K, 'force': fd, 'prox': xd}
    row_map = {'left': {'pose': 0, 'point': F, 'force': 2 * F, 'prox': 3 * F},
               'right': {'pose': 4 * F, 'point': 5 * F, 'force': 6 * F, 'prox': 7 * F}}
    Wd = jnp.zeros((8 * F, 2 * dw + 4 * K), jnp.float32)
    bd_parts, pt_w, pt_b = [], {}, {}
    col = 0
    for side in ('left', 'right'):
        for name in ('pose', 'point', 'force', 'prox'):
            od = out_dim[name]
            w = uni((od, F), F)
            b = uni((od,), F)
            r = row_map[side][name]
            Wd = Wd.at[r:r + F, col:col + od].set(w.T)
            bd_parts.append(b)
            if name == 'point':
                pt_w[side], pt_b[side] = w, b
            col += od
    for side in ('left', 'right'):
        r = row_map[side]['point']
        Wd = Wd.at[r:r + F, col:col + K].set(pt_w[side].T[:, 0::2])
        bd_parts.append(pt_b[side][0::2])
        col += K
        Wd = Wd.at[r:r + F, col:col + K].set(pt_w[side].T[:, 1::2])
        bd_parts.append(pt_b[side][1::2])
        col += K
    p['dec_head_W'] = Wd
    p['dec_head_b'] = jnp.concatenate(bd_parts).reshape(1, -1).astype(jnp.float32)

    # --- normalized [-1, 1] coordinate grids (SpatialSoftmax + ISSM) ---
    ys = jnp.linspace(-1.0, 1.0, Hs)
    xs = jnp.linspace(-1.0, 1.0, Ws)
    gy, gx = jnp.meshgrid(ys, xs, indexing='ij')
    p['grid_x'] = jnp.broadcast_to(gx.reshape(1, Hs * Ws, 1),
                                   (1, Hs * Ws, K)).astype(jnp.float32)
    p['grid_y'] = jnp.broadcast_to(gy.reshape(1, Hs * Ws, 1),
                                   (1, Hs * Ws, K)).astype(jnp.float32)
    return p


# ----------------------------- main -----------------------------

if __name__ == "__main__":
    im_size = (16, 16)
    kernel_size = 3
    cfg = dict(fast_dim=20, slow_dim=5, union_dim=4,
               fast_tau=3.0, slow_tau=6.0, union_tau=12.0,
               k_dim=5, pose_dim=3, force_dim=1, prox_dim=1,
               temperature=1e-4, heatmap_size=0.1,
               sub_im_size=(im_size[0] - 3 * (kernel_size - 1),
                            im_size[1] - 3 * (kernel_size - 1)))

    root = jax.random.PRNGKey(0)
    kp, k1, k2, k3, k4 = jax.random.split(root, 5)
    params = init_params(kp, cfg)

    B = 2
    xi = jax.random.uniform(k1, (2, B, 3, im_size[0], im_size[1]), jnp.float32)
    xpos = jax.random.uniform(k2, (2, B, cfg['pose_dim']), jnp.float32)
    xf = jax.random.uniform(k3, (2, B, cfg['force_dim']), jnp.float32)
    xprox = jax.random.uniform(k4, (2, B, cfg['prox_dim']), jnp.float32)

    fwd = jax.jit(functools.partial(mtrnn_forward, cfg))
    out = fwd(params, xi, xpos, xf, xprox)
    jax.block_until_ready(out)

    y_images, y_poses, y_forces, y_proxs, enc_pts, dec_pts, state = out
    assert y_images[0].shape == (B, 3, im_size[0], im_size[1])
    assert y_images[1].shape == (B, 3, im_size[0], im_size[1])
    assert y_poses[0].shape == (B, cfg['pose_dim'])
    assert y_forces[1].shape == (B, cfg['force_dim'])
    assert y_proxs[0].shape == (B, cfg['prox_dim'])
    assert enc_pts[0].shape == (B, cfg['k_dim'] * 2)
    assert dec_pts[1].shape == (B, cfg['k_dim'] * 2)
    assert len(state[0]) == 10 and len(state[1]) == 10 and len(state[2]) == 2

    # exercise the recurrent path with the returned state (second timestep)
    out2 = fwd(params, xi, xpos, xf, xprox, state)
    jax.block_until_ready(out2)
    assert out2[0][0].shape == (B, 3, im_size[0], im_size[1])

    print("KERNEL_OK")
</pallas_src>

<mosaic_0001>
module attributes {stable_mosaic.version = 11 : i64} {
  func.func @_matmul_bias_lrelu_kernel(%arg0: memref<784x27xf32, #tpu.memory_space<vmem>>, %arg1: memref<27x32xf32, #tpu.memory_space<vmem>>, %arg2: memref<1x32xf32, #tpu.memory_space<vmem>>, %arg3: memref<784x32xf32, #tpu.memory_space<vmem>>) attributes {dimension_semantics = [], scalar_prefetch = 0 : i64, scratch_operands = 0 : i64, tpu.core_type = #tpu.core_type<tc>} {
    %c0 = arith.constant 0 : index
    %c0_0 = arith.constant 0 : index
    %0 = vector.load %arg0[%c0, %c0_0] : memref<784x27xf32, #tpu.memory_space<vmem>>, vector<784x27xf32>
    %c0_1 = arith.constant 0 : index
    %c0_2 = arith.constant 0 : index
    %1 = vector.load %arg1[%c0_1, %c0_2] : memref<27x32xf32, #tpu.memory_space<vmem>>, vector<27x32xf32>
    %cst = arith.constant dense<0.000000e+00> : vector<784x32xf32>
    %2 = tpu.matmul %0, %1, %cst {dimension_numbers = #tpu.dot_dimension_numbers<[1], [0], [0], [1], [0, 0, 1, 1], [], []>} : vector<784x27xf32>, vector<27x32xf32>, vector<784x32xf32> -> vector<784x32xf32>
    %c0_3 = arith.constant 0 : index
    %c0_4 = arith.constant 0 : index
    %3 = vector.load %arg2[%c0_3, %c0_4] : memref<1x32xf32, #tpu.memory_space<vmem>>, vector<1x32xf32>
    %4 = vector.broadcast %3 : vector<1x32xf32> to vector<784x32xf32>
    %5 = arith.addf %2, %4 : vector<784x32xf32>
    %cst_5 = arith.constant 0.000000e+00 : f32
    %6 = vector.broadcast %cst_5 : f32 to vector<784x32xf32>
    %7 = arith.cmpf oge, %5, %6 : vector<784x32xf32>
    %cst_6 = arith.constant 0.00999999977 : f32
    %8 = vector.broadcast %cst_6 : f32 to vector<784x32xf32>
    %9 = arith.mulf %8, %5 : vector<784x32xf32>
    %10 = arith.select %7, %5, %9 : vector<784x32xi1>, vector<784x32xf32>
    %c0_7 = arith.constant 0 : index
    %c0_8 = arith.constant 0 : index
    %11 = vector.load %arg3[%c0_7, %c0_8] : memref<784x32xf32, #tpu.memory_space<vmem>>, vector<784x32xf32>
    tpu.vector_store %arg3[%c0_7, %c0_8], %10 {strides = array<i32>} : memref<784x32xf32, #tpu.memory_space<vmem>>, vector<784x32xf32>,
    return
  }
}

module attributes {stable_mosaic.version = 11 : i64} {
  func.func @_matmul_bias_lrelu_kernel(%arg0: memref<576x288xf32, #tpu.memory_space<vmem>>, %arg1: memref<288x64xf32, #tpu.memory_space<vmem>>, %arg2: memref<1x64xf32, #tpu.memory_space<vmem>>, %arg3: memref<576x64xf32, #tpu.memory_space<vmem>>) attributes {dimension_semantics = [], scalar_prefetch = 0 : i64, scratch_operands = 0 : i64, tpu.core_type = #tpu.core_type<tc>} {
    %c0 = arith.constant 0 : index
    %c0_0 = arith.constant 0 : index
    %0 = vector.load %arg0[%c0, %c0_0] : memref<576x288xf32, #tpu.memory_space<vmem>>, vector<576x288xf32>
    %c0_1 = arith.constant 0 : index
    %c0_2 = arith.constant 0 : index
    %1 = vector.load %arg1[%c0_1, %c0_2] : memref<288x64xf32, #tpu.memory_space<vmem>>, vector<288x64xf32>
    %cst = arith.constant dense<0.000000e+00> : vector<576x64xf32>
    %2 = tpu.matmul %0, %1, %cst {dimension_numbers = #tpu.dot_dimension_numbers<[1], [0], [0], [1], [0, 0, 1, 1], [], []>} : vector<576x288xf32>, vector<288x64xf32>, vector<576x64xf32> -> vector<576x64xf32>
    %c0_3 = arith.constant 0 : index
    %c0_4 = arith.constant 0 : index
    %3 = vector.load %arg2[%c0_3, %c0_4] : memref<1x64xf32, #tpu.memory_space<vmem>>, vector<1x64xf32>
    %4 = vector.broadcast %3 : vector<1x64xf32> to vector<576x64xf32>
    %5 = arith.addf %2, %4 : vector<576x64xf32>
    %cst_5 = arith.constant 0.000000e+00 : f32
    %6 = vector.broadcast %cst_5 : f32 to vector<576x64xf32>
    %7 = arith.cmpf oge, %5, %6 : vector<576x64xf32>
    %cst_6 = arith.constant 0.00999999977 : f32
    %8 = vector.broadcast %cst_6 : f32 to vector<576x64xf32>
    %9 = arith.mulf %8, %5 : vector<576x64xf32>
    %10 = arith.select %7, %5, %9 : vector<576x64xi1>, vector<576x64xf32>
    %c0_7 = arith.constant 0 : index
    %c0_8 = arith.constant 0 : index
    %11 = vector.load %arg3[%c0_7, %c0_8] : memref<576x64xf32, #tpu.memory_space<vmem>>, vector<576x64xf32>
    tpu.vector_store %arg3[%c0_7, %c0_8], %10 {strides = array<i32>} : memref<576x64xf32, #tpu.memory_space<vmem>>, vector<576x64xf32>,
    return
  }
}

module attributes {stable_mosaic.version = 11 : i64} {
  func.func @_matmul_bias_lrelu_kernel(%arg0: memref<400x576xf32, #tpu.memory_space<vmem>>, %arg1: memref<576x10xf32, #tpu.memory_space<vmem>>, %arg2: memref<1x10xf32, #tpu.memory_space<vmem>>, %arg3: memref<400x10xf32, #tpu.memory_space<vmem>>) attributes {dimension_semantics = [], scalar_prefetch = 0 : i64, scratch_operands = 0 : i64, tpu.core_type = #tpu.core_type<tc>} {
    %c0 = arith.constant 0 : index
    %c0_0 = arith.constant 0 : index
    %0 = vector.load %arg0[%c0, %c0_0] : memref<400x576xf32, #tpu.memory_space<vmem>>, vector<400x576xf32>
    %c0_1 = arith.constant 0 : index
    %c0_2 = arith.constant 0 : index
    %1 = vector.load %arg1[%c0_1, %c0_2] : memref<576x10xf32, #tpu.memory_space<vmem>>, vector<576x10xf32>
    %cst = arith.constant dense<0.000000e+00> : vector<400x10xf32>
    %2 = tpu.matmul %0, %1, %cst {dimension_numbers = #tpu.dot_dimension_numbers<[1], [0], [0], [1], [0, 0, 1, 1], [], []>} : vector<400x576xf32>, vector<576x10xf32>, vector<400x10xf32> -> vector<400x10xf32>
    %c0_3 = arith.constant 0 : index
    %c0_4 = arith.constant 0 : index
    %3 = vector.load %arg2[%c0_3, %c0_4] : memref<1x10xf32, #tpu.memory_space<vmem>>, vector<1x10xf32>
    %4 = vector.broadcast %3 : vector<1x10xf32> to vector<400x10xf32>
    %5 = arith.addf %2, %4 : vector<400x10xf32>
    %cst_5 = arith.constant 0.000000e+00 : f32
    %6 = vector.broadcast %cst_5 : f32 to vector<400x10xf32>
    %7 = arith.cmpf oge, %5, %6 : vector<400x10xf32>
    %cst_6 = arith.constant 0.00999999977 : f32
    %8 = vector.broadcast %cst_6 : f32 to vector<400x10xf32>
    %9 = arith.mulf %8, %5 : vector<400x10xf32>
    %10 = arith.select %7, %5, %9 : vector<400x10xi1>, vector<400x10xf32>
    %c0_7 = arith.constant 0 : index
    %c0_8 = arith.constant 0 : index
    %11 = vector.load %arg3[%c0_7, %c0_8] : memref<400x10xf32, #tpu.memory_space<vmem>>, vector<400x10xf32>
    tpu.vector_store %arg3[%c0_7, %c0_8], %10 {strides = array<i32>} : memref<400x10xf32, #tpu.memory_space<vmem>>, vector<400x10xf32>,
    return
  }
}

module attributes {stable_mosaic.version = 11 : i64} {
  func.func @_fused_cell_kernel(%arg0: memref<4x100x10xf32, #tpu.memory_space<vmem>>, %arg1: memref<1x100x5xf32, #tpu.memory_space<vmem>>, %arg2: memref<1x100x5xf32, #tpu.memory_space<vmem>>, %arg3: memref<2x10xf32, #tpu.memory_space<vmem>>, %arg4: memref<2x174xf32, #tpu.memory_space<vmem>>, %arg5: memref<2x174xf32, #tpu.memory_space<vmem>>, %arg6: memref<10x174xf32, #tpu.memory_space<vmem>>, %arg7: memref<4x5x174xf32, #tpu.memory_space<vmem>>, %arg8: memref<174x174xf32, #tpu.memory_space<vmem>>, %arg9: memref<1x174xf32, #tpu.memory_space<vmem>>, %arg10: memref<1x174xf32, #tpu.memory_space<vmem>>, %arg11: memref<160x50xf32, #tpu.memory_space<vmem>>, %arg12: memref<1x50xf32, #tpu.memory_space<vmem>>, %arg13: memref<2x174xf32, #tpu.memory_space<vmem>>, %arg14: memref<2x174xf32, #tpu.memory_space<vmem>>, %arg15: memref<4x5xf32, #tpu.memory_space<vmem>>, %arg16: memref<4x5xf32, #tpu.memory_space<vmem>>, %arg17: memref<2x50xf32, #tpu.memory_space<vmem>>) attributes {dimension_semantics = [], scalar_prefetch = 0 : i64, scratch_operands = 0 : i64, tpu.core_type = #tpu.core_type<tc>} {
    %c0 = arith.constant 0 : index
    %c0_0 = arith.constant 0 : index
    %c0_1 = arith.constant 0 : index
    %0 = vector.load %arg0[%c0, %c0_0, %c0_1] : memref<4x100x10xf32, #tpu.memory_space<vmem>>, vector<4x100x10xf32>
    %c0_2 = arith.constant 0 : index
    %c0_3 = arith.constant 0 : index
    %c0_4 = arith.constant 0 : index
    %1 = vector.load %arg1[%c0_2, %c0_3, %c0_4] : memref<1x100x5xf32, #tpu.memory_space<vmem>>, vector<1x100x5xf32>
    %c0_5 = arith.constant 0 : index
    %c0_6 = arith.constant 0 : index
    %c0_7 = arith.constant 0 : index
    %2 = vector.load %arg2[%c0_5, %c0_6, %c0_7] : memref<1x100x5xf32, #tpu.memory_space<vmem>>, vector<1x100x5xf32>
    %3 = vector.extract_strided_slice %0 {offsets = [0, 0, 5], sizes = [4, 100, 5], strides = [1, 1, 1]} : vector<4x100x10xf32> to vector<4x100x5xf32>
    %cst = arith.constant 1.000000e+04 : f32
    %4 = vector.broadcast %cst : f32 to vector<4x100x5xf32>
    %5 = arith.mulf %3, %4 : vector<4x100x5xf32>
    %cst_8 = arith.constant dense<0xFF800000> : vector<4x5xf32>
    %6 = vector.multi_reduction <maximumf>, %5, %cst_8 [1] : vector<4x100x5xf32> to vector<4x5xf32>
    %7 = vector.shape_cast %6 : vector<4x5xf32> to vector<4x1x5xf32>
    %8 = vector.broadcast %7 : vector<4x1x5xf32> to vector<4x100x5xf32>
    %9 = arith.subf %5, %8 : vector<4x100x5xf32>
    %10 = math.exp %9 : vector<4x100x5xf32>
    %cst_9 = arith.constant dense<0.000000e+00> : vector<4x5xf32>
    %11 = vector.multi_reduction <add>, %10, %cst_9 [1] : vector<4x100x5xf32> to vector<4x5xf32>
    %12 = tpu.reciprocal %11 {approx = true} : vector<4x5xf32> -> vector<4x5xf32>
    %13 = vector.broadcast %1 : vector<1x100x5xf32> to vector<4x100x5xf32>
    %14 = arith.mulf %10, %13 : vector<4x100x5xf32>
    %cst_10 = arith.constant dense<0.000000e+00> : vector<4x5xf32>
    %15 = vector.multi_reduction <add>, %14, %cst_10 [1] : vector<4x100x5xf32> to vector<4x5xf32>
    %16 = arith.mulf %15, %12 : vector<4x5xf32>
    %17 = vector.broadcast %2 : vector<1x100x5xf32> to vector<4x100x5xf32>
    %18 = arith.mulf %10, %17 : vector<4x100x5xf32>
    %cst_11 = arith.constant dense<0.000000e+00> : vector<4x5xf32>
    %19 = vector.multi_reduction <add>, %18, %cst_11 [1] : vector<4x100x5xf32> to vector<4x5xf32>
    %20 = arith.mulf %19, %12 : vector<4x5xf32>
    %c0_12 = arith.constant 0 : index
    %c0_13 = arith.constant 0 : index
    %21 = vector.load %arg15[%c0_12, %c0_13] : memref<4x5xf32, #tpu.memory_space<vmem>>, vector<4x5xf32>
    tpu.vector_store %arg15[%c0_12, %c0_13], %16 {strides = array<i32>} : memref<4x5xf32, #tpu.memory_space<vmem>>, vector<4x5xf32>,
    %c0_14 = arith.constant 0 : index
    %c0_15 = arith.constant 0 : index
    %22 = vector.load %arg16[%c0_14, %c0_15] : memref<4x5xf32, #tpu.memory_space<vmem>>, vector<4x5xf32>
    tpu.vector_store %arg16[%c0_14, %c0_15], %20 {strides = array<i32>} : memref<4x5xf32, #tpu.memory_space<vmem>>, vector<4x5xf32>,
    %c0_16 = arith.constant 0 : index
    %c0_17 = arith.constant 0 : index
    %23 = vector.load %arg3[%c0_16, %c0_17] : memref<2x10xf32, #tpu.memory_space<vmem>>, vector<2x10xf32>
    %c0_18 = arith.constant 0 : index
    %c0_19 = arith.constant 0 : index
    %24 = vector.load %arg6[%c0_18, %c0_19] : memref<10x174xf32, #tpu.memory_space<vmem>>, vector<10x174xf32>
    %cst_20 = arith.constant dense<0.000000e+00> : vector<2x174xf32>
    %25 = tpu.matmul %23, %24, %cst_20 {dimension_numbers = #tpu.dot_dimension_numbers<[1], [0], [0], [1], [0, 0, 1, 1], [], []>} : vector<2x10xf32>, vector<10x174xf32>, vector<2x174xf32> -> vector<2x174xf32>
    %26 = vector.extract_strided_slice %16 {offsets = [0, 0], sizes = [2, 5], strides = [1, 1]} : vector<4x5xf32> to vector<2x5xf32>
    %c0_21 = arith.constant 0 : index
    %c0_22 = arith.constant 0 : index
    %c0_23 = arith.constant 0 : index
    %27 = vector.load %arg7[%c0_21, %c0_22, %c0_23] : memref<4x5x174xf32, #tpu.memory_space<vmem>>, vector<1x5x174xf32>
    %28 = vector.shape_cast %27 : vector<1x5x174xf32> to vector<5x174xf32>
    %cst_24 = arith.constant dense<0.000000e+00> : vector<2x174xf32>
    %29 = tpu.matmul %26, %28, %cst_24 {dimension_numbers = #tpu.dot_dimension_numbers<[1], [0], [0], [1], [0, 0, 1, 1], [], []>} : vector<2x5xf32>, vector<5x174xf32>, vector<2x174xf32> -> vector<2x174xf32>
    %30 = arith.addf %25, %29 : vector<2x174xf32>
    %31 = vector.extract_strided_slice %20 {offsets = [0, 0], sizes = [2, 5], strides = [1, 1]} : vector<4x5xf32> to vector<2x5xf32>
    %c1 = arith.constant 1 : index
    %c0_25 = arith.constant 0 : index
    %c0_26 = arith.constant 0 : index
    %32 = vector.load %arg7[%c1, %c0_25, %c0_26] : memref<4x5x174xf32, #tpu.memory_space<vmem>>, vector<1x5x174xf32>
    %33 = vector.shape_cast %32 : vector<1x5x174xf32> to vector<5x174xf32>
    %cst_27 = arith.constant dense<0.000000e+00> : vector<2x174xf32>
    %34 = tpu.matmul %31, %33, %cst_27 {dimension_numbers = #tpu.dot_dimension_numbers<[1], [0], [0], [1], [0, 0, 1, 1], [], []>} : vector<2x5xf32>, vector<5x174xf32>, vector<2x174xf32> -> vector<2x174xf32>
    %35 = arith.addf %30, %34 : vector<2x174xf32>
    %36 = vector.extract_strided_slice %16 {offsets = [2, 0], sizes = [2, 5], strides = [1, 1]} : vector<4x5xf32> to vector<2x5xf32>
    %c2 = arith.constant 2 : index
    %c0_28 = arith.constant 0 : index
    %c0_29 = arith.constant 0 : index
    %37 = vector.load %arg7[%c2, %c0_28, %c0_29] : memref<4x5x174xf32, #tpu.memory_space<vmem>>, vector<1x5x174xf32>
    %38 = vector.shape_cast %37 : vector<1x5x174xf32> to vector<5x174xf32>
    %cst_30 = arith.constant dense<0.000000e+00> : vector<2x174xf32>
    %39 = tpu.matmul %36, %38, %cst_30 {dimension_numbers = #tpu.dot_dimension_numbers<[1], [0], [0], [1], [0, 0, 1, 1], [], []>} : vector<2x5xf32>, vector<5x174xf32>, vector<2x174xf32> -> vector<2x174xf32>
    %40 = arith.addf %35, %39 : vector<2x174xf32>
    %41 = vector.extract_strided_slice %20 {offsets = [2, 0], sizes = [2, 5], strides = [1, 1]} : vector<4x5xf32> to vector<2x5xf32>
    %c3 = arith.constant 3 : index
    %c0_31 = arith.constant 0 : index
    %c0_32 = arith.constant 0 : index
    %42 = vector.load %arg7[%c3, %c0_31, %c0_32] : memref<4x5x174xf32, #tpu.memory_space<vmem>>, vector<1x5x174xf32>
    %43 = vector.shape_cast %42 : vector<1x5x174xf32> to vector<5x174xf32>
    %cst_33 = arith.constant dense<0.000000e+00> : vector<2x174xf32>
    %44 = tpu.matmul %41, %43, %cst_33 {dimension_numbers = #tpu.dot_dimension_numbers<[1], [0], [0], [1], [0, 0, 1, 1], [], []>} : vector<2x5xf32>, vector<5x174xf32>, vector<2x174xf32> -> vector<2x174xf32>
    %45 = arith.addf %40, %44 : vector<2x174xf32>
    %c0_34 = arith.constant 0 : index
    %c0_35 = arith.constant 0 : index
    %46 = vector.load %arg4[%c0_34, %c0_35] : memref<2x174xf32, #tpu.memory_space<vmem>>, vector<2x174xf32>
    %c0_36 = arith.constant 0 : index
    %c0_37 = arith.constant 0 : index
    %47 = vector.load %arg8[%c0_36, %c0_37] : memref<174x174xf32, #tpu.memory_space<vmem>>, vector<174x174xf32>
    %cst_38 = arith.constant dense<0.000000e+00> : vector<2x174xf32>
    %48 = tpu.matmul %46, %47, %cst_38 {dimension_numbers = #tpu.dot_dimension_numbers<[1], [0], [0], [1], [0, 0, 1, 1], [], []>} : vector<2x174xf32>, vector<174x174xf32>, vector<2x174xf32> -> vector<2x174xf32>
    %49 = arith.addf %45, %48 : vector<2x174xf32>
    %c0_39 = arith.constant 0 : index
    %c0_40 = arith.constant 0 : index
    %50 = vector.load %arg9[%c0_39, %c0_40] : memref<1x174xf32, #tpu.memory_space<vmem>>, vector<1x174xf32>
    %c0_41 = arith.constant 0 : index
    %c0_42 = arith.constant 0 : index
    %51 = vector.load %arg5[%c0_41, %c0_42] : memref<2x174xf32, #tpu.memory_space<vmem>>, vector<2x174xf32>
    %52 = vector.broadcast %50 : vector<1x174xf32> to vector<2x174xf32>
    %53 = arith.mulf %52, %51 : vector<2x174xf32>
    %c0_43 = arith.constant 0 : index
    %c0_44 = arith.constant 0 : index
    %54 = vector.load %arg10[%c0_43, %c0_44] : memref<1x174xf32, #tpu.memory_space<vmem>>, vector<1x174xf32>
    %55 = vector.broadcast %54 : vector<1x174xf32> to vector<2x174xf32>
    %56 = arith.mulf %55, %49 : vector<2x174xf32>
    %57 = arith.addf %53, %56 : vector<2x174xf32>
    %cst_45 = arith.constant 0.000000e+00 : f32
    %58 = vector.broadcast %cst_45 : f32 to vector<2x174xf32>
    %59 = arith.cmpf oge, %57, %58 : vector<2x174xf32>
    %cst_46 = arith.constant 0.00999999977 : f32
    %60 = vector.broadcast %cst_46 : f32 to vector<2x174xf32>
    %61 = arith.mulf %60, %57 : vector<2x174xf32>
    %62 = arith.select %59, %57, %61 : vector<2x174xi1>, vector<2x174xf32>
    %c0_47 = arith.constant 0 : index
    %c0_48 = arith.constant 0 : index
    %63 = vector.load %arg14[%c0_47, %c0_48] : memref<2x174xf32, #tpu.memory_space<vmem>>, vector<2x174xf32>
    tpu.vector_store %arg14[%c0_47, %c0_48], %57 {strides = array<i32>} : memref<2x174xf32, #tpu.memory_space<vmem>>, vector<2x174xf32>,
    %c0_49 = arith.constant 0 : index
    %c0_50 = arith.constant 0 : index
    %64 = vector.load %arg13[%c0_49, %c0_50] : memref<2x174xf32, #tpu.memory_space<vmem>>, vector<2x174xf32>
    tpu.vector_store %arg13[%c0_49, %c0_50], %62 {strides = array<i32>} : memref<2x174xf32, #tpu.memory_space<vmem>>, vector<2x174xf32>,
    %65 = vector.extract_strided_slice %62 {offsets = [0, 0], sizes = [2, 160], strides = [1, 1]} : vector<2x174xf32> to vector<2x160xf32>
    %c0_51 = arith.constant 0 : index
    %c0_52 = arith.constant 0 : index
    %66 = vector.load %arg11[%c0_51, %c0_52] : memref<160x50xf32, #tpu.memory_space<vmem>>, vector<160x50xf32>
    %cst_53 = arith.constant dense<0.000000e+00> : vector<2x50xf32>
    %67 = tpu.matmul %65, %66, %cst_53 {dimension_numbers = #tpu.dot_dimension_numbers<[1], [0], [0], [1], [0, 0, 1, 1], [], []>} : vector<2x160xf32>, vector<160x50xf32>, vector<2x50xf32> -> vector<2x50xf32>
    %c0_54 = arith.constant 0 : index
    %c0_55 = arith.constant 0 : index
    %68 = vector.load %arg12[%c0_54, %c0_55] : memref<1x50xf32, #tpu.memory_space<vmem>>, vector<1x50xf32>
    %69 = vector.broadcast %68 : vector<1x50xf32> to vector<2x50xf32>
    %70 = arith.addf %67, %69 : vector<2x50xf32>
    %cst_56 = arith.constant 0.000000e+00 : f32
    %71 = vector.broadcast %cst_56 : f32 to vector<2x50xf32>
    %72 = arith.cmpf oge, %70, %71 : vector<2x50xf32>
    %cst_57 = arith.constant 0.00999999977 : f32
    %73 = vector.broadcast %cst_57 : f32 to vector<2x50xf32>
    %74 = arith.mulf %73, %70 : vector<2x50xf32>
    %75 = arith.select %72, %70, %74 : vector<2x50xi1>, vector<2x50xf32>
    %c0_58 = arith.constant 0 : index
    %c0_59 = arith.constant 0 : index
    %76 = vector.load %arg17[%c0_58, %c0_59] : memref<2x50xf32, #tpu.memory_space<vmem>>, vector<2x50xf32>
    tpu.vector_store %arg17[%c0_58, %c0_59], %75 {strides = array<i32>} : memref<2x50xf32, #tpu.memory_space<vmem>>, vector<2x50xf32>,
    return
  }
}

module attributes {stable_mosaic.version = 11 : i64} {
  func.func @_issm_kernel(%arg0: memref<4x100x10xf32, #tpu.memory_space<vmem>>, %arg1: memref<4x1x5xf32, #tpu.memory_space<vmem>>, %arg2: memref<4x1x5xf32, #tpu.memory_space<vmem>>, %arg3: memref<1x100x5xf32, #tpu.memory_space<vmem>>, %arg4: memref<1x100x5xf32, #tpu.memory_space<vmem>>, %arg5: memref<4x100x5xf32, #tpu.memory_space<vmem>>) attributes {dimension_semantics = [], scalar_prefetch = 0 : i64, scratch_operands = 0 : i64, tpu.core_type = #tpu.core_type<tc>} {
    %c0 = arith.constant 0 : index
    %c0_0 = arith.constant 0 : index
    %c0_1 = arith.constant 0 : index
    %0 = vector.load %arg0[%c0, %c0_0, %c0_1] : memref<4x100x10xf32, #tpu.memory_space<vmem>>, vector<4x100x10xf32>
    %1 = vector.extract_strided_slice %0 {offsets = [0, 0, 0], sizes = [4, 100, 5], strides = [1, 1, 1]} : vector<4x100x10xf32> to vector<4x100x5xf32>
    %c0_2 = arith.constant 0 : index
    %c0_3 = arith.constant 0 : index
    %c0_4 = arith.constant 0 : index
    %2 = vector.load %arg3[%c0_2, %c0_3, %c0_4] : memref<1x100x5xf32, #tpu.memory_space<vmem>>, vector<1x100x5xf32>
    %c0_5 = arith.constant 0 : index
    %c0_6 = arith.constant 0 : index
    %c0_7 = arith.constant 0 : index
    %3 = vector.load %arg1[%c0_5, %c0_6, %c0_7] : memref<4x1x5xf32, #tpu.memory_space<vmem>>, vector<4x1x5xf32>
    %4 = vector.broadcast %2 : vector<1x100x5xf32> to vector<4x100x5xf32>
    %5 = vector.broadcast %3 : vector<4x1x5xf32> to vector<4x100x5xf32>
    %6 = arith.subf %4, %5 : vector<4x100x5xf32>
    %7 = arith.mulf %6, %6 : vector<4x100x5xf32>
    %c0_8 = arith.constant 0 : index
    %c0_9 = arith.constant 0 : index
    %c0_10 = arith.constant 0 : index
    %8 = vector.load %arg4[%c0_8, %c0_9, %c0_10] : memref<1x100x5xf32, #tpu.memory_space<vmem>>, vector<1x100x5xf32>
    %c0_11 = arith.constant 0 : index
    %c0_12 = arith.constant 0 : index
    %c0_13 = arith.constant 0 : index
    %9 = vector.load %arg2[%c0_11, %c0_12, %c0_13] : memref<4x1x5xf32, #tpu.memory_space<vmem>>, vector<4x1x5xf32>
    %10 = vector.broadcast %8 : vector<1x100x5xf32> to vector<4x100x5xf32>
    %11 = vector.broadcast %9 : vector<4x1x5xf32> to vector<4x100x5xf32>
    %12 = arith.subf %10, %11 : vector<4x100x5xf32>
    %13 = arith.mulf %12, %12 : vector<4x100x5xf32>
    %14 = arith.addf %7, %13 : vector<4x100x5xf32>
    %cst = arith.constant 0.000000e+00 : f32
    %15 = vector.broadcast %cst : f32 to vector<4x100x5xf32>
    %16 = arith.subf %15, %14 : vector<4x100x5xf32>
    %cst_14 = arith.constant 1.000000e+01 : f32
    %17 = vector.broadcast %cst_14 : f32 to vector<4x100x5xf32>
    %18 = arith.mulf %16, %17 : vector<4x100x5xf32>
    %19 = math.exp %18 : vector<4x100x5xf32>
    %20 = arith.mulf %19, %1 : vector<4x100x5xf32>
    %c0_15 = arith.constant 0 : index
    %c0_16 = arith.constant 0 : index
    %c0_17 = arith.constant 0 : index
    %21 = vector.load %arg5[%c0_15, %c0_16, %c0_17] : memref<4x100x5xf32, #tpu.memory_space<vmem>>, vector<4x100x5xf32>
    tpu.vector_store %arg5[%c0_15, %c0_16, %c0_17], %20 {strides = array<i32>} : memref<4x100x5xf32, #tpu.memory_space<vmem>>, vector<4x100x5xf32>,
    return
  }
}

module attributes {stable_mosaic.version = 11 : i64} {
  func.func @_matmul_bias_lrelu_kernel(%arg0: memref<576x45xf32, #tpu.memory_space<vmem>>, %arg1: memref<45x32xf32, #tpu.memory_space<vmem>>, %arg2: memref<1x32xf32, #tpu.memory_space<vmem>>, %arg3: memref<576x32xf32, #tpu.memory_space<vmem>>) attributes {dimension_semantics = [], scalar_prefetch = 0 : i64, scratch_operands = 0 : i64, tpu.core_type = #tpu.core_type<tc>} {
    %c0 = arith.constant 0 : index
    %c0_0 = arith.constant 0 : index
    %0 = vector.load %arg0[%c0, %c0_0] : memref<576x45xf32, #tpu.memory_space<vmem>>, vector<576x45xf32>
    %c0_1 = arith.constant 0 : index
    %c0_2 = arith.constant 0 : index
    %1 = vector.load %arg1[%c0_1, %c0_2] : memref<45x32xf32, #tpu.memory_space<vmem>>, vector<45x32xf32>
    %cst = arith.constant dense<0.000000e+00> : vector<576x32xf32>
    %2 = tpu.matmul %0, %1, %cst {dimension_numbers = #tpu.dot_dimension_numbers<[1], [0], [0], [1], [0, 0, 1, 1], [], []>} : vector<576x45xf32>, vector<45x32xf32>, vector<576x32xf32> -> vector<576x32xf32>
    %c0_3 = arith.constant 0 : index
    %c0_4 = arith.constant 0 : index
    %3 = vector.load %arg2[%c0_3, %c0_4] : memref<1x32xf32, #tpu.memory_space<vmem>>, vector<1x32xf32>
    %4 = vector.broadcast %3 : vector<1x32xf32> to vector<576x32xf32>
    %5 = arith.addf %2, %4 : vector<576x32xf32>
    %cst_5 = arith.constant 0.000000e+00 : f32
    %6 = vector.broadcast %cst_5 : f32 to vector<576x32xf32>
    %7 = arith.cmpf oge, %5, %6 : vector<576x32xf32>
    %cst_6 = arith.constant 0.00999999977 : f32
    %8 = vector.broadcast %cst_6 : f32 to vector<576x32xf32>
    %9 = arith.mulf %8, %5 : vector<576x32xf32>
    %10 = arith.select %7, %5, %9 : vector<576x32xi1>, vector<576x32xf32>
    %c0_7 = arith.constant 0 : index
    %c0_8 = arith.constant 0 : index
    %11 = vector.load %arg3[%c0_7, %c0_8] : memref<576x32xf32, #tpu.memory_space<vmem>>, vector<576x32xf32>
    tpu.vector_store %arg3[%c0_7, %c0_8], %10 {strides = array<i32>} : memref<576x32xf32, #tpu.memory_space<vmem>>, vector<576x32xf32>,
    return
  }
}

module attributes {stable_mosaic.version = 11 : i64} {
  func.func @_matmul_bias_lrelu_kernel(%arg0: memref<784x288xf32, #tpu.memory_space<vmem>>, %arg1: memref<288x16xf32, #tpu.memory_space<vmem>>, %arg2: memref<1x16xf32, #tpu.memory_space<vmem>>, %arg3: memref<784x16xf32, #tpu.memory_space<vmem>>) attributes {dimension_semantics = [], scalar_prefetch = 0 : i64, scratch_operands = 0 : i64, tpu.core_type = #tpu.core_type<tc>} {
    %c0 = arith.constant 0 : index
    %c0_0 = arith.constant 0 : index
    %0 = vector.load %arg0[%c0, %c0_0] : memref<784x288xf32, #tpu.memory_space<vmem>>, vector<784x288xf32>
    %c0_1 = arith.constant 0 : index
    %c0_2 = arith.constant 0 : index
    %1 = vector.load %arg1[%c0_1, %c0_2] : memref<288x16xf32, #tpu.memory_space<vmem>>, vector<288x16xf32>
    %cst = arith.constant dense<0.000000e+00> : vector<784x16xf32>
    %2 = tpu.matmul %0, %1, %cst {dimension_numbers = #tpu.dot_dimension_numbers<[1], [0], [0], [1], [0, 0, 1, 1], [], []>} : vector<784x288xf32>, vector<288x16xf32>, vector<784x16xf32> -> vector<784x16xf32>
    %c0_3 = arith.constant 0 : index
    %c0_4 = arith.constant 0 : index
    %3 = vector.load %arg2[%c0_3, %c0_4] : memref<1x16xf32, #tpu.memory_space<vmem>>, vector<1x16xf32>
    %4 = vector.broadcast %3 : vector<1x16xf32> to vector<784x16xf32>
    %5 = arith.addf %2, %4 : vector<784x16xf32>
    %cst_5 = arith.constant 0.000000e+00 : f32
    %6 = vector.broadcast %cst_5 : f32 to vector<784x16xf32>
    %7 = arith.cmpf oge, %5, %6 : vector<784x16xf32>
    %cst_6 = arith.constant 0.00999999977 : f32
    %8 = vector.broadcast %cst_6 : f32 to vector<784x16xf32>
    %9 = arith.mulf %8, %5 : vector<784x16xf32>
    %10 = arith.select %7, %5, %9 : vector<784x16xi1>, vector<784x16xf32>
    %c0_7 = arith.constant 0 : index
    %c0_8 = arith.constant 0 : index
    %11 = vector.load %arg3[%c0_7, %c0_8] : memref<784x16xf32, #tpu.memory_space<vmem>>, vector<784x16xf32>
    tpu.vector_store %arg3[%c0_7, %c0_8], %10 {strides = array<i32>} : memref<784x16xf32, #tpu.memory_space<vmem>>, vector<784x16xf32>,
    return
  }
}

module attributes {stable_mosaic.version = 11 : i64} {
  func.func @_matmul_bias_lrelu_kernel(%arg0: memref<1024x144xf32, #tpu.memory_space<vmem>>, %arg1: memref<144x3xf32, #tpu.memory_space<vmem>>, %arg2: memref<1x3xf32, #tpu.memory_space<vmem>>, %arg3: memref<1024x3xf32, #tpu.memory_space<vmem>>) attributes {dimension_semantics = [], scalar_prefetch = 0 : i64, scratch_operands = 0 : i64, tpu.core_type = #tpu.core_type<tc>} {
    %c0 = arith.constant 0 : index
    %c0_0 = arith.constant 0 : index
    %0 = vector.load %arg0[%c0, %c0_0] : memref<1024x144xf32, #tpu.memory_space<vmem>>, vector<1024x144xf32>
    %c0_1 = arith.constant 0 : index
    %c0_2 = arith.constant 0 : index
    %1 = vector.load %arg1[%c0_1, %c0_2] : memref<144x3xf32, #tpu.memory_space<vmem>>, vector<144x3xf32>
    %cst = arith.constant dense<0.000000e+00> : vector<1024x3xf32>
    %2 = tpu.matmul %0, %1, %cst {dimension_numbers = #tpu.dot_dimension_numbers<[1], [0], [0], [1], [0, 0, 1, 1], [], []>} : vector<1024x144xf32>, vector<144x3xf32>, vector<1024x3xf32> -> vector<1024x3xf32>
    %c0_3 = arith.constant 0 : index
    %c0_4 = arith.constant 0 : index
    %3 = vector.load %arg2[%c0_3, %c0_4] : memref<1x3xf32, #tpu.memory_space<vmem>>, vector<1x3xf32>
    %4 = vector.broadcast %3 : vector<1x3xf32> to vector<1024x3xf32>
    %5 = arith.addf %2, %4 : vector<1024x3xf32>
    %cst_5 = arith.constant 0.000000e+00 : f32
    %6 = vector.broadcast %cst_5 : f32 to vector<1024x3xf32>
    %7 = arith.cmpf oge, %5, %6 : vector<1024x3xf32>
    %cst_6 = arith.constant 0.00999999977 : f32
    %8 = vector.broadcast %cst_6 : f32 to vector<1024x3xf32>
    %9 = arith.mulf %8, %5 : vector<1024x3xf32>
    %10 = arith.select %7, %5, %9 : vector<1024x3xi1>, vector<1024x3xf32>
    %c0_7 = arith.constant 0 : index
    %c0_8 = arith.constant 0 : index
    %11 = vector.load %arg3[%c0_7, %c0_8] : memref<1024x3xf32, #tpu.memory_space<vmem>>, vector<1024x3xf32>
    tpu.vector_store %arg3[%c0_7, %c0_8], %10 {strides = array<i32>} : memref<1024x3xf32, #tpu.memory_space<vmem>>, vector<1024x3xf32>,
    return
  }
}

</mosaic_0001>

<llo_original>
// kernel: mtrnn_forward.8
$region0: #{mtrnn_forward.8}
  #allocation0 [shape = 'u32[]', space=smem, size = 0x4, offset = 0x4, fixed_abs, tag = 'smem constant byte address 0x4 - core index']
  #allocation1 [shape = 'u32[72,128]{1,0:T(1,128)}', space=vmem, size = 0x9000, scoped, tag = 'internal scratch']
  %s0 = inlined_call_operand.vmem [shape: f32[784,27], index: 0, kind: input, shape index: {}]
  %s1 = inlined_call_operand.vmem [shape: f32[27,32], index: 1, kind: input, shape index: {}]
  %s2 = inlined_call_operand.vmem [shape: f32[1,32], index: 2, kind: input, shape index: {}]
  %s3 = inlined_call_operand.vmem [shape: f32[784,32], index: 3, kind: output, shape index: {}]
  %s4 = sld [smem:[#allocation0]]
  $region22: #{mtrnn_forward.8} parent=0
    _
  %s6 = ssub.s32 1, %s4
  %s7 = scalar_select 0, %s6, %s4
  // Predicated region
  $region2: #{mtrnn_forward.8} parent=0 // pred_check
    _
  $region3: #{mtrnn_forward.8} parent=0 // pred_check_branch
    %9 = sbr.rel (0) target = $region5
  $region4: #{mtrnn_forward.8} parent=0 // pred_region
    _
  $region5: #{mtrnn_forward.8} parent=0 // pred_fallthru
    _
  // Predicated region
  $region6: #{mtrnn_forward.8} parent=0 // pred_check
    _
  $region7: #{mtrnn_forward.8} parent=0 // pred_check_branch
    %11 = sbr.rel (0) target = $region9
  $region8: #{mtrnn_forward.8} parent=0 // pred_region
    _
  $region9: #{mtrnn_forward.8} parent=0 // pred_fallthru
    _
  // Predicated region
  $region10: #{mtrnn_forward.8} parent=0 // pred_check
    _
  $region11: #{mtrnn_forward.8} parent=0 // pred_check_branch
    %13 = sbr.rel (0) target = $region13
  $region12: #{mtrnn_forward.8} parent=0 // pred_region
    _
  $region13: #{mtrnn_forward.8} parent=0 // pred_fallthru
    _
  %v14 = vld [vmem:[%s0] sm:$0xff]
  %v15 = vld [vmem:[%s0 + $0x8] sm:$0xff]
  %v16 = vld [vmem:[%s0 + $0x10] sm:$0xff]
  %v17 = vld [vmem:[%s0 + $0x18] sm:$0xff]
  %v18 = vld [vmem:[%s0 + $0x20] sm:$0xff]
  %v19 = vld [vmem:[%s0 + $0x28] sm:$0xff]
  %v20 = vld [vmem:[%s0 + $0x30] sm:$0xff]
  %v21 = vld [vmem:[%s0 + $0x38] sm:$0xff]
  %v22 = vld [vmem:[%s0 + $0x40] sm:$0xff]
  %v23 = vld [vmem:[%s0 + $0x48] sm:$0xff]
  %v24 = vld [vmem:[%s0 + $0x50] sm:$0xff]
  %v25 = vld [vmem:[%s0 + $0x58] sm:$0xff]
  %v26 = vld [vmem:[%s0 + $0x60] sm:$0xff]
  %v27 = vld [vmem:[%s0 + $0x68] sm:$0xff]
  %v28 = vld [vmem:[%s0 + $0x70] sm:$0xff]
  %v29 = vld [vmem:[%s0 + $0x78] sm:$0xff]
  %v30 = vld [vmem:[%s0 + $0x80] sm:$0xff]
  %v31 = vld [vmem:[%s0 + $0x88] sm:$0xff]
  %v32 = vld [vmem:[%s0 + $0x90] sm:$0xff]
  %v33 = vld [vmem:[%s0 + $0x98] sm:$0xff]
  %v34 = vld [vmem:[%s0 + $0xa0] sm:$0xff]
  %v35 = vld [vmem:[%s0 + $0xa8] sm:$0xff]
  %v36 = vld [vmem:[%s0 + $0xb0] sm:$0xff]
  %v37 = vld [vmem:[%s0 + $0xb8] sm:$0xff]
  %v38 = vld [vmem:[%s0 + $0xc0] sm:$0xff]
  %v39 = vld [vmem:[%s0 + $0xc8] sm:$0xff]
  %v40 = vld [vmem:[%s0 + $0xd0] sm:$0xff]
  %v41 = vld [vmem:[%s0 + $0xd8] sm:$0xff]
  %v42 = vld [vmem:[%s0 + $0xe0] sm:$0xff]
  %v43 = vld [vmem:[%s0 + $0xe8] sm:$0xff]
  %v44 = vld [vmem:[%s0 + $0xf0] sm:$0xff]
  %v45 = vld [vmem:[%s0 + $0xf8] sm:$0xff]
  %v46 = vld [vmem:[%s0 + $0x100] sm:$0xff]
  %v47 = vld [vmem:[%s0 + $0x108] sm:$0xff]
  %v48 = vld [vmem:[%s0 + $0x110] sm:$0xff]
  %v49 = vld [vmem:[%s0 + $0x118] sm:$0xff]
  %v50 = vld [vmem:[%s0 + $0x120] sm:$0xff]
  %v51 = vld [vmem:[%s0 + $0x128] sm:$0xff]
  %v52 = vld [vmem:[%s0 + $0x130] sm:$0xff]
  %v53 = vld [vmem:[%s0 + $0x138] sm:$0xff]
  %v54 = vld [vmem:[%s0 + $0x140] sm:$0xff]
  %v55 = vld [vmem:[%s0 + $0x148] sm:$0xff]
  %v56 = vld [vmem:[%s0 + $0x150] sm:$0xff]
  %v57 = vld [vmem:[%s0 + $0x158] sm:$0xff]
  %v58 = vld [vmem:[%s0 + $0x160] sm:$0xff]
  %v59 = vld [vmem:[%s0 + $0x168] sm:$0xff]
  %v60 = vld [vmem:[%s0 + $0x170] sm:$0xff]
  %v61 = vld [vmem:[%s0 + $0x178] sm:$0xff]
  %v62 = vld [vmem:[%s0 + $0x180] sm:$0xff]
  %v63 = vld [vmem:[%s0 + $0x188] sm:$0xff]
  %v64 = vld [vmem:[%s0 + $0x190] sm:$0xff]
  %v65 = vld [vmem:[%s0 + $0x198] sm:$0xff]
  %v66 = vld [vmem:[%s0 + $0x1a0] sm:$0xff]
  %v67 = vld [vmem:[%s0 + $0x1a8] sm:$0xff]
  %v68 = vld [vmem:[%s0 + $0x1b0] sm:$0xff]
  %v69 = vld [vmem:[%s0 + $0x1b8] sm:$0xff]
  %v70 = vld [vmem:[%s0 + $0x1c0] sm:$0xff]
  %v71 = vld [vmem:[%s0 + $0x1c8] sm:$0xff]
  %v72 = vld [vmem:[%s0 + $0x1d0] sm:$0xff]
  %v73 = vld [vmem:[%s0 + $0x1d8] sm:$0xff]
  %v74 = vld [vmem:[%s0 + $0x1e0] sm:$0xff]
  %v75 = vld [vmem:[%s0 + $0x1e8] sm:$0xff]
  %v76 = vld [vmem:[%s0 + $0x1f0] sm:$0xff]
  %v77 = vld [vmem:[%s0 + $0x1f8] sm:$0xff]
  %v78 = vld [vmem:[%s0 + $0x200] sm:$0xff]
  %v79 = vld [vmem:[%s0 + $0x208] sm:$0xff]
  %v80 = vld [vmem:[%s0 + $0x210] sm:$0xff]
  %v81 = vld [vmem:[%s0 + $0x218] sm:$0xff]
  %v82 = vld [vmem:[%s0 + $0x220] sm:$0xff]
  %v83 = vld [vmem:[%s0 + $0x228] sm:$0xff]
  %v84 = vld [vmem:[%s0 + $0x230] sm:$0xff]
  %v85 = vld [vmem:[%s0 + $0x238] sm:$0xff]
  %v86 = vld [vmem:[%s0 + $0x240] sm:$0xff]
  %v87 = vld [vmem:[%s0 + $0x248] sm:$0xff]
  %v88 = vld [vmem:[%s0 + $0x250] sm:$0xff]
  %v89 = vld [vmem:[%s0 + $0x258] sm:$0xff]
  %v90 = vld [vmem:[%s0 + $0x260] sm:$0xff]
  %v91 = vld [vmem:[%s0 + $0x268] sm:$0xff]
  %v92 = vld [vmem:[%s0 + $0x270] sm:$0xff]
  %v93 = vld [vmem:[%s0 + $0x278] sm:$0xff]
  %v94 = vld [vmem:[%s0 + $0x280] sm:$0xff]
  %v95 = vld [vmem:[%s0 + $0x288] sm:$0xff]
  %v96 = vld [vmem:[%s0 + $0x290] sm:$0xff]
  %v97 = vld [vmem:[%s0 + $0x298] sm:$0xff]
  %v98 = vld [vmem:[%s0 + $0x2a0] sm:$0xff]
  %v99 = vld [vmem:[%s0 + $0x2a8] sm:$0xff]
  %v100 = vld [vmem:[%s0 + $0x2b0] sm:$0xff]
  %v101 = vld [vmem:[%s0 + $0x2b8] sm:$0xff]
  %v102 = vld [vmem:[%s0 + $0x2c0] sm:$0xff]
  %v103 = vld [vmem:[%s0 + $0x2c8] sm:$0xff]
  %v104 = vld [vmem:[%s0 + $0x2d0] sm:$0xff]
  %v105 = vld [vmem:[%s0 + $0x2d8] sm:$0xff]
  %v106 = vld [vmem:[%s0 + $0x2e0] sm:$0xff]
  %v107 = vld [vmem:[%s0 + $0x2e8] sm:$0xff]
  %v108 = vld [vmem:[%s0 + $0x2f0] sm:$0xff]
  %v109 = vld [vmem:[%s0 + $0x2f8] sm:$0xff]
  %v110 = vld [vmem:[%s0 + $0x300] sm:$0xff]
  %v111 = vld [vmem:[%s0 + $0x308] sm:$0xff]
  %v112 = vld [vmem:[%s1] sm:$0xff]
  %v113 = vld [vmem:[%s1 + $0x8] sm:$0xff]
  %v114 = vld [vmem:[%s1 + $0x10] sm:$0xff]
  %v115 = vld [vmem:[%s1 + $0x18] sm:$0x7]
  %v116 = vld [vmem:[%s2] sm:$0x1]
  %v118 = vperm.slane %v116, 0
  %vm120 = vcmask 220160
  %v122 = vsel %vm120, %v14, 0
  %v125 = vsel %vm120, %v15, 0
  %v128 = vsel %vm120, %v16, 0
  %v131 = vsel %vm120, %v17, 0
  %v134 = vsel %vm120, %v18, 0
  %v137 = vsel %vm120, %v19, 0
  %v140 = vsel %vm120, %v20, 0
  %v143 = vsel %vm120, %v21, 0
  %v146 = vsel %vm120, %v22, 0
  %v149 = vsel %vm120, %v23, 0
  %v152 = vsel %vm120, %v24, 0
  %v155 = vsel %vm120, %v25, 0
  %v158 = vsel %vm120, %v26, 0
  %v161 = vsel %vm120, %v27, 0
  %v164 = vsel %vm120, %v28, 0
  %v167 = vsel %vm120, %v29, 0
  %v170 = vsel %vm120, %v30, 0
  %v173 = vsel %vm120, %v31, 0
  %v176 = vsel %vm120, %v32, 0
  %v179 = vsel %vm120, %v33, 0
  %v182 = vsel %vm120, %v34, 0
  %v185 = vsel %vm120, %v35, 0
  %v188 = vsel %vm120, %v36, 0
  %v191 = vsel %vm120, %v37, 0
  %v194 = vsel %vm120, %v38, 0
  %v197 = vsel %vm120, %v39, 0
  %v200 = vsel %vm120, %v40, 0
  %v203 = vsel %vm120, %v41, 0
  %v206 = vsel %vm120, %v42, 0
  %v209 = vsel %vm120, %v43, 0
  %v212 = vsel %vm120, %v44, 0
  %v215 = vsel %vm120, %v45, 0
  %v218 = vsel %vm120, %v46, 0
  %v221 = vsel %vm120, %v47, 0
  %v224 = vsel %vm120, %v48, 0
  %v227 = vsel %vm120, %v49, 0
  %v230 = vsel %vm120, %v50, 0
  %v233 = vsel %vm120, %v51, 0
  %v236 = vsel %vm120, %v52, 0
  %v239 = vsel %vm120, %v53, 0
  %v242 = vsel %vm120, %v54, 0
  %v245 = vsel %vm120, %v55, 0
  %v248 = vsel %vm120, %v56, 0
  %v251 = vsel %vm120, %v57, 0
  %v254 = vsel %vm120, %v58, 0
  %v257 = vsel %vm120, %v59, 0
  %v260 = vsel %vm120, %v60, 0
  %v263 = vsel %vm120, %v61, 0
  %v266 = vsel %vm120, %v62, 0
  %v269 = vsel %vm120, %v63, 0
  %v272 = vsel %vm120, %v64, 0
  %v275 = vsel %vm120, %v65, 0
  %v278 = vsel %vm120, %v66, 0
  %v281 = vsel %vm120, %v67, 0
  %v284 = vsel %vm120, %v68, 0
  %v287 = vsel %vm120, %v69, 0
  %v290 = vsel %vm120, %v70, 0
  %v293 = vsel %vm120, %v71, 0
  %v296 = vsel %vm120, %v72, 0
  %v299 = vsel %vm120, %v73, 0
  %v302 = vsel %vm120, %v74, 0
  %v305 = vsel %vm120, %v75, 0
  %v308 = vsel %vm120, %v76, 0
  %v311 = vsel %vm120, %v77, 0
  %v314 = vsel %vm120, %v78, 0
  %v317 = vsel %vm120, %v79, 0
  %v320 = vsel %vm120, %v80, 0
  %v323 = vsel %vm120, %v81, 0
  %v326 = vsel %vm120, %v82, 0
  %v329 = vsel %vm120, %v83, 0
  %v332 = vsel %vm120, %v84, 0
  %v335 = vsel %vm120, %v85, 0
  %v338 = vsel %vm120, %v86, 0
  %v341 = vsel %vm120, %v87, 0
  %v344 = vsel %vm120, %v88, 0
  %v347 = vsel %vm120, %v89, 0
  %v350 = vsel %vm120, %v90, 0
  %v353 = vsel %vm120, %v91, 0
  %v356 = vsel %vm120, %v92, 0
  %v359 = vsel %vm120, %v93, 0
  %v362 = vsel %vm120, %v94, 0
  %v365 = vsel %vm120, %v95, 0
  %v368 = vsel %vm120, %v96, 0
  %v371 = vsel %vm120, %v97, 0
  %v374 = vsel %vm120, %v98, 0
  %v377 = vsel %vm120, %v99, 0
  %v380 = vsel %vm120, %v100, 0
  %v383 = vsel %vm120, %v101, 0
  %v386 = vsel %vm120, %v102, 0
  %v389 = vsel %vm120, %v103, 0
  %v392 = vsel %vm120, %v104, 0
  %v395 = vsel %vm120, %v105, 0
  %v398 = vsel %vm120, %v106, 0
  %v401 = vsel %vm120, %v107, 0
  %v404 = vsel %vm120, %v108, 0
  %v407 = vsel %vm120, %v109, 0
  %v410 = vsel %vm120, %v110, 0
  %v413 = vsel %vm120, %v111, 0
  %vm415 = vcmask 1042432
  %v417 = vsel %vm415, %v115, 0
  %419 = vmatpush.msra.mxu0 0.0
  %420 = vmatpush.msra.mxu0 0.0
  %421 = vmatpush.msra.mxu0 0.0
  %422 = vmatpush.msra.mxu0 0.0
  %423 = vmatpush.msra.mxu0 0.0
  %424 = vmatpush.msra.mxu0 0.0
  %425 = vmatpush.msra.mxu0 0.0
  %426 = vmatpush.msra.mxu0 0.0
  %427 = vmatpush.msra.mxu0 0.0
  %428 = vmatpush.msra.mxu0 0.0
  %429 = vmatpush.msra.mxu0 0.0
  %430 = vmatpush.msra.mxu0 0.0
  %431 = vmatpush.msra.mxu0 %v417
  %432 = vmatpush.msra.mxu0 %v114
  %433 = vmatpush.msra.mxu0 %v113
  %434 = vmatpush.msra.mxu0 %v112
  %435 = vmatmul.f32.gmra.mxu0 %v122
  %v436 = vpop.f32.mrf.mxu0
  %v437 = vadd.f32 %v118, %v436
  %438 = vmatmul.f32.gmra.mxu0 %v125
  %v439 = vpop.f32.mrf.mxu0
  %v440 = vadd.f32 %v118, %v439
  %441 = vmatmul.f32.gmra.mxu0 %v128
  %v442 = vpop.f32.mrf.mxu0
  %v443 = vadd.f32 %v118, %v442
  %444 = vmatmul.f32.gmra.mxu0 %v131
  %v445 = vpop.f32.mrf.mxu0
  %v446 = vadd.f32 %v118, %v445
  %447 = vmatmul.f32.gmra.mxu0 %v134
  %v448 = vpop.f32.mrf.mxu0
  %v449 = vadd.f32 %v118, %v448
  %450 = vmatmul.f32.gmra.mxu0 %v137
  %v451 = vpop.f32.mrf.mxu0
  %v452 = vadd.f32 %v118, %v451
  %453 = vmatmul.f32.gmra.mxu0 %v140
  %v454 = vpop.f32.mrf.mxu0
  %v455 = vadd.f32 %v118, %v454
  %456 = vmatmul.f32.gmra.mxu0 %v143
  %v457 = vpop.f32.mrf.mxu0
  %v458 = vadd.f32 %v118, %v457
  %459 = vmatmul.f32.gmra.mxu0 %v146
  %v460 = vpop.f32.mrf.mxu0
  %v461 = vadd.f32 %v118, %v460
  %462 = vmatmul.f32.gmra.mxu0 %v149
  %v463 = vpop.f32.mrf.mxu0
  %v464 = vadd.f32 %v118, %v463
  %465 = vmatmul.f32.gmra.mxu0 %v152
  %v466 = vpop.f32.mrf.mxu0
  %v467 = vadd.f32 %v118, %v466
  %468 = vmatmul.f32.gmra.mxu0 %v155
  %v469 = vpop.f32.mrf.mxu0
  %v470 = vadd.f32 %v118, %v469
  %471 = vmatmul.f32.gmra.mxu0 %v158
  %v472 = vpop.f32.mrf.mxu0
  %v473 = vadd.f32 %v118, %v472
  %474 = vmatmul.f32.gmra.mxu0 %v161
  %v475 = vpop.f32.mrf.mxu0
  %v476 = vadd.f32 %v118, %v475
  %477 = vmatmul.f32.gmra.mxu0 %v164
  %v478 = vpop.f32.mrf.mxu0
  %v479 = vadd.f32 %v118, %v478
  %480 = vmatmul.f32.gmra.mxu0 %v167
  %v481 = vpop.f32.mrf.mxu0
  %v482 = vadd.f32 %v118, %v481
  %483 = vmatmul.f32.gmra.mxu0 %v170
  %v484 = vpop.f32.mrf.mxu0
  %v485 = vadd.f32 %v118, %v484
  %486 = vmatmul.f32.gmra.mxu0 %v173
  %v487 = vpop.f32.mrf.mxu0
  %v488 = vadd.f32 %v118, %v487
  %489 = vmatmul.f32.gmra.mxu0 %v176
  %v490 = vpop.f32.mrf.mxu0
  %v491 = vadd.f32 %v118, %v490
  %492 = vmatmul.f32.gmra.mxu0 %v179
  %v493 = vpop.f32.mrf.mxu0
  %v494 = vadd.f32 %v118, %v493
  %495 = vmatmul.f32.gmra.mxu0 %v182
  %v496 = vpop.f32.mrf.mxu0
  %v497 = vadd.f32 %v118, %v496
  %498 = vmatmul.f32.gmra.mxu0 %v185
  %v499 = vpop.f32.mrf.mxu0
  %v500 = vadd.f32 %v118, %v499
  %501 = vmatmul.f32.gmra.mxu0 %v188
  %v502 = vpop.f32.mrf.mxu0
  %v503 = vadd.f32 %v118, %v502
  %504 = vmatmul.f32.gmra.mxu0 %v191
  %v505 = vpop.f32.mrf.mxu0
  %v506 = vadd.f32 %v118, %v505
  %507 = vmatmul.f32.gmra.mxu0 %v194
  %v508 = vpop.f32.mrf.mxu0
  %v509 = vadd.f32 %v118, %v508
  %510 = vmatmul.f32.gmra.mxu0 %v197
  %v511 = vpop.f32.mrf.mxu0
  %v512 = vadd.f32 %v118, %v511
  %513 = vmatmul.f32.gmra.mxu0 %v200
  %v514 = vpop.f32.mrf.mxu0
  %v515 = vadd.f32 %v118, %v514
  %516 = vmatmul.f32.gmra.mxu0 %v203
  %v517 = vpop.f32.mrf.mxu0
  %v518 = vadd.f32 %v118, %v517
  %519 = vmatmul.f32.gmra.mxu0 %v206
  %v520 = vpop.f32.mrf.mxu0
  %v521 = vadd.f32 %v118, %v520
  %522 = vmatmul.f32.gmra.mxu0 %v209
  %v523 = vpop.f32.mrf.mxu0
  %v524 = vadd.f32 %v118, %v523
  %525 = vmatmul.f32.gmra.mxu0 %v212
  %v526 = vpop.f32.mrf.mxu0
  %v527 = vadd.f32 %v118, %v526
  %528 = vmatmul.f32.gmra.mxu0 %v215
  %v529 = vpop.f32.mrf.mxu0
  %v530 = vadd.f32 %v118, %v529
  %531 = vmatmul.f32.gmra.mxu0 %v218
  %v532 = vpop.f32.mrf.mxu0
  %v533 = vadd.f32 %v118, %v532
  %534 = vmatmul.f32.gmra.mxu0 %v221
  %v535 = vpop.f32.mrf.mxu0
  %v536 = vadd.f32 %v118, %v535
  %537 = vmatmul.f32.gmra.mxu0 %v224
  %v538 = vpop.f32.mrf.mxu0
  %v539 = vadd.f32 %v118, %v538
  %540 = vmatmul.f32.gmra.mxu0 %v227
  %v541 = vpop.f32.mrf.mxu0
  %v542 = vadd.f32 %v118, %v541
  %543 = vmatmul.f32.gmra.mxu0 %v230
  %v544 = vpop.f32.mrf.mxu0
  %v545 = vadd.f32 %v118, %v544
  %546 = vmatmul.f32.gmra.mxu0 %v233
  %v547 = vpop.f32.mrf.mxu0
  %v548 = vadd.f32 %v118, %v547
  %549 = vmatmul.f32.gmra.mxu0 %v236
  %v550 = vpop.f32.mrf.mxu0
  %v551 = vadd.f32 %v118, %v550
  %552 = vmatmul.f32.gmra.mxu0 %v239
  %v553 = vpop.f32.mrf.mxu0
  %v554 = vadd.f32 %v118, %v553
  %555 = vmatmul.f32.gmra.mxu0 %v242
  %v556 = vpop.f32.mrf.mxu0
  %v557 = vadd.f32 %v118, %v556
  %558 = vmatmul.f32.gmra.mxu0 %v245
  %v559 = vpop.f32.mrf.mxu0
  %v560 = vadd.f32 %v118, %v559
  %561 = vmatmul.f32.gmra.mxu0 %v248
  %v562 = vpop.f32.mrf.mxu0
  %v563 = vadd.f32 %v118, %v562
  %564 = vmatmul.f32.gmra.mxu0 %v251
  %v565 = vpop.f32.mrf.mxu0
  %v566 = vadd.f32 %v118, %v565
  %567 = vmatmul.f32.gmra.mxu0 %v254
  %v568 = vpop.f32.mrf.mxu0
  %v569 = vadd.f32 %v118, %v568
  %570 = vmatmul.f32.gmra.mxu0 %v257
  %v571 = vpop.f32.mrf.mxu0
  %v572 = vadd.f32 %v118, %v571
  %573 = vmatmul.f32.gmra.mxu0 %v260
  %v574 = vpop.f32.mrf.mxu0
  %v575 = vadd.f32 %v118, %v574
  %576 = vmatmul.f32.gmra.mxu0 %v263
  %v577 = vpop.f32.mrf.mxu0
  %v578 = vadd.f32 %v118, %v577
  %579 = vmatmul.f32.gmra.mxu0 %v266
  %v580 = vpop.f32.mrf.mxu0
  %v581 = vadd.f32 %v118, %v580
  %582 = vmatmul.f32.gmra.mxu0 %v269
  %v583 = vpop.f32.mrf.mxu0
  %v584 = vadd.f32 %v118, %v583
  %585 = vmatmul.f32.gmra.mxu0 %v272
  %v586 = vpop.f32.mrf.mxu0
  %v587 = vadd.f32 %v118, %v586
  %588 = vmatmul.f32.gmra.mxu0 %v275
  %v589 = vpop.f32.mrf.mxu0
  %v590 = vadd.f32 %v118, %v589
  %591 = vmatmul.f32.gmra.mxu0 %v278
  %v592 = vpop.f32.mrf.mxu0
  %v593 = vadd.f32 %v118, %v592
  %594 = vmatmul.f32.gmra.mxu0 %v281
  %v595 = vpop.f32.mrf.mxu0
  %v596 = vadd.f32 %v118, %v595
  %597 = vmatmul.f32.gmra.mxu0 %v284
  %v598 = vpop.f32.mrf.mxu0
  %v599 = vadd.f32 %v118, %v598
  %600 = vmatmul.f32.gmra.mxu0 %v287
  %v601 = vpop.f32.mrf.mxu0
  %v602 = vadd.f32 %v118, %v601
  %603 = vmatmul.f32.gmra.mxu0 %v290
  %v604 = vpop.f32.mrf.mxu0
  %v605 = vadd.f32 %v118, %v604
  %606 = vmatmul.f32.gmra.mxu0 %v293
  %v607 = vpop.f32.mrf.mxu0
  %v608 = vadd.f32 %v118, %v607
  %609 = vmatmul.f32.gmra.mxu0 %v296
  %v610 = vpop.f32.mrf.mxu0
  %v611 = vadd.f32 %v118, %v610
  %612 = vmatmul.f32.gmra.mxu0 %v299
  %v613 = vpop.f32.mrf.mxu0
  %v614 = vadd.f32 %v118, %v613
  %615 = vmatmul.f32.gmra.mxu0 %v302
  %v616 = vpop.f32.mrf.mxu0
  %v617 = vadd.f32 %v118, %v616
  %618 = vmatmul.f32.gmra.mxu0 %v305
  %v619 = vpop.f32.mrf.mxu0
  %v620 = vadd.f32 %v118, %v619
  %621 = vmatmul.f32.gmra.mxu0 %v308
  %v622 = vpop.f32.mrf.mxu0
  %v623 = vadd.f32 %v118, %v622
  %624 = vmatmul.f32.gmra.mxu0 %v311
  %v625 = vpop.f32.mrf.mxu0
  %v626 = vadd.f32 %v118, %v625
  %627 = vmatmul.f32.gmra.mxu0 %v314
  %v628 = vpop.f32.mrf.mxu0
  %v629 = vadd.f32 %v118, %v628
  %630 = vmatmul.f32.gmra.mxu0 %v317
  %v631 = vpop.f32.mrf.mxu0
  %v632 = vadd.f32 %v118, %v631
  %633 = vmatmul.f32.gmra.mxu0 %v320
  %v634 = vpop.f32.mrf.mxu0
  %v635 = vadd.f32 %v118, %v634
  %636 = vmatmul.f32.gmra.mxu0 %v323
  %v637 = vpop.f32.mrf.mxu0
  %v638 = vadd.f32 %v118, %v637
  %639 = vmatmul.f32.gmra.mxu0 %v326
  %v640 = vpop.f32.mrf.mxu0
  %v641 = vadd.f32 %v118, %v640
  %642 = vmatmul.f32.gmra.mxu0 %v329
  %v643 = vpop.f32.mrf.mxu0
  %v644 = vadd.f32 %v118, %v643
  %645 = vmatmul.f32.gmra.mxu0 %v332
  %v646 = vpop.f32.mrf.mxu0
  %v647 = vadd.f32 %v118, %v646
  %648 = vmatmul.f32.gmra.mxu0 %v335
  %v649 = vpop.f32.mrf.mxu0
  %v650 = vadd.f32 %v118, %v649
  %651 = vmatmul.f32.gmra.mxu0 %v338
  %v652 = vpop.f32.mrf.mxu0
  %v653 = vadd.f32 %v118, %v652
  %654 = vmatmul.f32.gmra.mxu0 %v341
  %v655 = vpop.f32.mrf.mxu0
  %v656 = vadd.f32 %v118, %v655
  %657 = vmatmul.f32.gmra.mxu0 %v344
  %v658 = vpop.f32.mrf.mxu0
  %v659 = vadd.f32 %v118, %v658
  %660 = vmatmul.f32.gmra.mxu0 %v347
  %v661 = vpop.f32.mrf.mxu0
  %v662 = vadd.f32 %v118, %v661
  %663 = vmatmul.f32.gmra.mxu0 %v350
  %v664 = vpop.f32.mrf.mxu0
  %v665 = vadd.f32 %v118, %v664
  %666 = vmatmul.f32.gmra.mxu0 %v353
  %v667 = vpop.f32.mrf.mxu0
  %v668 = vadd.f32 %v118, %v667
  %669 = vmatmul.f32.gmra.mxu0 %v356
  %v670 = vpop.f32.mrf.mxu0
  %v671 = vadd.f32 %v118, %v670
  %672 = vmatmul.f32.gmra.mxu0 %v359
  %v673 = vpop.f32.mrf.mxu0
  %v674 = vadd.f32 %v118, %v673
  %675 = vmatmul.f32.gmra.mxu0 %v362
  %v676 = vpop.f32.mrf.mxu0
  %v677 = vadd.f32 %v118, %v676
  %678 = vmatmul.f32.gmra.mxu0 %v365
  %v679 = vpop.f32.mrf.mxu0
  %v680 = vadd.f32 %v118, %v679
  %681 = vmatmul.f32.gmra.mxu0 %v368
  %v682 = vpop.f32.mrf.mxu0
  %v683 = vadd.f32 %v118, %v682
  %684 = vmatmul.f32.gmra.mxu0 %v371
  %v685 = vpop.f32.mrf.mxu0
  %v686 = vadd.f32 %v118, %v685
  %687 = vmatmul.f32.gmra.mxu0 %v374
  %v688 = vpop.f32.mrf.mxu0
  %v689 = vadd.f32 %v118, %v688
  %690 = vmatmul.f32.gmra.mxu0 %v377
  %v691 = vpop.f32.mrf.mxu0
  %v692 = vadd.f32 %v118, %v691
  %693 = vmatmul.f32.gmra.mxu0 %v380
  %v694 = vpop.f32.mrf.mxu0
  %v695 = vadd.f32 %v118, %v694
  %696 = vmatmul.f32.gmra.mxu0 %v383
  %v697 = vpop.f32.mrf.mxu0
  %v698 = vadd.f32 %v118, %v697
  %699 = vmatmul.f32.gmra.mxu0 %v386
  %v700 = vpop.f32.mrf.mxu0
  %v701 = vadd.f32 %v118, %v700
  %702 = vmatmul.f32.gmra.mxu0 %v389
  %v703 = vpop.f32.mrf.mxu0
  %v704 = vadd.f32 %v118, %v703
  %705 = vmatmul.f32.gmra.mxu0 %v392
  %v706 = vpop.f32.mrf.mxu0
  %v707 = vadd.f32 %v118, %v706
  %708 = vmatmul.f32.gmra.mxu0 %v395
  %v709 = vpop.f32.mrf.mxu0
  %v710 = vadd.f32 %v118, %v709
  %711 = vmatmul.f32.gmra.mxu0 %v398
  %v712 = vpop.f32.mrf.mxu0
  %v713 = vadd.f32 %v118, %v712
  %714 = vmatmul.f32.gmra.mxu0 %v401
  %v715 = vpop.f32.mrf.mxu0
  %v716 = vadd.f32 %v118, %v715
  %717 = vmatmul.f32.gmra.mxu0 %v404
  %v718 = vpop.f32.mrf.mxu0
  %v719 = vadd.f32 %v118, %v718
  %720 = vmatmul.f32.gmra.mxu0 %v407
  %v721 = vpop.f32.mrf.mxu0
  %v722 = vadd.f32 %v118, %v721
  %723 = vmatmul.f32.gmra.mxu0 %v410
  %v724 = vpop.f32.mrf.mxu0
  %v725 = vadd.f32 %v118, %v724
  %726 = vmatmul.f32.gmra.mxu0 %v413
  %v727 = vpop.f32.mrf.mxu0
  %v728 = vadd.f32 %v118, %v727
  %729 = vdwg.mxu0
  %vm730 = vcmp.ge.f32.partialorder %v437, 0.0
  %vm731 = vcmp.ge.f32.partialorder %v440, 0.0
  %vm732 = vcmp.ge.f32.partialorder %v443, 0.0
  %vm733 = vcmp.ge.f32.partialorder %v446, 0.0
  %vm734 = vcmp.ge.f32.partialorder %v449, 0.0
  %vm735 = vcmp.ge.f32.partialorder %v452, 0.0
  %vm736 = vcmp.ge.f32.partialorder %v455, 0.0
  %vm737 = vcmp.ge.f32.partialorder %v458, 0.0
  %vm738 = vcmp.ge.f32.partialorder %v461, 0.0
  %vm739 = vcmp.ge.f32.partialorder %v464, 0.0
  %vm740 = vcmp.ge.f32.partialorder %v467, 0.0
  %vm741 = vcmp.ge.f32.partialorder %v470, 0.0
  %vm742 = vcmp.ge.f32.partialorder %v473, 0.0
  %vm743 = vcmp.ge.f32.partialorder %v476, 0.0
  %vm744 = vcmp.ge.f32.partialorder %v479, 0.0
  %vm745 = vcmp.ge.f32.partialorder %v482, 0.0
  %vm746 = vcmp.ge.f32.partialorder %v485, 0.0
  %vm747 = vcmp.ge.f32.partialorder %v488, 0.0
  %vm748 = vcmp.ge.f32.partialorder %v491, 0.0
  %vm749 = vcmp.ge.f32.partialorder %v494, 0.0
  %vm750 = vcmp.ge.f32.partialorder %v497, 0.0
  %vm751 = vcmp.ge.f32.partialorder %v500, 0.0
  %vm752 = vcmp.ge.f32.partialorder %v503, 0.0
  %vm753 = vcmp.ge.f32.partialorder %v506, 0.0
  %vm754 = vcmp.ge.f32.partialorder %v509, 0.0
  %vm755 = vcmp.ge.f32.partialorder %v512, 0.0
  %vm756 = vcmp.ge.f32.partialorder %v515, 0.0
  %vm757 = vcmp.ge.f32.partialorder %v518, 0.0
  %vm758 = vcmp.ge.f32.partialorder %v521, 0.0
  %vm759 = vcmp.ge.f32.partialorder %v524, 0.0
  %vm760 = vcmp.ge.f32.partialorder %v527, 0.0
  %vm761 = vcmp.ge.f32.partialorder %v530, 0.0
  %vm762 = vcmp.ge.f32.partialorder %v533, 0.0
  %vm763 = vcmp.ge.f32.partialorder %v536, 0.0
  %vm764 = vcmp.ge.f32.partialorder %v539, 0.0
  %vm765 = vcmp.ge.f32.partialorder %v542, 0.0
  %vm766 = vcmp.ge.f32.partialorder %v545, 0.0
  %vm767 = vcmp.ge.f32.partialorder %v548, 0.0
  %vm768 = vcmp.ge.f32.partialorder %v551, 0.0
  %vm769 = vcmp.ge.f32.partialorder %v554, 0.0
  %vm770 = vcmp.ge.f32.partialorder %v557, 0.0
  %vm771 = vcmp.ge.f32.partialorder %v560, 0.0
  %vm772 = vcmp.ge.f32.partialorder %v563, 0.0
  %vm773 = vcmp.ge.f32.partialorder %v566, 0.0
  %vm774 = vcmp.ge.f32.partialorder %v569, 0.0
  %vm775 = vcmp.ge.f32.partialorder %v572, 0.0
  %vm776 = vcmp.ge.f32.partialorder %v575, 0.0
  %vm777 = vcmp.ge.f32.partialorder %v578, 0.0
  %vm778 = vcmp.ge.f32.partialorder %v581, 0.0
  %vm779 = vcmp.ge.f32.partialorder %v584, 0.0
  %vm780 = vcmp.ge.f32.partialorder %v587, 0.0
  %vm781 = vcmp.ge.f32.partialorder %v590, 0.0
  %vm782 = vcmp.ge.f32.partialorder %v593, 0.0
  %vm783 = vcmp.ge.f32.partialorder %v596, 0.0
  %vm784 = vcmp.ge.f32.partialorder %v599, 0.0
  %vm785 = vcmp.ge.f32.partialorder %v602, 0.0
  %vm786 = vcmp.ge.f32.partialorder %v605, 0.0
  %vm787 = vcmp.ge.f32.partialorder %v608, 0.0
  %vm788 = vcmp.ge.f32.partialorder %v611, 0.0
  %vm789 = vcmp.ge.f32.partialorder %v614, 0.0
  %vm790 = vcmp.ge.f32.partialorder %v617, 0.0
  %vm791 = vcmp.ge.f32.partialorder %v620, 0.0
  %vm792 = vcmp.ge.f32.partialorder %v623, 0.0
  %vm793 = vcmp.ge.f32.partialorder %v626, 0.0
  %vm794 = vcmp.ge.f32.partialorder %v629, 0.0
  %vm795 = vcmp.ge.f32.partialorder %v632, 0.0
  %vm796 = vcmp.ge.f32.partialorder %v635, 0.0
  %vm797 = vcmp.ge.f32.partialorder %v638, 0.0
  %vm798 = vcmp.ge.f32.partialorder %v641, 0.0
  %vm799 = vcmp.ge.f32.partialorder %v644, 0.0
  %vm800 = vcmp.ge.f32.partialorder %v647, 0.0
  %vm801 = vcmp.ge.f32.partialorder %v650, 0.0
  %vm802 = vcmp.ge.f32.partialorder %v653, 0.0
  %vm803 = vcmp.ge.f32.partialorder %v656, 0.0
  %vm804 = vcmp.ge.f32.partialorder %v659, 0.0
  %vm805 = vcmp.ge.f32.partialorder %v662, 0.0
  %vm806 = vcmp.ge.f32.partialorder %v665, 0.0
  %vm807 = vcmp.ge.f32.partialorder %v668, 0.0
  %vm808 = vcmp.ge.f32.partialorder %v671, 0.0
  %vm809 = vcmp.ge.f32.partialorder %v674, 0.0
  %vm810 = vcmp.ge.f32.partialorder %v677, 0.0
  %vm811 = vcmp.ge.f32.partialorder %v680, 0.0
  %vm812 = vcmp.ge.f32.partialorder %v683, 0.0
  %vm813 = vcmp.ge.f32.partialorder %v686, 0.0
  %vm814 = vcmp.ge.f32.partialorder %v689, 0.0
  %vm815 = vcmp.ge.f32.partialorder %v692, 0.0
  %vm816 = vcmp.ge.f32.partialorder %v695, 0.0
  %vm817 = vcmp.ge.f32.partialorder %v698, 0.0
  %vm818 = vcmp.ge.f32.partialorder %v701, 0.0
  %vm819 = vcmp.ge.f32.partialorder %v704, 0.0
  %vm820 = vcmp.ge.f32.partialorder %v707, 0.0
  %vm821 = vcmp.ge.f32.partialorder %v710, 0.0
  %vm822 = vcmp.ge.f32.partialorder %v713, 0.0
  %vm823 = vcmp.ge.f32.partialorder %v716, 0.0
  %vm824 = vcmp.ge.f32.partialorder %v719, 0.0
  %vm825 = vcmp.ge.f32.partialorder %v722, 0.0
  %vm826 = vcmp.ge.f32.partialorder %v725, 0.0
  %vm827 = vcmp.ge.f32.partialorder %v728, 0.0
  %v828 = vmul.f32 %v437, 0.01
  %v829 = vmul.f32 %v440, 0.01
  %v830 = vmul.f32 %v443, 0.01
  %v831 = vmul.f32 %v446, 0.01
  %v832 = vmul.f32 %v449, 0.01
  %v833 = vmul.f32 %v452, 0.01
  %v834 = vmul.f32 %v455, 0.01
  %v835 = vmul.f32 %v458, 0.01
  %v836 = vmul.f32 %v461, 0.01
  %v837 = vmul.f32 %v464, 0.01
  %v838 = vmul.f32 %v467, 0.01
  %v839 = vmul.f32 %v470, 0.01
  %v840 = vmul.f32 %v473, 0.01
  %v841 = vmul.f32 %v476, 0.01
  %v842 = vmul.f32 %v479, 0.01
  %v843 = vmul.f32 %v482, 0.01
  %v844 = vmul.f32 %v485, 0.01
  %v845 = vmul.f32 %v488, 0.01
  %v846 = vmul.f32 %v491, 0.01
  %v847 = vmul.f32 %v494, 0.01
  %v848 = vmul.f32 %v497, 0.01
  %v849 = vmul.f32 %v500, 0.01
  %v850 = vmul.f32 %v503, 0.01
  %v851 = vmul.f32 %v506, 0.01
  %v852 = vmul.f32 %v509, 0.01
  %v853 = vmul.f32 %v512, 0.01
  %v854 = vmul.f32 %v515, 0.01
  %v855 = vmul.f32 %v518, 0.01
  %v856 = vmul.f32 %v521, 0.01
  %v857 = vmul.f32 %v524, 0.01
  %v858 = vmul.f32 %v527, 0.01
  %v859 = vmul.f32 %v530, 0.01
  %v860 = vmul.f32 %v533, 0.01
  %v861 = vmul.f32 %v536, 0.01
  %v862 = vmul.f32 %v539, 0.01
  %v863 = vmul.f32 %v542, 0.01
  %v864 = vmul.f32 %v545, 0.01
  %v865 = vmul.f32 %v548, 0.01
  %v866 = vmul.f32 %v551, 0.01
  %v867 = vmul.f32 %v554, 0.01
  %v868 = vmul.f32 %v557, 0.01
  %v869 = vmul.f32 %v560, 0.01
  %v870 = vmul.f32 %v563, 0.01
  %v871 = vmul.f32 %v566, 0.01
  %v872 = vmul.f32 %v569, 0.01
  %v873 = vmul.f32 %v572, 0.01
  %v874 = vmul.f32 %v575, 0.01
  %v875 = vmul.f32 %v578, 0.01
  %v876 = vmul.f32 %v581, 0.01
  %v877 = vmul.f32 %v584, 0.01
  %v878 = vmul.f32 %v587, 0.01
  %v879 = vmul.f32 %v590, 0.01
  %v880 = vmul.f32 %v593, 0.01
  %v881 = vmul.f32 %v596, 0.01
  %v882 = vmul.f32 %v599, 0.01
  %v883 = vmul.f32 %v602, 0.01
  %v884 = vmul.f32 %v605, 0.01
  %v885 = vmul.f32 %v608, 0.01
  %v886 = vmul.f32 %v611, 0.01
  %v887 = vmul.f32 %v614, 0.01
  %v888 = vmul.f32 %v617, 0.01
  %v889 = vmul.f32 %v620, 0.01
  %v890 = vmul.f32 %v623, 0.01
  %v891 = vmul.f32 %v626, 0.01
  %v892 = vmul.f32 %v629, 0.01
  %v893 = vmul.f32 %v632, 0.01
  %v894 = vmul.f32 %v635, 0.01
  %v895 = vmul.f32 %v638, 0.01
  %v896 = vmul.f32 %v641, 0.01
  %v897 = vmul.f32 %v644, 0.01
  %v898 = vmul.f32 %v647, 0.01
  %v899 = vmul.f32 %v650, 0.01
  %v900 = vmul.f32 %v653, 0.01
  %v901 = vmul.f32 %v656, 0.01
  %v902 = vmul.f32 %v659, 0.01
  %v903 = vmul.f32 %v662, 0.01
  %v904 = vmul.f32 %v665, 0.01
  %v905 = vmul.f32 %v668, 0.01
  %v906 = vmul.f32 %v671, 0.01
  %v907 = vmul.f32 %v674, 0.01
  %v908 = vmul.f32 %v677, 0.01
  %v909 = vmul.f32 %v680, 0.01
  %v910 = vmul.f32 %v683, 0.01
  %v911 = vmul.f32 %v686, 0.01
  %v912 = vmul.f32 %v689, 0.01
  %v913 = vmul.f32 %v692, 0.01
  %v914 = vmul.f32 %v695, 0.01
  %v915 = vmul.f32 %v698, 0.01
  %v916 = vmul.f32 %v701, 0.01
  %v917 = vmul.f32 %v704, 0.01
  %v918 = vmul.f32 %v707, 0.01
  %v919 = vmul.f32 %v710, 0.01
  %v920 = vmul.f32 %v713, 0.01
  %v921 = vmul.f32 %v716, 0.01
  %v922 = vmul.f32 %v719, 0.01
  %v923 = vmul.f32 %v722, 0.01
  %v924 = vmul.f32 %v725, 0.01
  %v925 = vmul.f32 %v728, 0.01
  %v926 = vsel %vm730, %v437, %v828
  %v927 = vsel %vm731, %v440, %v829
  %v928 = vsel %vm732, %v443, %v830
  %v929 = vsel %vm733, %v446, %v831
  %v930 = vsel %vm734, %v449, %v832
  %v931 = vsel %vm735, %v452, %v833
  %v932 = vsel %vm736, %v455, %v834
  %v933 = vsel %vm737, %v458, %v835
  %v934 = vsel %vm738, %v461, %v836
  %v935 = vsel %vm739, %v464, %v837
  %v936 = vsel %vm740, %v467, %v838
  %v937 = vsel %vm741, %v470, %v839
  %v938 = vsel %vm742, %v473, %v840
  %v939 = vsel %vm743, %v476, %v841
  %v940 = vsel %vm744, %v479, %v842
  %v941 = vsel %vm745, %v482, %v843
  %v942 = vsel %vm746, %v485, %v844
  %v943 = vsel %vm747, %v488, %v845
  %v944 = vsel %vm748, %v491, %v846
  %v945 = vsel %vm749, %v494, %v847
  %v946 = vsel %vm750, %v497, %v848
  %v947 = vsel %vm751, %v500, %v849
  %v948 = vsel %vm752, %v503, %v850
  %v949 = vsel %vm753, %v506, %v851
  %v950 = vsel %vm754, %v509, %v852
  %v951 = vsel %vm755, %v512, %v853
  %v952 = vsel %vm756, %v515, %v854
  %v953 = vsel %vm757, %v518, %v855
  %v954 = vsel %vm758, %v521, %v856
  %v955 = vsel %vm759, %v524, %v857
  %v956 = vsel %vm760, %v527, %v858
  %v957 = vsel %vm761, %v530, %v859
  %v958 = vsel %vm762, %v533, %v860
  %v959 = vsel %vm763, %v536, %v861
  %v960 = vsel %vm764, %v539, %v862
  %v961 = vsel %vm765, %v542, %v863
  %v962 = vsel %vm766, %v545, %v864
  %v963 = vsel %vm767, %v548, %v865
  %v964 = vsel %vm768, %v551, %v866
  %v965 = vsel %vm769, %v554, %v867
  %v966 = vsel %vm770, %v557, %v868
  %v967 = vsel %vm771, %v560, %v869
  %v968 = vsel %vm772, %v563, %v870
  %v969 = vsel %vm773, %v566, %v871
  %v970 = vsel %vm774, %v569, %v872
  %v971 = vsel %vm775, %v572, %v873
  %v972 = vsel %vm776, %v575, %v874
  %v973 = vsel %vm777, %v578, %v875
  %v974 = vsel %vm778, %v581, %v876
  %v975 = vsel %vm779, %v584, %v877
  %v976 = vsel %vm780, %v587, %v878
  %v977 = vsel %vm781, %v590, %v879
  %v978 = vsel %vm782, %v593, %v880
  %v979 = vsel %vm783, %v596, %v881
  %v980 = vsel %vm784, %v599, %v882
  %v981 = vsel %vm785, %v602, %v883
  %v982 = vsel %vm786, %v605, %v884
  %v983 = vsel %vm787, %v608, %v885
  %v984 = vsel %vm788, %v611, %v886
  %v985 = vsel %vm789, %v614, %v887
  %v986 = vsel %vm790, %v617, %v888
  %v987 = vsel %vm791, %v620, %v889
  %v988 = vsel %vm792, %v623, %v890
  %v989 = vsel %vm793, %v626, %v891
  %v990 = vsel %vm794, %v629, %v892
  %v991 = vsel %vm795, %v632, %v893
  %v992 = vsel %vm796, %v635, %v894
  %v993 = vsel %vm797, %v638, %v895
  %v994 = vsel %vm798, %v641, %v896
  %v995 = vsel %vm799, %v644, %v897
  %v996 = vsel %vm800, %v647, %v898
  %v997 = vsel %vm801, %v650, %v899
  %v998 = vsel %vm802, %v653, %v900
  %v999 = vsel %vm803, %v656, %v901
  %v1000 = vsel %vm804, %v659, %v902
  %v1001 = vsel %vm805, %v662, %v903
  %v1002 = vsel %vm806, %v665, %v904
  %v1003 = vsel %vm807, %v668, %v905
  %v1004 = vsel %vm808, %v671, %v906
  %v1005 = vsel %vm809, %v674, %v907
  %v1006 = vsel %vm810, %v677, %v908
  %v1007 = vsel %vm811, %v680, %v909
  %v1008 = vsel %vm812, %v683, %v910
  %v1009 = vsel %vm813, %v686, %v911
  %v1010 = vsel %vm814, %v689, %v912
  %v1011 = vsel %vm815, %v692, %v913
  %v1012 = vsel %vm816, %v695, %v914
  %v1013 = vsel %vm817, %v698, %v915
  %v1014 = vsel %vm818, %v701, %v916
  %v1015 = vsel %vm819, %v704, %v917
  %v1016 = vsel %vm820, %v707, %v918
  %v1017 = vsel %vm821, %v710, %v919
  %v1018 = vsel %vm822, %v713, %v920
  %v1019 = vsel %vm823, %v716, %v921
  %v1020 = vsel %vm824, %v719, %v922
  %v1021 = vsel %vm825, %v722, %v923
  %v1022 = vsel %vm826, %v725, %v924
  %v1023 = vsel %vm827, %v728, %v925
  %vm1024 = vcmask 261120
  %1025 = vst.msk [vmem:[%s3] sm:$0xff] %vm1024, %v926
  %1026 = vst.msk [vmem:[%s3 + $0x8] sm:$0xff] %vm1024, %v927
  %1027 = vst.msk [vmem:[%s3 + $0x10] sm:$0xff] %vm1024, %v928
  %1028 = vst.msk [vmem:[%s3 + $0x18] sm:$0xff] %vm1024, %v929
  %1029 = vst.msk [vmem:[%s3 + $0x20] sm:$0xff] %vm1024, %v930
  %1030 = vst.msk [vmem:[%s3 + $0x28] sm:$0xff] %vm1024, %v931
  %1031 = vst.msk [vmem:[%s3 + $0x30] sm:$0xff] %vm1024, %v932
  %1032 = vst.msk [vmem:[%s3 + $0x38] sm:$0xff] %vm1024, %v933
  %1033 = vst.msk [vmem:[%s3 + $0x40] sm:$0xff] %vm1024, %v934
  %1034 = vst.msk [vmem:[%s3 + $0x48] sm:$0xff] %vm1024, %v935
  %1035 = vst.msk [vmem:[%s3 + $0x50] sm:$0xff] %vm1024, %v936
  %1036 = vst.msk [vmem:[%s3 + $0x58] sm:$0xff] %vm1024, %v937
  %1037 = vst.msk [vmem:[%s3 + $0x60] sm:$0xff] %vm1024, %v938
  %1038 = vst.msk [vmem:[%s3 + $0x68] sm:$0xff] %vm1024, %v939
  %1039 = vst.msk [vmem:[%s3 + $0x70] sm:$0xff] %vm1024, %v940
  %1040 = vst.msk [vmem:[%s3 + $0x78] sm:$0xff] %vm1024, %v941
  %1041 = vst.msk [vmem:[%s3 + $0x80] sm:$0xff] %vm1024, %v942
  %1042 = vst.msk [vmem:[%s3 + $0x88] sm:$0xff] %vm1024, %v943
  %1043 = vst.msk [vmem:[%s3 + $0x90] sm:$0xff] %vm1024, %v944
  %1044 = vst.msk [vmem:[%s3 + $0x98] sm:$0xff] %vm1024, %v945
  %1045 = vst.msk [vmem:[%s3 + $0xa0] sm:$0xff] %vm1024, %v946
  %1046 = vst.msk [vmem:[%s3 + $0xa8] sm:$0xff] %vm1024, %v947
  %1047 = vst.msk [vmem:[%s3 + $0xb0] sm:$0xff] %vm1024, %v948
  %1048 = vst.msk [vmem:[%s3 + $0xb8] sm:$0xff] %vm1024, %v949
  %1049 = vst.msk [vmem:[%s3 + $0xc0] sm:$0xff] %vm1024, %v950
  %1050 = vst.msk [vmem:[%s3 + $0xc8] sm:$0xff] %vm1024, %v951
  %1051 = vst.msk [vmem:[%s3 + $0xd0] sm:$0xff] %vm1024, %v952
  %1052 = vst.msk [vmem:[%s3 + $0xd8] sm:$0xff] %vm1024, %v953
  %1053 = vst.msk [vmem:[%s3 + $0xe0] sm:$0xff] %vm1024, %v954
  %1054 = vst.msk [vmem:[%s3 + $0xe8] sm:$0xff] %vm1024, %v955
  %1055 = vst.msk [vmem:[%s3 + $0xf0] sm:$0xff] %vm1024, %v956
  %1056 = vst.msk [vmem:[%s3 + $0xf8] sm:$0xff] %vm1024, %v957
  %1057 = vst.msk [vmem:[%s3 + $0x100] sm:$0xff] %vm1024, %v958
  %1058 = vst.msk [vmem:[%s3 + $0x108] sm:$0xff] %vm1024, %v959
  %1059 = vst.msk [vmem:[%s3 + $0x110] sm:$0xff] %vm1024, %v960
  %1060 = vst.msk [vmem:[%s3 + $0x118] sm:$0xff] %vm1024, %v961
  %1061 = vst.msk [vmem:[%s3 + $0x120] sm:$0xff] %vm1024, %v962
  %1062 = vst.msk [vmem:[%s3 + $0x128] sm:$0xff] %vm1024, %v963
  %1063 = vst.msk [vmem:[%s3 + $0x130] sm:$0xff] %vm1024, %v964
  %1064 = vst.msk [vmem:[%s3 + $0x138] sm:$0xff] %vm1024, %v965
  %1065 = vst.msk [vmem:[%s3 + $0x140] sm:$0xff] %vm1024, %v966
  %1066 = vst.msk [vmem:[%s3 + $0x148] sm:$0xff] %vm1024, %v967
  %1067 = vst.msk [vmem:[%s3 + $0x150] sm:$0xff] %vm1024, %v968
  %1068 = vst.msk [vmem:[%s3 + $0x158] sm:$0xff] %vm1024, %v969
  %1069 = vst.msk [vmem:[%s3 + $0x160] sm:$0xff] %vm1024, %v970
  %1070 = vst.msk [vmem:[%s3 + $0x168] sm:$0xff] %vm1024, %v971
  %1071 = vst.msk [vmem:[%s3 + $0x170] sm:$0xff] %vm1024, %v972
  %1072 = vst.msk [vmem:[%s3 + $0x178] sm:$0xff] %vm1024, %v973
  %1073 = vst.msk [vmem:[%s3 + $0x180] sm:$0xff] %vm1024, %v974
  %1074 = vst.msk [vmem:[%s3 + $0x188] sm:$0xff] %vm1024, %v975
  %1075 = vst.msk [vmem:[%s3 + $0x190] sm:$0xff] %vm1024, %v976
  %1076 = vst.msk [vmem:[%s3 + $0x198] sm:$0xff] %vm1024, %v977
  %1077 = vst.msk [vmem:[%s3 + $0x1a0] sm:$0xff] %vm1024, %v978
  %1078 = vst.msk [vmem:[%s3 + $0x1a8] sm:$0xff] %vm1024, %v979
  %1079 = vst.msk [vmem:[%s3 + $0x1b0] sm:$0xff] %vm1024, %v980
  %1080 = vst.msk [vmem:[%s3 + $0x1b8] sm:$0xff] %vm1024, %v981
  %1081 = vst.msk [vmem:[%s3 + $0x1c0] sm:$0xff] %vm1024, %v982
  %1082 = vst.msk [vmem:[%s3 + $0x1c8] sm:$0xff] %vm1024, %v983
  %1083 = vst.msk [vmem:[%s3 + $0x1d0] sm:$0xff] %vm1024, %v984
  %1084 = vst.msk [vmem:[%s3 + $0x1d8] sm:$0xff] %vm1024, %v985
  %1085 = vst.msk [vmem:[%s3 + $0x1e0] sm:$0xff] %vm1024, %v986
  %1086 = vst.msk [vmem:[%s3 + $0x1e8] sm:$0xff] %vm1024, %v987
  %1087 = vst.msk [vmem:[%s3 + $0x1f0] sm:$0xff] %vm1024, %v988
  %1088 = vst.msk [vmem:[%s3 + $0x1f8] sm:$0xff] %vm1024, %v989
  %1089 = vst.msk [vmem:[%s3 + $0x200] sm:$0xff] %vm1024, %v990
  %1090 = vst.msk [vmem:[%s3 + $0x208] sm:$0xff] %vm1024, %v991
  %1091 = vst.msk [vmem:[%s3 + $0x210] sm:$0xff] %vm1024, %v992
  %1092 = vst.msk [vmem:[%s3 + $0x218] sm:$0xff] %vm1024, %v993
  %1093 = vst.msk [vmem:[%s3 + $0x220] sm:$0xff] %vm1024, %v994
  %1094 = vst.msk [vmem:[%s3 + $0x228] sm:$0xff] %vm1024, %v995
  %1095 = vst.msk [vmem:[%s3 + $0x230] sm:$0xff] %vm1024, %v996
  %1096 = vst.msk [vmem:[%s3 + $0x238] sm:$0xff] %vm1024, %v997
  %1097 = vst.msk [vmem:[%s3 + $0x240] sm:$0xff] %vm1024, %v998
  %1098 = vst.msk [vmem:[%s3 + $0x248] sm:$0xff] %vm1024, %v999
  %1099 = vst.msk [vmem:[%s3 + $0x250] sm:$0xff] %vm1024, %v1000
  %1100 = vst.msk [vmem:[%s3 + $0x258] sm:$0xff] %vm1024, %v1001
  %1101 = vst.msk [vmem:[%s3 + $0x260] sm:$0xff] %vm1024, %v1002
  %1102 = vst.msk [vmem:[%s3 + $0x268] sm:$0xff] %vm1024, %v1003
  %1103 = vst.msk [vmem:[%s3 + $0x270] sm:$0xff] %vm1024, %v1004
  %1104 = vst.msk [vmem:[%s3 + $0x278] sm:$0xff] %vm1024, %v1005
  %1105 = vst.msk [vmem:[%s3 + $0x280] sm:$0xff] %vm1024, %v1006
  %1106 = vst.msk [vmem:[%s3 + $0x288] sm:$0xff] %vm1024, %v1007
  %1107 = vst.msk [vmem:[%s3 + $0x290] sm:$0xff] %vm1024, %v1008
  %1108 = vst.msk [vmem:[%s3 + $0x298] sm:$0xff] %vm1024, %v1009
  %1109 = vst.msk [vmem:[%s3 + $0x2a0] sm:$0xff] %vm1024, %v1010
  %1110 = vst.msk [vmem:[%s3 + $0x2a8] sm:$0xff] %vm1024, %v1011
  %1111 = vst.msk [vmem:[%s3 + $0x2b0] sm:$0xff] %vm1024, %v1012
  %1112 = vst.msk [vmem:[%s3 + $0x2b8] sm:$0xff] %vm1024, %v1013
  %1113 = vst.msk [vmem:[%s3 + $0x2c0] sm:$0xff] %vm1024, %v1014
  %1114 = vst.msk [vmem:[%s3 + $0x2c8] sm:$0xff] %vm1024, %v1015
  %1115 = vst.msk [vmem:[%s3 + $0x2d0] sm:$0xff] %vm1024, %v1016
  %1116 = vst.msk [vmem:[%s3 + $0x2d8] sm:$0xff] %vm1024, %v1017
  %1117 = vst.msk [vmem:[%s3 + $0x2e0] sm:$0xff] %vm1024, %v1018
  %1118 = vst.msk [vmem:[%s3 + $0x2e8] sm:$0xff] %vm1024, %v1019
  %1119 = vst.msk [vmem:[%s3 + $0x2f0] sm:$0xff] %vm1024, %v1020
  %1120 = vst.msk [vmem:[%s3 + $0x2f8] sm:$0xff] %vm1024, %v1021
  %1121 = vst.msk [vmem:[%s3 + $0x300] sm:$0xff] %vm1024, %v1022
  %1122 = vst.msk [vmem:[%s3 + $0x308] sm:$0xff] %vm1024, %v1023
  // Predicated region
  $region14: #{mtrnn_forward.8} parent=0 // pred_check
    _
  $region15: #{mtrnn_forward.8} parent=0 // pred_check_branch
    %1124 = sbr.rel (0) target = $region17
  $region16: #{mtrnn_forward.8} parent=0 // pred_region
    _
  $region17: #{mtrnn_forward.8} parent=0 // pred_fallthru
    _
  // Predicated region
  $region18: #{mtrnn_forward.8} parent=0 // pred_check
    _
  $region19: #{mtrnn_forward.8} parent=0 // pred_check_branch
    %1126 = sbr.rel (0) target = $region21
  $region20: #{mtrnn_forward.8} parent=0 // pred_region
    _
  $region21: #{mtrnn_forward.8} parent=0 // pred_fallthru
    _

// kernel: mtrnn_forward.9
$region0: #{mtrnn_forward.9}
  #allocation0 [shape = 'u32[]', space=smem, size = 0x4, offset = 0x4, fixed_abs, tag = 'smem constant byte address 0x4 - core index']
  #allocation1 [shape = 'u32[72,128]{1,0:T(1,128)}', space=vmem, size = 0x9000, scoped, tag = 'internal scratch']
  %s0 = inlined_call_operand.vmem [shape: f32[576,288], index: 0, kind: input, shape index: {}]
  %s1 = inlined_call_operand.vmem [shape: f32[288,64], index: 1, kind: input, shape index: {}]
  %s2 = inlined_call_operand.vmem [shape: f32[1,64], index: 2, kind: input, shape index: {}]
  %s3 = inlined_call_operand.vmem [shape: f32[576,64], index: 3, kind: output, shape index: {}]
  %s4 = sld [smem:[#allocation0]]
  $region22: #{mtrnn_forward.9} parent=0
    _
  %s6 = ssub.s32 1, %s4
  %s7 = scalar_select 0, %s6, %s4
  // Predicated region
  $region2: #{mtrnn_forward.9} parent=0 // pred_check
    _
  $region3: #{mtrnn_forward.9} parent=0 // pred_check_branch
    %9 = sbr.rel (0) target = $region5
  $region4: #{mtrnn_forward.9} parent=0 // pred_region
    _
  $region5: #{mtrnn_forward.9} parent=0 // pred_fallthru
    _
  // Predicated region
  $region6: #{mtrnn_forward.9} parent=0 // pred_check
    _
  $region7: #{mtrnn_forward.9} parent=0 // pred_check_branch
    %11 = sbr.rel (0) target = $region9
  $region8: #{mtrnn_forward.9} parent=0 // pred_region
    _
  $region9: #{mtrnn_forward.9} parent=0 // pred_fallthru
    _
  // Predicated region
  $region10: #{mtrnn_forward.9} parent=0 // pred_check
    _
  $region11: #{mtrnn_forward.9} parent=0 // pred_check_branch
    %13 = sbr.rel (0) target = $region13
  $region12: #{mtrnn_forward.9} parent=0 // pred_region
    _
  $region13: #{mtrnn_forward.9} parent=0 // pred_fallthru
    _
  %v14 = vld [vmem:[%s0] sm:$0xff]
  %v15 = vld [vmem:[%s0 + $0x8] sm:$0xff]
  %v16 = vld [vmem:[%s0 + $0x10] sm:$0xff]
  %v17 = vld [vmem:[%s0 + $0x18] sm:$0xff]
  %v18 = vld [vmem:[%s0 + $0x20] sm:$0xff]
  %v19 = vld [vmem:[%s0 + $0x28] sm:$0xff]
  %v20 = vld [vmem:[%s0 + $0x30] sm:$0xff]
  %v21 = vld [vmem:[%s0 + $0x38] sm:$0xff]
  %v22 = vld [vmem:[%s0 + $0x40] sm:$0xff]
  %v23 = vld [vmem:[%s0 + $0x48] sm:$0xff]
  %v24 = vld [vmem:[%s0 + $0x50] sm:$0xff]
  %v25 = vld [vmem:[%s0 + $0x58] sm:$0xff]
  %v26 = vld [vmem:[%s0 + $0x60] sm:$0xff]
  %v27 = vld [vmem:[%s0 + $0x68] sm:$0xff]
  %v28 = vld [vmem:[%s0 + $0x70] sm:$0xff]
  %v29 = vld [vmem:[%s0 + $0x78] sm:$0xff]
  %v30 = vld [vmem:[%s0 + $0x80] sm:$0xff]
  %v31 = vld [vmem:[%s0 + $0x88] sm:$0xff]
  %v32 = vld [vmem:[%s0 + $0x90] sm:$0xff]
  %v33 = vld [vmem:[%s0 + $0x98] sm:$0xff]
  %v34 = vld [vmem:[%s0 + $0xa0] sm:$0xff]
  %v35 = vld [vmem:[%s0 + $0xa8] sm:$0xff]
  %v36 = vld [vmem:[%s0 + $0xb0] sm:$0xff]
  %v37 = vld [vmem:[%s0 + $0xb8] sm:$0xff]
  %v38 = vld [vmem:[%s0 + $0xc0] sm:$0xff]
  %v39 = vld [vmem:[%s0 + $0xc8] sm:$0xff]
  %v40 = vld [vmem:[%s0 + $0xd0] sm:$0xff]
  %v41 = vld [vmem:[%s0 + $0xd8] sm:$0xff]
  %v42 = vld [vmem:[%s0 + $0xe0] sm:$0xff]
  %v43 = vld [vmem:[%s0 + $0xe8] sm:$0xff]
  %v44 = vld [vmem:[%s0 + $0xf0] sm:$0xff]
  %v45 = vld [vmem:[%s0 + $0xf8] sm:$0xff]
  %v46 = vld [vmem:[%s0 + $0x100] sm:$0xff]
  %v47 = vld [vmem:[%s0 + $0x108] sm:$0xff]
  %v48 = vld [vmem:[%s0 + $0x110] sm:$0xff]
  %v49 = vld [vmem:[%s0 + $0x118] sm:$0xff]
  %v50 = vld [vmem:[%s0 + $0x120] sm:$0xff]
  %v51 = vld [vmem:[%s0 + $0x128] sm:$0xff]
  %v52 = vld [vmem:[%s0 + $0x130] sm:$0xff]
  %v53 = vld [vmem:[%s0 + $0x138] sm:$0xff]
  %v54 = vld [vmem:[%s0 + $0x140] sm:$0xff]
  %v55 = vld [vmem:[%s0 + $0x148] sm:$0xff]
  %v56 = vld [vmem:[%s0 + $0x150] sm:$0xff]
  %v57 = vld [vmem:[%s0 + $0x158] sm:$0xff]
  %v58 = vld [vmem:[%s0 + $0x160] sm:$0xff]
  %v59 = vld [vmem:[%s0 + $0x168] sm:$0xff]
  %v60 = vld [vmem:[%s0 + $0x170] sm:$0xff]
  %v61 = vld [vmem:[%s0 + $0x178] sm:$0xff]
  %v62 = vld [vmem:[%s0 + $0x180] sm:$0xff]
  %v63 = vld [vmem:[%s0 + $0x188] sm:$0xff]
  %v64 = vld [vmem:[%s0 + $0x190] sm:$0xff]
  %v65 = vld [vmem:[%s0 + $0x198] sm:$0xff]
  %v66 = vld [vmem:[%s0 + $0x1a0] sm:$0xff]
  %v67 = vld [vmem:[%s0 + $0x1a8] sm:$0xff]
  %v68 = vld [vmem:[%s0 + $0x1b0] sm:$0xff]
  %v69 = vld [vmem:[%s0 + $0x1b8] sm:$0xff]
  %v70 = vld [vmem:[%s0 + $0x1c0] sm:$0xff]
  %v71 = vld [vmem:[%s0 + $0x1c8] sm:$0xff]
  %v72 = vld [vmem:[%s0 + $0x1d0] sm:$0xff]
  %v73 = vld [vmem:[%s0 + $0x1d8] sm:$0xff]
  %v74 = vld [vmem:[%s0 + $0x1e0] sm:$0xff]
  %v75 = vld [vmem:[%s0 + $0x1e8] sm:$0xff]
  %v76 = vld [vmem:[%s0 + $0x1f0] sm:$0xff]
  %v77 = vld [vmem:[%s0 + $0x1f8] sm:$0xff]
  %v78 = vld [vmem:[%s0 + $0x200] sm:$0xff]
  %v79 = vld [vmem:[%s0 + $0x208] sm:$0xff]
  %v80 = vld [vmem:[%s0 + $0x210] sm:$0xff]
  %v81 = vld [vmem:[%s0 + $0x218] sm:$0xff]
  %v82 = vld [vmem:[%s0 + $0x220] sm:$0xff]
  %v83 = vld [vmem:[%s0 + $0x228] sm:$0xff]
  %v84 = vld [vmem:[%s0 + $0x230] sm:$0xff]
  %v85 = vld [vmem:[%s0 + $0x238] sm:$0xff]
  %v86 = vld [vmem:[%s0 + $0x240] sm:$0xff]
  %v87 = vld [vmem:[%s0 + $0x248] sm:$0xff]
  %v88 = vld [vmem:[%s0 + $0x250] sm:$0xff]
  %v89 = vld [vmem:[%s0 + $0x258] sm:$0xff]
  %v90 = vld [vmem:[%s0 + $0x260] sm:$0xff]
  %v91 = vld [vmem:[%s0 + $0x268] sm:$0xff]
  %v92 = vld [vmem:[%s0 + $0x270] sm:$0xff]
  %v93 = vld [vmem:[%s0 + $0x278] sm:$0xff]
  %v94 = vld [vmem:[%s0 + $0x280] sm:$0xff]
  %v95 = vld [vmem:[%s0 + $0x288] sm:$0xff]
  %v96 = vld [vmem:[%s0 + $0x290] sm:$0xff]
  %v97 = vld [vmem:[%s0 + $0x298] sm:$0xff]
  %v98 = vld [vmem:[%s0 + $0x2a0] sm:$0xff]
  %v99 = vld [vmem:[%s0 + $0x2a8] sm:$0xff]
  %v100 = vld [vmem:[%s0 + $0x2b0] sm:$0xff]
  %v101 = vld [vmem:[%s0 + $0x2b8] sm:$0xff]
  %v102 = vld [vmem:[%s0 + $0x2c0] sm:$0xff]
  %v103 = vld [vmem:[%s0 + $0x2c8] sm:$0xff]
  %v104 = vld [vmem:[%s0 + $0x2d0] sm:$0xff]
  %v105 = vld [vmem:[%s0 + $0x2d8] sm:$0xff]
  %v106 = vld [vmem:[%s0 + $0x2e0] sm:$0xff]
  %v107 = vld [vmem:[%s0 + $0x2e8] sm:$0xff]
  %v108 = vld [vmem:[%s0 + $0x2f0] sm:$0xff]
  %v109 = vld [vmem:[%s0 + $0x2f8] sm:$0xff]
  %v110 = vld [vmem:[%s0 + $0x300] sm:$0xff]
  %v111 = vld [vmem:[%s0 + $0x308] sm:$0xff]
  %v112 = vld [vmem:[%s0 + $0x310] sm:$0xff]
  %v113 = vld [vmem:[%s0 + $0x318] sm:$0xff]
  %v114 = vld [vmem:[%s0 + $0x320] sm:$0xff]
  %v115 = vld [vmem:[%s0 + $0x328] sm:$0xff]
  %v116 = vld [vmem:[%s0 + $0x330] sm:$0xff]
  %v117 = vld [vmem:[%s0 + $0x338] sm:$0xff]
  %v118 = vld [vmem:[%s0 + $0x340] sm:$0xff]
  %v119 = vld [vmem:[%s0 + $0x348] sm:$0xff]
  %v120 = vld [vmem:[%s0 + $0x350] sm:$0xff]
  %v121 = vld [vmem:[%s0 + $0x358] sm:$0xff]
  %v122 = vld [vmem:[%s0 + $0x360] sm:$0xff]
  %v123 = vld [vmem:[%s0 + $0x368] sm:$0xff]
  %v124 = vld [vmem:[%s0 + $0x370] sm:$0xff]
  %v125 = vld [vmem:[%s0 + $0x378] sm:$0xff]
  %v126 = vld [vmem:[%s0 + $0x380] sm:$0xff]
  %v127 = vld [vmem:[%s0 + $0x388] sm:$0xff]
  %v128 = vld [vmem:[%s0 + $0x390] sm:$0xff]
  %v129 = vld [vmem:[%s0 + $0x398] sm:$0xff]
  %v130 = vld [vmem:[%s0 + $0x3a0] sm:$0xff]
  %v131 = vld [vmem:[%s0 + $0x3a8] sm:$0xff]
  %v132 = vld [vmem:[%s0 + $0x3b0] sm:$0xff]
  %v133 = vld [vmem:[%s0 + $0x3b8] sm:$0xff]
  %v134 = vld [vmem:[%s0 + $0x3c0] sm:$0xff]
  %v135 = vld [vmem:[%s0 + $0x3c8] sm:$0xff]
  %v136 = vld [vmem:[%s0 + $0x3d0] sm:$0xff]
  %v137 = vld [vmem:[%s0 + $0x3d8] sm:$0xff]
  %v138 = vld [vmem:[%s0 + $0x3e0] sm:$0xff]
  %v139 = vld [vmem:[%s0 + $0x3e8] sm:$0xff]
  %v140 = vld [vmem:[%s0 + $0x3f0] sm:$0xff]
  %v141 = vld [vmem:[%s0 + $0x3f8] sm:$0xff]
  %v142 = vld [vmem:[%s0 + $0x400] sm:$0xff]
  %v143 = vld [vmem:[%s0 + $0x408] sm:$0xff]
  %v144 = vld [vmem:[%s0 + $0x410] sm:$0xff]
  %v145 = vld [vmem:[%s0 + $0x418] sm:$0xff]
  %v146 = vld [vmem:[%s0 + $0x420] sm:$0xff]
  %v147 = vld [vmem:[%s0 + $0x428] sm:$0xff]
  %v148 = vld [vmem:[%s0 + $0x430] sm:$0xff]
  %v149 = vld [vmem:[%s0 + $0x438] sm:$0xff]
  %v150 = vld [vmem:[%s0 + $0x440] sm:$0xff]
  %v151 = vld [vmem:[%s0 + $0x448] sm:$0xff]
  %v152 = vld [vmem:[%s0 + $0x450] sm:$0xff]
  %v153 = vld [vmem:[%s0 + $0x458] sm:$0xff]
  %v154 = vld [vmem:[%s0 + $0x460] sm:$0xff]
  %v155 = vld [vmem:[%s0 + $0x468] sm:$0xff]
  %v156 = vld [vmem:[%s0 + $0x470] sm:$0xff]
  %v157 = vld [vmem:[%s0 + $0x478] sm:$0xff]
  %v158 = vld [vmem:[%s0 + $0x480] sm:$0xff]
  %v159 = vld [vmem:[%s0 + $0x488] sm:$0xff]
  %v160 = vld [vmem:[%s0 + $0x490] sm:$0xff]
  %v161 = vld [vmem:[%s0 + $0x498] sm:$0xff]
  %v162 = vld [vmem:[%s0 + $0x4a0] sm:$0xff]
  %v163 = vld [vmem:[%s0 + $0x4a8] sm:$0xff]
  %v164 = vld [vmem:[%s0 + $0x4b0] sm:$0xff]
  %v165 = vld [vmem:[%s0 + $0x4b8] sm:$0xff]
  %v166 = vld [vmem:[%s0 + $0x4c0] sm:$0xff]
  %v167 = vld [vmem:[%s0 + $0x4c8] sm:$0xff]
  %v168 = vld [vmem:[%s0 + $0x4d0] sm:$0xff]
  %v169 = vld [vmem:[%s0 + $0x4d8] sm:$0xff]
  %v170 = vld [vmem:[%s0 + $0x4e0] sm:$0xff]
  %v171 = vld [vmem:[%s0 + $0x4e8] sm:$0xff]
  %v172 = vld [vmem:[%s0 + $0x4f0] sm:$0xff]
  %v173 = vld [vmem:[%s0 + $0x4f8] sm:$0xff]
  %v174 = vld [vmem:[%s0 + $0x500] sm:$0xff]
  %v175 = vld [vmem:[%s0 + $0x508] sm:$0xff]
  %v176 = vld [vmem:[%s0 + $0x510] sm:$0xff]
  %v177 = vld [vmem:[%s0 + $0x518] sm:$0xff]
  %v178 = vld [vmem:[%s0 + $0x520] sm:$0xff]
  %v179 = vld [vmem:[%s0 + $0x528] sm:$0xff]
  %v180 = vld [vmem:[%s0 + $0x530] sm:$0xff]
  %v181 = vld [vmem:[%s0 + $0x538] sm:$0xff]
  %v182 = vld [vmem:[%s0 + $0x540] sm:$0xff]
  %v183 = vld [vmem:[%s0 + $0x548] sm:$0xff]
  %v184 = vld [vmem:[%s0 + $0x550] sm:$0xff]
  %v185 = vld [vmem:[%s0 + $0x558] sm:$0xff]
  %v186 = vld [vmem:[%s0 + $0x560] sm:$0xff]
  %v187 = vld [vmem:[%s0 + $0x568] sm:$0xff]
  %v188 = vld [vmem:[%s0 + $0x570] sm:$0xff]
  %v189 = vld [vmem:[%s0 + $0x578] sm:$0xff]
  %v190 = vld [vmem:[%s0 + $0x580] sm:$0xff]
  %v191 = vld [vmem:[%s0 + $0x588] sm:$0xff]
  %v192 = vld [vmem:[%s0 + $0x590] sm:$0xff]
  %v193 = vld [vmem:[%s0 + $0x598] sm:$0xff]
  %v194 = vld [vmem:[%s0 + $0x5a0] sm:$0xff]
  %v195 = vld [vmem:[%s0 + $0x5a8] sm:$0xff]
  %v196 = vld [vmem:[%s0 + $0x5b0] sm:$0xff]
  %v197 = vld [vmem:[%s0 + $0x5b8] sm:$0xff]
  %v198 = vld [vmem:[%s0 + $0x5c0] sm:$0xff]
  %v199 = vld [vmem:[%s0 + $0x5c8] sm:$0xff]
  %v200 = vld [vmem:[%s0 + $0x5d0] sm:$0xff]
  %v201 = vld [vmem:[%s0 + $0x5d8] sm:$0xff]
  %v202 = vld [vmem:[%s0 + $0x5e0] sm:$0xff]
  %v203 = vld [vmem:[%s0 + $0x5e8] sm:$0xff]
  %v204 = vld [vmem:[%s0 + $0x5f0] sm:$0xff]
  %v205 = vld [vmem:[%s0 + $0x5f8] sm:$0xff]
  %v206 = vld [vmem:[%s0 + $0x600] sm:$0xff]
  %v207 = vld [vmem:[%s0 + $0x608] sm:$0xff]
  %v208 = vld [vmem:[%s0 + $0x610] sm:$0xff]
  %v209 = vld [vmem:[%s0 + $0x618] sm:$0xff]
  %v210 = vld [vmem:[%s0 + $0x620] sm:$0xff]
  %v211 = vld [vmem:[%s0 + $0x628] sm:$0xff]
  %v212 = vld [vmem:[%s0 + $0x630] sm:$0xff]
  %v213 = vld [vmem:[%s0 + $0x638] sm:$0xff]
  %v214 = vld [vmem:[%s0 + $0x640] sm:$0xff]
  %v215 = vld [vmem:[%s0 + $0x648] sm:$0xff]
  %v216 = vld [vmem:[%s0 + $0x650] sm:$0xff]
  %v217 = vld [vmem:[%s0 + $0x658] sm:$0xff]
  %v218 = vld [vmem:[%s0 + $0x660] sm:$0xff]
  %v219 = vld [vmem:[%s0 + $0x668] sm:$0xff]
  %v220 = vld [vmem:[%s0 + $0x670] sm:$0xff]
  %v221 = vld [vmem:[%s0 + $0x678] sm:$0xff]
  %v222 = vld [vmem:[%s0 + $0x680] sm:$0xff]
  %v223 = vld [vmem:[%s0 + $0x688] sm:$0xff]
  %v224 = vld [vmem:[%s0 + $0x690] sm:$0xff]
  %v225 = vld [vmem:[%s0 + $0x698] sm:$0xff]
  %v226 = vld [vmem:[%s0 + $0x6a0] sm:$0xff]
  %v227 = vld [vmem:[%s0 + $0x6a8] sm:$0xff]
  %v228 = vld [vmem:[%s0 + $0x6b0] sm:$0xff]
  %v229 = vld [vmem:[%s0 + $0x6b8] sm:$0xff]
  %v230 = vld [vmem:[%s1] sm:$0xff]
  %v231 = vld [vmem:[%s1 + $0x8] sm:$0xff]
  %v232 = vld [vmem:[%s1 + $0x10] sm:$0xff]
  %v233 = vld [vmem:[%s1 + $0x18] sm:$0xff]
  %v234 = vld [vmem:[%s1 + $0x20] sm:$0xff]
  %v235 = vld [vmem:[%s1 + $0x28] sm:$0xff]
  %v236 = vld [vmem:[%s1 + $0x30] sm:$0xff]
  %v237 = vld [vmem:[%s1 + $0x38] sm:$0xff]
  %v238 = vld [vmem:[%s1 + $0x40] sm:$0xff]
  %v239 = vld [vmem:[%s1 + $0x48] sm:$0xff]
  %v240 = vld [vmem:[%s1 + $0x50] sm:$0xff]
  %v241 = vld [vmem:[%s1 + $0x58] sm:$0xff]
  %v242 = vld [vmem:[%s1 + $0x60] sm:$0xff]
  %v243 = vld [vmem:[%s1 + $0x68] sm:$0xff]
  %v244 = vld [vmem:[%s1 + $0x70] sm:$0xff]
  %v245 = vld [vmem:[%s1 + $0x78] sm:$0xff]
  %v246 = vld [vmem:[%s1 + $0x80] sm:$0xff]
  %v247 = vld [vmem:[%s1 + $0x88] sm:$0xff]
  %v248 = vld [vmem:[%s1 + $0x90] sm:$0xff]
  %v249 = vld [vmem:[%s1 + $0x98] sm:$0xff]
  %v250 = vld [vmem:[%s1 + $0xa0] sm:$0xff]
  %v251 = vld [vmem:[%s1 + $0xa8] sm:$0xff]
  %v252 = vld [vmem:[%s1 + $0xb0] sm:$0xff]
  %v253 = vld [vmem:[%s1 + $0xb8] sm:$0xff]
  %v254 = vld [vmem:[%s1 + $0xc0] sm:$0xff]
  %v255 = vld [vmem:[%s1 + $0xc8] sm:$0xff]
  %v256 = vld [vmem:[%s1 + $0xd0] sm:$0xff]
  %v257 = vld [vmem:[%s1 + $0xd8] sm:$0xff]
  %v258 = vld [vmem:[%s1 + $0xe0] sm:$0xff]
  %v259 = vld [vmem:[%s1 + $0xe8] sm:$0xff]
  %v260 = vld [vmem:[%s1 + $0xf0] sm:$0xff]
  %v261 = vld [vmem:[%s1 + $0xf8] sm:$0xff]
  %v262 = vld [vmem:[%s1 + $0x100] sm:$0xff]
  %v263 = vld [vmem:[%s1 + $0x108] sm:$0xff]
  %v264 = vld [vmem:[%s1 + $0x110] sm:$0xff]
  %v265 = vld [vmem:[%s1 + $0x118] sm:$0xff]
  %v266 = vld [vmem:[%s2] sm:$0x1]
  %v268 = vperm.slane %v266, 0
  %vm270 = vcmask 261120
  %v272 = vsel %vm270, %v16, 0
  %v275 = vsel %vm270, %v19, 0
  %v278 = vsel %vm270, %v22, 0
  %v281 = vsel %vm270, %v25, 0
  %v284 = vsel %vm270, %v28, 0
  %v287 = vsel %vm270, %v31, 0
  %v290 = vsel %vm270, %v34, 0
  %v293 = vsel %vm270, %v37, 0
  %v296 = vsel %vm270, %v40, 0
  %v299 = vsel %vm270, %v43, 0
  %v302 = vsel %vm270, %v46, 0
  %v305 = vsel %vm270, %v49, 0
  %v308 = vsel %vm270, %v52, 0
  %v311 = vsel %vm270, %v55, 0
  %v314 = vsel %vm270, %v58, 0
  %v317 = vsel %vm270, %v61, 0
  %v320 = vsel %vm270, %v64, 0
  %v323 = vsel %vm270, %v67, 0
  %v326 = vsel %vm270, %v70, 0
  %v329 = vsel %vm270, %v73, 0
  %v332 = vsel %vm270, %v76, 0
  %v335 = vsel %vm270, %v79, 0
  %v338 = vsel %vm270, %v82, 0
  %v341 = vsel %vm270, %v85, 0
  %v344 = vsel %vm270, %v88, 0
  %v347 = vsel %vm270, %v91, 0
  %v350 = vsel %vm270, %v94, 0
  %v353 = vsel %vm270, %v97, 0
  %v356 = vsel %vm270, %v100, 0
  %v359 = vsel %vm270, %v103, 0
  %v362 = vsel %vm270, %v106, 0
  %v365 = vsel %vm270, %v109, 0
  %v368 = vsel %vm270, %v112, 0
  %v371 = vsel %vm270, %v115, 0
  %v374 = vsel %vm270, %v118, 0
  %v377 = vsel %vm270, %v121, 0
  %v380 = vsel %vm270, %v124, 0
  %v383 = vsel %vm270, %v127, 0
  %v386 = vsel %vm270, %v130, 0
  %v389 = vsel %vm270, %v133, 0
  %v392 = vsel %vm270, %v136, 0
  %v395 = vsel %vm270, %v139, 0
  %v398 = vsel %vm270, %v142, 0
  %v401 = vsel %vm270, %v145, 0
  %v404 = vsel %vm270, %v148, 0
  %v407 = vsel %vm270, %v151, 0
  %v410 = vsel %vm270, %v154, 0
  %v413 = vsel %vm270, %v157, 0
  %v416 = vsel %vm270, %v160, 0
  %v419 = vsel %vm270, %v163, 0
  %v422 = vsel %vm270, %v166, 0
  %v425 = vsel %vm270, %v169, 0
  %v428 = vsel %vm270, %v172, 0
  %v431 = vsel %vm270, %v175, 0
  %v434 = vsel %vm270, %v178, 0
  %v437 = vsel %vm270, %v181, 0
  %v440 = vsel %vm270, %v184, 0
  %v443 = vsel %vm270, %v187, 0
  %v446 = vsel %vm270, %v190, 0
  %v449 = vsel %vm270, %v193, 0
  %v452 = vsel %vm270, %v196, 0
  %v455 = vsel %vm270, %v199, 0
  %v458 = vsel %vm270, %v202, 0
  %v461 = vsel %vm270, %v205, 0
  %v464 = vsel %vm270, %v208, 0
  %v467 = vsel %vm270, %v211, 0
  %v470 = vsel %vm270, %v214, 0
  %v473 = vsel %vm270, %v217, 0
  %v476 = vsel %vm270, %v220, 0
  %v479 = vsel %vm270, %v223, 0
  %v482 = vsel %vm270, %v226, 0
  %v485 = vsel %vm270, %v229, 0
  %487 = vmatpush.msra.mxu0 %v245
  %488 = vmatpush.msra.mxu0 %v244
  %489 = vmatpush.msra.mxu0 %v243
  %490 = vmatpush.msra.mxu0 %v242
  %491 = vmatpush.msra.mxu0 %v241
  %492 = vmatpush.msra.mxu0 %v240
  %493 = vmatpush.msra.mxu0 %v239
  %494 = vmatpush.msra.mxu0 %v238
  %495 = vmatpush.msra.mxu0 %v237
  %496 = vmatpush.msra.mxu0 %v236
  %497 = vmatpush.msra.mxu0 %v235
  %498 = vmatpush.msra.mxu0 %v234
  %499 = vmatpush.msra.mxu0 %v233
  %500 = vmatpush.msra.mxu0 %v232
  %501 = vmatpush.msra.mxu0 %v231
  %502 = vmatpush.msra.mxu0 %v230
  %503 = vmatmul.f32.gmra.mxu0 %v14
  %v504 = vpop.f32.mrf.mxu0
  %v505 = vadd.f32 %v268, %v504
  %506 = vmatmul.f32.gmra.mxu0 %v17
  %v507 = vpop.f32.mrf.mxu0
  %v508 = vadd.f32 %v268, %v507
  %509 = vmatmul.f32.gmra.mxu0 %v20
  %v510 = vpop.f32.mrf.mxu0
  %v511 = vadd.f32 %v268, %v510
  %512 = vmatmul.f32.gmra.mxu0 %v23
  %v513 = vpop.f32.mrf.mxu0
  %v514 = vadd.f32 %v268, %v513
  %515 = vmatmul.f32.gmra.mxu0 %v26
  %v516 = vpop.f32.mrf.mxu0
  %v517 = vadd.f32 %v268, %v516
  %518 = vmatmul.f32.gmra.mxu0 %v29
  %v519 = vpop.f32.mrf.mxu0
  %v520 = vadd.f32 %v268, %v519
  %521 = vmatmul.f32.gmra.mxu0 %v32
  %v522 = vpop.f32.mrf.mxu0
  %v523 = vadd.f32 %v268, %v522
  %524 = vmatmul.f32.gmra.mxu0 %v35
  %v525 = vpop.f32.mrf.mxu0
  %v526 = vadd.f32 %v268, %v525
  %527 = vmatmul.f32.gmra.mxu0 %v38
  %v528 = vpop.f32.mrf.mxu0
  %v529 = vadd.f32 %v268, %v528
  %530 = vmatmul.f32.gmra.mxu0 %v41
  %v531 = vpop.f32.mrf.mxu0
  %v532 = vadd.f32 %v268, %v531
  %533 = vmatmul.f32.gmra.mxu0 %v44
  %v534 = vpop.f32.mrf.mxu0
  %v535 = vadd.f32 %v268, %v534
  %536 = vmatmul.f32.gmra.mxu0 %v47
  %v537 = vpop.f32.mrf.mxu0
  %v538 = vadd.f32 %v268, %v537
  %539 = vmatmul.f32.gmra.mxu0 %v50
  %v540 = vpop.f32.mrf.mxu0
  %v541 = vadd.f32 %v268, %v540
  %542 = vmatmul.f32.gmra.mxu0 %v53
  %v543 = vpop.f32.mrf.mxu0
  %v544 = vadd.f32 %v268, %v543
  %545 = vmatmul.f32.gmra.mxu0 %v56
  %v546 = vpop.f32.mrf.mxu0
  %v547 = vadd.f32 %v268, %v546
  %548 = vmatmul.f32.gmra.mxu0 %v59
  %v549 = vpop.f32.mrf.mxu0
  %v550 = vadd.f32 %v268, %v549
  %551 = vmatmul.f32.gmra.mxu0 %v62
  %v552 = vpop.f32.mrf.mxu0
  %v553 = vadd.f32 %v268, %v552
  %554 = vmatmul.f32.gmra.mxu0 %v65
  %v555 = vpop.f32.mrf.mxu0
  %v556 = vadd.f32 %v268, %v555
  %557 = vmatmul.f32.gmra.mxu0 %v68
  %v558 = vpop.f32.mrf.mxu0
  %v559 = vadd.f32 %v268, %v558
  %560 = vmatmul.f32.gmra.mxu0 %v71
  %v561 = vpop.f32.mrf.mxu0
  %v562 = vadd.f32 %v268, %v561
  %563 = vmatmul.f32.gmra.mxu0 %v74
  %v564 = vpop.f32.mrf.mxu0
  %v565 = vadd.f32 %v268, %v564
  %566 = vmatmul.f32.gmra.mxu0 %v77
  %v567 = vpop.f32.mrf.mxu0
  %v568 = vadd.f32 %v268, %v567
  %569 = vmatmul.f32.gmra.mxu0 %v80
  %v570 = vpop.f32.mrf.mxu0
  %v571 = vadd.f32 %v268, %v570
  %572 = vmatmul.f32.gmra.mxu0 %v83
  %v573 = vpop.f32.mrf.mxu0
  %v574 = vadd.f32 %v268, %v573
  %575 = vmatmul.f32.gmra.mxu0 %v86
  %v576 = vpop.f32.mrf.mxu0
  %v577 = vadd.f32 %v268, %v576
  %578 = vmatmul.f32.gmra.mxu0 %v89
  %v579 = vpop.f32.mrf.mxu0
  %v580 = vadd.f32 %v268, %v579
  %581 = vmatmul.f32.gmra.mxu0 %v92
  %v582 = vpop.f32.mrf.mxu0
  %v583 = vadd.f32 %v268, %v582
  %584 = vmatmul.f32.gmra.mxu0 %v95
  %v585 = vpop.f32.mrf.mxu0
  %v586 = vadd.f32 %v268, %v585
  %587 = vmatmul.f32.gmra.mxu0 %v98
  %v588 = vpop.f32.mrf.mxu0
  %v589 = vadd.f32 %v268, %v588
  %590 = vmatmul.f32.gmra.mxu0 %v101
  %v591 = vpop.f32.mrf.mxu0
  %v592 = vadd.f32 %v268, %v591
  %593 = vmatmul.f32.gmra.mxu0 %v104
  %v594 = vpop.f32.mrf.mxu0
  %v595 = vadd.f32 %v268, %v594
  %596 = vmatmul.f32.gmra.mxu0 %v107
  %v597 = vpop.f32.mrf.mxu0
  %v598 = vadd.f32 %v268, %v597
  %599 = vmatmul.f32.gmra.mxu0 %v110
  %v600 = vpop.f32.mrf.mxu0
  %v601 = vadd.f32 %v268, %v600
  %602 = vmatmul.f32.gmra.mxu0 %v113
  %v603 = vpop.f32.mrf.mxu0
  %v604 = vadd.f32 %v268, %v603
  %605 = vmatmul.f32.gmra.mxu0 %v116
  %v606 = vpop.f32.mrf.mxu0
  %v607 = vadd.f32 %v268, %v606
  %608 = vmatmul.f32.gmra.mxu0 %v119
  %v609 = vpop.f32.mrf.mxu0
  %v610 = vadd.f32 %v268, %v609
  %611 = vmatmul.f32.gmra.mxu0 %v122
  %v612 = vpop.f32.mrf.mxu0
  %v613 = vadd.f32 %v268, %v612
  %614 = vmatmul.f32.gmra.mxu0 %v125
  %v615 = vpop.f32.mrf.mxu0
  %v616 = vadd.f32 %v268, %v615
  %617 = vmatmul.f32.gmra.mxu0 %v128
  %v618 = vpop.f32.mrf.mxu0
  %v619 = vadd.f32 %v268, %v618
  %620 = vmatmul.f32.gmra.mxu0 %v131
  %v621 = vpop.f32.mrf.mxu0
  %v622 = vadd.f32 %v268, %v621
  %623 = vmatmul.f32.gmra.mxu0 %v134
  %v624 = vpop.f32.mrf.mxu0
  %v625 = vadd.f32 %v268, %v624
  %626 = vmatmul.f32.gmra.mxu0 %v137
  %v627 = vpop.f32.mrf.mxu0
  %v628 = vadd.f32 %v268, %v627
  %629 = vmatmul.f32.gmra.mxu0 %v140
  %v630 = vpop.f32.mrf.mxu0
  %v631 = vadd.f32 %v268, %v630
  %632 = vmatmul.f32.gmra.mxu0 %v143
  %v633 = vpop.f32.mrf.mxu0
  %v634 = vadd.f32 %v268, %v633
  %635 = vmatmul.f32.gmra.mxu0 %v146
  %v636 = vpop.f32.mrf.mxu0
  %v637 = vadd.f32 %v268, %v636
  %638 = vmatmul.f32.gmra.mxu0 %v149
  %v639 = vpop.f32.mrf.mxu0
  %v640 = vadd.f32 %v268, %v639
  %641 = vmatmul.f32.gmra.mxu0 %v152
  %v642 = vpop.f32.mrf.mxu0
  %v643 = vadd.f32 %v268, %v642
  %644 = vmatmul.f32.gmra.mxu0 %v155
  %v645 = vpop.f32.mrf.mxu0
  %v646 = vadd.f32 %v268, %v645
  %647 = vmatmul.f32.gmra.mxu0 %v158
  %v648 = vpop.f32.mrf.mxu0
  %v649 = vadd.f32 %v268, %v648
  %650 = vmatmul.f32.gmra.mxu0 %v161
  %v651 = vpop.f32.mrf.mxu0
  %v652 = vadd.f32 %v268, %v651
  %653 = vmatmul.f32.gmra.mxu0 %v164
  %v654 = vpop.f32.mrf.mxu0
  %v655 = vadd.f32 %v268, %v654
  %656 = vmatmul.f32.gmra.mxu0 %v167
  %v657 = vpop.f32.mrf.mxu0
  %v658 = vadd.f32 %v268, %v657
  %659 = vmatmul.f32.gmra.mxu0 %v170
  %v660 = vpop.f32.mrf.mxu0
  %v661 = vadd.f32 %v268, %v660
  %662 = vmatmul.f32.gmra.mxu0 %v173
  %v663 = vpop.f32.mrf.mxu0
  %v664 = vadd.f32 %v268, %v663
  %665 = vmatmul.f32.gmra.mxu0 %v176
  %v666 = vpop.f32.mrf.mxu0
  %v667 = vadd.f32 %v268, %v666
  %668 = vmatmul.f32.gmra.mxu0 %v179
  %v669 = vpop.f32.mrf.mxu0
  %v670 = vadd.f32 %v268, %v669
  %671 = vmatmul.f32.gmra.mxu0 %v182
  %v672 = vpop.f32.mrf.mxu0
  %v673 = vadd.f32 %v268, %v672
  %674 = vmatmul.f32.gmra.mxu0 %v185
  %v675 = vpop.f32.mrf.mxu0
  %v676 = vadd.f32 %v268, %v675
  %677 = vmatmul.f32.gmra.mxu0 %v188
  %v678 = vpop.f32.mrf.mxu0
  %v679 = vadd.f32 %v268, %v678
  %680 = vmatmul.f32.gmra.mxu0 %v191
  %v681 = vpop.f32.mrf.mxu0
  %v682 = vadd.f32 %v268, %v681
  %683 = vmatmul.f32.gmra.mxu0 %v194
  %v684 = vpop.f32.mrf.mxu0
  %v685 = vadd.f32 %v268, %v684
  %686 = vmatmul.f32.gmra.mxu0 %v197
  %v687 = vpop.f32.mrf.mxu0
  %v688 = vadd.f32 %v268, %v687
  %689 = vmatmul.f32.gmra.mxu0 %v200
  %v690 = vpop.f32.mrf.mxu0
  %v691 = vadd.f32 %v268, %v690
  %692 = vmatmul.f32.gmra.mxu0 %v203
  %v693 = vpop.f32.mrf.mxu0
  %v694 = vadd.f32 %v268, %v693
  %695 = vmatmul.f32.gmra.mxu0 %v206
  %v696 = vpop.f32.mrf.mxu0
  %v697 = vadd.f32 %v268, %v696
  %698 = vmatmul.f32.gmra.mxu0 %v209
  %v699 = vpop.f32.mrf.mxu0
  %v700 = vadd.f32 %v268, %v699
  %701 = vmatmul.f32.gmra.mxu0 %v212
  %v702 = vpop.f32.mrf.mxu0
  %v703 = vadd.f32 %v268, %v702
  %704 = vmatmul.f32.gmra.mxu0 %v215
  %v705 = vpop.f32.mrf.mxu0
  %v706 = vadd.f32 %v268, %v705
  %707 = vmatmul.f32.gmra.mxu0 %v218
  %v708 = vpop.f32.mrf.mxu0
  %v709 = vadd.f32 %v268, %v708
  %710 = vmatmul.f32.gmra.mxu0 %v221
  %v711 = vpop.f32.mrf.mxu0
  %v712 = vadd.f32 %v268, %v711
  %713 = vmatmul.f32.gmra.mxu0 %v224
  %v714 = vpop.f32.mrf.mxu0
  %v715 = vadd.f32 %v268, %v714
  %716 = vmatmul.f32.gmra.mxu0 %v227
  %v717 = vpop.f32.mrf.mxu0
  %v718 = vadd.f32 %v268, %v717
  %719 = vdwg.mxu0
  %720 = vmatpush.msra.mxu0 %v261
  %721 = vmatpush.msra.mxu0 %v260
  %722 = vmatpush.msra.mxu0 %v259
  %723 = vmatpush.msra.mxu0 %v258
  %724 = vmatpush.msra.mxu0 %v257
  %725 = vmatpush.msra.mxu0 %v256
  %726 = vmatpush.msra.mxu0 %v255
  %727 = vmatpush.msra.mxu0 %v254
  %728 = vmatpush.msra.mxu0 %v253
  %729 = vmatpush.msra.mxu0 %v252
  %730 = vmatpush.msra.mxu0 %v251
  %731 = vmatpush.msra.mxu0 %v250
  %732 = vmatpush.msra.mxu0 %v249
  %733 = vmatpush.msra.mxu0 %v248
  %734 = vmatpush.msra.mxu0 %v247
  %735 = vmatpush.msra.mxu0 %v246
  %736 = vmatmul.f32.gmra.mxu0 %v15
  %v737 = vpop.f32.mrf.mxu0
  %v738 = vadd.f32 %v505, %v737
  %739 = vmatmul.f32.gmra.mxu0 %v18
  %v740 = vpop.f32.mrf.mxu0
  %v741 = vadd.f32 %v508, %v740
  %742 = vmatmul.f32.gmra.mxu0 %v21
  %v743 = vpop.f32.mrf.mxu0
  %v744 = vadd.f32 %v511, %v743
  %745 = vmatmul.f32.gmra.mxu0 %v24
  %v746 = vpop.f32.mrf.mxu0
  %v747 = vadd.f32 %v514, %v746
  %748 = vmatmul.f32.gmra.mxu0 %v27
  %v749 = vpop.f32.mrf.mxu0
  %v750 = vadd.f32 %v517, %v749
  %751 = vmatmul.f32.gmra.mxu0 %v30
  %v752 = vpop.f32.mrf.mxu0
  %v753 = vadd.f32 %v520, %v752
  %754 = vmatmul.f32.gmra.mxu0 %v33
  %v755 = vpop.f32.mrf.mxu0
  %v756 = vadd.f32 %v523, %v755
  %757 = vmatmul.f32.gmra.mxu0 %v36
  %v758 = vpop.f32.mrf.mxu0
  %v759 = vadd.f32 %v526, %v758
  %760 = vmatmul.f32.gmra.mxu0 %v39
  %v761 = vpop.f32.mrf.mxu0
  %v762 = vadd.f32 %v529, %v761
  %763 = vmatmul.f32.gmra.mxu0 %v42
  %v764 = vpop.f32.mrf.mxu0
  %v765 = vadd.f32 %v532, %v764
  %766 = vmatmul.f32.gmra.mxu0 %v45
  %v767 = vpop.f32.mrf.mxu0
  %v768 = vadd.f32 %v535, %v767
  %769 = vmatmul.f32.gmra.mxu0 %v48
  %v770 = vpop.f32.mrf.mxu0
  %v771 = vadd.f32 %v538, %v770
  %772 = vmatmul.f32.gmra.mxu0 %v51
  %v773 = vpop.f32.mrf.mxu0
  %v774 = vadd.f32 %v541, %v773
  %775 = vmatmul.f32.gmra.mxu0 %v54
  %v776 = vpop.f32.mrf.mxu0
  %v777 = vadd.f32 %v544, %v776
  %778 = vmatmul.f32.gmra.mxu0 %v57
  %v779 = vpop.f32.mrf.mxu0
  %v780 = vadd.f32 %v547, %v779
  %781 = vmatmul.f32.gmra.mxu0 %v60
  %v782 = vpop.f32.mrf.mxu0
  %v783 = vadd.f32 %v550, %v782
  %784 = vmatmul.f32.gmra.mxu0 %v63
  %v785 = vpop.f32.mrf.mxu0
  %v786 = vadd.f32 %v553, %v785
  %787 = vmatmul.f32.gmra.mxu0 %v66
  %v788 = vpop.f32.mrf.mxu0
  %v789 = vadd.f32 %v556, %v788
  %790 = vmatmul.f32.gmra.mxu0 %v69
  %v791 = vpop.f32.mrf.mxu0
  %v792 = vadd.f32 %v559, %v791
  %793 = vmatmul.f32.gmra.mxu0 %v72
  %v794 = vpop.f32.mrf.mxu0
  %v795 = vadd.f32 %v562, %v794
  %796 = vmatmul.f32.gmra.mxu0 %v75
  %v797 = vpop.f32.mrf.mxu0
  %v798 = vadd.f32 %v565, %v797
  %799 = vmatmul.f32.gmra.mxu0 %v78
  %v800 = vpop.f32.mrf.mxu0
  %v801 = vadd.f32 %v568, %v800
  %802 = vmatmul.f32.gmra.mxu0 %v81
  %v803 = vpop.f32.mrf.mxu0
  %v804 = vadd.f32 %v571, %v803
  %805 = vmatmul.f32.gmra.mxu0 %v84
  %v806 = vpop.f32.mrf.mxu0
  %v807 = vadd.f32 %v574, %v806
  %808 = vmatmul.f32.gmra.mxu0 %v87
  %v809 = vpop.f32.mrf.mxu0
  %v810 = vadd.f32 %v577, %v809
  %811 = vmatmul.f32.gmra.mxu0 %v90
  %v812 = vpop.f32.mrf.mxu0
  %v813 = vadd.f32 %v580, %v812
  %814 = vmatmul.f32.gmra.mxu0 %v93
  %v815 = vpop.f32.mrf.mxu0
  %v816 = vadd.f32 %v583, %v815
  %817 = vmatmul.f32.gmra.mxu0 %v96
  %v818 = vpop.f32.mrf.mxu0
  %v819 = vadd.f32 %v586, %v818
  %820 = vmatmul.f32.gmra.mxu0 %v99
  %v821 = vpop.f32.mrf.mxu0
  %v822 = vadd.f32 %v589, %v821
  %823 = vmatmul.f32.gmra.mxu0 %v102
  %v824 = vpop.f32.mrf.mxu0
  %v825 = vadd.f32 %v592, %v824
  %826 = vmatmul.f32.gmra.mxu0 %v105
  %v827 = vpop.f32.mrf.mxu0
  %v828 = vadd.f32 %v595, %v827
  %829 = vmatmul.f32.gmra.mxu0 %v108
  %v830 = vpop.f32.mrf.mxu0
  %v831 = vadd.f32 %v598, %v830
  %832 = vmatmul.f32.gmra.mxu0 %v111
  %v833 = vpop.f32.mrf.mxu0
  %v834 = vadd.f32 %v601, %v833
  %835 = vmatmul.f32.gmra.mxu0 %v114
  %v836 = vpop.f32.mrf.mxu0
  %v837 = vadd.f32 %v604, %v836
  %838 = vmatmul.f32.gmra.mxu0 %v117
  %v839 = vpop.f32.mrf.mxu0
  %v840 = vadd.f32 %v607, %v839
  %841 = vmatmul.f32.gmra.mxu0 %v120
  %v842 = vpop.f32.mrf.mxu0
  %v843 = vadd.f32 %v610, %v842
  %844 = vmatmul.f32.gmra.mxu0 %v123
  %v845 = vpop.f32.mrf.mxu0
  %v846 = vadd.f32 %v613, %v845
  %847 = vmatmul.f32.gmra.mxu0 %v126
  %v848 = vpop.f32.mrf.mxu0
  %v849 = vadd.f32 %v616, %v848
  %850 = vmatmul.f32.gmra.mxu0 %v129
  %v851 = vpop.f32.mrf.mxu0
  %v852 = vadd.f32 %v619, %v851
  %853 = vmatmul.f32.gmra.mxu0 %v132
  %v854 = vpop.f32.mrf.mxu0
  %v855 = vadd.f32 %v622, %v854
  %856 = vmatmul.f32.gmra.mxu0 %v135
  %v857 = vpop.f32.mrf.mxu0
  %v858 = vadd.f32 %v625, %v857
  %859 = vmatmul.f32.gmra.mxu0 %v138
  %v860 = vpop.f32.mrf.mxu0
  %v861 = vadd.f32 %v628, %v860
  %862 = vmatmul.f32.gmra.mxu0 %v141
  %v863 = vpop.f32.mrf.mxu0
  %v864 = vadd.f32 %v631, %v863
  %865 = vmatmul.f32.gmra.mxu0 %v144
  %v866 = vpop.f32.mrf.mxu0
  %v867 = vadd.f32 %v634, %v866
  %868 = vmatmul.f32.gmra.mxu0 %v147
  %v869 = vpop.f32.mrf.mxu0
  %v870 = vadd.f32 %v637, %v869
  %871 = vmatmul.f32.gmra.mxu0 %v150
  %v872 = vpop.f32.mrf.mxu0
  %v873 = vadd.f32 %v640, %v872
  %874 = vmatmul.f32.gmra.mxu0 %v153
  %v875 = vpop.f32.mrf.mxu0
  %v876 = vadd.f32 %v643, %v875
  %877 = vmatmul.f32.gmra.mxu0 %v156
  %v878 = vpop.f32.mrf.mxu0
  %v879 = vadd.f32 %v646, %v878
  %880 = vmatmul.f32.gmra.mxu0 %v159
  %v881 = vpop.f32.mrf.mxu0
  %v882 = vadd.f32 %v649, %v881
  %883 = vmatmul.f32.gmra.mxu0 %v162
  %v884 = vpop.f32.mrf.mxu0
  %v885 = vadd.f32 %v652, %v884
  %886 = vmatmul.f32.gmra.mxu0 %v165
  %v887 = vpop.f32.mrf.mxu0
  %v888 = vadd.f32 %v655, %v887
  %889 = vmatmul.f32.gmra.mxu0 %v168
  %v890 = vpop.f32.mrf.mxu0
  %v891 = vadd.f32 %v658, %v890
  %892 = vmatmul.f32.gmra.mxu0 %v171
  %v893 = vpop.f32.mrf.mxu0
  %v894 = vadd.f32 %v661, %v893
  %895 = vmatmul.f32.gmra.mxu0 %v174
  %v896 = vpop.f32.mrf.mxu0
  %v897 = vadd.f32 %v664, %v896
  %898 = vmatmul.f32.gmra.mxu0 %v177
  %v899 = vpop.f32.mrf.mxu0
  %v900 = vadd.f32 %v667, %v899
  %901 = vmatmul.f32.gmra.mxu0 %v180
  %v902 = vpop.f32.mrf.mxu0
  %v903 = vadd.f32 %v670, %v902
  %904 = vmatmul.f32.gmra.mxu0 %v183
  %v905 = vpop.f32.mrf.mxu0
  %v906 = vadd.f32 %v673, %v905
  %907 = vmatmul.f32.gmra.mxu0 %v186
  %v908 = vpop.f32.mrf.mxu0
  %v909 = vadd.f32 %v676, %v908
  %910 = vmatmul.f32.gmra.mxu0 %v189
  %v911 = vpop.f32.mrf.mxu0
  %v912 = vadd.f32 %v679, %v911
  %913 = vmatmul.f32.gmra.mxu0 %v192
  %v914 = vpop.f32.mrf.mxu0
  %v915 = vadd.f32 %v682, %v914
  %916 = vmatmul.f32.gmra.mxu0 %v195
  %v917 = vpop.f32.mrf.mxu0
  %v918 = vadd.f32 %v685, %v917
  %919 = vmatmul.f32.gmra.mxu0 %v198
  %v920 = vpop.f32.mrf.mxu0
  %v921 = vadd.f32 %v688, %v920
  %922 = vmatmul.f32.gmra.mxu0 %v201
  %v923 = vpop.f32.mrf.mxu0
  %v924 = vadd.f32 %v691, %v923
  %925 = vmatmul.f32.gmra.mxu0 %v204
  %v926 = vpop.f32.mrf.mxu0
  %v927 = vadd.f32 %v694, %v926
  %928 = vmatmul.f32.gmra.mxu0 %v207
  %v929 = vpop.f32.mrf.mxu0
  %v930 = vadd.f32 %v697, %v929
  %931 = vmatmul.f32.gmra.mxu0 %v210
  %v932 = vpop.f32.mrf.mxu0
  %v933 = vadd.f32 %v700, %v932
  %934 = vmatmul.f32.gmra.mxu0 %v213
  %v935 = vpop.f32.mrf.mxu0
  %v936 = vadd.f32 %v703, %v935
  %937 = vmatmul.f32.gmra.mxu0 %v216
  %v938 = vpop.f32.mrf.mxu0
  %v939 = vadd.f32 %v706, %v938
  %940 = vmatmul.f32.gmra.mxu0 %v219
  %v941 = vpop.f32.mrf.mxu0
  %v942 = vadd.f32 %v709, %v941
  %943 = vmatmul.f32.gmra.mxu0 %v222
  %v944 = vpop.f32.mrf.mxu0
  %v945 = vadd.f32 %v712, %v944
  %946 = vmatmul.f32.gmra.mxu0 %v225
  %v947 = vpop.f32.mrf.mxu0
  %v948 = vadd.f32 %v715, %v947
  %949 = vmatmul.f32.gmra.mxu0 %v228
  %v950 = vpop.f32.mrf.mxu0
  %v951 = vadd.f32 %v718, %v950
  %952 = vdwg.mxu0
  %953 = vmatpush.msra.mxu0 0.0
  %954 = vmatpush.msra.mxu0 0.0
  %955 = vmatpush.msra.mxu0 0.0
  %956 = vmatpush.msra.mxu0 0.0
  %957 = vmatpush.msra.mxu0 0.0
  %958 = vmatpush.msra.mxu0 0.0
  %959 = vmatpush.msra.mxu0 0.0
  %960 = vmatpush.msra.mxu0 0.0
  %961 = vmatpush.msra.mxu0 0.0
  %962 = vmatpush.msra.mxu0 0.0
  %963 = vmatpush.msra.mxu0 0.0
  %964 = vmatpush.msra.mxu0 0.0
  %965 = vmatpush.msra.mxu0 %v265
  %966 = vmatpush.msra.mxu0 %v264
  %967 = vmatpush.msra.mxu0 %v263
  %968 = vmatpush.msra.mxu0 %v262
  %969 = vmatmul.f32.gmra.mxu0 %v272
  %v970 = vpop.f32.mrf.mxu0
  %v971 = vadd.f32 %v738, %v970
  %972 = vmatmul.f32.gmra.mxu0 %v275
  %v973 = vpop.f32.mrf.mxu0
  %v974 = vadd.f32 %v741, %v973
  %975 = vmatmul.f32.gmra.mxu0 %v278
  %v976 = vpop.f32.mrf.mxu0
  %v977 = vadd.f32 %v744, %v976
  %978 = vmatmul.f32.gmra.mxu0 %v281
  %v979 = vpop.f32.mrf.mxu0
  %v980 = vadd.f32 %v747, %v979
  %981 = vmatmul.f32.gmra.mxu0 %v284
  %v982 = vpop.f32.mrf.mxu0
  %v983 = vadd.f32 %v750, %v982
  %984 = vmatmul.f32.gmra.mxu0 %v287
  %v985 = vpop.f32.mrf.mxu0
  %v986 = vadd.f32 %v753, %v985
  %987 = vmatmul.f32.gmra.mxu0 %v290
  %v988 = vpop.f32.mrf.mxu0
  %v989 = vadd.f32 %v756, %v988
  %990 = vmatmul.f32.gmra.mxu0 %v293
  %v991 = vpop.f32.mrf.mxu0
  %v992 = vadd.f32 %v759, %v991
  %993 = vmatmul.f32.gmra.mxu0 %v296
  %v994 = vpop.f32.mrf.mxu0
  %v995 = vadd.f32 %v762, %v994
  %996 = vmatmul.f32.gmra.mxu0 %v299
  %v997 = vpop.f32.mrf.mxu0
  %v998 = vadd.f32 %v765, %v997
  %999 = vmatmul.f32.gmra.mxu0 %v302
  %v1000 = vpop.f32.mrf.mxu0
  %v1001 = vadd.f32 %v768, %v1000
  %1002 = vmatmul.f32.gmra.mxu0 %v305
  %v1003 = vpop.f32.mrf.mxu0
  %v1004 = vadd.f32 %v771, %v1003
  %1005 = vmatmul.f32.gmra.mxu0 %v308
  %v1006 = vpop.f32.mrf.mxu0
  %v1007 = vadd.f32 %v774, %v1006
  %1008 = vmatmul.f32.gmra.mxu0 %v311
  %v1009 = vpop.f32.mrf.mxu0
  %v1010 = vadd.f32 %v777, %v1009
  %1011 = vmatmul.f32.gmra.mxu0 %v314
  %v1012 = vpop.f32.mrf.mxu0
  %v1013 = vadd.f32 %v780, %v1012
  %1014 = vmatmul.f32.gmra.mxu0 %v317
  %v1015 = vpop.f32.mrf.mxu0
  %v1016 = vadd.f32 %v783, %v1015
  %1017 = vmatmul.f32.gmra.mxu0 %v320
  %v1018 = vpop.f32.mrf.mxu0
  %v1019 = vadd.f32 %v786, %v1018
  %1020 = vmatmul.f32.gmra.mxu0 %v323
  %v1021 = vpop.f32.mrf.mxu0
  %v1022 = vadd.f32 %v789, %v1021
  %1023 = vmatmul.f32.gmra.mxu0 %v326
  %v1024 = vpop.f32.mrf.mxu0
  %v1025 = vadd.f32 %v792, %v1024
  %1026 = vmatmul.f32.gmra.mxu0 %v329
  %v1027 = vpop.f32.mrf.mxu0
  %v1028 = vadd.f32 %v795, %v1027
  %1029 = vmatmul.f32.gmra.mxu0 %v332
  %v1030 = vpop.f32.mrf.mxu0
  %v1031 = vadd.f32 %v798, %v1030
  %1032 = vmatmul.f32.gmra.mxu0 %v335
  %v1033 = vpop.f32.mrf.mxu0
  %v1034 = vadd.f32 %v801, %v1033
  %1035 = vmatmul.f32.gmra.mxu0 %v338
  %v1036 = vpop.f32.mrf.mxu0
  %v1037 = vadd.f32 %v804, %v1036
  %1038 = vmatmul.f32.gmra.mxu0 %v341
  %v1039 = vpop.f32.mrf.mxu0
  %v1040 = vadd.f32 %v807, %v1039
  %1041 = vmatmul.f32.gmra.mxu0 %v344
  %v1042 = vpop.f32.mrf.mxu0
  %v1043 = vadd.f32 %v810, %v1042
  %1044 = vmatmul.f32.gmra.mxu0 %v347
  %v1045 = vpop.f32.mrf.mxu0
  %v1046 = vadd.f32 %v813, %v1045
  %1047 = vmatmul.f32.gmra.mxu0 %v350
  %v1048 = vpop.f32.mrf.mxu0
  %v1049 = vadd.f32 %v816, %v1048
  %1050 = vmatmul.f32.gmra.mxu0 %v353
  %v1051 = vpop.f32.mrf.mxu0
  %v1052 = vadd.f32 %v819, %v1051
  %1053 = vmatmul.f32.gmra.mxu0 %v356
  %v1054 = vpop.f32.mrf.mxu0
  %v1055 = vadd.f32 %v822, %v1054
  %1056 = vmatmul.f32.gmra.mxu0 %v359
  %v1057 = vpop.f32.mrf.mxu0
  %v1058 = vadd.f32 %v825, %v1057
  %1059 = vmatmul.f32.gmra.mxu0 %v362
  %v1060 = vpop.f32.mrf.mxu0
  %v1061 = vadd.f32 %v828, %v1060
  %1062 = vmatmul.f32.gmra.mxu0 %v365
  %v1063 = vpop.f32.mrf.mxu0
  %v1064 = vadd.f32 %v831, %v1063
  %1065 = vmatmul.f32.gmra.mxu0 %v368
  %v1066 = vpop.f32.mrf.mxu0
  %v1067 = vadd.f32 %v834, %v1066
  %1068 = vmatmul.f32.gmra.mxu0 %v371
  %v1069 = vpop.f32.mrf.mxu0
  %v1070 = vadd.f32 %v837, %v1069
  %1071 = vmatmul.f32.gmra.mxu0 %v374
  %v1072 = vpop.f32.mrf.mxu0
  %v1073 = vadd.f32 %v840, %v1072
  %1074 = vmatmul.f32.gmra.mxu0 %v377
  %v1075 = vpop.f32.mrf.mxu0
  %v1076 = vadd.f32 %v843, %v1075
  %1077 = vmatmul.f32.gmra.mxu0 %v380
  %v1078 = vpop.f32.mrf.mxu0
  %v1079 = vadd.f32 %v846, %v1078
  %1080 = vmatmul.f32.gmra.mxu0 %v383
  %v1081 = vpop.f32.mrf.mxu0
  %v1082 = vadd.f32 %v849, %v1081
  %1083 = vmatmul.f32.gmra.mxu0 %v386
  %v1084 = vpop.f32.mrf.mxu0
  %v1085 = vadd.f32 %v852, %v1084
  %1086 = vmatmul.f32.gmra.mxu0 %v389
  %v1087 = vpop.f32.mrf.mxu0
  %v1088 = vadd.f32 %v855, %v1087
  %1089 = vmatmul.f32.gmra.mxu0 %v392
  %v1090 = vpop.f32.mrf.mxu0
  %v1091 = vadd.f32 %v858, %v1090
  %1092 = vmatmul.f32.gmra.mxu0 %v395
  %v1093 = vpop.f32.mrf.mxu0
  %v1094 = vadd.f32 %v861, %v1093
  %1095 = vmatmul.f32.gmra.mxu0 %v398
  %v1096 = vpop.f32.mrf.mxu0
  %v1097 = vadd.f32 %v864, %v1096
  %1098 = vmatmul.f32.gmra.mxu0 %v401
  %v1099 = vpop.f32.mrf.mxu0
  %v1100 = vadd.f32 %v867, %v1099
  %1101 = vmatmul.f32.gmra.mxu0 %v404
  %v1102 = vpop.f32.mrf.mxu0
  %v1103 = vadd.f32 %v870, %v1102
  %1104 = vmatmul.f32.gmra.mxu0 %v407
  %v1105 = vpop.f32.mrf.mxu0
  %v1106 = vadd.f32 %v873, %v1105
  %1107 = vmatmul.f32.gmra.mxu0 %v410
  %v1108 = vpop.f32.mrf.mxu0
  %v1109 = vadd.f32 %v876, %v1108
  %1110 = vmatmul.f32.gmra.mxu0 %v413
  %v1111 = vpop.f32.mrf.mxu0
  %v1112 = vadd.f32 %v879, %v1111
  %1113 = vmatmul.f32.gmra.mxu0 %v416
  %v1114 = vpop.f32.mrf.mxu0
  %v1115 = vadd.f32 %v882, %v1114
  %1116 = vmatmul.f32.gmra.mxu0 %v419
  %v1117 = vpop.f32.mrf.mxu0
  %v1118 = vadd.f32 %v885, %v1117
  %1119 = vmatmul.f32.gmra.mxu0 %v422
  %v1120 = vpop.f32.mrf.mxu0
  %v1121 = vadd.f32 %v888, %v1120
  %1122 = vmatmul.f32.gmra.mxu0 %v425
  %v1123 = vpop.f32.mrf.mxu0
  %v1124 = vadd.f32 %v891, %v1123
  %1125 = vmatmul.f32.gmra.mxu0 %v428
  %v1126 = vpop.f32.mrf.mxu0
  %v1127 = vadd.f32 %v894, %v1126
  %1128 = vmatmul.f32.gmra.mxu0 %v431
  %v1129 = vpop.f32.mrf.mxu0
  %v1130 = vadd.f32 %v897, %v1129
  %1131 = vmatmul.f32.gmra.mxu0 %v434
  %v1132 = vpop.f32.mrf.mxu0
  %v1133 = vadd.f32 %v900, %v1132
  %1134 = vmatmul.f32.gmra.mxu0 %v437
  %v1135 = vpop.f32.mrf.mxu0
  %v1136 = vadd.f32 %v903, %v1135
  %1137 = vmatmul.f32.gmra.mxu0 %v440
  %v1138 = vpop.f32.mrf.mxu0
  %v1139 = vadd.f32 %v906, %v1138
  %1140 = vmatmul.f32.gmra.mxu0 %v443
  %v1141 = vpop.f32.mrf.mxu0
  %v1142 = vadd.f32 %v909, %v1141
  %1143 = vmatmul.f32.gmra.mxu0 %v446
  %v1144 = vpop.f32.mrf.mxu0
  %v1145 = vadd.f32 %v912, %v1144
  %1146 = vmatmul.f32.gmra.mxu0 %v449
  %v1147 = vpop.f32.mrf.mxu0
  %v1148 = vadd.f32 %v915, %v1147
  %1149 = vmatmul.f32.gmra.mxu0 %v452
  %v1150 = vpop.f32.mrf.mxu0
  %v1151 = vadd.f32 %v918, %v1150
  %1152 = vmatmul.f32.gmra.mxu0 %v455
  %v1153 = vpop.f32.mrf.mxu0
  %v1154 = vadd.f32 %v921, %v1153
  %1155 = vmatmul.f32.gmra.mxu0 %v458
  %v1156 = vpop.f32.mrf.mxu0
  %v1157 = vadd.f32 %v924, %v1156
  %1158 = vmatmul.f32.gmra.mxu0 %v461
  %v1159 = vpop.f32.mrf.mxu0
  %v1160 = vadd.f32 %v927, %v1159
  %1161 = vmatmul.f32.gmra.mxu0 %v464
  %v1162 = vpop.f32.mrf.mxu0
  %v1163 = vadd.f32 %v930, %v1162
  %1164 = vmatmul.f32.gmra.mxu0 %v467
  %v1165 = vpop.f32.mrf.mxu0
  %v1166 = vadd.f32 %v933, %v1165
  %1167 = vmatmul.f32.gmra.mxu0 %v470
  %v1168 = vpop.f32.mrf.mxu0
  %v1169 = vadd.f32 %v936, %v1168
  %1170 = vmatmul.f32.gmra.mxu0 %v473
  %v1171 = vpop.f32.mrf.mxu0
  %v1172 = vadd.f32 %v939, %v1171
  %1173 = vmatmul.f32.gmra.mxu0 %v476
  %v1174 = vpop.f32.mrf.mxu0
  %v1175 = vadd.f32 %v942, %v1174
  %1176 = vmatmul.f32.gmra.mxu0 %v479
  %v1177 = vpop.f32.mrf.mxu0
  %v1178 = vadd.f32 %v945, %v1177
  %1179 = vmatmul.f32.gmra.mxu0 %v482
  %v1180 = vpop.f32.mrf.mxu0
  %v1181 = vadd.f32 %v948, %v1180
  %1182 = vmatmul.f32.gmra.mxu0 %v485
  %v1183 = vpop.f32.mrf.mxu0
  %v1184 = vadd.f32 %v951, %v1183
  %1185 = vdwg.mxu0
  %vm1186 = vcmp.ge.f32.partialorder %v971, 0.0
  %vm1187 = vcmp.ge.f32.partialorder %v974, 0.0
  %vm1188 = vcmp.ge.f32.partialorder %v977, 0.0
  %vm1189 = vcmp.ge.f32.partialorder %v980, 0.0
  %vm1190 = vcmp.ge.f32.partialorder %v983, 0.0
  %vm1191 = vcmp.ge.f32.partialorder %v986, 0.0
  %vm1192 = vcmp.ge.f32.partialorder %v989, 0.0
  %vm1193 = vcmp.ge.f32.partialorder %v992, 0.0
  %vm1194 = vcmp.ge.f32.partialorder %v995, 0.0
  %vm1195 = vcmp.ge.f32.partialorder %v998, 0.0
  %vm1196 = vcmp.ge.f32.partialorder %v1001, 0.0
  %vm1197 = vcmp.ge.f32.partialorder %v1004, 0.0
  %vm1198 = vcmp.ge.f32.partialorder %v1007, 0.0
  %vm1199 = vcmp.ge.f32.partialorder %v1010, 0.0
  %vm1200 = vcmp.ge.f32.partialorder %v1013, 0.0
  %vm1201 = vcmp.ge.f32.partialorder %v1016, 0.0
  %vm1202 = vcmp.ge.f32.partialorder %v1019, 0.0
  %vm1203 = vcmp.ge.f32.partialorder %v1022, 0.0
  %vm1204 = vcmp.ge.f32.partialorder %v1025, 0.0
  %vm1205 = vcmp.ge.f32.partialorder %v1028, 0.0
  %vm1206 = vcmp.ge.f32.partialorder %v1031, 0.0
  %vm1207 = vcmp.ge.f32.partialorder %v1034, 0.0
  %vm1208 = vcmp.ge.f32.partialorder %v1037, 0.0
  %vm1209 = vcmp.ge.f32.partialorder %v1040, 0.0
  %vm1210 = vcmp.ge.f32.partialorder %v1043, 0.0
  %vm1211 = vcmp.ge.f32.partialorder %v1046, 0.0
  %vm1212 = vcmp.ge.f32.partialorder %v1049, 0.0
  %vm1213 = vcmp.ge.f32.partialorder %v1052, 0.0
  %vm1214 = vcmp.ge.f32.partialorder %v1055, 0.0
  %vm1215 = vcmp.ge.f32.partialorder %v1058, 0.0
  %vm1216 = vcmp.ge.f32.partialorder %v1061, 0.0
  %vm1217 = vcmp.ge.f32.partialorder %v1064, 0.0
  %vm1218 = vcmp.ge.f32.partialorder %v1067, 0.0
  %vm1219 = vcmp.ge.f32.partialorder %v1070, 0.0
  %vm1220 = vcmp.ge.f32.partialorder %v1073, 0.0
  %vm1221 = vcmp.ge.f32.partialorder %v1076, 0.0
  %vm1222 = vcmp.ge.f32.partialorder %v1079, 0.0
  %vm1223 = vcmp.ge.f32.partialorder %v1082, 0.0
  %vm1224 = vcmp.ge.f32.partialorder %v1085, 0.0
  %vm1225 = vcmp.ge.f32.partialorder %v1088, 0.0
  %vm1226 = vcmp.ge.f32.partialorder %v1091, 0.0
  %vm1227 = vcmp.ge.f32.partialorder %v1094, 0.0
  %vm1228 = vcmp.ge.f32.partialorder %v1097, 0.0
  %vm1229 = vcmp.ge.f32.partialorder %v1100, 0.0
  %vm1230 = vcmp.ge.f32.partialorder %v1103, 0.0
  %vm1231 = vcmp.ge.f32.partialorder %v1106, 0.0
  %vm1232 = vcmp.ge.f32.partialorder %v1109, 0.0
  %vm1233 = vcmp.ge.f32.partialorder %v1112, 0.0
  %vm1234 = vcmp.ge.f32.partialorder %v1115, 0.0
  %vm1235 = vcmp.ge.f32.partialorder %v1118, 0.0
  %vm1236 = vcmp.ge.f32.partialorder %v1121, 0.0
  %vm1237 = vcmp.ge.f32.partialorder %v1124, 0.0
  %vm1238 = vcmp.ge.f32.partialorder %v1127, 0.0
  %vm1239 = vcmp.ge.f32.partialorder %v1130, 0.0
  %vm1240 = vcmp.ge.f32.partialorder %v1133, 0.0
  %vm1241 = vcmp.ge.f32.partialorder %v1136, 0.0
  %vm1242 = vcmp.ge.f32.partialorder %v1139, 0.0
  %vm1243 = vcmp.ge.f32.partialorder %v1142, 0.0
  %vm1244 = vcmp.ge.f32.partialorder %v1145, 0.0
  %vm1245 = vcmp.ge.f32.partialorder %v1148, 0.0
  %vm1246 = vcmp.ge.f32.partialorder %v1151, 0.0
  %vm1247 = vcmp.ge.f32.partialorder %v1154, 0.0
  %vm1248 = vcmp.ge.f32.partialorder %v1157, 0.0
  %vm1249 = vcmp.ge.f32.partialorder %v1160, 0.0
  %vm1250 = vcmp.ge.f32.partialorder %v1163, 0.0
  %vm1251 = vcmp.ge.f32.partialorder %v1166, 0.0
  %vm1252 = vcmp.ge.f32.partialorder %v1169, 0.0
  %vm1253 = vcmp.ge.f32.partialorder %v1172, 0.0
  %vm1254 = vcmp.ge.f32.partialorder %v1175, 0.0
  %vm1255 = vcmp.ge.f32.partialorder %v1178, 0.0
  %vm1256 = vcmp.ge.f32.partialorder %v1181, 0.0
  %vm1257 = vcmp.ge.f32.partialorder %v1184, 0.0
  %v1258 = vmul.f32 %v971, 0.01
  %v1259 = vmul.f32 %v974, 0.01
  %v1260 = vmul.f32 %v977, 0.01
  %v1261 = vmul.f32 %v980, 0.01
  %v1262 = vmul.f32 %v983, 0.01
  %v1263 = vmul.f32 %v986, 0.01
  %v1264 = vmul.f32 %v989, 0.01
  %v1265 = vmul.f32 %v992, 0.01
  %v1266 = vmul.f32 %v995, 0.01
  %v1267 = vmul.f32 %v998, 0.01
  %v1268 = vmul.f32 %v1001, 0.01
  %v1269 = vmul.f32 %v1004, 0.01
  %v1270 = vmul.f32 %v1007, 0.01
  %v1271 = vmul.f32 %v1010, 0.01
  %v1272 = vmul.f32 %v1013, 0.01
  %v1273 = vmul.f32 %v1016, 0.01
  %v1274 = vmul.f32 %v1019, 0.01
  %v1275 = vmul.f32 %v1022, 0.01
  %v1276 = vmul.f32 %v1025, 0.01
  %v1277 = vmul.f32 %v1028, 0.01
  %v1278 = vmul.f32 %v1031, 0.01
  %v1279 = vmul.f32 %v1034, 0.01
  %v1280 = vmul.f32 %v1037, 0.01
  %v1281 = vmul.f32 %v1040, 0.01
  %v1282 = vmul.f32 %v1043, 0.01
  %v1283 = vmul.f32 %v1046, 0.01
  %v1284 = vmul.f32 %v1049, 0.01
  %v1285 = vmul.f32 %v1052, 0.01
  %v1286 = vmul.f32 %v1055, 0.01
  %v1287 = vmul.f32 %v1058, 0.01
  %v1288 = vmul.f32 %v1061, 0.01
  %v1289 = vmul.f32 %v1064, 0.01
  %v1290 = vmul.f32 %v1067, 0.01
  %v1291 = vmul.f32 %v1070, 0.01
  %v1292 = vmul.f32 %v1073, 0.01
  %v1293 = vmul.f32 %v1076, 0.01
  %v1294 = vmul.f32 %v1079, 0.01
  %v1295 = vmul.f32 %v1082, 0.01
  %v1296 = vmul.f32 %v1085, 0.01
  %v1297 = vmul.f32 %v1088, 0.01
  %v1298 = vmul.f32 %v1091, 0.01
  %v1299 = vmul.f32 %v1094, 0.01
  %v1300 = vmul.f32 %v1097, 0.01
  %v1301 = vmul.f32 %v1100, 0.01
  %v1302 = vmul.f32 %v1103, 0.01
  %v1303 = vmul.f32 %v1106, 0.01
  %v1304 = vmul.f32 %v1109, 0.01
  %v1305 = vmul.f32 %v1112, 0.01
  %v1306 = vmul.f32 %v1115, 0.01
  %v1307 = vmul.f32 %v1118, 0.01
  %v1308 = vmul.f32 %v1121, 0.01
  %v1309 = vmul.f32 %v1124, 0.01
  %v1310 = vmul.f32 %v1127, 0.01
  %v1311 = vmul.f32 %v1130, 0.01
  %v1312 = vmul.f32 %v1133, 0.01
  %v1313 = vmul.f32 %v1136, 0.01
  %v1314 = vmul.f32 %v1139, 0.01
  %v1315 = vmul.f32 %v1142, 0.01
  %v1316 = vmul.f32 %v1145, 0.01
  %v1317 = vmul.f32 %v1148, 0.01
  %v1318 = vmul.f32 %v1151, 0.01
  %v1319 = vmul.f32 %v1154, 0.01
  %v1320 = vmul.f32 %v1157, 0.01
  %v1321 = vmul.f32 %v1160, 0.01
  %v1322 = vmul.f32 %v1163, 0.01
  %v1323 = vmul.f32 %v1166, 0.01
  %v1324 = vmul.f32 %v1169, 0.01
  %v1325 = vmul.f32 %v1172, 0.01
  %v1326 = vmul.f32 %v1175, 0.01
  %v1327 = vmul.f32 %v1178, 0.01
  %v1328 = vmul.f32 %v1181, 0.01
  %v1329 = vmul.f32 %v1184, 0.01
  %v1330 = vsel %vm1186, %v971, %v1258
  %v1331 = vsel %vm1187, %v974, %v1259
  %v1332 = vsel %vm1188, %v977, %v1260
  %v1333 = vsel %vm1189, %v980, %v1261
  %v1334 = vsel %vm1190, %v983, %v1262
  %v1335 = vsel %vm1191, %v986, %v1263
  %v1336 = vsel %vm1192, %v989, %v1264
  %v1337 = vsel %vm1193, %v992, %v1265
  %v1338 = vsel %vm1194, %v995, %v1266
  %v1339 = vsel %vm1195, %v998, %v1267
  %v1340 = vsel %vm1196, %v1001, %v1268
  %v1341 = vsel %vm1197, %v1004, %v1269
  %v1342 = vsel %vm1198, %v1007, %v1270
  %v1343 = vsel %vm1199, %v1010, %v1271
  %v1344 = vsel %vm1200, %v1013, %v1272
  %v1345 = vsel %vm1201, %v1016, %v1273
  %v1346 = vsel %vm1202, %v1019, %v1274
  %v1347 = vsel %vm1203, %v1022, %v1275
  %v1348 = vsel %vm1204, %v1025, %v1276
  %v1349 = vsel %vm1205, %v1028, %v1277
  %v1350 = vsel %vm1206, %v1031, %v1278
  %v1351 = vsel %vm1207, %v1034, %v1279
  %v1352 = vsel %vm1208, %v1037, %v1280
  %v1353 = vsel %vm1209, %v1040, %v1281
  %v1354 = vsel %vm1210, %v1043, %v1282
  %v1355 = vsel %vm1211, %v1046, %v1283
  %v1356 = vsel %vm1212, %v1049, %v1284
  %v1357 = vsel %vm1213, %v1052, %v1285
  %v1358 = vsel %vm1214, %v1055, %v1286
  %v1359 = vsel %vm1215, %v1058, %v1287
  %v1360 = vsel %vm1216, %v1061, %v1288
  %v1361 = vsel %vm1217, %v1064, %v1289
  %v1362 = vsel %vm1218, %v1067, %v1290
  %v1363 = vsel %vm1219, %v1070, %v1291
  %v1364 = vsel %vm1220, %v1073, %v1292
  %v1365 = vsel %vm1221, %v1076, %v1293
  %v1366 = vsel %vm1222, %v1079, %v1294
  %v1367 = vsel %vm1223, %v1082, %v1295
  %v1368 = vsel %vm1224, %v1085, %v1296
  %v1369 = vsel %vm1225, %v1088, %v1297
  %v1370 = vsel %vm1226, %v1091, %v1298
  %v1371 = vsel %vm1227, %v1094, %v1299
  %v1372 = vsel %vm1228, %v1097, %v1300
  %v1373 = vsel %vm1229, %v1100, %v1301
  %v1374 = vsel %vm1230, %v1103, %v1302
  %v1375 = vsel %vm1231, %v1106, %v1303
  %v1376 = vsel %vm1232, %v1109, %v1304
  %v1377 = vsel %vm1233, %v1112, %v1305
  %v1378 = vsel %vm1234, %v1115, %v1306
  %v1379 = vsel %vm1235, %v1118, %v1307
  %v1380 = vsel %vm1236, %v1121, %v1308
  %v1381 = vsel %vm1237, %v1124, %v1309
  %v1382 = vsel %vm1238, %v1127, %v1310
  %v1383 = vsel %vm1239, %v1130, %v1311
  %v1384 = vsel %vm1240, %v1133, %v1312
  %v1385 = vsel %vm1241, %v1136, %v1313
  %v1386 = vsel %vm1242, %v1139, %v1314
  %v1387 = vsel %vm1243, %v1142, %v1315
  %v1388 = vsel %vm1244, %v1145, %v1316
  %v1389 = vsel %vm1245, %v1148, %v1317
  %v1390 = vsel %vm1246, %v1151, %v1318
  %v1391 = vsel %vm1247, %v1154, %v1319
  %v1392 = vsel %vm1248, %v1157, %v1320
  %v1393 = vsel %vm1249, %v1160, %v1321
  %v1394 = vsel %vm1250, %v1163, %v1322
  %v1395 = vsel %vm1251, %v1166, %v1323
  %v1396 = vsel %vm1252, %v1169, %v1324
  %v1397 = vsel %vm1253, %v1172, %v1325
  %v1398 = vsel %vm1254, %v1175, %v1326
  %v1399 = vsel %vm1255, %v1178, %v1327
  %v1400 = vsel %vm1256, %v1181, %v1328
  %v1401 = vsel %vm1257, %v1184, %v1329
  %vm1402 = vcmask 523264
  %1403 = vst.msk [vmem:[%s3] sm:$0xff] %vm1402, %v1330
  %1404 = vst.msk [vmem:[%s3 + $0x8] sm:$0xff] %vm1402, %v1331
  %1405 = vst.msk [vmem:[%s3 + $0x10] sm:$0xff] %vm1402, %v1332
  %1406 = vst.msk [vmem:[%s3 + $0x18] sm:$0xff] %vm1402, %v1333
  %1407 = vst.msk [vmem:[%s3 + $0x20] sm:$0xff] %vm1402, %v1334
  %1408 = vst.msk [vmem:[%s3 + $0x28] sm:$0xff] %vm1402, %v1335
  %1409 = vst.msk [vmem:[%s3 + $0x30] sm:$0xff] %vm1402, %v1336
  %1410 = vst.msk [vmem:[%s3 + $0x38] sm:$0xff] %vm1402, %v1337
  %1411 = vst.msk [vmem:[%s3 + $0x40] sm:$0xff] %vm1402, %v1338
  %1412 = vst.msk [vmem:[%s3 + $0x48] sm:$0xff] %vm1402, %v1339
  %1413 = vst.msk [vmem:[%s3 + $0x50] sm:$0xff] %vm1402, %v1340
  %1414 = vst.msk [vmem:[%s3 + $0x58] sm:$0xff] %vm1402, %v1341
  %1415 = vst.msk [vmem:[%s3 + $0x60] sm:$0xff] %vm1402, %v1342
  %1416 = vst.msk [vmem:[%s3 + $0x68] sm:$0xff] %vm1402, %v1343
  %1417 = vst.msk [vmem:[%s3 + $0x70] sm:$0xff] %vm1402, %v1344
  %1418 = vst.msk [vmem:[%s3 + $0x78] sm:$0xff] %vm1402, %v1345
  %1419 = vst.msk [vmem:[%s3 + $0x80] sm:$0xff] %vm1402, %v1346
  %1420 = vst.msk [vmem:[%s3 + $0x88] sm:$0xff] %vm1402, %v1347
  %1421 = vst.msk [vmem:[%s3 + $0x90] sm:$0xff] %vm1402, %v1348
  %1422 = vst.msk [vmem:[%s3 + $0x98] sm:$0xff] %vm1402, %v1349
  %1423 = vst.msk [vmem:[%s3 + $0xa0] sm:$0xff] %vm1402, %v1350
  %1424 = vst.msk [vmem:[%s3 + $0xa8] sm:$0xff] %vm1402, %v1351
  %1425 = vst.msk [vmem:[%s3 + $0xb0] sm:$0xff] %vm1402, %v1352
  %1426 = vst.msk [vmem:[%s3 + $0xb8] sm:$0xff] %vm1402, %v1353
  %1427 = vst.msk [vmem:[%s3 + $0xc0] sm:$0xff] %vm1402, %v1354
  %1428 = vst.msk [vmem:[%s3 + $0xc8] sm:$0xff] %vm1402, %v1355
  %1429 = vst.msk [vmem:[%s3 + $0xd0] sm:$0xff] %vm1402, %v1356
  %1430 = vst.msk [vmem:[%s3 + $0xd8] sm:$0xff] %vm1402, %v1357
  %1431 = vst.msk [vmem:[%s3 + $0xe0] sm:$0xff] %vm1402, %v1358
  %1432 = vst.msk [vmem:[%s3 + $0xe8] sm:$0xff] %vm1402, %v1359
  %1433 = vst.msk [vmem:[%s3 + $0xf0] sm:$0xff] %vm1402, %v1360
  %1434 = vst.msk [vmem:[%s3 + $0xf8] sm:$0xff] %vm1402, %v1361
  %1435 = vst.msk [vmem:[%s3 + $0x100] sm:$0xff] %vm1402, %v1362
  %1436 = vst.msk [vmem:[%s3 + $0x108] sm:$0xff] %vm1402, %v1363
  %1437 = vst.msk [vmem:[%s3 + $0x110] sm:$0xff] %vm1402, %v1364
  %1438 = vst.msk [vmem:[%s3 + $0x118] sm:$0xff] %vm1402, %v1365
  %1439 = vst.msk [vmem:[%s3 + $0x120] sm:$0xff] %vm1402, %v1366
  %1440 = vst.msk [vmem:[%s3 + $0x128] sm:$0xff] %vm1402, %v1367
  %1441 = vst.msk [vmem:[%s3 + $0x130] sm:$0xff] %vm1402, %v1368
  %1442 = vst.msk [vmem:[%s3 + $0x138] sm:$0xff] %vm1402, %v1369
  %1443 = vst.msk [vmem:[%s3 + $0x140] sm:$0xff] %vm1402, %v1370
  %1444 = vst.msk [vmem:[%s3 + $0x148] sm:$0xff] %vm1402, %v1371
  %1445 = vst.msk [vmem:[%s3 + $0x150] sm:$0xff] %vm1402, %v1372
  %1446 = vst.msk [vmem:[%s3 + $0x158] sm:$0xff] %vm1402, %v1373
  %1447 = vst.msk [vmem:[%s3 + $0x160] sm:$0xff] %vm1402, %v1374
  %1448 = vst.msk [vmem:[%s3 + $0x168] sm:$0xff] %vm1402, %v1375
  %1449 = vst.msk [vmem:[%s3 + $0x170] sm:$0xff] %vm1402, %v1376
  %1450 = vst.msk [vmem:[%s3 + $0x178] sm:$0xff] %vm1402, %v1377
  %1451 = vst.msk [vmem:[%s3 + $0x180] sm:$0xff] %vm1402, %v1378
  %1452 = vst.msk [vmem:[%s3 + $0x188] sm:$0xff] %vm1402, %v1379
  %1453 = vst.msk [vmem:[%s3 + $0x190] sm:$0xff] %vm1402, %v1380
  %1454 = vst.msk [vmem:[%s3 + $0x198] sm:$0xff] %vm1402, %v1381
  %1455 = vst.msk [vmem:[%s3 + $0x1a0] sm:$0xff] %vm1402, %v1382
  %1456 = vst.msk [vmem:[%s3 + $0x1a8] sm:$0xff] %vm1402, %v1383
  %1457 = vst.msk [vmem:[%s3 + $0x1b0] sm:$0xff] %vm1402, %v1384
  %1458 = vst.msk [vmem:[%s3 + $0x1b8] sm:$0xff] %vm1402, %v1385
  %1459 = vst.msk [vmem:[%s3 + $0x1c0] sm:$0xff] %vm1402, %v1386
  %1460 = vst.msk [vmem:[%s3 + $0x1c8] sm:$0xff] %vm1402, %v1387
  %1461 = vst.msk [vmem:[%s3 + $0x1d0] sm:$0xff] %vm1402, %v1388
  %1462 = vst.msk [vmem:[%s3 + $0x1d8] sm:$0xff] %vm1402, %v1389
  %1463 = vst.msk [vmem:[%s3 + $0x1e0] sm:$0xff] %vm1402, %v1390
  %1464 = vst.msk [vmem:[%s3 + $0x1e8] sm:$0xff] %vm1402, %v1391
  %1465 = vst.msk [vmem:[%s3 + $0x1f0] sm:$0xff] %vm1402, %v1392
  %1466 = vst.msk [vmem:[%s3 + $0x1f8] sm:$0xff] %vm1402, %v1393
  %1467 = vst.msk [vmem:[%s3 + $0x200] sm:$0xff] %vm1402, %v1394
  %1468 = vst.msk [vmem:[%s3 + $0x208] sm:$0xff] %vm1402, %v1395
  %1469 = vst.msk [vmem:[%s3 + $0x210] sm:$0xff] %vm1402, %v1396
  %1470 = vst.msk [vmem:[%s3 + $0x218] sm:$0xff] %vm1402, %v1397
  %1471 = vst.msk [vmem:[%s3 + $0x220] sm:$0xff] %vm1402, %v1398
  %1472 = vst.msk [vmem:[%s3 + $0x228] sm:$0xff] %vm1402, %v1399
  %1473 = vst.msk [vmem:[%s3 + $0x230] sm:$0xff] %vm1402, %v1400
  %1474 = vst.msk [vmem:[%s3 + $0x238] sm:$0xff] %vm1402, %v1401
  // Predicated region
  $region14: #{mtrnn_forward.9} parent=0 // pred_check
    _
  $region15: #{mtrnn_forward.9} parent=0 // pred_check_branch
    %1476 = sbr.rel (0) target = $region17
  $region16: #{mtrnn_forward.9} parent=0 // pred_region
    _
  $region17: #{mtrnn_forward.9} parent=0 // pred_fallthru
    _
  // Predicated region
  $region18: #{mtrnn_forward.9} parent=0 // pred_check
    _
  $region19: #{mtrnn_forward.9} parent=0 // pred_check_branch
    %1478 = sbr.rel (0) target = $region21
  $region20: #{mtrnn_forward.9} parent=0 // pred_region
    _
  $region21: #{mtrnn_forward.9} parent=0 // pred_fallthru
    _

// kernel: mtrnn_forward.10
$region0: #{mtrnn_forward.10}
  #allocation0 [shape = 'u32[]', space=smem, size = 0x4, offset = 0x4, fixed_abs, tag = 'smem constant byte address 0x4 - core index']
  #allocation1 [shape = 'u32[72,128]{1,0:T(1,128)}', space=vmem, size = 0x9000, scoped, tag = 'internal scratch']
  %s0 = inlined_call_operand.vmem [shape: f32[400,576], index: 0, kind: input, shape index: {}]
  %s1 = inlined_call_operand.vmem [shape: f32[576,10], index: 1, kind: input, shape index: {}]
  %s2 = inlined_call_operand.vmem [shape: f32[1,10], index: 2, kind: input, shape index: {}]
  %s3 = inlined_call_operand.vmem [shape: f32[400,10], index: 3, kind: output, shape index: {}]
  %s4 = sld [smem:[#allocation0]]
  $region22: #{mtrnn_forward.10} parent=0
    _
  %s6 = ssub.s32 1, %s4
  %s7 = scalar_select 0, %s6, %s4
  // Predicated region
  $region2: #{mtrnn_forward.10} parent=0 // pred_check
    _
  $region3: #{mtrnn_forward.10} parent=0 // pred_check_branch
    %9 = sbr.rel (0) target = $region5
  $region4: #{mtrnn_forward.10} parent=0 // pred_region
    _
  $region5: #{mtrnn_forward.10} parent=0 // pred_fallthru
    _
  // Predicated region
  $region6: #{mtrnn_forward.10} parent=0 // pred_check
    _
  $region7: #{mtrnn_forward.10} parent=0 // pred_check_branch
    %11 = sbr.rel (0) target = $region9
  $region8: #{mtrnn_forward.10} parent=0 // pred_region
    _
  $region9: #{mtrnn_forward.10} parent=0 // pred_fallthru
    _
  // Predicated region
  $region10: #{mtrnn_forward.10} parent=0 // pred_check
    _
  $region11: #{mtrnn_forward.10} parent=0 // pred_check_branch
    %13 = sbr.rel (0) target = $region13
  $region12: #{mtrnn_forward.10} parent=0 // pred_region
    _
  $region13: #{mtrnn_forward.10} parent=0 // pred_fallthru
    _
  %v14 = vld [vmem:[%s0] sm:$0xff]
  %v15 = vld [vmem:[%s0 + $0x8] sm:$0xff]
  %v16 = vld [vmem:[%s0 + $0x10] sm:$0xff]
  %v17 = vld [vmem:[%s0 + $0x18] sm:$0xff]
  %v18 = vld [vmem:[%s0 + $0x20] sm:$0xff]
  %v19 = vld [vmem:[%s0 + $0x28] sm:$0xff]
  %v20 = vld [vmem:[%s0 + $0x30] sm:$0xff]
  %v21 = vld [vmem:[%s0 + $0x38] sm:$0xff]
  %v22 = vld [vmem:[%s0 + $0x40] sm:$0xff]
  %v23 = vld [vmem:[%s0 + $0x48] sm:$0xff]
  %v24 = vld [vmem:[%s0 + $0x50] sm:$0xff]
  %v25 = vld [vmem:[%s0 + $0x58] sm:$0xff]
  %v26 = vld [vmem:[%s0 + $0x60] sm:$0xff]
  %v27 = vld [vmem:[%s0 + $0x68] sm:$0xff]
  %v28 = vld [vmem:[%s0 + $0x70] sm:$0xff]
  %v29 = vld [vmem:[%s0 + $0x78] sm:$0xff]
  %v30 = vld [vmem:[%s0 + $0x80] sm:$0xff]
  %v31 = vld [vmem:[%s0 + $0x88] sm:$0xff]
  %v32 = vld [vmem:[%s0 + $0x90] sm:$0xff]
  %v33 = vld [vmem:[%s0 + $0x98] sm:$0xff]
  %v34 = vld [vmem:[%s0 + $0xa0] sm:$0xff]
  %v35 = vld [vmem:[%s0 + $0xa8] sm:$0xff]
  %v36 = vld [vmem:[%s0 + $0xb0] sm:$0xff]
  %v37 = vld [vmem:[%s0 + $0xb8] sm:$0xff]
  %v38 = vld [vmem:[%s0 + $0xc0] sm:$0xff]
  %v39 = vld [vmem:[%s0 + $0xc8] sm:$0xff]
  %v40 = vld [vmem:[%s0 + $0xd0] sm:$0xff]
  %v41 = vld [vmem:[%s0 + $0xd8] sm:$0xff]
  %v42 = vld [vmem:[%s0 + $0xe0] sm:$0xff]
  %v43 = vld [vmem:[%s0 + $0xe8] sm:$0xff]
  %v44 = vld [vmem:[%s0 + $0xf0] sm:$0xff]
  %v45 = vld [vmem:[%s0 + $0xf8] sm:$0xff]
  %v46 = vld [vmem:[%s0 + $0x100] sm:$0xff]
  %v47 = vld [vmem:[%s0 + $0x108] sm:$0xff]
  %v48 = vld [vmem:[%s0 + $0x110] sm:$0xff]
  %v49 = vld [vmem:[%s0 + $0x118] sm:$0xff]
  %v50 = vld [vmem:[%s0 + $0x120] sm:$0xff]
  %v51 = vld [vmem:[%s0 + $0x128] sm:$0xff]
  %v52 = vld [vmem:[%s0 + $0x130] sm:$0xff]
  %v53 = vld [vmem:[%s0 + $0x138] sm:$0xff]
  %v54 = vld [vmem:[%s0 + $0x140] sm:$0xff]
  %v55 = vld [vmem:[%s0 + $0x148] sm:$0xff]
  %v56 = vld [vmem:[%s0 + $0x150] sm:$0xff]
  %v57 = vld [vmem:[%s0 + $0x158] sm:$0xff]
  %v58 = vld [vmem:[%s0 + $0x160] sm:$0xff]
  %v59 = vld [vmem:[%s0 + $0x168] sm:$0xff]
  %v60 = vld [vmem:[%s0 + $0x170] sm:$0xff]
  %v61 = vld [vmem:[%s0 + $0x178] sm:$0xff]
  %v62 = vld [vmem:[%s0 + $0x180] sm:$0xff]
  %v63 = vld [vmem:[%s0 + $0x188] sm:$0xff]
  %v64 = vld [vmem:[%s0 + $0x190] sm:$0xff]
  %v65 = vld [vmem:[%s0 + $0x198] sm:$0xff]
  %v66 = vld [vmem:[%s0 + $0x1a0] sm:$0xff]
  %v67 = vld [vmem:[%s0 + $0x1a8] sm:$0xff]
  %v68 = vld [vmem:[%s0 + $0x1b0] sm:$0xff]
  %v69 = vld [vmem:[%s0 + $0x1b8] sm:$0xff]
  %v70 = vld [vmem:[%s0 + $0x1c0] sm:$0xff]
  %v71 = vld [vmem:[%s0 + $0x1c8] sm:$0xff]
  %v72 = vld [vmem:[%s0 + $0x1d0] sm:$0xff]
  %v73 = vld [vmem:[%s0 + $0x1d8] sm:$0xff]
  %v74 = vld [vmem:[%s0 + $0x1e0] sm:$0xff]
  %v75 = vld [vmem:[%s0 + $0x1e8] sm:$0xff]
  %v76 = vld [vmem:[%s0 + $0x1f0] sm:$0xff]
  %v77 = vld [vmem:[%s0 + $0x1f8] sm:$0xff]
  %v78 = vld [vmem:[%s0 + $0x200] sm:$0xff]
  %v79 = vld [vmem:[%s0 + $0x208] sm:$0xff]
  %v80 = vld [vmem:[%s0 + $0x210] sm:$0xff]
  %v81 = vld [vmem:[%s0 + $0x218] sm:$0xff]
  %v82 = vld [vmem:[%s0 + $0x220] sm:$0xff]
  %v83 = vld [vmem:[%s0 + $0x228] sm:$0xff]
  %v84 = vld [vmem:[%s0 + $0x230] sm:$0xff]
  %v85 = vld [vmem:[%s0 + $0x238] sm:$0xff]
  %v86 = vld [vmem:[%s0 + $0x240] sm:$0xff]
  %v87 = vld [vmem:[%s0 + $0x248] sm:$0xff]
  %v88 = vld [vmem:[%s0 + $0x250] sm:$0xff]
  %v89 = vld [vmem:[%s0 + $0x258] sm:$0xff]
  %v90 = vld [vmem:[%s0 + $0x260] sm:$0xff]
  %v91 = vld [vmem:[%s0 + $0x268] sm:$0xff]
  %v92 = vld [vmem:[%s0 + $0x270] sm:$0xff]
  %v93 = vld [vmem:[%s0 + $0x278] sm:$0xff]
  %v94 = vld [vmem:[%s0 + $0x280] sm:$0xff]
  %v95 = vld [vmem:[%s0 + $0x288] sm:$0xff]
  %v96 = vld [vmem:[%s0 + $0x290] sm:$0xff]
  %v97 = vld [vmem:[%s0 + $0x298] sm:$0xff]
  %v98 = vld [vmem:[%s0 + $0x2a0] sm:$0xff]
  %v99 = vld [vmem:[%s0 + $0x2a8] sm:$0xff]
  %v100 = vld [vmem:[%s0 + $0x2b0] sm:$0xff]
  %v101 = vld [vmem:[%s0 + $0x2b8] sm:$0xff]
  %v102 = vld [vmem:[%s0 + $0x2c0] sm:$0xff]
  %v103 = vld [vmem:[%s0 + $0x2c8] sm:$0xff]
  %v104 = vld [vmem:[%s0 + $0x2d0] sm:$0xff]
  %v105 = vld [vmem:[%s0 + $0x2d8] sm:$0xff]
  %v106 = vld [vmem:[%s0 + $0x2e0] sm:$0xff]
  %v107 = vld [vmem:[%s0 + $0x2e8] sm:$0xff]
  %v108 = vld [vmem:[%s0 + $0x2f0] sm:$0xff]
  %v109 = vld [vmem:[%s0 + $0x2f8] sm:$0xff]
  %v110 = vld [vmem:[%s0 + $0x300] sm:$0xff]
  %v111 = vld [vmem:[%s0 + $0x308] sm:$0xff]
  %v112 = vld [vmem:[%s0 + $0x310] sm:$0xff]
  %v113 = vld [vmem:[%s0 + $0x318] sm:$0xff]
  %v114 = vld [vmem:[%s0 + $0x320] sm:$0xff]
  %v115 = vld [vmem:[%s0 + $0x328] sm:$0xff]
  %v116 = vld [vmem:[%s0 + $0x330] sm:$0xff]
  %v117 = vld [vmem:[%s0 + $0x338] sm:$0xff]
  %v118 = vld [vmem:[%s0 + $0x340] sm:$0xff]
  %v119 = vld [vmem:[%s0 + $0x348] sm:$0xff]
  %v120 = vld [vmem:[%s0 + $0x350] sm:$0xff]
  %v121 = vld [vmem:[%s0 + $0x358] sm:$0xff]
  %v122 = vld [vmem:[%s0 + $0x360] sm:$0xff]
  %v123 = vld [vmem:[%s0 + $0x368] sm:$0xff]
  %v124 = vld [vmem:[%s0 + $0x370] sm:$0xff]
  %v125 = vld [vmem:[%s0 + $0x378] sm:$0xff]
  %v126 = vld [vmem:[%s0 + $0x380] sm:$0xff]
  %v127 = vld [vmem:[%s0 + $0x388] sm:$0xff]
  %v128 = vld [vmem:[%s0 + $0x390] sm:$0xff]
  %v129 = vld [vmem:[%s0 + $0x398] sm:$0xff]
  %v130 = vld [vmem:[%s0 + $0x3a0] sm:$0xff]
  %v131 = vld [vmem:[%s0 + $0x3a8] sm:$0xff]
  %v132 = vld [vmem:[%s0 + $0x3b0] sm:$0xff]
  %v133 = vld [vmem:[%s0 + $0x3b8] sm:$0xff]
  %v134 = vld [vmem:[%s0 + $0x3c0] sm:$0xff]
  %v135 = vld [vmem:[%s0 + $0x3c8] sm:$0xff]
  %v136 = vld [vmem:[%s0 + $0x3d0] sm:$0xff]
  %v137 = vld [vmem:[%s0 + $0x3d8] sm:$0xff]
  %v138 = vld [vmem:[%s0 + $0x3e0] sm:$0xff]
  %v139 = vld [vmem:[%s0 + $0x3e8] sm:$0xff]
  %v140 = vld [vmem:[%s0 + $0x3f0] sm:$0xff]
  %v141 = vld [vmem:[%s0 + $0x3f8] sm:$0xff]
  %v142 = vld [vmem:[%s0 + $0x400] sm:$0xff]
  %v143 = vld [vmem:[%s0 + $0x408] sm:$0xff]
  %v144 = vld [vmem:[%s0 + $0x410] sm:$0xff]
  %v145 = vld [vmem:[%s0 + $0x418] sm:$0xff]
  %v146 = vld [vmem:[%s0 + $0x420] sm:$0xff]
  %v147 = vld [vmem:[%s0 + $0x428] sm:$0xff]
  %v148 = vld [vmem:[%s0 + $0x430] sm:$0xff]
  %v149 = vld [vmem:[%s0 + $0x438] sm:$0xff]
  %v150 = vld [vmem:[%s0 + $0x440] sm:$0xff]
  %v151 = vld [vmem:[%s0 + $0x448] sm:$0xff]
  %v152 = vld [vmem:[%s0 + $0x450] sm:$0xff]
  %v153 = vld [vmem:[%s0 + $0x458] sm:$0xff]
  %v154 = vld [vmem:[%s0 + $0x460] sm:$0xff]
  %v155 = vld [vmem:[%s0 + $0x468] sm:$0xff]
  %v156 = vld [vmem:[%s0 + $0x470] sm:$0xff]
  %v157 = vld [vmem:[%s0 + $0x478] sm:$0xff]
  %v158 = vld [vmem:[%s0 + $0x480] sm:$0xff]
  %v159 = vld [vmem:[%s0 + $0x488] sm:$0xff]
  %v160 = vld [vmem:[%s0 + $0x490] sm:$0xff]
  %v161 = vld [vmem:[%s0 + $0x498] sm:$0xff]
  %v162 = vld [vmem:[%s0 + $0x4a0] sm:$0xff]
  %v163 = vld [vmem:[%s0 + $0x4a8] sm:$0xff]
  %v164 = vld [vmem:[%s0 + $0x4b0] sm:$0xff]
  %v165 = vld [vmem:[%s0 + $0x4b8] sm:$0xff]
  %v166 = vld [vmem:[%s0 + $0x4c0] sm:$0xff]
  %v167 = vld [vmem:[%s0 + $0x4c8] sm:$0xff]
  %v168 = vld [vmem:[%s0 + $0x4d0] sm:$0xff]
  %v169 = vld [vmem:[%s0 + $0x4d8] sm:$0xff]
  %v170 = vld [vmem:[%s0 + $0x4e0] sm:$0xff]
  %v171 = vld [vmem:[%s0 + $0x4e8] sm:$0xff]
  %v172 = vld [vmem:[%s0 + $0x4f0] sm:$0xff]
  %v173 = vld [vmem:[%s0 + $0x4f8] sm:$0xff]
  %v174 = vld [vmem:[%s0 + $0x500] sm:$0xff]
  %v175 = vld [vmem:[%s0 + $0x508] sm:$0xff]
  %v176 = vld [vmem:[%s0 + $0x510] sm:$0xff]
  %v177 = vld [vmem:[%s0 + $0x518] sm:$0xff]
  %v178 = vld [vmem:[%s0 + $0x520] sm:$0xff]
  %v179 = vld [vmem:[%s0 + $0x528] sm:$0xff]
  %v180 = vld [vmem:[%s0 + $0x530] sm:$0xff]
  %v181 = vld [vmem:[%s0 + $0x538] sm:$0xff]
  %v182 = vld [vmem:[%s0 + $0x540] sm:$0xff]
  %v183 = vld [vmem:[%s0 + $0x548] sm:$0xff]
  %v184 = vld [vmem:[%s0 + $0x550] sm:$0xff]
  %v185 = vld [vmem:[%s0 + $0x558] sm:$0xff]
  %v186 = vld [vmem:[%s0 + $0x560] sm:$0xff]
  %v187 = vld [vmem:[%s0 + $0x568] sm:$0xff]
  %v188 = vld [vmem:[%s0 + $0x570] sm:$0xff]
  %v189 = vld [vmem:[%s0 + $0x578] sm:$0xff]
  %v190 = vld [vmem:[%s0 + $0x580] sm:$0xff]
  %v191 = vld [vmem:[%s0 + $0x588] sm:$0xff]
  %v192 = vld [vmem:[%s0 + $0x590] sm:$0xff]
  %v193 = vld [vmem:[%s0 + $0x598] sm:$0xff]
  %v194 = vld [vmem:[%s0 + $0x5a0] sm:$0xff]
  %v195 = vld [vmem:[%s0 + $0x5a8] sm:$0xff]
  %v196 = vld [vmem:[%s0 + $0x5b0] sm:$0xff]
  %v197 = vld [vmem:[%s0 + $0x5b8] sm:$0xff]
  %v198 = vld [vmem:[%s0 + $0x5c0] sm:$0xff]
  %v199 = vld [vmem:[%s0 + $0x5c8] sm:$0xff]
  %v200 = vld [vmem:[%s0 + $0x5d0] sm:$0xff]
  %v201 = vld [vmem:[%s0 + $0x5d8] sm:$0xff]
  %v202 = vld [vmem:[%s0 + $0x5e0] sm:$0xff]
  %v203 = vld [vmem:[%s0 + $0x5e8] sm:$0xff]
  %v204 = vld [vmem:[%s0 + $0x5f0] sm:$0xff]
  %v205 = vld [vmem:[%s0 + $0x5f8] sm:$0xff]
  %v206 = vld [vmem:[%s0 + $0x600] sm:$0xff]
  %v207 = vld [vmem:[%s0 + $0x608] sm:$0xff]
  %v208 = vld [vmem:[%s0 + $0x610] sm:$0xff]
  %v209 = vld [vmem:[%s0 + $0x618] sm:$0xff]
  %v210 = vld [vmem:[%s0 + $0x620] sm:$0xff]
  %v211 = vld [vmem:[%s0 + $0x628] sm:$0xff]
  %v212 = vld [vmem:[%s0 + $0x630] sm:$0xff]
  %v213 = vld [vmem:[%s0 + $0x638] sm:$0xff]
  %v214 = vld [vmem:[%s0 + $0x640] sm:$0xff]
  %v215 = vld [vmem:[%s0 + $0x648] sm:$0xff]
  %v216 = vld [vmem:[%s0 + $0x650] sm:$0xff]
  %v217 = vld [vmem:[%s0 + $0x658] sm:$0xff]
  %v218 = vld [vmem:[%s0 + $0x660] sm:$0xff]
  %v219 = vld [vmem:[%s0 + $0x668] sm:$0xff]
  %v220 = vld [vmem:[%s0 + $0x670] sm:$0xff]
  %v221 = vld [vmem:[%s0 + $0x678] sm:$0xff]
  %v222 = vld [vmem:[%s0 + $0x680] sm:$0xff]
  %v223 = vld [vmem:[%s0 + $0x688] sm:$0xff]
  %v224 = vld [vmem:[%s0 + $0x690] sm:$0xff]
  %v225 = vld [vmem:[%s0 + $0x698] sm:$0xff]
  %v226 = vld [vmem:[%s0 + $0x6a0] sm:$0xff]
  %v227 = vld [vmem:[%s0 + $0x6a8] sm:$0xff]
  %v228 = vld [vmem:[%s0 + $0x6b0] sm:$0xff]
  %v229 = vld [vmem:[%s0 + $0x6b8] sm:$0xff]
  %v230 = vld [vmem:[%s0 + $0x6c0] sm:$0xff]
  %v231 = vld [vmem:[%s0 + $0x6c8] sm:$0xff]
  %v232 = vld [vmem:[%s0 + $0x6d0] sm:$0xff]
  %v233 = vld [vmem:[%s0 + $0x6d8] sm:$0xff]
  %v234 = vld [vmem:[%s0 + $0x6e0] sm:$0xff]
  %v235 = vld [vmem:[%s0 + $0x6e8] sm:$0xff]
  %v236 = vld [vmem:[%s0 + $0x6f0] sm:$0xff]
  %v237 = vld [vmem:[%s0 + $0x6f8] sm:$0xff]
  %v238 = vld [vmem:[%s0 + $0x700] sm:$0xff]
  %v239 = vld [vmem:[%s0 + $0x708] sm:$0xff]
  %v240 = vld [vmem:[%s0 + $0x710] sm:$0xff]
  %v241 = vld [vmem:[%s0 + $0x718] sm:$0xff]
  %v242 = vld [vmem:[%s0 + $0x720] sm:$0xff]
  %v243 = vld [vmem:[%s0 + $0x728] sm:$0xff]
  %v244 = vld [vmem:[%s0 + $0x730] sm:$0xff]
  %v245 = vld [vmem:[%s0 + $0x738] sm:$0xff]
  %v246 = vld [vmem:[%s0 + $0x740] sm:$0xff]
  %v247 = vld [vmem:[%s0 + $0x748] sm:$0xff]
  %v248 = vld [vmem:[%s0 + $0x750] sm:$0xff]
  %v249 = vld [vmem:[%s0 + $0x758] sm:$0xff]
  %v250 = vld [vmem:[%s0 + $0x760] sm:$0xff]
  %v251 = vld [vmem:[%s0 + $0x768] sm:$0xff]
  %v252 = vld [vmem:[%s0 + $0x770] sm:$0xff]
  %v253 = vld [vmem:[%s0 + $0x778] sm:$0xff]
  %v254 = vld [vmem:[%s0 + $0x780] sm:$0xff]
  %v255 = vld [vmem:[%s0 + $0x788] sm:$0xff]
  %v256 = vld [vmem:[%s0 + $0x790] sm:$0xff]
  %v257 = vld [vmem:[%s0 + $0x798] sm:$0xff]
  %v258 = vld [vmem:[%s0 + $0x7a0] sm:$0xff]
  %v259 = vld [vmem:[%s0 + $0x7a8] sm:$0xff]
  %v260 = vld [vmem:[%s0 + $0x7b0] sm:$0xff]
  %v261 = vld [vmem:[%s0 + $0x7b8] sm:$0xff]
  %v262 = vld [vmem:[%s0 + $0x7c0] sm:$0xff]
  %v263 = vld [vmem:[%s0 + $0x7c8] sm:$0xff]
  %v264 = vld [vmem:[%s1] sm:$0xff]
  %v265 = vld [vmem:[%s1 + $0x8] sm:$0xff]
  %v266 = vld [vmem:[%s1 + $0x10] sm:$0xff]
  %v267 = vld [vmem:[%s1 + $0x18] sm:$0xff]
  %v268 = vld [vmem:[%s1 + $0x20] sm:$0xff]
  %v269 = vld [vmem:[%s1 + $0x28] sm:$0xff]
  %v270 = vld [vmem:[%s1 + $0x30] sm:$0xff]
  %v271 = vld [vmem:[%s1 + $0x38] sm:$0xff]
  %v272 = vld [vmem:[%s1 + $0x40] sm:$0xff]
  %v273 = vld [vmem:[%s1 + $0x48] sm:$0xff]
  %v274 = vld [vmem:[%s1 + $0x50] sm:$0xff]
  %v275 = vld [vmem:[%s1 + $0x58] sm:$0xff]
  %v276 = vld [vmem:[%s1 + $0x60] sm:$0xff]
  %v277 = vld [vmem:[%s1 + $0x68] sm:$0xff]
  %v278 = vld [vmem:[%s1 + $0x70] sm:$0xff]
  %v279 = vld [vmem:[%s1 + $0x78] sm:$0xff]
  %v280 = vld [vmem:[%s1 + $0x80] sm:$0xff]
  %v281 = vld [vmem:[%s1 + $0x88] sm:$0xff]
  %v282 = vld [vmem:[%s1 + $0x90] sm:$0xff]
  %v283 = vld [vmem:[%s1 + $0x98] sm:$0xff]
  %v284 = vld [vmem:[%s1 + $0xa0] sm:$0xff]
  %v285 = vld [vmem:[%s1 + $0xa8] sm:$0xff]
  %v286 = vld [vmem:[%s1 + $0xb0] sm:$0xff]
  %v287 = vld [vmem:[%s1 + $0xb8] sm:$0xff]
  %v288 = vld [vmem:[%s1 + $0xc0] sm:$0xff]
  %v289 = vld [vmem:[%s1 + $0xc8] sm:$0xff]
  %v290 = vld [vmem:[%s1 + $0xd0] sm:$0xff]
  %v291 = vld [vmem:[%s1 + $0xd8] sm:$0xff]
  %v292 = vld [vmem:[%s1 + $0xe0] sm:$0xff]
  %v293 = vld [vmem:[%s1 + $0xe8] sm:$0xff]
  %v294 = vld [vmem:[%s1 + $0xf0] sm:$0xff]
  %v295 = vld [vmem:[%s1 + $0xf8] sm:$0xff]
  %v296 = vld [vmem:[%s1 + $0x100] sm:$0xff]
  %v297 = vld [vmem:[%s1 + $0x108] sm:$0xff]
  %v298 = vld [vmem:[%s1 + $0x110] sm:$0xff]
  %v299 = vld [vmem:[%s1 + $0x118] sm:$0xff]
  %v300 = vld [vmem:[%s1 + $0x120] sm:$0xff]
  %v301 = vld [vmem:[%s1 + $0x128] sm:$0xff]
  %v302 = vld [vmem:[%s1 + $0x130] sm:$0xff]
  %v303 = vld [vmem:[%s1 + $0x138] sm:$0xff]
  %v304 = vld [vmem:[%s1 + $0x140] sm:$0xff]
  %v305 = vld [vmem:[%s1 + $0x148] sm:$0xff]
  %v306 = vld [vmem:[%s1 + $0x150] sm:$0xff]
  %v307 = vld [vmem:[%s1 + $0x158] sm:$0xff]
  %v308 = vld [vmem:[%s1 + $0x160] sm:$0xff]
  %v309 = vld [vmem:[%s1 + $0x168] sm:$0xff]
  %v310 = vld [vmem:[%s1 + $0x170] sm:$0xff]
  %v311 = vld [vmem:[%s1 + $0x178] sm:$0xff]
  %v312 = vld [vmem:[%s1 + $0x180] sm:$0xff]
  %v313 = vld [vmem:[%s1 + $0x188] sm:$0xff]
  %v314 = vld [vmem:[%s1 + $0x190] sm:$0xff]
  %v315 = vld [vmem:[%s1 + $0x198] sm:$0xff]
  %v316 = vld [vmem:[%s1 + $0x1a0] sm:$0xff]
  %v317 = vld [vmem:[%s1 + $0x1a8] sm:$0xff]
  %v318 = vld [vmem:[%s1 + $0x1b0] sm:$0xff]
  %v319 = vld [vmem:[%s1 + $0x1b8] sm:$0xff]
  %v320 = vld [vmem:[%s1 + $0x1c0] sm:$0xff]
  %v321 = vld [vmem:[%s1 + $0x1c8] sm:$0xff]
  %v322 = vld [vmem:[%s1 + $0x1d0] sm:$0xff]
  %v323 = vld [vmem:[%s1 + $0x1d8] sm:$0xff]
  %v324 = vld [vmem:[%s1 + $0x1e0] sm:$0xff]
  %v325 = vld [vmem:[%s1 + $0x1e8] sm:$0xff]
  %v326 = vld [vmem:[%s1 + $0x1f0] sm:$0xff]
  %v327 = vld [vmem:[%s1 + $0x1f8] sm:$0xff]
  %v328 = vld [vmem:[%s1 + $0x200] sm:$0xff]
  %v329 = vld [vmem:[%s1 + $0x208] sm:$0xff]
  %v330 = vld [vmem:[%s1 + $0x210] sm:$0xff]
  %v331 = vld [vmem:[%s1 + $0x218] sm:$0xff]
  %v332 = vld [vmem:[%s1 + $0x220] sm:$0xff]
  %v333 = vld [vmem:[%s1 + $0x228] sm:$0xff]
  %v334 = vld [vmem:[%s1 + $0x230] sm:$0xff]
  %v335 = vld [vmem:[%s1 + $0x238] sm:$0xff]
  %v336 = vld [vmem:[%s2] sm:$0x1]
  %v338 = vperm.slane %v336, 0
  %vm340 = vcmask 523264
  %v342 = vsel %vm340, %v18, 0
  %v345 = vsel %vm340, %v23, 0
  %v348 = vsel %vm340, %v28, 0
  %v351 = vsel %vm340, %v33, 0
  %v354 = vsel %vm340, %v38, 0
  %v357 = vsel %vm340, %v43, 0
  %v360 = vsel %vm340, %v48, 0
  %v363 = vsel %vm340, %v53, 0
  %v366 = vsel %vm340, %v58, 0
  %v369 = vsel %vm340, %v63, 0
  %v372 = vsel %vm340, %v68, 0
  %v375 = vsel %vm340, %v73, 0
  %v378 = vsel %vm340, %v78, 0
  %v381 = vsel %vm340, %v83, 0
  %v384 = vsel %vm340, %v88, 0
  %v387 = vsel %vm340, %v93, 0
  %v390 = vsel %vm340, %v98, 0
  %v393 = vsel %vm340, %v103, 0
  %v396 = vsel %vm340, %v108, 0
  %v399 = vsel %vm340, %v113, 0
  %v402 = vsel %vm340, %v118, 0
  %v405 = vsel %vm340, %v123, 0
  %v408 = vsel %vm340, %v128, 0
  %v411 = vsel %vm340, %v133, 0
  %v414 = vsel %vm340, %v138, 0
  %v417 = vsel %vm340, %v143, 0
  %v420 = vsel %vm340, %v148, 0
  %v423 = vsel %vm340, %v153, 0
  %v426 = vsel %vm340, %v158, 0
  %v429 = vsel %vm340, %v163, 0
  %v432 = vsel %vm340, %v168, 0
  %v435 = vsel %vm340, %v173, 0
  %v438 = vsel %vm340, %v178, 0
  %v441 = vsel %vm340, %v183, 0
  %v444 = vsel %vm340, %v188, 0
  %v447 = vsel %vm340, %v193, 0
  %v450 = vsel %vm340, %v198, 0
  %v453 = vsel %vm340, %v203, 0
  %v456 = vsel %vm340, %v208, 0
  %v459 = vsel %vm340, %v213, 0
  %v462 = vsel %vm340, %v218, 0
  %v465 = vsel %vm340, %v223, 0
  %v468 = vsel %vm340, %v228, 0
  %v471 = vsel %vm340, %v233, 0
  %v474 = vsel %vm340, %v238, 0
  %v477 = vsel %vm340, %v243, 0
  %v480 = vsel %vm340, %v248, 0
  %v483 = vsel %vm340, %v253, 0
  %v486 = vsel %vm340, %v258, 0
  %v489 = vsel %vm340, %v263, 0
  %491 = vmatpush.msra.mxu0 %v279
  %492 = vmatpush.msra.mxu0 %v278
  %493 = vmatpush.msra.mxu0 %v277
  %494 = vmatpush.msra.mxu0 %v276
  %495 = vmatpush.msra.mxu0 %v275
  %496 = vmatpush.msra.mxu0 %v274
  %497 = vmatpush.msra.mxu0 %v273
  %498 = vmatpush.msra.mxu0 %v272
  %499 = vmatpush.msra.mxu0 %v271
  %500 = vmatpush.msra.mxu0 %v270
  %501 = vmatpush.msra.mxu0 %v269
  %502 = vmatpush.msra.mxu0 %v268
  %503 = vmatpush.msra.mxu0 %v267
  %504 = vmatpush.msra.mxu0 %v266
  %505 = vmatpush.msra.mxu0 %v265
  %506 = vmatpush.msra.mxu0 %v264
  %507 = vmatmul.f32.gmra.mxu0 %v14
  %v508 = vpop.f32.mrf.mxu0
  %v509 = vadd.f32 %v338, %v508
  %510 = vmatmul.f32.gmra.mxu0 %v19
  %v511 = vpop.f32.mrf.mxu0
  %v512 = vadd.f32 %v338, %v511
  %513 = vmatmul.f32.gmra.mxu0 %v24
  %v514 = vpop.f32.mrf.mxu0
  %v515 = vadd.f32 %v338, %v514
  %516 = vmatmul.f32.gmra.mxu0 %v29
  %v517 = vpop.f32.mrf.mxu0
  %v518 = vadd.f32 %v338, %v517
  %519 = vmatmul.f32.gmra.mxu0 %v34
  %v520 = vpop.f32.mrf.mxu0
  %v521 = vadd.f32 %v338, %v520
  %522 = vmatmul.f32.gmra.mxu0 %v39
  %v523 = vpop.f32.mrf.mxu0
  %v524 = vadd.f32 %v338, %v523
  %525 = vmatmul.f32.gmra.mxu0 %v44
  %v526 = vpop.f32.mrf.mxu0
  %v527 = vadd.f32 %v338, %v526
  %528 = vmatmul.f32.gmra.mxu0 %v49
  %v529 = vpop.f32.mrf.mxu0
  %v530 = vadd.f32 %v338, %v529
  %531 = vmatmul.f32.gmra.mxu0 %v54
  %v532 = vpop.f32.mrf.mxu0
  %v533 = vadd.f32 %v338, %v532
  %534 = vmatmul.f32.gmra.mxu0 %v59
  %v535 = vpop.f32.mrf.mxu0
  %v536 = vadd.f32 %v338, %v535
  %537 = vmatmul.f32.gmra.mxu0 %v64
  %v538 = vpop.f32.mrf.mxu0
  %v539 = vadd.f32 %v338, %v538
  %540 = vmatmul.f32.gmra.mxu0 %v69
  %v541 = vpop.f32.mrf.mxu0
  %v542 = vadd.f32 %v338, %v541
  %543 = vmatmul.f32.gmra.mxu0 %v74
  %v544 = vpop.f32.mrf.mxu0
  %v545 = vadd.f32 %v338, %v544
  %546 = vmatmul.f32.gmra.mxu0 %v79
  %v547 = vpop.f32.mrf.mxu0
  %v548 = vadd.f32 %v338, %v547
  %549 = vmatmul.f32.gmra.mxu0 %v84
  %v550 = vpop.f32.mrf.mxu0
  %v551 = vadd.f32 %v338, %v550
  %552 = vmatmul.f32.gmra.mxu0 %v89
  %v553 = vpop.f32.mrf.mxu0
  %v554 = vadd.f32 %v338, %v553
  %555 = vmatmul.f32.gmra.mxu0 %v94
  %v556 = vpop.f32.mrf.mxu0
  %v557 = vadd.f32 %v338, %v556
  %558 = vmatmul.f32.gmra.mxu0 %v99
  %v559 = vpop.f32.mrf.mxu0
  %v560 = vadd.f32 %v338, %v559
  %561 = vmatmul.f32.gmra.mxu0 %v104
  %v562 = vpop.f32.mrf.mxu0
  %v563 = vadd.f32 %v338, %v562
  %564 = vmatmul.f32.gmra.mxu0 %v109
  %v565 = vpop.f32.mrf.mxu0
  %v566 = vadd.f32 %v338, %v565
  %567 = vmatmul.f32.gmra.mxu0 %v114
  %v568 = vpop.f32.mrf.mxu0
  %v569 = vadd.f32 %v338, %v568
  %570 = vmatmul.f32.gmra.mxu0 %v119
  %v571 = vpop.f32.mrf.mxu0
  %v572 = vadd.f32 %v338, %v571
  %573 = vmatmul.f32.gmra.mxu0 %v124
  %v574 = vpop.f32.mrf.mxu0
  %v575 = vadd.f32 %v338, %v574
  %576 = vmatmul.f32.gmra.mxu0 %v129
  %v577 = vpop.f32.mrf.mxu0
  %v578 = vadd.f32 %v338, %v577
  %579 = vmatmul.f32.gmra.mxu0 %v134
  %v580 = vpop.f32.mrf.mxu0
  %v581 = vadd.f32 %v338, %v580
  %582 = vmatmul.f32.gmra.mxu0 %v139
  %v583 = vpop.f32.mrf.mxu0
  %v584 = vadd.f32 %v338, %v583
  %585 = vmatmul.f32.gmra.mxu0 %v144
  %v586 = vpop.f32.mrf.mxu0
  %v587 = vadd.f32 %v338, %v586
  %588 = vmatmul.f32.gmra.mxu0 %v149
  %v589 = vpop.f32.mrf.mxu0
  %v590 = vadd.f32 %v338, %v589
  %591 = vmatmul.f32.gmra.mxu0 %v154
  %v592 = vpop.f32.mrf.mxu0
  %v593 = vadd.f32 %v338, %v592
  %594 = vmatmul.f32.gmra.mxu0 %v159
  %v595 = vpop.f32.mrf.mxu0
  %v596 = vadd.f32 %v338, %v595
  %597 = vmatmul.f32.gmra.mxu0 %v164
  %v598 = vpop.f32.mrf.mxu0
  %v599 = vadd.f32 %v338, %v598
  %600 = vmatmul.f32.gmra.mxu0 %v169
  %v601 = vpop.f32.mrf.mxu0
  %v602 = vadd.f32 %v338, %v601
  %603 = vmatmul.f32.gmra.mxu0 %v174
  %v604 = vpop.f32.mrf.mxu0
  %v605 = vadd.f32 %v338, %v604
  %606 = vmatmul.f32.gmra.mxu0 %v179
  %v607 = vpop.f32.mrf.mxu0
  %v608 = vadd.f32 %v338, %v607
  %609 = vmatmul.f32.gmra.mxu0 %v184
  %v610 = vpop.f32.mrf.mxu0
  %v611 = vadd.f32 %v338, %v610
  %612 = vmatmul.f32.gmra.mxu0 %v189
  %v613 = vpop.f32.mrf.mxu0
  %v614 = vadd.f32 %v338, %v613
  %615 = vmatmul.f32.gmra.mxu0 %v194
  %v616 = vpop.f32.mrf.mxu0
  %v617 = vadd.f32 %v338, %v616
  %618 = vmatmul.f32.gmra.mxu0 %v199
  %v619 = vpop.f32.mrf.mxu0
  %v620 = vadd.f32 %v338, %v619
  %621 = vmatmul.f32.gmra.mxu0 %v204
  %v622 = vpop.f32.mrf.mxu0
  %v623 = vadd.f32 %v338, %v622
  %624 = vmatmul.f32.gmra.mxu0 %v209
  %v625 = vpop.f32.mrf.mxu0
  %v626 = vadd.f32 %v338, %v625
  %627 = vmatmul.f32.gmra.mxu0 %v214
  %v628 = vpop.f32.mrf.mxu0
  %v629 = vadd.f32 %v338, %v628
  %630 = vmatmul.f32.gmra.mxu0 %v219
  %v631 = vpop.f32.mrf.mxu0
  %v632 = vadd.f32 %v338, %v631
  %633 = vmatmul.f32.gmra.mxu0 %v224
  %v634 = vpop.f32.mrf.mxu0
  %v635 = vadd.f32 %v338, %v634
  %636 = vmatmul.f32.gmra.mxu0 %v229
  %v637 = vpop.f32.mrf.mxu0
  %v638 = vadd.f32 %v338, %v637
  %639 = vmatmul.f32.gmra.mxu0 %v234
  %v640 = vpop.f32.mrf.mxu0
  %v641 = vadd.f32 %v338, %v640
  %642 = vmatmul.f32.gmra.mxu0 %v239
  %v643 = vpop.f32.mrf.mxu0
  %v644 = vadd.f32 %v338, %v643
  %645 = vmatmul.f32.gmra.mxu0 %v244
  %v646 = vpop.f32.mrf.mxu0
  %v647 = vadd.f32 %v338, %v646
  %648 = vmatmul.f32.gmra.mxu0 %v249
  %v649 = vpop.f32.mrf.mxu0
  %v650 = vadd.f32 %v338, %v649
  %651 = vmatmul.f32.gmra.mxu0 %v254
  %v652 = vpop.f32.mrf.mxu0
  %v653 = vadd.f32 %v338, %v652
  %654 = vmatmul.f32.gmra.mxu0 %v259
  %v655 = vpop.f32.mrf.mxu0
  %v656 = vadd.f32 %v338, %v655
  %657 = vdwg.mxu0
  %658 = vmatpush.msra.mxu0 %v295
  %659 = vmatpush.msra.mxu0 %v294
  %660 = vmatpush.msra.mxu0 %v293
  %661 = vmatpush.msra.mxu0 %v292
  %662 = vmatpush.msra.mxu0 %v291
  %663 = vmatpush.msra.mxu0 %v290
  %664 = vmatpush.msra.mxu0 %v289
  %665 = vmatpush.msra.mxu0 %v288
  %666 = vmatpush.msra.mxu0 %v287
  %667 = vmatpush.msra.mxu0 %v286
  %668 = vmatpush.msra.mxu0 %v285
  %669 = vmatpush.msra.mxu0 %v284
  %670 = vmatpush.msra.mxu0 %v283
  %671 = vmatpush.msra.mxu0 %v282
  %672 = vmatpush.msra.mxu0 %v281
  %673 = vmatpush.msra.mxu0 %v280
  %674 = vmatmul.f32.gmra.mxu0 %v15
  %v675 = vpop.f32.mrf.mxu0
  %v676 = vadd.f32 %v509, %v675
  %677 = vmatmul.f32.gmra.mxu0 %v20
  %v678 = vpop.f32.mrf.mxu0
  %v679 = vadd.f32 %v512, %v678
  %680 = vmatmul.f32.gmra.mxu0 %v25
  %v681 = vpop.f32.mrf.mxu0
  %v682 = vadd.f32 %v515, %v681
  %683 = vmatmul.f32.gmra.mxu0 %v30
  %v684 = vpop.f32.mrf.mxu0
  %v685 = vadd.f32 %v518, %v684
  %686 = vmatmul.f32.gmra.mxu0 %v35
  %v687 = vpop.f32.mrf.mxu0
  %v688 = vadd.f32 %v521, %v687
  %689 = vmatmul.f32.gmra.mxu0 %v40
  %v690 = vpop.f32.mrf.mxu0
  %v691 = vadd.f32 %v524, %v690
  %692 = vmatmul.f32.gmra.mxu0 %v45
  %v693 = vpop.f32.mrf.mxu0
  %v694 = vadd.f32 %v527, %v693
  %695 = vmatmul.f32.gmra.mxu0 %v50
  %v696 = vpop.f32.mrf.mxu0
  %v697 = vadd.f32 %v530, %v696
  %698 = vmatmul.f32.gmra.mxu0 %v55
  %v699 = vpop.f32.mrf.mxu0
  %v700 = vadd.f32 %v533, %v699
  %701 = vmatmul.f32.gmra.mxu0 %v60
  %v702 = vpop.f32.mrf.mxu0
  %v703 = vadd.f32 %v536, %v702
  %704 = vmatmul.f32.gmra.mxu0 %v65
  %v705 = vpop.f32.mrf.mxu0
  %v706 = vadd.f32 %v539, %v705
  %707 = vmatmul.f32.gmra.mxu0 %v70
  %v708 = vpop.f32.mrf.mxu0
  %v709 = vadd.f32 %v542, %v708
  %710 = vmatmul.f32.gmra.mxu0 %v75
  %v711 = vpop.f32.mrf.mxu0
  %v712 = vadd.f32 %v545, %v711
  %713 = vmatmul.f32.gmra.mxu0 %v80
  %v714 = vpop.f32.mrf.mxu0
  %v715 = vadd.f32 %v548, %v714
  %716 = vmatmul.f32.gmra.mxu0 %v85
  %v717 = vpop.f32.mrf.mxu0
  %v718 = vadd.f32 %v551, %v717
  %719 = vmatmul.f32.gmra.mxu0 %v90
  %v720 = vpop.f32.mrf.mxu0
  %v721 = vadd.f32 %v554, %v720
  %722 = vmatmul.f32.gmra.mxu0 %v95
  %v723 = vpop.f32.mrf.mxu0
  %v724 = vadd.f32 %v557, %v723
  %725 = vmatmul.f32.gmra.mxu0 %v100
  %v726 = vpop.f32.mrf.mxu0
  %v727 = vadd.f32 %v560, %v726
  %728 = vmatmul.f32.gmra.mxu0 %v105
  %v729 = vpop.f32.mrf.mxu0
  %v730 = vadd.f32 %v563, %v729
  %731 = vmatmul.f32.gmra.mxu0 %v110
  %v732 = vpop.f32.mrf.mxu0
  %v733 = vadd.f32 %v566, %v732
  %734 = vmatmul.f32.gmra.mxu0 %v115
  %v735 = vpop.f32.mrf.mxu0
  %v736 = vadd.f32 %v569, %v735
  %737 = vmatmul.f32.gmra.mxu0 %v120
  %v738 = vpop.f32.mrf.mxu0
  %v739 = vadd.f32 %v572, %v738
  %740 = vmatmul.f32.gmra.mxu0 %v125
  %v741 = vpop.f32.mrf.mxu0
  %v742 = vadd.f32 %v575, %v741
  %743 = vmatmul.f32.gmra.mxu0 %v130
  %v744 = vpop.f32.mrf.mxu0
  %v745 = vadd.f32 %v578, %v744
  %746 = vmatmul.f32.gmra.mxu0 %v135
  %v747 = vpop.f32.mrf.mxu0
  %v748 = vadd.f32 %v581, %v747
  %749 = vmatmul.f32.gmra.mxu0 %v140
  %v750 = vpop.f32.mrf.mxu0
  %v751 = vadd.f32 %v584, %v750
  %752 = vmatmul.f32.gmra.mxu0 %v145
  %v753 = vpop.f32.mrf.mxu0
  %v754 = vadd.f32 %v587, %v753
  %755 = vmatmul.f32.gmra.mxu0 %v150
  %v756 = vpop.f32.mrf.mxu0
  %v757 = vadd.f32 %v590, %v756
  %758 = vmatmul.f32.gmra.mxu0 %v155
  %v759 = vpop.f32.mrf.mxu0
  %v760 = vadd.f32 %v593, %v759
  %761 = vmatmul.f32.gmra.mxu0 %v160
  %v762 = vpop.f32.mrf.mxu0
  %v763 = vadd.f32 %v596, %v762
  %764 = vmatmul.f32.gmra.mxu0 %v165
  %v765 = vpop.f32.mrf.mxu0
  %v766 = vadd.f32 %v599, %v765
  %767 = vmatmul.f32.gmra.mxu0 %v170
  %v768 = vpop.f32.mrf.mxu0
  %v769 = vadd.f32 %v602, %v768
  %770 = vmatmul.f32.gmra.mxu0 %v175
  %v771 = vpop.f32.mrf.mxu0
  %v772 = vadd.f32 %v605, %v771
  %773 = vmatmul.f32.gmra.mxu0 %v180
  %v774 = vpop.f32.mrf.mxu0
  %v775 = vadd.f32 %v608, %v774
  %776 = vmatmul.f32.gmra.mxu0 %v185
  %v777 = vpop.f32.mrf.mxu0
  %v778 = vadd.f32 %v611, %v777
  %779 = vmatmul.f32.gmra.mxu0 %v190
  %v780 = vpop.f32.mrf.mxu0
  %v781 = vadd.f32 %v614, %v780
  %782 = vmatmul.f32.gmra.mxu0 %v195
  %v783 = vpop.f32.mrf.mxu0
  %v784 = vadd.f32 %v617, %v783
  %785 = vmatmul.f32.gmra.mxu0 %v200
  %v786 = vpop.f32.mrf.mxu0
  %v787 = vadd.f32 %v620, %v786
  %788 = vmatmul.f32.gmra.mxu0 %v205
  %v789 = vpop.f32.mrf.mxu0
  %v790 = vadd.f32 %v623, %v789
  %791 = vmatmul.f32.gmra.mxu0 %v210
  %v792 = vpop.f32.mrf.mxu0
  %v793 = vadd.f32 %v626, %v792
  %794 = vmatmul.f32.gmra.mxu0 %v215
  %v795 = vpop.f32.mrf.mxu0
  %v796 = vadd.f32 %v629, %v795
  %797 = vmatmul.f32.gmra.mxu0 %v220
  %v798 = vpop.f32.mrf.mxu0
  %v799 = vadd.f32 %v632, %v798
  %800 = vmatmul.f32.gmra.mxu0 %v225
  %v801 = vpop.f32.mrf.mxu0
  %v802 = vadd.f32 %v635, %v801
  %803 = vmatmul.f32.gmra.mxu0 %v230
  %v804 = vpop.f32.mrf.mxu0
  %v805 = vadd.f32 %v638, %v804
  %806 = vmatmul.f32.gmra.mxu0 %v235
  %v807 = vpop.f32.mrf.mxu0
  %v808 = vadd.f32 %v641, %v807
  %809 = vmatmul.f32.gmra.mxu0 %v240
  %v810 = vpop.f32.mrf.mxu0
  %v811 = vadd.f32 %v644, %v810
  %812 = vmatmul.f32.gmra.mxu0 %v245
  %v813 = vpop.f32.mrf.mxu0
  %v814 = vadd.f32 %v647, %v813
  %815 = vmatmul.f32.gmra.mxu0 %v250
  %v816 = vpop.f32.mrf.mxu0
  %v817 = vadd.f32 %v650, %v816
  %818 = vmatmul.f32.gmra.mxu0 %v255
  %v819 = vpop.f32.mrf.mxu0
  %v820 = vadd.f32 %v653, %v819
  %821 = vmatmul.f32.gmra.mxu0 %v260
  %v822 = vpop.f32.mrf.mxu0
  %v823 = vadd.f32 %v656, %v822
  %824 = vdwg.mxu0
  %825 = vmatpush.msra.mxu0 %v311
  %826 = vmatpush.msra.mxu0 %v310
  %827 = vmatpush.msra.mxu0 %v309
  %828 = vmatpush.msra.mxu0 %v308
  %829 = vmatpush.msra.mxu0 %v307
  %830 = vmatpush.msra.mxu0 %v306
  %831 = vmatpush.msra.mxu0 %v305
  %832 = vmatpush.msra.mxu0 %v304
  %833 = vmatpush.msra.mxu0 %v303
  %834 = vmatpush.msra.mxu0 %v302
  %835 = vmatpush.msra.mxu0 %v301
  %836 = vmatpush.msra.mxu0 %v300
  %837 = vmatpush.msra.mxu0 %v299
  %838 = vmatpush.msra.mxu0 %v298
  %839 = vmatpush.msra.mxu0 %v297
  %840 = vmatpush.msra.mxu0 %v296
  %841 = vmatmul.f32.gmra.mxu0 %v16
  %v842 = vpop.f32.mrf.mxu0
  %v843 = vadd.f32 %v676, %v842
  %844 = vmatmul.f32.gmra.mxu0 %v21
  %v845 = vpop.f32.mrf.mxu0
  %v846 = vadd.f32 %v679, %v845
  %847 = vmatmul.f32.gmra.mxu0 %v26
  %v848 = vpop.f32.mrf.mxu0
  %v849 = vadd.f32 %v682, %v848
  %850 = vmatmul.f32.gmra.mxu0 %v31
  %v851 = vpop.f32.mrf.mxu0
  %v852 = vadd.f32 %v685, %v851
  %853 = vmatmul.f32.gmra.mxu0 %v36
  %v854 = vpop.f32.mrf.mxu0
  %v855 = vadd.f32 %v688, %v854
  %856 = vmatmul.f32.gmra.mxu0 %v41
  %v857 = vpop.f32.mrf.mxu0
  %v858 = vadd.f32 %v691, %v857
  %859 = vmatmul.f32.gmra.mxu0 %v46
  %v860 = vpop.f32.mrf.mxu0
  %v861 = vadd.f32 %v694, %v860
  %862 = vmatmul.f32.gmra.mxu0 %v51
  %v863 = vpop.f32.mrf.mxu0
  %v864 = vadd.f32 %v697, %v863
  %865 = vmatmul.f32.gmra.mxu0 %v56
  %v866 = vpop.f32.mrf.mxu0
  %v867 = vadd.f32 %v700, %v866
  %868 = vmatmul.f32.gmra.mxu0 %v61
  %v869 = vpop.f32.mrf.mxu0
  %v870 = vadd.f32 %v703, %v869
  %871 = vmatmul.f32.gmra.mxu0 %v66
  %v872 = vpop.f32.mrf.mxu0
  %v873 = vadd.f32 %v706, %v872
  %874 = vmatmul.f32.gmra.mxu0 %v71
  %v875 = vpop.f32.mrf.mxu0
  %v876 = vadd.f32 %v709, %v875
  %877 = vmatmul.f32.gmra.mxu0 %v76
  %v878 = vpop.f32.mrf.mxu0
  %v879 = vadd.f32 %v712, %v878
  %880 = vmatmul.f32.gmra.mxu0 %v81
  %v881 = vpop.f32.mrf.mxu0
  %v882 = vadd.f32 %v715, %v881
  %883 = vmatmul.f32.gmra.mxu0 %v86
  %v884 = vpop.f32.mrf.mxu0
  %v885 = vadd.f32 %v718, %v884
  %886 = vmatmul.f32.gmra.mxu0 %v91
  %v887 = vpop.f32.mrf.mxu0
  %v888 = vadd.f32 %v721, %v887
  %889 = vmatmul.f32.gmra.mxu0 %v96
  %v890 = vpop.f32.mrf.mxu0
  %v891 = vadd.f32 %v724, %v890
  %892 = vmatmul.f32.gmra.mxu0 %v101
  %v893 = vpop.f32.mrf.mxu0
  %v894 = vadd.f32 %v727, %v893
  %895 = vmatmul.f32.gmra.mxu0 %v106
  %v896 = vpop.f32.mrf.mxu0
  %v897 = vadd.f32 %v730, %v896
  %898 = vmatmul.f32.gmra.mxu0 %v111
  %v899 = vpop.f32.mrf.mxu0
  %v900 = vadd.f32 %v733, %v899
  %901 = vmatmul.f32.gmra.mxu0 %v116
  %v902 = vpop.f32.mrf.mxu0
  %v903 = vadd.f32 %v736, %v902
  %904 = vmatmul.f32.gmra.mxu0 %v121
  %v905 = vpop.f32.mrf.mxu0
  %v906 = vadd.f32 %v739, %v905
  %907 = vmatmul.f32.gmra.mxu0 %v126
  %v908 = vpop.f32.mrf.mxu0
  %v909 = vadd.f32 %v742, %v908
  %910 = vmatmul.f32.gmra.mxu0 %v131
  %v911 = vpop.f32.mrf.mxu0
  %v912 = vadd.f32 %v745, %v911
  %913 = vmatmul.f32.gmra.mxu0 %v136
  %v914 = vpop.f32.mrf.mxu0
  %v915 = vadd.f32 %v748, %v914
  %916 = vmatmul.f32.gmra.mxu0 %v141
  %v917 = vpop.f32.mrf.mxu0
  %v918 = vadd.f32 %v751, %v917
  %919 = vmatmul.f32.gmra.mxu0 %v146
  %v920 = vpop.f32.mrf.mxu0
  %v921 = vadd.f32 %v754, %v920
  %922 = vmatmul.f32.gmra.mxu0 %v151
  %v923 = vpop.f32.mrf.mxu0
  %v924 = vadd.f32 %v757, %v923
  %925 = vmatmul.f32.gmra.mxu0 %v156
  %v926 = vpop.f32.mrf.mxu0
  %v927 = vadd.f32 %v760, %v926
  %928 = vmatmul.f32.gmra.mxu0 %v161
  %v929 = vpop.f32.mrf.mxu0
  %v930 = vadd.f32 %v763, %v929
  %931 = vmatmul.f32.gmra.mxu0 %v166
  %v932 = vpop.f32.mrf.mxu0
  %v933 = vadd.f32 %v766, %v932
  %934 = vmatmul.f32.gmra.mxu0 %v171
  %v935 = vpop.f32.mrf.mxu0
  %v936 = vadd.f32 %v769, %v935
  %937 = vmatmul.f32.gmra.mxu0 %v176
  %v938 = vpop.f32.mrf.mxu0
  %v939 = vadd.f32 %v772, %v938
  %940 = vmatmul.f32.gmra.mxu0 %v181
  %v941 = vpop.f32.mrf.mxu0
  %v942 = vadd.f32 %v775, %v941
  %943 = vmatmul.f32.gmra.mxu0 %v186
  %v944 = vpop.f32.mrf.mxu0
  %v945 = vadd.f32 %v778, %v944
  %946 = vmatmul.f32.gmra.mxu0 %v191
  %v947 = vpop.f32.mrf.mxu0
  %v948 = vadd.f32 %v781, %v947
  %949 = vmatmul.f32.gmra.mxu0 %v196
  %v950 = vpop.f32.mrf.mxu0
  %v951 = vadd.f32 %v784, %v950
  %952 = vmatmul.f32.gmra.mxu0 %v201
  %v953 = vpop.f32.mrf.mxu0
  %v954 = vadd.f32 %v787, %v953
  %955 = vmatmul.f32.gmra.mxu0 %v206
  %v956 = vpop.f32.mrf.mxu0
  %v957 = vadd.f32 %v790, %v956
  %958 = vmatmul.f32.gmra.mxu0 %v211
  %v959 = vpop.f32.mrf.mxu0
  %v960 = vadd.f32 %v793, %v959
  %961 = vmatmul.f32.gmra.mxu0 %v216
  %v962 = vpop.f32.mrf.mxu0
  %v963 = vadd.f32 %v796, %v962
  %964 = vmatmul.f32.gmra.mxu0 %v221
  %v965 = vpop.f32.mrf.mxu0
  %v966 = vadd.f32 %v799, %v965
  %967 = vmatmul.f32.gmra.mxu0 %v226
  %v968 = vpop.f32.mrf.mxu0
  %v969 = vadd.f32 %v802, %v968
  %970 = vmatmul.f32.gmra.mxu0 %v231
  %v971 = vpop.f32.mrf.mxu0
  %v972 = vadd.f32 %v805, %v971
  %973 = vmatmul.f32.gmra.mxu0 %v236
  %v974 = vpop.f32.mrf.mxu0
  %v975 = vadd.f32 %v808, %v974
  %976 = vmatmul.f32.gmra.mxu0 %v241
  %v977 = vpop.f32.mrf.mxu0
  %v978 = vadd.f32 %v811, %v977
  %979 = vmatmul.f32.gmra.mxu0 %v246
  %v980 = vpop.f32.mrf.mxu0
  %v981 = vadd.f32 %v814, %v980
  %982 = vmatmul.f32.gmra.mxu0 %v251
  %v983 = vpop.f32.mrf.mxu0
  %v984 = vadd.f32 %v817, %v983
  %985 = vmatmul.f32.gmra.mxu0 %v256
  %v986 = vpop.f32.mrf.mxu0
  %v987 = vadd.f32 %v820, %v986
  %988 = vmatmul.f32.gmra.mxu0 %v261
  %v989 = vpop.f32.mrf.mxu0
  %v990 = vadd.f32 %v823, %v989
  %991 = vdwg.mxu0
  %992 = vmatpush.msra.mxu0 %v327
  %993 = vmatpush.msra.mxu0 %v326
  %994 = vmatpush.msra.mxu0 %v325
  %995 = vmatpush.msra.mxu0 %v324
  %996 = vmatpush.msra.mxu0 %v323
  %997 = vmatpush.msra.mxu0 %v322
  %998 = vmatpush.msra.mxu0 %v321
  %999 = vmatpush.msra.mxu0 %v320
  %1000 = vmatpush.msra.mxu0 %v319
  %1001 = vmatpush.msra.mxu0 %v318
  %1002 = vmatpush.msra.mxu0 %v317
  %1003 = vmatpush.msra.mxu0 %v316
  %1004 = vmatpush.msra.mxu0 %v315
  %1005 = vmatpush.msra.mxu0 %v314
  %1006 = vmatpush.msra.mxu0 %v313
  %1007 = vmatpush.msra.mxu0 %v312
  %1008 = vmatmul.f32.gmra.mxu0 %v17
  %v1009 = vpop.f32.mrf.mxu0
  %v1010 = vadd.f32 %v843, %v1009
  %1011 = vmatmul.f32.gmra.mxu0 %v22
  %v1012 = vpop.f32.mrf.mxu0
  %v1013 = vadd.f32 %v846, %v1012
  %1014 = vmatmul.f32.gmra.mxu0 %v27
  %v1015 = vpop.f32.mrf.mxu0
  %v1016 = vadd.f32 %v849, %v1015
  %1017 = vmatmul.f32.gmra.mxu0 %v32
  %v1018 = vpop.f32.mrf.mxu0
  %v1019 = vadd.f32 %v852, %v1018
  %1020 = vmatmul.f32.gmra.mxu0 %v37
  %v1021 = vpop.f32.mrf.mxu0
  %v1022 = vadd.f32 %v855, %v1021
  %1023 = vmatmul.f32.gmra.mxu0 %v42
  %v1024 = vpop.f32.mrf.mxu0
  %v1025 = vadd.f32 %v858, %v1024
  %1026 = vmatmul.f32.gmra.mxu0 %v47
  %v1027 = vpop.f32.mrf.mxu0
  %v1028 = vadd.f32 %v861, %v1027
  %1029 = vmatmul.f32.gmra.mxu0 %v52
  %v1030 = vpop.f32.mrf.mxu0
  %v1031 = vadd.f32 %v864, %v1030
  %1032 = vmatmul.f32.gmra.mxu0 %v57
  %v1033 = vpop.f32.mrf.mxu0
  %v1034 = vadd.f32 %v867, %v1033
  %1035 = vmatmul.f32.gmra.mxu0 %v62
  %v1036 = vpop.f32.mrf.mxu0
  %v1037 = vadd.f32 %v870, %v1036
  %1038 = vmatmul.f32.gmra.mxu0 %v67
  %v1039 = vpop.f32.mrf.mxu0
  %v1040 = vadd.f32 %v873, %v1039
  %1041 = vmatmul.f32.gmra.mxu0 %v72
  %v1042 = vpop.f32.mrf.mxu0
  %v1043 = vadd.f32 %v876, %v1042
  %1044 = vmatmul.f32.gmra.mxu0 %v77
  %v1045 = vpop.f32.mrf.mxu0
  %v1046 = vadd.f32 %v879, %v1045
  %1047 = vmatmul.f32.gmra.mxu0 %v82
  %v1048 = vpop.f32.mrf.mxu0
  %v1049 = vadd.f32 %v882, %v1048
  %1050 = vmatmul.f32.gmra.mxu0 %v87
  %v1051 = vpop.f32.mrf.mxu0
  %v1052 = vadd.f32 %v885, %v1051
  %1053 = vmatmul.f32.gmra.mxu0 %v92
  %v1054 = vpop.f32.mrf.mxu0
  %v1055 = vadd.f32 %v888, %v1054
  %1056 = vmatmul.f32.gmra.mxu0 %v97
  %v1057 = vpop.f32.mrf.mxu0
  %v1058 = vadd.f32 %v891, %v1057
  %1059 = vmatmul.f32.gmra.mxu0 %v102
  %v1060 = vpop.f32.mrf.mxu0
  %v1061 = vadd.f32 %v894, %v1060
  %1062 = vmatmul.f32.gmra.mxu0 %v107
  %v1063 = vpop.f32.mrf.mxu0
  %v1064 = vadd.f32 %v897, %v1063
  %1065 = vmatmul.f32.gmra.mxu0 %v112
  %v1066 = vpop.f32.mrf.mxu0
  %v1067 = vadd.f32 %v900, %v1066
  %1068 = vmatmul.f32.gmra.mxu0 %v117
  %v1069 = vpop.f32.mrf.mxu0
  %v1070 = vadd.f32 %v903, %v1069
  %1071 = vmatmul.f32.gmra.mxu0 %v122
  %v1072 = vpop.f32.mrf.mxu0
  %v1073 = vadd.f32 %v906, %v1072
  %1074 = vmatmul.f32.gmra.mxu0 %v127
  %v1075 = vpop.f32.mrf.mxu0
  %v1076 = vadd.f32 %v909, %v1075
  %1077 = vmatmul.f32.gmra.mxu0 %v132
  %v1078 = vpop.f32.mrf.mxu0
  %v1079 = vadd.f32 %v912, %v1078
  %1080 = vmatmul.f32.gmra.mxu0 %v137
  %v1081 = vpop.f32.mrf.mxu0
  %v1082 = vadd.f32 %v915, %v1081
  %1083 = vmatmul.f32.gmra.mxu0 %v142
  %v1084 = vpop.f32.mrf.mxu0
  %v1085 = vadd.f32 %v918, %v1084
  %1086 = vmatmul.f32.gmra.mxu0 %v147
  %v1087 = vpop.f32.mrf.mxu0
  %v1088 = vadd.f32 %v921, %v1087
  %1089 = vmatmul.f32.gmra.mxu0 %v152
  %v1090 = vpop.f32.mrf.mxu0
  %v1091 = vadd.f32 %v924, %v1090
  %1092 = vmatmul.f32.gmra.mxu0 %v157
  %v1093 = vpop.f32.mrf.mxu0
  %v1094 = vadd.f32 %v927, %v1093
  %1095 = vmatmul.f32.gmra.mxu0 %v162
  %v1096 = vpop.f32.mrf.mxu0
  %v1097 = vadd.f32 %v930, %v1096
  %1098 = vmatmul.f32.gmra.mxu0 %v167
  %v1099 = vpop.f32.mrf.mxu0
  %v1100 = vadd.f32 %v933, %v1099
  %1101 = vmatmul.f32.gmra.mxu0 %v172
  %v1102 = vpop.f32.mrf.mxu0
  %v1103 = vadd.f32 %v936, %v1102
  %1104 = vmatmul.f32.gmra.mxu0 %v177
  %v1105 = vpop.f32.mrf.mxu0
  %v1106 = vadd.f32 %v939, %v1105
  %1107 = vmatmul.f32.gmra.mxu0 %v182
  %v1108 = vpop.f32.mrf.mxu0
  %v1109 = vadd.f32 %v942, %v1108
  %1110 = vmatmul.f32.gmra.mxu0 %v187
  %v1111 = vpop.f32.mrf.mxu0
  %v1112 = vadd.f32 %v945, %v1111
  %1113 = vmatmul.f32.gmra.mxu0 %v192
  %v1114 = vpop.f32.mrf.mxu0
  %v1115 = vadd.f32 %v948, %v1114
  %1116 = vmatmul.f32.gmra.mxu0 %v197
  %v1117 = vpop.f32.mrf.mxu0
  %v1118 = vadd.f32 %v951, %v1117
  %1119 = vmatmul.f32.gmra.mxu0 %v202
  %v1120 = vpop.f32.mrf.mxu0
  %v1121 = vadd.f32 %v954, %v1120
  %1122 = vmatmul.f32.gmra.mxu0 %v207
  %v1123 = vpop.f32.mrf.mxu0
  %v1124 = vadd.f32 %v957, %v1123
  %1125 = vmatmul.f32.gmra.mxu0 %v212
  %v1126 = vpop.f32.mrf.mxu0
  %v1127 = vadd.f32 %v960, %v1126
  %1128 = vmatmul.f32.gmra.mxu0 %v217
  %v1129 = vpop.f32.mrf.mxu0
  %v1130 = vadd.f32 %v963, %v1129
  %1131 = vmatmul.f32.gmra.mxu0 %v222
  %v1132 = vpop.f32.mrf.mxu0
  %v1133 = vadd.f32 %v966, %v1132
  %1134 = vmatmul.f32.gmra.mxu0 %v227
  %v1135 = vpop.f32.mrf.mxu0
  %v1136 = vadd.f32 %v969, %v1135
  %1137 = vmatmul.f32.gmra.mxu0 %v232
  %v1138 = vpop.f32.mrf.mxu0
  %v1139 = vadd.f32 %v972, %v1138
  %1140 = vmatmul.f32.gmra.mxu0 %v237
  %v1141 = vpop.f32.mrf.mxu0
  %v1142 = vadd.f32 %v975, %v1141
  %1143 = vmatmul.f32.gmra.mxu0 %v242
  %v1144 = vpop.f32.mrf.mxu0
  %v1145 = vadd.f32 %v978, %v1144
  %1146 = vmatmul.f32.gmra.mxu0 %v247
  %v1147 = vpop.f32.mrf.mxu0
  %v1148 = vadd.f32 %v981, %v1147
  %1149 = vmatmul.f32.gmra.mxu0 %v252
  %v1150 = vpop.f32.mrf.mxu0
  %v1151 = vadd.f32 %v984, %v1150
  %1152 = vmatmul.f32.gmra.mxu0 %v257
  %v1153 = vpop.f32.mrf.mxu0
  %v1154 = vadd.f32 %v987, %v1153
  %1155 = vmatmul.f32.gmra.mxu0 %v262
  %v1156 = vpop.f32.mrf.mxu0
  %v1157 = vadd.f32 %v990, %v1156
  %1158 = vdwg.mxu0
  %1159 = vmatpush.msra.mxu0 0.0
  %1160 = vmatpush.msra.mxu0 0.0
  %1161 = vmatpush.msra.mxu0 0.0
  %1162 = vmatpush.msra.mxu0 0.0
  %1163 = vmatpush.msra.mxu0 0.0
  %1164 = vmatpush.msra.mxu0 0.0
  %1165 = vmatpush.msra.mxu0 0.0
  %1166 = vmatpush.msra.mxu0 0.0
  %1167 = vmatpush.msra.mxu0 %v335
  %1168 = vmatpush.msra.mxu0 %v334
  %1169 = vmatpush.msra.mxu0 %v333
  %1170 = vmatpush.msra.mxu0 %v332
  %1171 = vmatpush.msra.mxu0 %v331
  %1172 = vmatpush.msra.mxu0 %v330
  %1173 = vmatpush.msra.mxu0 %v329
  %1174 = vmatpush.msra.mxu0 %v328
  %1175 = vmatmul.f32.gmra.mxu0 %v342
  %v1176 = vpop.f32.mrf.mxu0
  %v1177 = vadd.f32 %v1010, %v1176
  %1178 = vmatmul.f32.gmra.mxu0 %v345
  %v1179 = vpop.f32.mrf.mxu0
  %v1180 = vadd.f32 %v1013, %v1179
  %1181 = vmatmul.f32.gmra.mxu0 %v348
  %v1182 = vpop.f32.mrf.mxu0
  %v1183 = vadd.f32 %v1016, %v1182
  %1184 = vmatmul.f32.gmra.mxu0 %v351
  %v1185 = vpop.f32.mrf.mxu0
  %v1186 = vadd.f32 %v1019, %v1185
  %1187 = vmatmul.f32.gmra.mxu0 %v354
  %v1188 = vpop.f32.mrf.mxu0
  %v1189 = vadd.f32 %v1022, %v1188
  %1190 = vmatmul.f32.gmra.mxu0 %v357
  %v1191 = vpop.f32.mrf.mxu0
  %v1192 = vadd.f32 %v1025, %v1191
  %1193 = vmatmul.f32.gmra.mxu0 %v360
  %v1194 = vpop.f32.mrf.mxu0
  %v1195 = vadd.f32 %v1028, %v1194
  %1196 = vmatmul.f32.gmra.mxu0 %v363
  %v1197 = vpop.f32.mrf.mxu0
  %v1198 = vadd.f32 %v1031, %v1197
  %1199 = vmatmul.f32.gmra.mxu0 %v366
  %v1200 = vpop.f32.mrf.mxu0
  %v1201 = vadd.f32 %v1034, %v1200
  %1202 = vmatmul.f32.gmra.mxu0 %v369
  %v1203 = vpop.f32.mrf.mxu0
  %v1204 = vadd.f32 %v1037, %v1203
  %1205 = vmatmul.f32.gmra.mxu0 %v372
  %v1206 = vpop.f32.mrf.mxu0
  %v1207 = vadd.f32 %v1040, %v1206
  %1208 = vmatmul.f32.gmra.mxu0 %v375
  %v1209 = vpop.f32.mrf.mxu0
  %v1210 = vadd.f32 %v1043, %v1209
  %1211 = vmatmul.f32.gmra.mxu0 %v378
  %v1212 = vpop.f32.mrf.mxu0
  %v1213 = vadd.f32 %v1046, %v1212
  %1214 = vmatmul.f32.gmra.mxu0 %v381
  %v1215 = vpop.f32.mrf.mxu0
  %v1216 = vadd.f32 %v1049, %v1215
  %1217 = vmatmul.f32.gmra.mxu0 %v384
  %v1218 = vpop.f32.mrf.mxu0
  %v1219 = vadd.f32 %v1052, %v1218
  %1220 = vmatmul.f32.gmra.mxu0 %v387
  %v1221 = vpop.f32.mrf.mxu0
  %v1222 = vadd.f32 %v1055, %v1221
  %1223 = vmatmul.f32.gmra.mxu0 %v390
  %v1224 = vpop.f32.mrf.mxu0
  %v1225 = vadd.f32 %v1058, %v1224
  %1226 = vmatmul.f32.gmra.mxu0 %v393
  %v1227 = vpop.f32.mrf.mxu0
  %v1228 = vadd.f32 %v1061, %v1227
  %1229 = vmatmul.f32.gmra.mxu0 %v396
  %v1230 = vpop.f32.mrf.mxu0
  %v1231 = vadd.f32 %v1064, %v1230
  %1232 = vmatmul.f32.gmra.mxu0 %v399
  %v1233 = vpop.f32.mrf.mxu0
  %v1234 = vadd.f32 %v1067, %v1233
  %1235 = vmatmul.f32.gmra.mxu0 %v402
  %v1236 = vpop.f32.mrf.mxu0
  %v1237 = vadd.f32 %v1070, %v1236
  %1238 = vmatmul.f32.gmra.mxu0 %v405
  %v1239 = vpop.f32.mrf.mxu0
  %v1240 = vadd.f32 %v1073, %v1239
  %1241 = vmatmul.f32.gmra.mxu0 %v408
  %v1242 = vpop.f32.mrf.mxu0
  %v1243 = vadd.f32 %v1076, %v1242
  %1244 = vmatmul.f32.gmra.mxu0 %v411
  %v1245 = vpop.f32.mrf.mxu0
  %v1246 = vadd.f32 %v1079, %v1245
  %1247 = vmatmul.f32.gmra.mxu0 %v414
  %v1248 = vpop.f32.mrf.mxu0
  %v1249 = vadd.f32 %v1082, %v1248
  %1250 = vmatmul.f32.gmra.mxu0 %v417
  %v1251 = vpop.f32.mrf.mxu0
  %v1252 = vadd.f32 %v1085, %v1251
  %1253 = vmatmul.f32.gmra.mxu0 %v420
  %v1254 = vpop.f32.mrf.mxu0
  %v1255 = vadd.f32 %v1088, %v1254
  %1256 = vmatmul.f32.gmra.mxu0 %v423
  %v1257 = vpop.f32.mrf.mxu0
  %v1258 = vadd.f32 %v1091, %v1257
  %1259 = vmatmul.f32.gmra.mxu0 %v426
  %v1260 = vpop.f32.mrf.mxu0
  %v1261 = vadd.f32 %v1094, %v1260
  %1262 = vmatmul.f32.gmra.mxu0 %v429
  %v1263 = vpop.f32.mrf.mxu0
  %v1264 = vadd.f32 %v1097, %v1263
  %1265 = vmatmul.f32.gmra.mxu0 %v432
  %v1266 = vpop.f32.mrf.mxu0
  %v1267 = vadd.f32 %v1100, %v1266
  %1268 = vmatmul.f32.gmra.mxu0 %v435
  %v1269 = vpop.f32.mrf.mxu0
  %v1270 = vadd.f32 %v1103, %v1269
  %1271 = vmatmul.f32.gmra.mxu0 %v438
  %v1272 = vpop.f32.mrf.mxu0
  %v1273 = vadd.f32 %v1106, %v1272
  %1274 = vmatmul.f32.gmra.mxu0 %v441
  %v1275 = vpop.f32.mrf.mxu0
  %v1276 = vadd.f32 %v1109, %v1275
  %1277 = vmatmul.f32.gmra.mxu0 %v444
  %v1278 = vpop.f32.mrf.mxu0
  %v1279 = vadd.f32 %v1112, %v1278
  %1280 = vmatmul.f32.gmra.mxu0 %v447
  %v1281 = vpop.f32.mrf.mxu0
  %v1282 = vadd.f32 %v1115, %v1281
  %1283 = vmatmul.f32.gmra.mxu0 %v450
  %v1284 = vpop.f32.mrf.mxu0
  %v1285 = vadd.f32 %v1118, %v1284
  %1286 = vmatmul.f32.gmra.mxu0 %v453
  %v1287 = vpop.f32.mrf.mxu0
  %v1288 = vadd.f32 %v1121, %v1287
  %1289 = vmatmul.f32.gmra.mxu0 %v456
  %v1290 = vpop.f32.mrf.mxu0
  %v1291 = vadd.f32 %v1124, %v1290
  %1292 = vmatmul.f32.gmra.mxu0 %v459
  %v1293 = vpop.f32.mrf.mxu0
  %v1294 = vadd.f32 %v1127, %v1293
  %1295 = vmatmul.f32.gmra.mxu0 %v462
  %v1296 = vpop.f32.mrf.mxu0
  %v1297 = vadd.f32 %v1130, %v1296
  %1298 = vmatmul.f32.gmra.mxu0 %v465
  %v1299 = vpop.f32.mrf.mxu0
  %v1300 = vadd.f32 %v1133, %v1299
  %1301 = vmatmul.f32.gmra.mxu0 %v468
  %v1302 = vpop.f32.mrf.mxu0
  %v1303 = vadd.f32 %v1136, %v1302
  %1304 = vmatmul.f32.gmra.mxu0 %v471
  %v1305 = vpop.f32.mrf.mxu0
  %v1306 = vadd.f32 %v1139, %v1305
  %1307 = vmatmul.f32.gmra.mxu0 %v474
  %v1308 = vpop.f32.mrf.mxu0
  %v1309 = vadd.f32 %v1142, %v1308
  %1310 = vmatmul.f32.gmra.mxu0 %v477
  %v1311 = vpop.f32.mrf.mxu0
  %v1312 = vadd.f32 %v1145, %v1311
  %1313 = vmatmul.f32.gmra.mxu0 %v480
  %v1314 = vpop.f32.mrf.mxu0
  %v1315 = vadd.f32 %v1148, %v1314
  %1316 = vmatmul.f32.gmra.mxu0 %v483
  %v1317 = vpop.f32.mrf.mxu0
  %v1318 = vadd.f32 %v1151, %v1317
  %1319 = vmatmul.f32.gmra.mxu0 %v486
  %v1320 = vpop.f32.mrf.mxu0
  %v1321 = vadd.f32 %v1154, %v1320
  %1322 = vmatmul.f32.gmra.mxu0 %v489
  %v1323 = vpop.f32.mrf.mxu0
  %v1324 = vadd.f32 %v1157, %v1323
  %1325 = vdwg.mxu0
  %vm1326 = vcmp.ge.f32.partialorder %v1177, 0.0
  %vm1327 = vcmp.ge.f32.partialorder %v1180, 0.0
  %vm1328 = vcmp.ge.f32.partialorder %v1183, 0.0
  %vm1329 = vcmp.ge.f32.partialorder %v1186, 0.0
  %vm1330 = vcmp.ge.f32.partialorder %v1189, 0.0
  %vm1331 = vcmp.ge.f32.partialorder %v1192, 0.0
  %vm1332 = vcmp.ge.f32.partialorder %v1195, 0.0
  %vm1333 = vcmp.ge.f32.partialorder %v1198, 0.0
  %vm1334 = vcmp.ge.f32.partialorder %v1201, 0.0
  %vm1335 = vcmp.ge.f32.partialorder %v1204, 0.0
  %vm1336 = vcmp.ge.f32.partialorder %v1207, 0.0
  %vm1337 = vcmp.ge.f32.partialorder %v1210, 0.0
  %vm1338 = vcmp.ge.f32.partialorder %v1213, 0.0
  %vm1339 = vcmp.ge.f32.partialorder %v1216, 0.0
  %vm1340 = vcmp.ge.f32.partialorder %v1219, 0.0
  %vm1341 = vcmp.ge.f32.partialorder %v1222, 0.0
  %vm1342 = vcmp.ge.f32.partialorder %v1225, 0.0
  %vm1343 = vcmp.ge.f32.partialorder %v1228, 0.0
  %vm1344 = vcmp.ge.f32.partialorder %v1231, 0.0
  %vm1345 = vcmp.ge.f32.partialorder %v1234, 0.0
  %vm1346 = vcmp.ge.f32.partialorder %v1237, 0.0
  %vm1347 = vcmp.ge.f32.partialorder %v1240, 0.0
  %vm1348 = vcmp.ge.f32.partialorder %v1243, 0.0
  %vm1349 = vcmp.ge.f32.partialorder %v1246, 0.0
  %vm1350 = vcmp.ge.f32.partialorder %v1249, 0.0
  %vm1351 = vcmp.ge.f32.partialorder %v1252, 0.0
  %vm1352 = vcmp.ge.f32.partialorder %v1255, 0.0
  %vm1353 = vcmp.ge.f32.partialorder %v1258, 0.0
  %vm1354 = vcmp.ge.f32.partialorder %v1261, 0.0
  %vm1355 = vcmp.ge.f32.partialorder %v1264, 0.0
  %vm1356 = vcmp.ge.f32.partialorder %v1267, 0.0
  %vm1357 = vcmp.ge.f32.partialorder %v1270, 0.0
  %vm1358 = vcmp.ge.f32.partialorder %v1273, 0.0
  %vm1359 = vcmp.ge.f32.partialorder %v1276, 0.0
  %vm1360 = vcmp.ge.f32.partialorder %v1279, 0.0
  %vm1361 = vcmp.ge.f32.partialorder %v1282, 0.0
  %vm1362 = vcmp.ge.f32.partialorder %v1285, 0.0
  %vm1363 = vcmp.ge.f32.partialorder %v1288, 0.0
  %vm1364 = vcmp.ge.f32.partialorder %v1291, 0.0
  %vm1365 = vcmp.ge.f32.partialorder %v1294, 0.0
  %vm1366 = vcmp.ge.f32.partialorder %v1297, 0.0
  %vm1367 = vcmp.ge.f32.partialorder %v1300, 0.0
  %vm1368 = vcmp.ge.f32.partialorder %v1303, 0.0
  %vm1369 = vcmp.ge.f32.partialorder %v1306, 0.0
  %vm1370 = vcmp.ge.f32.partialorder %v1309, 0.0
  %vm1371 = vcmp.ge.f32.partialorder %v1312, 0.0
  %vm1372 = vcmp.ge.f32.partialorder %v1315, 0.0
  %vm1373 = vcmp.ge.f32.partialorder %v1318, 0.0
  %vm1374 = vcmp.ge.f32.partialorder %v1321, 0.0
  %vm1375 = vcmp.ge.f32.partialorder %v1324, 0.0
  %v1376 = vmul.f32 %v1177, 0.01
  %v1377 = vmul.f32 %v1180, 0.01
  %v1378 = vmul.f32 %v1183, 0.01
  %v1379 = vmul.f32 %v1186, 0.01
  %v1380 = vmul.f32 %v1189, 0.01
  %v1381 = vmul.f32 %v1192, 0.01
  %v1382 = vmul.f32 %v1195, 0.01
  %v1383 = vmul.f32 %v1198, 0.01
  %v1384 = vmul.f32 %v1201, 0.01
  %v1385 = vmul.f32 %v1204, 0.01
  %v1386 = vmul.f32 %v1207, 0.01
  %v1387 = vmul.f32 %v1210, 0.01
  %v1388 = vmul.f32 %v1213, 0.01
  %v1389 = vmul.f32 %v1216, 0.01
  %v1390 = vmul.f32 %v1219, 0.01
  %v1391 = vmul.f32 %v1222, 0.01
  %v1392 = vmul.f32 %v1225, 0.01
  %v1393 = vmul.f32 %v1228, 0.01
  %v1394 = vmul.f32 %v1231, 0.01
  %v1395 = vmul.f32 %v1234, 0.01
  %v1396 = vmul.f32 %v1237, 0.01
  %v1397 = vmul.f32 %v1240, 0.01
  %v1398 = vmul.f32 %v1243, 0.01
  %v1399 = vmul.f32 %v1246, 0.01
  %v1400 = vmul.f32 %v1249, 0.01
  %v1401 = vmul.f32 %v1252, 0.01
  %v1402 = vmul.f32 %v1255, 0.01
  %v1403 = vmul.f32 %v1258, 0.01
  %v1404 = vmul.f32 %v1261, 0.01
  %v1405 = vmul.f32 %v1264, 0.01
  %v1406 = vmul.f32 %v1267, 0.01
  %v1407 = vmul.f32 %v1270, 0.01
  %v1408 = vmul.f32 %v1273, 0.01
  %v1409 = vmul.f32 %v1276, 0.01
  %v1410 = vmul.f32 %v1279, 0.01
  %v1411 = vmul.f32 %v1282, 0.01
  %v1412 = vmul.f32 %v1285, 0.01
  %v1413 = vmul.f32 %v1288, 0.01
  %v1414 = vmul.f32 %v1291, 0.01
  %v1415 = vmul.f32 %v1294, 0.01
  %v1416 = vmul.f32 %v1297, 0.01
  %v1417 = vmul.f32 %v1300, 0.01
  %v1418 = vmul.f32 %v1303, 0.01
  %v1419 = vmul.f32 %v1306, 0.01
  %v1420 = vmul.f32 %v1309, 0.01
  %v1421 = vmul.f32 %v1312, 0.01
  %v1422 = vmul.f32 %v1315, 0.01
  %v1423 = vmul.f32 %v1318, 0.01
  %v1424 = vmul.f32 %v1321, 0.01
  %v1425 = vmul.f32 %v1324, 0.01
  %v1426 = vsel %vm1326, %v1177, %v1376
  %v1427 = vsel %vm1327, %v1180, %v1377
  %v1428 = vsel %vm1328, %v1183, %v1378
  %v1429 = vsel %vm1329, %v1186, %v1379
  %v1430 = vsel %vm1330, %v1189, %v1380
  %v1431 = vsel %vm1331, %v1192, %v1381
  %v1432 = vsel %vm1332, %v1195, %v1382
  %v1433 = vsel %vm1333, %v1198, %v1383
  %v1434 = vsel %vm1334, %v1201, %v1384
  %v1435 = vsel %vm1335, %v1204, %v1385
  %v1436 = vsel %vm1336, %v1207, %v1386
  %v1437 = vsel %vm1337, %v1210, %v1387
  %v1438 = vsel %vm1338, %v1213, %v1388
  %v1439 = vsel %vm1339, %v1216, %v1389
  %v1440 = vsel %vm1340, %v1219, %v1390
  %v1441 = vsel %vm1341, %v1222, %v1391
  %v1442 = vsel %vm1342, %v1225, %v1392
  %v1443 = vsel %vm1343, %v1228, %v1393
  %v1444 = vsel %vm1344, %v1231, %v1394
  %v1445 = vsel %vm1345, %v1234, %v1395
  %v1446 = vsel %vm1346, %v1237, %v1396
  %v1447 = vsel %vm1347, %v1240, %v1397
  %v1448 = vsel %vm1348, %v1243, %v1398
  %v1449 = vsel %vm1349, %v1246, %v1399
  %v1450 = vsel %vm1350, %v1249, %v1400
  %v1451 = vsel %vm1351, %v1252, %v1401
  %v1452 = vsel %vm1352, %v1255, %v1402
  %v1453 = vsel %vm1353, %v1258, %v1403
  %v1454 = vsel %vm1354, %v1261, %v1404
  %v1455 = vsel %vm1355, %v1264, %v1405
  %v1456 = vsel %vm1356, %v1267, %v1406
  %v1457 = vsel %vm1357, %v1270, %v1407
  %v1458 = vsel %vm1358, %v1273, %v1408
  %v1459 = vsel %vm1359, %v1276, %v1409
  %v1460 = vsel %vm1360, %v1279, %v1410
  %v1461 = vsel %vm1361, %v1282, %v1411
  %v1462 = vsel %vm1362, %v1285, %v1412
  %v1463 = vsel %vm1363, %v1288, %v1413
  %v1464 = vsel %vm1364, %v1291, %v1414
  %v1465 = vsel %vm1365, %v1294, %v1415
  %v1466 = vsel %vm1366, %v1297, %v1416
  %v1467 = vsel %vm1367, %v1300, %v1417
  %v1468 = vsel %vm1368, %v1303, %v1418
  %v1469 = vsel %vm1369, %v1306, %v1419
  %v1470 = vsel %vm1370, %v1309, %v1420
  %v1471 = vsel %vm1371, %v1312, %v1421
  %v1472 = vsel %vm1372, %v1315, %v1422
  %v1473 = vsel %vm1373, %v1318, %v1423
  %v1474 = vsel %vm1374, %v1321, %v1424
  %v1475 = vsel %vm1375, %v1324, %v1425
  %vm1476 = vcmask 80896
  %1477 = vst.msk [vmem:[%s3] sm:$0xff] %vm1476, %v1426
  %1478 = vst.msk [vmem:[%s3 + $0x8] sm:$0xff] %vm1476, %v1427
  %1479 = vst.msk [vmem:[%s3 + $0x10] sm:$0xff] %vm1476, %v1428
  %1480 = vst.msk [vmem:[%s3 + $0x18] sm:$0xff] %vm1476, %v1429
  %1481 = vst.msk [vmem:[%s3 + $0x20] sm:$0xff] %vm1476, %v1430
  %1482 = vst.msk [vmem:[%s3 + $0x28] sm:$0xff] %vm1476, %v1431
  %1483 = vst.msk [vmem:[%s3 + $0x30] sm:$0xff] %vm1476, %v1432
  %1484 = vst.msk [vmem:[%s3 + $0x38] sm:$0xff] %vm1476, %v1433
  %1485 = vst.msk [vmem:[%s3 + $0x40] sm:$0xff] %vm1476, %v1434
  %1486 = vst.msk [vmem:[%s3 + $0x48] sm:$0xff] %vm1476, %v1435
  %1487 = vst.msk [vmem:[%s3 + $0x50] sm:$0xff] %vm1476, %v1436
  %1488 = vst.msk [vmem:[%s3 + $0x58] sm:$0xff] %vm1476, %v1437
  %1489 = vst.msk [vmem:[%s3 + $0x60] sm:$0xff] %vm1476, %v1438
  %1490 = vst.msk [vmem:[%s3 + $0x68] sm:$0xff] %vm1476, %v1439
  %1491 = vst.msk [vmem:[%s3 + $0x70] sm:$0xff] %vm1476, %v1440
  %1492 = vst.msk [vmem:[%s3 + $0x78] sm:$0xff] %vm1476, %v1441
  %1493 = vst.msk [vmem:[%s3 + $0x80] sm:$0xff] %vm1476, %v1442
  %1494 = vst.msk [vmem:[%s3 + $0x88] sm:$0xff] %vm1476, %v1443
  %1495 = vst.msk [vmem:[%s3 + $0x90] sm:$0xff] %vm1476, %v1444
  %1496 = vst.msk [vmem:[%s3 + $0x98] sm:$0xff] %vm1476, %v1445
  %1497 = vst.msk [vmem:[%s3 + $0xa0] sm:$0xff] %vm1476, %v1446
  %1498 = vst.msk [vmem:[%s3 + $0xa8] sm:$0xff] %vm1476, %v1447
  %1499 = vst.msk [vmem:[%s3 + $0xb0] sm:$0xff] %vm1476, %v1448
  %1500 = vst.msk [vmem:[%s3 + $0xb8] sm:$0xff] %vm1476, %v1449
  %1501 = vst.msk [vmem:[%s3 + $0xc0] sm:$0xff] %vm1476, %v1450
  %1502 = vst.msk [vmem:[%s3 + $0xc8] sm:$0xff] %vm1476, %v1451
  %1503 = vst.msk [vmem:[%s3 + $0xd0] sm:$0xff] %vm1476, %v1452
  %1504 = vst.msk [vmem:[%s3 + $0xd8] sm:$0xff] %vm1476, %v1453
  %1505 = vst.msk [vmem:[%s3 + $0xe0] sm:$0xff] %vm1476, %v1454
  %1506 = vst.msk [vmem:[%s3 + $0xe8] sm:$0xff] %vm1476, %v1455
  %1507 = vst.msk [vmem:[%s3 + $0xf0] sm:$0xff] %vm1476, %v1456
  %1508 = vst.msk [vmem:[%s3 + $0xf8] sm:$0xff] %vm1476, %v1457
  %1509 = vst.msk [vmem:[%s3 + $0x100] sm:$0xff] %vm1476, %v1458
  %1510 = vst.msk [vmem:[%s3 + $0x108] sm:$0xff] %vm1476, %v1459
  %1511 = vst.msk [vmem:[%s3 + $0x110] sm:$0xff] %vm1476, %v1460
  %1512 = vst.msk [vmem:[%s3 + $0x118] sm:$0xff] %vm1476, %v1461
  %1513 = vst.msk [vmem:[%s3 + $0x120] sm:$0xff] %vm1476, %v1462
  %1514 = vst.msk [vmem:[%s3 + $0x128] sm:$0xff] %vm1476, %v1463
  %1515 = vst.msk [vmem:[%s3 + $0x130] sm:$0xff] %vm1476, %v1464
  %1516 = vst.msk [vmem:[%s3 + $0x138] sm:$0xff] %vm1476, %v1465
  %1517 = vst.msk [vmem:[%s3 + $0x140] sm:$0xff] %vm1476, %v1466
  %1518 = vst.msk [vmem:[%s3 + $0x148] sm:$0xff] %vm1476, %v1467
  %1519 = vst.msk [vmem:[%s3 + $0x150] sm:$0xff] %vm1476, %v1468
  %1520 = vst.msk [vmem:[%s3 + $0x158] sm:$0xff] %vm1476, %v1469
  %1521 = vst.msk [vmem:[%s3 + $0x160] sm:$0xff] %vm1476, %v1470
  %1522 = vst.msk [vmem:[%s3 + $0x168] sm:$0xff] %vm1476, %v1471
  %1523 = vst.msk [vmem:[%s3 + $0x170] sm:$0xff] %vm1476, %v1472
  %1524 = vst.msk [vmem:[%s3 + $0x178] sm:$0xff] %vm1476, %v1473
  %1525 = vst.msk [vmem:[%s3 + $0x180] sm:$0xff] %vm1476, %v1474
  %1526 = vst.msk [vmem:[%s3 + $0x188] sm:$0xff] %vm1476, %v1475
  // Predicated region
  $region14: #{mtrnn_forward.10} parent=0 // pred_check
    _
  $region15: #{mtrnn_forward.10} parent=0 // pred_check_branch
    %1528 = sbr.rel (0) target = $region17
  $region16: #{mtrnn_forward.10} parent=0 // pred_region
    _
  $region17: #{mtrnn_forward.10} parent=0 // pred_fallthru
    _
  // Predicated region
  $region18: #{mtrnn_forward.10} parent=0 // pred_check
    _
  $region19: #{mtrnn_forward.10} parent=0 // pred_check_branch
    %1530 = sbr.rel (0) target = $region21
  $region20: #{mtrnn_forward.10} parent=0 // pred_region
    _
  $region21: #{mtrnn_forward.10} parent=0 // pred_fallthru
    _

// kernel: mtrnn_forward.12
$region0: #{mtrnn_forward.12}
  #allocation0 [shape = 'u32[]', space=smem, size = 0x4, offset = 0x4, fixed_abs, tag = 'smem constant byte address 0x4 - core index']
  #allocation1 [shape = 'u32[72,128]{1,0:T(1,128)}', space=vmem, size = 0x9000, scoped, tag = 'internal scratch']
  %s0 = inlined_call_operand.vmem [shape: f32[4,100,10], index: 0, kind: input, shape index: {}]
  %s1 = inlined_call_operand.vmem [shape: f32[4,1,5], index: 1, kind: input, shape index: {}]
  %s2 = inlined_call_operand.vmem [shape: f32[4,1,5], index: 2, kind: input, shape index: {}]
  %s3 = inlined_call_operand.vmem [shape: f32[1,100,5], index: 3, kind: input, shape index: {}]
  %s4 = inlined_call_operand.vmem [shape: f32[1,100,5], index: 4, kind: input, shape index: {}]
  %s5 = inlined_call_operand.vmem [shape: f32[4,100,5], index: 5, kind: output, shape index: {}]
  %s6 = sld [smem:[#allocation0]]
  $region30: #{mtrnn_forward.12} parent=0
    _
  %s8 = ssub.s32 1, %s6
  %s9 = scalar_select 0, %s8, %s6
  // Predicated region
  $region2: #{mtrnn_forward.12} parent=0 // pred_check
    _
  $region3: #{mtrnn_forward.12} parent=0 // pred_check_branch
    %11 = sbr.rel (0) target = $region5
  $region4: #{mtrnn_forward.12} parent=0 // pred_region
    _
  $region5: #{mtrnn_forward.12} parent=0 // pred_fallthru
    _
  // Predicated region
  $region6: #{mtrnn_forward.12} parent=0 // pred_check
    _
  $region7: #{mtrnn_forward.12} parent=0 // pred_check_branch
    %13 = sbr.rel (0) target = $region9
  $region8: #{mtrnn_forward.12} parent=0 // pred_region
    _
  $region9: #{mtrnn_forward.12} parent=0 // pred_fallthru
    _
  // Predicated region
  $region10: #{mtrnn_forward.12} parent=0 // pred_check
    _
  $region11: #{mtrnn_forward.12} parent=0 // pred_check_branch
    %15 = sbr.rel (0) target = $region13
  $region12: #{mtrnn_forward.12} parent=0 // pred_region
    _
  $region13: #{mtrnn_forward.12} parent=0 // pred_fallthru
    _
  // Predicated region
  $region14: #{mtrnn_forward.12} parent=0 // pred_check
    _
  $region15: #{mtrnn_forward.12} parent=0 // pred_check_branch
    %17 = sbr.rel (0) target = $region17
  $region16: #{mtrnn_forward.12} parent=0 // pred_region
    _
  $region17: #{mtrnn_forward.12} parent=0 // pred_fallthru
    _
  // Predicated region
  $region18: #{mtrnn_forward.12} parent=0 // pred_check
    _
  $region19: #{mtrnn_forward.12} parent=0 // pred_check_branch
    %19 = sbr.rel (0) target = $region21
  $region20: #{mtrnn_forward.12} parent=0 // pred_region
    _
  $region21: #{mtrnn_forward.12} parent=0 // pred_fallthru
    _
  %v20 = vld [vmem:[%s0] sm:$0xff]
  %v21 = vld [vmem:[%s0 + $0x8] sm:$0xff]
  %v22 = vld [vmem:[%s0 + $0x10] sm:$0xff]
  %v23 = vld [vmem:[%s0 + $0x18] sm:$0xff]
  %v24 = vld [vmem:[%s0 + $0x20] sm:$0xff]
  %v25 = vld [vmem:[%s0 + $0x28] sm:$0xff]
  %v26 = vld [vmem:[%s0 + $0x30] sm:$0xff]
  %v27 = vld [vmem:[%s0 + $0x38] sm:$0xff]
  %v28 = vld [vmem:[%s0 + $0x40] sm:$0xff]
  %v29 = vld [vmem:[%s0 + $0x48] sm:$0xff]
  %v30 = vld [vmem:[%s0 + $0x50] sm:$0xff]
  %v31 = vld [vmem:[%s0 + $0x58] sm:$0xff]
  %v32 = vld [vmem:[%s0 + $0x60] sm:$0xf]
  %v33 = vld [vmem:[%s0 + $0x68] sm:$0xff]
  %v34 = vld [vmem:[%s0 + $0x70] sm:$0xff]
  %v35 = vld [vmem:[%s0 + $0x78] sm:$0xff]
  %v36 = vld [vmem:[%s0 + $0x80] sm:$0xff]
  %v37 = vld [vmem:[%s0 + $0x88] sm:$0xff]
  %v38 = vld [vmem:[%s0 + $0x90] sm:$0xff]
  %v39 = vld [vmem:[%s0 + $0x98] sm:$0xff]
  %v40 = vld [vmem:[%s0 + $0xa0] sm:$0xff]
  %v41 = vld [vmem:[%s0 + $0xa8] sm:$0xff]
  %v42 = vld [vmem:[%s0 + $0xb0] sm:$0xff]
  %v43 = vld [vmem:[%s0 + $0xb8] sm:$0xff]
  %v44 = vld [vmem:[%s0 + $0xc0] sm:$0xff]
  %v45 = vld [vmem:[%s0 + $0xc8] sm:$0xf]
  %v46 = vld [vmem:[%s0 + $0xd0] sm:$0xff]
  %v47 = vld [vmem:[%s0 + $0xd8] sm:$0xff]
  %v48 = vld [vmem:[%s0 + $0xe0] sm:$0xff]
  %v49 = vld [vmem:[%s0 + $0xe8] sm:$0xff]
  %v50 = vld [vmem:[%s0 + $0xf0] sm:$0xff]
  %v51 = vld [vmem:[%s0 + $0xf8] sm:$0xff]
  %v52 = vld [vmem:[%s0 + $0x100] sm:$0xff]
  %v53 = vld [vmem:[%s0 + $0x108] sm:$0xff]
  %v54 = vld [vmem:[%s0 + $0x110] sm:$0xff]
  %v55 = vld [vmem:[%s0 + $0x118] sm:$0xff]
  %v56 = vld [vmem:[%s0 + $0x120] sm:$0xff]
  %v57 = vld [vmem:[%s0 + $0x128] sm:$0xff]
  %v58 = vld [vmem:[%s0 + $0x130] sm:$0xf]
  %v59 = vld [vmem:[%s0 + $0x138] sm:$0xff]
  %v60 = vld [vmem:[%s0 + $0x140] sm:$0xff]
  %v61 = vld [vmem:[%s0 + $0x148] sm:$0xff]
  %v62 = vld [vmem:[%s0 + $0x150] sm:$0xff]
  %v63 = vld [vmem:[%s0 + $0x158] sm:$0xff]
  %v64 = vld [vmem:[%s0 + $0x160] sm:$0xff]
  %v65 = vld [vmem:[%s0 + $0x168] sm:$0xff]
  %v66 = vld [vmem:[%s0 + $0x170] sm:$0xff]
  %v67 = vld [vmem:[%s0 + $0x178] sm:$0xff]
  %v68 = vld [vmem:[%s0 + $0x180] sm:$0xff]
  %v69 = vld [vmem:[%s0 + $0x188] sm:$0xff]
  %v70 = vld [vmem:[%s0 + $0x190] sm:$0xff]
  %v71 = vld [vmem:[%s0 + $0x198] sm:$0xf]
  %v72 = vld [vmem:[%s3] sm:$0xff]
  %v73 = vld [vmem:[%s3 + $0x8] sm:$0xff]
  %v74 = vld [vmem:[%s3 + $0x10] sm:$0xff]
  %v75 = vld [vmem:[%s3 + $0x18] sm:$0xff]
  %v76 = vld [vmem:[%s3 + $0x20] sm:$0xff]
  %v77 = vld [vmem:[%s3 + $0x28] sm:$0xff]
  %v78 = vld [vmem:[%s3 + $0x30] sm:$0xff]
  %v79 = vld [vmem:[%s3 + $0x38] sm:$0xff]
  %v80 = vld [vmem:[%s3 + $0x40] sm:$0xff]
  %v81 = vld [vmem:[%s3 + $0x48] sm:$0xff]
  %v82 = vld [vmem:[%s3 + $0x50] sm:$0xff]
  %v83 = vld [vmem:[%s3 + $0x58] sm:$0xff]
  %v84 = vld [vmem:[%s3 + $0x60] sm:$0xf]
  %v85 = vld [vmem:[%s1] sm:$0x1]
  %v86 = vld [vmem:[%s1 + $0x1] sm:$0x1]
  %v87 = vld [vmem:[%s1 + $0x2] sm:$0x1]
  %v88 = vld [vmem:[%s1 + $0x3] sm:$0x1]
  %v93 = vperm.slane %v85, 0
  %v94 = vperm.slane %v86, 0
  %v95 = vperm.slane %v87, 0
  %v96 = vperm.slane %v88, 0
  %v101 = vsub.f32 %v72, %v93
  %v102 = vsub.f32 %v73, %v93
  %v103 = vsub.f32 %v74, %v93
  %v104 = vsub.f32 %v75, %v93
  %v105 = vsub.f32 %v76, %v93
  %v106 = vsub.f32 %v77, %v93
  %v107 = vsub.f32 %v78, %v93
  %v108 = vsub.f32 %v79, %v93
  %v109 = vsub.f32 %v80, %v93
  %v110 = vsub.f32 %v81, %v93
  %v111 = vsub.f32 %v82, %v93
  %v112 = vsub.f32 %v83, %v93
  %v113 = vsub.f32 %v84, %v93
  %v114 = vsub.f32 %v72, %v94
  %v115 = vsub.f32 %v73, %v94
  %v116 = vsub.f32 %v74, %v94
  %v117 = vsub.f32 %v75, %v94
  %v118 = vsub.f32 %v76, %v94
  %v119 = vsub.f32 %v77, %v94
  %v120 = vsub.f32 %v78, %v94
  %v121 = vsub.f32 %v79, %v94
  %v122 = vsub.f32 %v80, %v94
  %v123 = vsub.f32 %v81, %v94
  %v124 = vsub.f32 %v82, %v94
  %v125 = vsub.f32 %v83, %v94
  %v126 = vsub.f32 %v84, %v94
  %v127 = vsub.f32 %v72, %v95
  %v128 = vsub.f32 %v73, %v95
  %v129 = vsub.f32 %v74, %v95
  %v130 = vsub.f32 %v75, %v95
  %v131 = vsub.f32 %v76, %v95
  %v132 = vsub.f32 %v77, %v95
  %v133 = vsub.f32 %v78, %v95
  %v134 = vsub.f32 %v79, %v95
  %v135 = vsub.f32 %v80, %v95
  %v136 = vsub.f32 %v81, %v95
  %v137 = vsub.f32 %v82, %v95
  %v138 = vsub.f32 %v83, %v95
  %v139 = vsub.f32 %v84, %v95
  %v140 = vsub.f32 %v72, %v96
  %v141 = vsub.f32 %v73, %v96
  %v142 = vsub.f32 %v74, %v96
  %v143 = vsub.f32 %v75, %v96
  %v144 = vsub.f32 %v76, %v96
  %v145 = vsub.f32 %v77, %v96
  %v146 = vsub.f32 %v78, %v96
  %v147 = vsub.f32 %v79, %v96
  %v148 = vsub.f32 %v80, %v96
  %v149 = vsub.f32 %v81, %v96
  %v150 = vsub.f32 %v82, %v96
  %v151 = vsub.f32 %v83, %v96
  %v152 = vsub.f32 %v84, %v96
  %v153 = vmul.f32 %v101, %v101
  %v154 = vmul.f32 %v102, %v102
  %v155 = vmul.f32 %v103, %v103
  %v156 = vmul.f32 %v104, %v104
  %v157 = vmul.f32 %v105, %v105
  %v158 = vmul.f32 %v106, %v106
  %v159 = vmul.f32 %v107, %v107
  %v160 = vmul.f32 %v108, %v108
  %v161 = vmul.f32 %v109, %v109
  %v162 = vmul.f32 %v110, %v110
  %v163 = vmul.f32 %v111, %v111
  %v164 = vmul.f32 %v112, %v112
  %v165 = vmul.f32 %v113, %v113
  %v166 = vmul.f32 %v114, %v114
  %v167 = vmul.f32 %v115, %v115
  %v168 = vmul.f32 %v116, %v116
  %v169 = vmul.f32 %v117, %v117
  %v170 = vmul.f32 %v118, %v118
  %v171 = vmul.f32 %v119, %v119
  %v172 = vmul.f32 %v120, %v120
  %v173 = vmul.f32 %v121, %v121
  %v174 = vmul.f32 %v122, %v122
  %v175 = vmul.f32 %v123, %v123
  %v176 = vmul.f32 %v124, %v124
  %v177 = vmul.f32 %v125, %v125
  %v178 = vmul.f32 %v126, %v126
  %v179 = vmul.f32 %v127, %v127
  %v180 = vmul.f32 %v128, %v128
  %v181 = vmul.f32 %v129, %v129
  %v182 = vmul.f32 %v130, %v130
  %v183 = vmul.f32 %v131, %v131
  %v184 = vmul.f32 %v132, %v132
  %v185 = vmul.f32 %v133, %v133
  %v186 = vmul.f32 %v134, %v134
  %v187 = vmul.f32 %v135, %v135
  %v188 = vmul.f32 %v136, %v136
  %v189 = vmul.f32 %v137, %v137
  %v190 = vmul.f32 %v138, %v138
  %v191 = vmul.f32 %v139, %v139
  %v192 = vmul.f32 %v140, %v140
  %v193 = vmul.f32 %v141, %v141
  %v194 = vmul.f32 %v142, %v142
  %v195 = vmul.f32 %v143, %v143
  %v196 = vmul.f32 %v144, %v144
  %v197 = vmul.f32 %v145, %v145
  %v198 = vmul.f32 %v146, %v146
  %v199 = vmul.f32 %v147, %v147
  %v200 = vmul.f32 %v148, %v148
  %v201 = vmul.f32 %v149, %v149
  %v202 = vmul.f32 %v150, %v150
  %v203 = vmul.f32 %v151, %v151
  %v204 = vmul.f32 %v152, %v152
  %v205 = vld [vmem:[%s4] sm:$0xff]
  %v206 = vld [vmem:[%s4 + $0x8] sm:$0xff]
  %v207 = vld [vmem:[%s4 + $0x10] sm:$0xff]
  %v208 = vld [vmem:[%s4 + $0x18] sm:$0xff]
  %v209 = vld [vmem:[%s4 + $0x20] sm:$0xff]
  %v210 = vld [vmem:[%s4 + $0x28] sm:$0xff]
  %v211 = vld [vmem:[%s4 + $0x30] sm:$0xff]
  %v212 = vld [vmem:[%s4 + $0x38] sm:$0xff]
  %v213 = vld [vmem:[%s4 + $0x40] sm:$0xff]
  %v214 = vld [vmem:[%s4 + $0x48] sm:$0xff]
  %v215 = vld [vmem:[%s4 + $0x50] sm:$0xff]
  %v216 = vld [vmem:[%s4 + $0x58] sm:$0xff]
  %v217 = vld [vmem:[%s4 + $0x60] sm:$0xf]
  %v218 = vld [vmem:[%s2] sm:$0x1]
  %v219 = vld [vmem:[%s2 + $0x1] sm:$0x1]
  %v220 = vld [vmem:[%s2 + $0x2] sm:$0x1]
  %v221 = vld [vmem:[%s2 + $0x3] sm:$0x1]
  %v226 = vperm.slane %v218, 0
  %v227 = vperm.slane %v219, 0
  %v228 = vperm.slane %v220, 0
  %v229 = vperm.slane %v221, 0
  %v234 = vsub.f32 %v205, %v226
  %v235 = vsub.f32 %v206, %v226
  %v236 = vsub.f32 %v207, %v226
  %v237 = vsub.f32 %v208, %v226
  %v238 = vsub.f32 %v209, %v226
  %v239 = vsub.f32 %v210, %v226
  %v240 = vsub.f32 %v211, %v226
  %v241 = vsub.f32 %v212, %v226
  %v242 = vsub.f32 %v213, %v226
  %v243 = vsub.f32 %v214, %v226
  %v244 = vsub.f32 %v215, %v226
  %v245 = vsub.f32 %v216, %v226
  %v246 = vsub.f32 %v217, %v226
  %v247 = vsub.f32 %v205, %v227
  %v248 = vsub.f32 %v206, %v227
  %v249 = vsub.f32 %v207, %v227
  %v250 = vsub.f32 %v208, %v227
  %v251 = vsub.f32 %v209, %v227
  %v252 = vsub.f32 %v210, %v227
  %v253 = vsub.f32 %v211, %v227
  %v254 = vsub.f32 %v212, %v227
  %v255 = vsub.f32 %v213, %v227
  %v256 = vsub.f32 %v214, %v227
  %v257 = vsub.f32 %v215, %v227
  %v258 = vsub.f32 %v216, %v227
  %v259 = vsub.f32 %v217, %v227
  %v260 = vsub.f32 %v205, %v228
  %v261 = vsub.f32 %v206, %v228
  %v262 = vsub.f32 %v207, %v228
  %v263 = vsub.f32 %v208, %v228
  %v264 = vsub.f32 %v209, %v228
  %v265 = vsub.f32 %v210, %v228
  %v266 = vsub.f32 %v211, %v228
  %v267 = vsub.f32 %v212, %v228
  %v268 = vsub.f32 %v213, %v228
  %v269 = vsub.f32 %v214, %v228
  %v270 = vsub.f32 %v215, %v228
  %v271 = vsub.f32 %v216, %v228
  %v272 = vsub.f32 %v217, %v228
  %v273 = vsub.f32 %v205, %v229
  %v274 = vsub.f32 %v206, %v229
  %v275 = vsub.f32 %v207, %v229
  %v276 = vsub.f32 %v208, %v229
  %v277 = vsub.f32 %v209, %v229
  %v278 = vsub.f32 %v210, %v229
  %v279 = vsub.f32 %v211, %v229
  %v280 = vsub.f32 %v212, %v229
  %v281 = vsub.f32 %v213, %v229
  %v282 = vsub.f32 %v214, %v229
  %v283 = vsub.f32 %v215, %v229
  %v284 = vsub.f32 %v216, %v229
  %v285 = vsub.f32 %v217, %v229
  %v286 = vmul.f32 %v234, %v234
  %v287 = vmul.f32 %v235, %v235
  %v288 = vmul.f32 %v236, %v236
  %v289 = vmul.f32 %v237, %v237
  %v290 = vmul.f32 %v238, %v238
  %v291 = vmul.f32 %v239, %v239
  %v292 = vmul.f32 %v240, %v240
  %v293 = vmul.f32 %v241, %v241
  %v294 = vmul.f32 %v242, %v242
  %v295 = vmul.f32 %v243, %v243
  %v296 = vmul.f32 %v244, %v244
  %v297 = vmul.f32 %v245, %v245
  %v298 = vmul.f32 %v246, %v246
  %v299 = vmul.f32 %v247, %v247
  %v300 = vmul.f32 %v248, %v248
  %v301 = vmul.f32 %v249, %v249
  %v302 = vmul.f32 %v250, %v250
  %v303 = vmul.f32 %v251, %v251
  %v304 = vmul.f32 %v252, %v252
  %v305 = vmul.f32 %v253, %v253
  %v306 = vmul.f32 %v254, %v254
  %v307 = vmul.f32 %v255, %v255
  %v308 = vmul.f32 %v256, %v256
  %v309 = vmul.f32 %v257, %v257
  %v310 = vmul.f32 %v258, %v258
  %v311 = vmul.f32 %v259, %v259
  %v312 = vmul.f32 %v260, %v260
  %v313 = vmul.f32 %v261, %v261
  %v314 = vmul.f32 %v262, %v262
  %v315 = vmul.f32 %v263, %v263
  %v316 = vmul.f32 %v264, %v264
  %v317 = vmul.f32 %v265, %v265
  %v318 = vmul.f32 %v266, %v266
  %v319 = vmul.f32 %v267, %v267
  %v320 = vmul.f32 %v268, %v268
  %v321 = vmul.f32 %v269, %v269
  %v322 = vmul.f32 %v270, %v270
  %v323 = vmul.f32 %v271, %v271
  %v324 = vmul.f32 %v272, %v272
  %v325 = vmul.f32 %v273, %v273
  %v326 = vmul.f32 %v274, %v274
  %v327 = vmul.f32 %v275, %v275
  %v328 = vmul.f32 %v276, %v276
  %v329 = vmul.f32 %v277, %v277
  %v330 = vmul.f32 %v278, %v278
  %v331 = vmul.f32 %v279, %v279
  %v332 = vmul.f32 %v280, %v280
  %v333 = vmul.f32 %v281, %v281
  %v334 = vmul.f32 %v282, %v282
  %v335 = vmul.f32 %v283, %v283
  %v336 = vmul.f32 %v284, %v284
  %v337 = vmul.f32 %v285, %v285
  %v338 = vadd.f32 %v153, %v286
  %v339 = vadd.f32 %v154, %v287
  %v340 = vadd.f32 %v155, %v288
  %v341 = vadd.f32 %v156, %v289
  %v342 = vadd.f32 %v157, %v290
  %v343 = vadd.f32 %v158, %v291
  %v344 = vadd.f32 %v159, %v292
  %v345 = vadd.f32 %v160, %v293
  %v346 = vadd.f32 %v161, %v294
  %v347 = vadd.f32 %v162, %v295
  %v348 = vadd.f32 %v163, %v296
  %v349 = vadd.f32 %v164, %v297
  %v350 = vadd.f32 %v165, %v298
  %v351 = vadd.f32 %v166, %v299
  %v352 = vadd.f32 %v167, %v300
  %v353 = vadd.f32 %v168, %v301
  %v354 = vadd.f32 %v169, %v302
  %v355 = vadd.f32 %v170, %v303
  %v356 = vadd.f32 %v171, %v304
  %v357 = vadd.f32 %v172, %v305
  %v358 = vadd.f32 %v173, %v306
  %v359 = vadd.f32 %v174, %v307
  %v360 = vadd.f32 %v175, %v308
  %v361 = vadd.f32 %v176, %v309
  %v362 = vadd.f32 %v177, %v310
  %v363 = vadd.f32 %v178, %v311
  %v364 = vadd.f32 %v179, %v312
  %v365 = vadd.f32 %v180, %v313
  %v366 = vadd.f32 %v181, %v314
  %v367 = vadd.f32 %v182, %v315
  %v368 = vadd.f32 %v183, %v316
  %v369 = vadd.f32 %v184, %v317
  %v370 = vadd.f32 %v185, %v318
  %v371 = vadd.f32 %v186, %v319
  %v372 = vadd.f32 %v187, %v320
  %v373 = vadd.f32 %v188, %v321
  %v374 = vadd.f32 %v189, %v322
  %v375 = vadd.f32 %v190, %v323
  %v376 = vadd.f32 %v191, %v324
  %v377 = vadd.f32 %v192, %v325
  %v378 = vadd.f32 %v193, %v326
  %v379 = vadd.f32 %v194, %v327
  %v380 = vadd.f32 %v195, %v328
  %v381 = vadd.f32 %v196, %v329
  %v382 = vadd.f32 %v197, %v330
  %v383 = vadd.f32 %v198, %v331
  %v384 = vadd.f32 %v199, %v332
  %v385 = vadd.f32 %v200, %v333
  %v386 = vadd.f32 %v201, %v334
  %v387 = vadd.f32 %v202, %v335
  %v388 = vadd.f32 %v203, %v336
  %v389 = vadd.f32 %v204, %v337
  %v390 = vsub.f32 0.0, %v338
  %v391 = vsub.f32 0.0, %v339
  %v392 = vsub.f32 0.0, %v340
  %v393 = vsub.f32 0.0, %v341
  %v394 = vsub.f32 0.0, %v342
  %v395 = vsub.f32 0.0, %v343
  %v396 = vsub.f32 0.0, %v344
  %v397 = vsub.f32 0.0, %v345
  %v398 = vsub.f32 0.0, %v346
  %v399 = vsub.f32 0.0, %v347
  %v400 = vsub.f32 0.0, %v348
  %v401 = vsub.f32 0.0, %v349
  %v402 = vsub.f32 0.0, %v350
  %v403 = vsub.f32 0.0, %v351
  %v404 = vsub.f32 0.0, %v352
  %v405 = vsub.f32 0.0, %v353
  %v406 = vsub.f32 0.0, %v354
  %v407 = vsub.f32 0.0, %v355
  %v408 = vsub.f32 0.0, %v356
  %v409 = vsub.f32 0.0, %v357
  %v410 = vsub.f32 0.0, %v358
  %v411 = vsub.f32 0.0, %v359
  %v412 = vsub.f32 0.0, %v360
  %v413 = vsub.f32 0.0, %v361
  %v414 = vsub.f32 0.0, %v362
  %v415 = vsub.f32 0.0, %v363
  %v416 = vsub.f32 0.0, %v364
  %v417 = vsub.f32 0.0, %v365
  %v418 = vsub.f32 0.0, %v366
  %v419 = vsub.f32 0.0, %v367
  %v420 = vsub.f32 0.0, %v368
  %v421 = vsub.f32 0.0, %v369
  %v422 = vsub.f32 0.0, %v370
  %v423 = vsub.f32 0.0, %v371
  %v424 = vsub.f32 0.0, %v372
  %v425 = vsub.f32 0.0, %v373
  %v426 = vsub.f32 0.0, %v374
  %v427 = vsub.f32 0.0, %v375
  %v428 = vsub.f32 0.0, %v376
  %v429 = vsub.f32 0.0, %v377
  %v430 = vsub.f32 0.0, %v378
  %v431 = vsub.f32 0.0, %v379
  %v432 = vsub.f32 0.0, %v380
  %v433 = vsub.f32 0.0, %v381
  %v434 = vsub.f32 0.0, %v382
  %v435 = vsub.f32 0.0, %v383
  %v436 = vsub.f32 0.0, %v384
  %v437 = vsub.f32 0.0, %v385
  %v438 = vsub.f32 0.0, %v386
  %v439 = vsub.f32 0.0, %v387
  %v440 = vsub.f32 0.0, %v388
  %v441 = vsub.f32 0.0, %v389
  %v442 = vmul.f32 %v390, 10.0
  %v443 = vmul.f32 %v391, 10.0
  %v444 = vmul.f32 %v392, 10.0
  %v445 = vmul.f32 %v393, 10.0
  %v446 = vmul.f32 %v394, 10.0
  %v447 = vmul.f32 %v395, 10.0
  %v448 = vmul.f32 %v396, 10.0
  %v449 = vmul.f32 %v397, 10.0
  %v450 = vmul.f32 %v398, 10.0
  %v451 = vmul.f32 %v399, 10.0
  %v452 = vmul.f32 %v400, 10.0
  %v453 = vmul.f32 %v401, 10.0
  %v454 = vmul.f32 %v402, 10.0
  %v455 = vmul.f32 %v403, 10.0
  %v456 = vmul.f32 %v404, 10.0
  %v457 = vmul.f32 %v405, 10.0
  %v458 = vmul.f32 %v406, 10.0
  %v459 = vmul.f32 %v407, 10.0
  %v460 = vmul.f32 %v408, 10.0
  %v461 = vmul.f32 %v409, 10.0
  %v462 = vmul.f32 %v410, 10.0
  %v463 = vmul.f32 %v411, 10.0
  %v464 = vmul.f32 %v412, 10.0
  %v465 = vmul.f32 %v413, 10.0
  %v466 = vmul.f32 %v414, 10.0
  %v467 = vmul.f32 %v415, 10.0
  %v468 = vmul.f32 %v416, 10.0
  %v469 = vmul.f32 %v417, 10.0
  %v470 = vmul.f32 %v418, 10.0
  %v471 = vmul.f32 %v419, 10.0
  %v472 = vmul.f32 %v420, 10.0
  %v473 = vmul.f32 %v421, 10.0
  %v474 = vmul.f32 %v422, 10.0
  %v475 = vmul.f32 %v423, 10.0
  %v476 = vmul.f32 %v424, 10.0
  %v477 = vmul.f32 %v425, 10.0
  %v478 = vmul.f32 %v426, 10.0
  %v479 = vmul.f32 %v427, 10.0
  %v480 = vmul.f32 %v428, 10.0
  %v481 = vmul.f32 %v429, 10.0
  %v482 = vmul.f32 %v430, 10.0
  %v483 = vmul.f32 %v431, 10.0
  %v484 = vmul.f32 %v432, 10.0
  %v485 = vmul.f32 %v433, 10.0
  %v486 = vmul.f32 %v434, 10.0
  %v487 = vmul.f32 %v435, 10.0
  %v488 = vmul.f32 %v436, 10.0
  %v489 = vmul.f32 %v437, 10.0
  %v490 = vmul.f32 %v438, 10.0
  %v491 = vmul.f32 %v439, 10.0
  %v492 = vmul.f32 %v440, 10.0
  %v493 = vmul.f32 %v441, 10.0
  %v494 = vmul.f32 %v442, 1.442695
  %v495 = vpow.pop %v494
  %v496 = vmul.f32 %v443, 1.442695
  %v497 = vpow.pop %v496
  %v498 = vmul.f32 %v444, 1.442695
  %v499 = vpow.pop %v498
  %v500 = vmul.f32 %v445, 1.442695
  %v501 = vpow.pop %v500
  %v502 = vmul.f32 %v446, 1.442695
  %v503 = vpow.pop %v502
  %v504 = vmul.f32 %v447, 1.442695
  %v505 = vpow.pop %v504
  %v506 = vmul.f32 %v448, 1.442695
  %v507 = vpow.pop %v506
  %v508 = vmul.f32 %v449, 1.442695
  %v509 = vpow.pop %v508
  %v510 = vmul.f32 %v450, 1.442695
  %v511 = vpow.pop %v510
  %v512 = vmul.f32 %v451, 1.442695
  %v513 = vpow.pop %v512
  %v514 = vmul.f32 %v452, 1.442695
  %v515 = vpow.pop %v514
  %v516 = vmul.f32 %v453, 1.442695
  %v517 = vpow.pop %v516
  %v518 = vmul.f32 %v454, 1.442695
  %v519 = vpow.pop %v518
  %v520 = vmul.f32 %v455, 1.442695
  %v521 = vpow.pop %v520
  %v522 = vmul.f32 %v456, 1.442695
  %v523 = vpow.pop %v522
  %v524 = vmul.f32 %v457, 1.442695
  %v525 = vpow.pop %v524
  %v526 = vmul.f32 %v458, 1.442695
  %v527 = vpow.pop %v526
  %v528 = vmul.f32 %v459, 1.442695
  %v529 = vpow.pop %v528
  %v530 = vmul.f32 %v460, 1.442695
  %v531 = vpow.pop %v530
  %v532 = vmul.f32 %v461, 1.442695
  %v533 = vpow.pop %v532
  %v534 = vmul.f32 %v462, 1.442695
  %v535 = vpow.pop %v534
  %v536 = vmul.f32 %v463, 1.442695
  %v537 = vpow.pop %v536
  %v538 = vmul.f32 %v464, 1.442695
  %v539 = vpow.pop %v538
  %v540 = vmul.f32 %v465, 1.442695
  %v541 = vpow.pop %v540
  %v542 = vmul.f32 %v466, 1.442695
  %v543 = vpow.pop %v542
  %v544 = vmul.f32 %v467, 1.442695
  %v545 = vpow.pop %v544
  %v546 = vmul.f32 %v468, 1.442695
  %v547 = vpow.pop %v546
  %v548 = vmul.f32 %v469, 1.442695
  %v549 = vpow.pop %v548
  %v550 = vmul.f32 %v470, 1.442695
  %v551 = vpow.pop %v550
  %v552 = vmul.f32 %v471, 1.442695
  %v553 = vpow.pop %v552
  %v554 = vmul.f32 %v472, 1.442695
  %v555 = vpow.pop %v554
  %v556 = vmul.f32 %v473, 1.442695
  %v557 = vpow.pop %v556
  %v558 = vmul.f32 %v474, 1.442695
  %v559 = vpow.pop %v558
  %v560 = vmul.f32 %v475, 1.442695
  %v561 = vpow.pop %v560
  %v562 = vmul.f32 %v476, 1.442695
  %v563 = vpow.pop %v562
  %v564 = vmul.f32 %v477, 1.442695
  %v565 = vpow.pop %v564
  %v566 = vmul.f32 %v478, 1.442695
  %v567 = vpow.pop %v566
  %v568 = vmul.f32 %v479, 1.442695
  %v569 = vpow.pop %v568
  %v570 = vmul.f32 %v480, 1.442695
  %v571 = vpow.pop %v570
  %v572 = vmul.f32 %v481, 1.442695
  %v573 = vpow.pop %v572
  %v574 = vmul.f32 %v482, 1.442695
  %v575 = vpow.pop %v574
  %v576 = vmul.f32 %v483, 1.442695
  %v577 = vpow.pop %v576
  %v578 = vmul.f32 %v484, 1.442695
  %v579 = vpow.pop %v578
  %v580 = vmul.f32 %v485, 1.442695
  %v581 = vpow.pop %v580
  %v582 = vmul.f32 %v486, 1.442695
  %v583 = vpow.pop %v582
  %v584 = vmul.f32 %v487, 1.442695
  %v585 = vpow.pop %v584
  %v586 = vmul.f32 %v488, 1.442695
  %v587 = vpow.pop %v586
  %v588 = vmul.f32 %v489, 1.442695
  %v589 = vpow.pop %v588
  %v590 = vmul.f32 %v490, 1.442695
  %v591 = vpow.pop %v590
  %v592 = vmul.f32 %v491, 1.442695
  %v593 = vpow.pop %v592
  %v594 = vmul.f32 %v492, 1.442695
  %v595 = vpow.pop %v594
  %v596 = vmul.f32 %v493, 1.442695
  %v597 = vpow.pop %v596
  %v598 = vmul.f32 %v495, %v20
  %v599 = vmul.f32 %v497, %v21
  %v600 = vmul.f32 %v499, %v22
  %v601 = vmul.f32 %v501, %v23
  %v602 = vmul.f32 %v503, %v24
  %v603 = vmul.f32 %v505, %v25
  %v604 = vmul.f32 %v507, %v26
  %v605 = vmul.f32 %v509, %v27
  %v606 = vmul.f32 %v511, %v28
  %v607 = vmul.f32 %v513, %v29
  %v608 = vmul.f32 %v515, %v30
  %v609 = vmul.f32 %v517, %v31
  %v610 = vmul.f32 %v519, %v32
  %v611 = vmul.f32 %v521, %v33
  %v612 = vmul.f32 %v523, %v34
  %v613 = vmul.f32 %v525, %v35
  %v614 = vmul.f32 %v527, %v36
  %v615 = vmul.f32 %v529, %v37
  %v616 = vmul.f32 %v531, %v38
  %v617 = vmul.f32 %v533, %v39
  %v618 = vmul.f32 %v535, %v40
  %v619 = vmul.f32 %v537, %v41
  %v620 = vmul.f32 %v539, %v42
  %v621 = vmul.f32 %v541, %v43
  %v622 = vmul.f32 %v543, %v44
  %v623 = vmul.f32 %v545, %v45
  %v624 = vmul.f32 %v547, %v46
  %v625 = vmul.f32 %v549, %v47
  %v626 = vmul.f32 %v551, %v48
  %v627 = vmul.f32 %v553, %v49
  %v628 = vmul.f32 %v555, %v50
  %v629 = vmul.f32 %v557, %v51
  %v630 = vmul.f32 %v559, %v52
  %v631 = vmul.f32 %v561, %v53
  %v632 = vmul.f32 %v563, %v54
  %v633 = vmul.f32 %v565, %v55
  %v634 = vmul.f32 %v567, %v56
  %v635 = vmul.f32 %v569, %v57
  %v636 = vmul.f32 %v571, %v58
  %v637 = vmul.f32 %v573, %v59
  %v638 = vmul.f32 %v575, %v60
  %v639 = vmul.f32 %v577, %v61
  %v640 = vmul.f32 %v579, %v62
  %v641 = vmul.f32 %v581, %v63
  %v642 = vmul.f32 %v583, %v64
  %v643 = vmul.f32 %v585, %v65
  %v644 = vmul.f32 %v587, %v66
  %v645 = vmul.f32 %v589, %v67
  %v646 = vmul.f32 %v591, %v68
  %v647 = vmul.f32 %v593, %v69
  %v648 = vmul.f32 %v595, %v70
  %v649 = vmul.f32 %v597, %v71
  %vm650 = vcmask 39936
  %651 = vst.msk [vmem:[%s5] sm:$0xff] %vm650, %v598
  %652 = vst.msk [vmem:[%s5 + $0x8] sm:$0xff] %vm650, %v599
  %653 = vst.msk [vmem:[%s5 + $0x10] sm:$0xff] %vm650, %v600
  %654 = vst.msk [vmem:[%s5 + $0x18] sm:$0xff] %vm650, %v601
  %655 = vst.msk [vmem:[%s5 + $0x20] sm:$0xff] %vm650, %v602
  %656 = vst.msk [vmem:[%s5 + $0x28] sm:$0xff] %vm650, %v603
  %657 = vst.msk [vmem:[%s5 + $0x30] sm:$0xff] %vm650, %v604
  %658 = vst.msk [vmem:[%s5 + $0x38] sm:$0xff] %vm650, %v605
  %659 = vst.msk [vmem:[%s5 + $0x40] sm:$0xff] %vm650, %v606
  %660 = vst.msk [vmem:[%s5 + $0x48] sm:$0xff] %vm650, %v607
  %661 = vst.msk [vmem:[%s5 + $0x50] sm:$0xff] %vm650, %v608
  %662 = vst.msk [vmem:[%s5 + $0x58] sm:$0xff] %vm650, %v609
  %vm663 = vcmask 35840
  %664 = vst.msk [vmem:[%s5 + $0x60] sm:$0xf] %vm663, %v610
  %665 = vst.msk [vmem:[%s5 + $0x68] sm:$0xff] %vm650, %v611
  %666 = vst.msk [vmem:[%s5 + $0x70] sm:$0xff] %vm650, %v612
  %667 = vst.msk [vmem:[%s5 + $0x78] sm:$0xff] %vm650, %v613
  %668 = vst.msk [vmem:[%s5 + $0x80] sm:$0xff] %vm650, %v614
  %669 = vst.msk [vmem:[%s5 + $0x88] sm:$0xff] %vm650, %v615
  %670 = vst.msk [vmem:[%s5 + $0x90] sm:$0xff] %vm650, %v616
  %671 = vst.msk [vmem:[%s5 + $0x98] sm:$0xff] %vm650, %v617
  %672 = vst.msk [vmem:[%s5 + $0xa0] sm:$0xff] %vm650, %v618
  %673 = vst.msk [vmem:[%s5 + $0xa8] sm:$0xff] %vm650, %v619
  %674 = vst.msk [vmem:[%s5 + $0xb0] sm:$0xff] %vm650, %v620
  %675 = vst.msk [vmem:[%s5 + $0xb8] sm:$0xff] %vm650, %v621
  %676 = vst.msk [vmem:[%s5 + $0xc0] sm:$0xff] %vm650, %v622
  %677 = vst.msk [vmem:[%s5 + $0xc8] sm:$0xf] %vm663, %v623
  %678 = vst.msk [vmem:[%s5 + $0xd0] sm:$0xff] %vm650, %v624
  %679 = vst.msk [vmem:[%s5 + $0xd8] sm:$0xff] %vm650, %v625
  %680 = vst.msk [vmem:[%s5 + $0xe0] sm:$0xff] %vm650, %v626
  %681 = vst.msk [vmem:[%s5 + $0xe8] sm:$0xff] %vm650, %v627
  %682 = vst.msk [vmem:[%s5 + $0xf0] sm:$0xff] %vm650, %v628
  %683 = vst.msk [vmem:[%s5 + $0xf8] sm:$0xff] %vm650, %v629
  %684 = vst.msk [vmem:[%s5 + $0x100] sm:$0xff] %vm650, %v630
  %685 = vst.msk [vmem:[%s5 + $0x108] sm:$0xff] %vm650, %v631
  %686 = vst.msk [vmem:[%s5 + $0x110] sm:$0xff] %vm650, %v632
  %687 = vst.msk [vmem:[%s5 + $0x118] sm:$0xff] %vm650, %v633
  %688 = vst.msk [vmem:[%s5 + $0x120] sm:$0xff] %vm650, %v634
  %689 = vst.msk [vmem:[%s5 + $0x128] sm:$0xff] %vm650, %v635
  %690 = vst.msk [vmem:[%s5 + $0x130] sm:$0xf] %vm663, %v636
  %691 = vst.msk [vmem:[%s5 + $0x138] sm:$0xff] %vm650, %v637
  %692 = vst.msk [vmem:[%s5 + $0x140] sm:$0xff] %vm650, %v638
  %693 = vst.msk [vmem:[%s5 + $0x148] sm:$0xff] %vm650, %v639
  %694 = vst.msk [vmem:[%s5 + $0x150] sm:$0xff] %vm650, %v640
  %695 = vst.msk [vmem:[%s5 + $0x158] sm:$0xff] %vm650, %v641
  %696 = vst.msk [vmem:[%s5 + $0x160] sm:$0xff] %vm650, %v642
  %697 = vst.msk [vmem:[%s5 + $0x168] sm:$0xff] %vm650, %v643
  %698 = vst.msk [vmem:[%s5 + $0x170] sm:$0xff] %vm650, %v644
  %699 = vst.msk [vmem:[%s5 + $0x178] sm:$0xff] %vm650, %v645
  %700 = vst.msk [vmem:[%s5 + $0x180] sm:$0xff] %vm650, %v646
  %701 = vst.msk [vmem:[%s5 + $0x188] sm:$0xff] %vm650, %v647
  %702 = vst.msk [vmem:[%s5 + $0x190] sm:$0xff] %vm650, %v648
  %703 = vst.msk [vmem:[%s5 + $0x198] sm:$0xf] %vm663, %v649
  // Predicated region
  $region22: #{mtrnn_forward.12} parent=0 // pred_check
    _
  $region23: #{mtrnn_forward.12} parent=0 // pred_check_branch
    %705 = sbr.rel (0) target = $region25
  $region24: #{mtrnn_forward.12} parent=0 // pred_region
    _
  $region25: #{mtrnn_forward.12} parent=0 // pred_fallthru
    _
  // Predicated region
  $region26: #{mtrnn_forward.12} parent=0 // pred_check
    _
  $region27: #{mtrnn_forward.12} parent=0 // pred_check_branch
    %707 = sbr.rel (0) target = $region29
  $region28: #{mtrnn_forward.12} parent=0 // pred_region
    _
  $region29: #{mtrnn_forward.12} parent=0 // pred_fallthru
    _

// kernel: mtrnn_forward.11
$region0: #{mtrnn_forward.11}
  #allocation0 [shape = 'u32[]', space=smem, size = 0x4, offset = 0x4, fixed_abs, tag = 'smem constant byte address 0x4 - core index']
  #allocation1 [shape = 'u32[72,128]{1,0:T(1,128)}', space=vmem, size = 0x9000, scoped, tag = 'internal scratch']
  %s0 = inlined_call_operand.vmem [shape: f32[4,100,10], index: 0, kind: input, shape index: {}]
  %s1 = inlined_call_operand.vmem [shape: f32[1,100,5], index: 1, kind: input, shape index: {}]
  %s2 = inlined_call_operand.vmem [shape: f32[1,100,5], index: 2, kind: input, shape index: {}]
  %s3 = inlined_call_operand.vmem [shape: f32[2,10], index: 3, kind: input, shape index: {}]
  %s4 = inlined_call_operand.vmem [shape: f32[2,174], index: 4, kind: input, shape index: {}, may-alias: {4,5}]
  %s5 = inlined_call_operand.vmem [shape: f32[2,174], index: 5, kind: input, shape index: {}, may-alias: {4,5}]
  %s6 = inlined_call_operand.vmem [shape: f32[10,174], index: 6, kind: input, shape index: {}]
  %s7 = inlined_call_operand.vmem [shape: f32[4,5,174], index: 7, kind: input, shape index: {}]
  %s8 = inlined_call_operand.vmem [shape: f32[174,174], index: 8, kind: input, shape index: {}]
  %s9 = inlined_call_operand.vmem [shape: f32[1,174], index: 9, kind: input, shape index: {}]
  %s10 = inlined_call_operand.vmem [shape: f32[1,174], index: 10, kind: input, shape index: {}]
  %s11 = inlined_call_operand.vmem [shape: f32[160,50], index: 11, kind: input, shape index: {}]
  %s12 = inlined_call_operand.vmem [shape: f32[1,50], index: 12, kind: input, shape index: {}]
  %s13 = inlined_call_operand.vmem [shape: f32[2,174], index: 13, kind: output, shape index: {0}]
  %s14 = inlined_call_operand.vmem [shape: f32[2,174], index: 14, kind: output, shape index: {1}]
  %s15 = inlined_call_operand.vmem [shape: f32[4,5], index: 15, kind: output, shape index: {2}]
  %s16 = inlined_call_operand.vmem [shape: f32[4,5], index: 16, kind: output, shape index: {3}]
  %s17 = inlined_call_operand.vmem [shape: f32[2,50], index: 17, kind: output, shape index: {4}]
  %18 = xla_tuple %s13, %s14, %s15, %s16, %s17
  %s19 = sld [smem:[#allocation0]]
  $region94: #{mtrnn_forward.11} parent=0
    _
  %s21 = ssub.s32 1, %s19
  %s22 = scalar_select 0, %s21, %s19
  // Predicated region
  $region2: #{mtrnn_forward.11} parent=0 // pred_check
    _
  $region3: #{mtrnn_forward.11} parent=0 // pred_check_branch
    %24 = sbr.rel (0) target = $region5
  $region4: #{mtrnn_forward.11} parent=0 // pred_region
    _
  $region5: #{mtrnn_forward.11} parent=0 // pred_fallthru
    _
  // Predicated region
  $region6: #{mtrnn_forward.11} parent=0 // pred_check
    _
  $region7: #{mtrnn_forward.11} parent=0 // pred_check_branch
    %26 = sbr.rel (0) target = $region9
  $region8: #{mtrnn_forward.11} parent=0 // pred_region
    _
  $region9: #{mtrnn_forward.11} parent=0 // pred_fallthru
    _
  // Predicated region
  $region10: #{mtrnn_forward.11} parent=0 // pred_check
    _
  $region11: #{mtrnn_forward.11} parent=0 // pred_check_branch
    %28 = sbr.rel (0) target = $region13
  $region12: #{mtrnn_forward.11} parent=0 // pred_region
    _
  $region13: #{mtrnn_forward.11} parent=0 // pred_fallthru
    _
  // Predicated region
  $region14: #{mtrnn_forward.11} parent=0 // pred_check
    _
  $region15: #{mtrnn_forward.11} parent=0 // pred_check_branch
    %30 = sbr.rel (0) target = $region17
  $region16: #{mtrnn_forward.11} parent=0 // pred_region
    _
  $region17: #{mtrnn_forward.11} parent=0 // pred_fallthru
    _
  // Predicated region
  $region18: #{mtrnn_forward.11} parent=0 // pred_check
    _
  $region19: #{mtrnn_forward.11} parent=0 // pred_check_branch
    %32 = sbr.rel (0) target = $region21
  $region20: #{mtrnn_forward.11} parent=0 // pred_region
    _
  $region21: #{mtrnn_forward.11} parent=0 // pred_fallthru
    _
  // Predicated region
  $region22: #{mtrnn_forward.11} parent=0 // pred_check
    _
  $region23: #{mtrnn_forward.11} parent=0 // pred_check_branch
    %34 = sbr.rel (0) target = $region25
  $region24: #{mtrnn_forward.11} parent=0 // pred_region
    _
  $region25: #{mtrnn_forward.11} parent=0 // pred_fallthru
    _
  // Predicated region
  $region26: #{mtrnn_forward.11} parent=0 // pred_check
    _
  $region27: #{mtrnn_forward.11} parent=0 // pred_check_branch
    %36 = sbr.rel (0) target = $region29
  $region28: #{mtrnn_forward.11} parent=0 // pred_region
    _
  $region29: #{mtrnn_forward.11} parent=0 // pred_fallthru
    _
  // Predicated region
  $region30: #{mtrnn_forward.11} parent=0 // pred_check
    _
  $region31: #{mtrnn_forward.11} parent=0 // pred_check_branch
    %38 = sbr.rel (0) target = $region33
  $region32: #{mtrnn_forward.11} parent=0 // pred_region
    _
  $region33: #{mtrnn_forward.11} parent=0 // pred_fallthru
    _
  // Predicated region
  $region34: #{mtrnn_forward.11} parent=0 // pred_check
    _
  $region35: #{mtrnn_forward.11} parent=0 // pred_check_branch
    %40 = sbr.rel (0) target = $region37
  $region36: #{mtrnn_forward.11} parent=0 // pred_region
    _
  $region37: #{mtrnn_forward.11} parent=0 // pred_fallthru
    _
  // Predicated region
  $region38: #{mtrnn_forward.11} parent=0 // pred_check
    _
  $region39: #{mtrnn_forward.11} parent=0 // pred_check_branch
    %42 = sbr.rel (0) target = $region41
  $region40: #{mtrnn_forward.11} parent=0 // pred_region
    _
  $region41: #{mtrnn_forward.11} parent=0 // pred_fallthru
    _
  // Predicated region
  $region42: #{mtrnn_forward.11} parent=0 // pred_check
    _
  $region43: #{mtrnn_forward.11} parent=0 // pred_check_branch
    %44 = sbr.rel (0) target = $region45
  $region44: #{mtrnn_forward.11} parent=0 // pred_region
    _
  $region45: #{mtrnn_forward.11} parent=0 // pred_fallthru
    _
  // Predicated region
  $region46: #{mtrnn_forward.11} parent=0 // pred_check
    _
  $region47: #{mtrnn_forward.11} parent=0 // pred_check_branch
    %46 = sbr.rel (0) target = $region49
  $region48: #{mtrnn_forward.11} parent=0 // pred_region
    _
  $region49: #{mtrnn_forward.11} parent=0 // pred_fallthru
    _
  // Predicated region
  $region50: #{mtrnn_forward.11} parent=0 // pred_check
    _
  $region51: #{mtrnn_forward.11} parent=0 // pred_check_branch
    %48 = sbr.rel (0) target = $region53
  $region52: #{mtrnn_forward.11} parent=0 // pred_region
    _
  $region53: #{mtrnn_forward.11} parent=0 // pred_fallthru
    _
  %v49 = vld [vmem:[%s0] sm:$0xff]
  %v50 = vld [vmem:[%s0 + $0x8] sm:$0xff]
  %v51 = vld [vmem:[%s0 + $0x10] sm:$0xff]
  %v52 = vld [vmem:[%s0 + $0x18] sm:$0xff]
  %v53 = vld [vmem:[%s0 + $0x20] sm:$0xff]
  %v54 = vld [vmem:[%s0 + $0x28] sm:$0xff]
  %v55 = vld [vmem:[%s0 + $0x30] sm:$0xff]
  %v56 = vld [vmem:[%s0 + $0x38] sm:$0xff]
  %v57 = vld [vmem:[%s0 + $0x40] sm:$0xff]
  %v58 = vld [vmem:[%s0 + $0x48] sm:$0xff]
  %v59 = vld [vmem:[%s0 + $0x50] sm:$0xff]
  %v60 = vld [vmem:[%s0 + $0x58] sm:$0xff]
  %v61 = vld [vmem:[%s0 + $0x60] sm:$0xf]
  %v62 = vld [vmem:[%s0 + $0x68] sm:$0xff]
  %v63 = vld [vmem:[%s0 + $0x70] sm:$0xff]
  %v64 = vld [vmem:[%s0 + $0x78] sm:$0xff]
  %v65 = vld [vmem:[%s0 + $0x80] sm:$0xff]
  %v66 = vld [vmem:[%s0 + $0x88] sm:$0xff]
  %v67 = vld [vmem:[%s0 + $0x90] sm:$0xff]
  %v68 = vld [vmem:[%s0 + $0x98] sm:$0xff]
  %v69 = vld [vmem:[%s0 + $0xa0] sm:$0xff]
  %v70 = vld [vmem:[%s0 + $0xa8] sm:$0xff]
  %v71 = vld [vmem:[%s0 + $0xb0] sm:$0xff]
  %v72 = vld [vmem:[%s0 + $0xb8] sm:$0xff]
  %v73 = vld [vmem:[%s0 + $0xc0] sm:$0xff]
  %v74 = vld [vmem:[%s0 + $0xc8] sm:$0xf]
  %v75 = vld [vmem:[%s0 + $0xd0] sm:$0xff]
  %v76 = vld [vmem:[%s0 + $0xd8] sm:$0xff]
  %v77 = vld [vmem:[%s0 + $0xe0] sm:$0xff]
  %v78 = vld [vmem:[%s0 + $0xe8] sm:$0xff]
  %v79 = vld [vmem:[%s0 + $0xf0] sm:$0xff]
  %v80 = vld [vmem:[%s0 + $0xf8] sm:$0xff]
  %v81 = vld [vmem:[%s0 + $0x100] sm:$0xff]
  %v82 = vld [vmem:[%s0 + $0x108] sm:$0xff]
  %v83 = vld [vmem:[%s0 + $0x110] sm:$0xff]
  %v84 = vld [vmem:[%s0 + $0x118] sm:$0xff]
  %v85 = vld [vmem:[%s0 + $0x120] sm:$0xff]
  %v86 = vld [vmem:[%s0 + $0x128] sm:$0xff]
  %v87 = vld [vmem:[%s0 + $0x130] sm:$0xf]
  %v88 = vld [vmem:[%s0 + $0x138] sm:$0xff]
  %v89 = vld [vmem:[%s0 + $0x140] sm:$0xff]
  %v90 = vld [vmem:[%s0 + $0x148] sm:$0xff]
  %v91 = vld [vmem:[%s0 + $0x150] sm:$0xff]
  %v92 = vld [vmem:[%s0 + $0x158] sm:$0xff]
  %v93 = vld [vmem:[%s0 + $0x160] sm:$0xff]
  %v94 = vld [vmem:[%s0 + $0x168] sm:$0xff]
  %v95 = vld [vmem:[%s0 + $0x170] sm:$0xff]
  %v96 = vld [vmem:[%s0 + $0x178] sm:$0xff]
  %v97 = vld [vmem:[%s0 + $0x180] sm:$0xff]
  %v98 = vld [vmem:[%s0 + $0x188] sm:$0xff]
  %v99 = vld [vmem:[%s0 + $0x190] sm:$0xff]
  %v100 = vld [vmem:[%s0 + $0x198] sm:$0xf]
  %v101 = vld [vmem:[%s1] sm:$0xff]
  %v102 = vld [vmem:[%s1 + $0x8] sm:$0xff]
  %v103 = vld [vmem:[%s1 + $0x10] sm:$0xff]
  %v104 = vld [vmem:[%s1 + $0x18] sm:$0xff]
  %v105 = vld [vmem:[%s1 + $0x20] sm:$0xff]
  %v106 = vld [vmem:[%s1 + $0x28] sm:$0xff]
  %v107 = vld [vmem:[%s1 + $0x30] sm:$0xff]
  %v108 = vld [vmem:[%s1 + $0x38] sm:$0xff]
  %v109 = vld [vmem:[%s1 + $0x40] sm:$0xff]
  %v110 = vld [vmem:[%s1 + $0x48] sm:$0xff]
  %v111 = vld [vmem:[%s1 + $0x50] sm:$0xff]
  %v112 = vld [vmem:[%s1 + $0x58] sm:$0xff]
  %v113 = vld [vmem:[%s1 + $0x60] sm:$0xf]
  %v114 = vld [vmem:[%s2] sm:$0xff]
  %v115 = vld [vmem:[%s2 + $0x8] sm:$0xff]
  %v116 = vld [vmem:[%s2 + $0x10] sm:$0xff]
  %v117 = vld [vmem:[%s2 + $0x18] sm:$0xff]
  %v118 = vld [vmem:[%s2 + $0x20] sm:$0xff]
  %v119 = vld [vmem:[%s2 + $0x28] sm:$0xff]
  %v120 = vld [vmem:[%s2 + $0x30] sm:$0xff]
  %v121 = vld [vmem:[%s2 + $0x38] sm:$0xff]
  %v122 = vld [vmem:[%s2 + $0x40] sm:$0xff]
  %v123 = vld [vmem:[%s2 + $0x48] sm:$0xff]
  %v124 = vld [vmem:[%s2 + $0x50] sm:$0xff]
  %v125 = vld [vmem:[%s2 + $0x58] sm:$0xff]
  %v126 = vld [vmem:[%s2 + $0x60] sm:$0xf]
  %v127 = vmul.f32 %v49, 10000.0
  %v128 = vmul.f32 %v50, 10000.0
  %v129 = vmul.f32 %v51, 10000.0
  %v130 = vmul.f32 %v52, 10000.0
  %v131 = vmul.f32 %v53, 10000.0
  %v132 = vmul.f32 %v54, 10000.0
  %v133 = vmul.f32 %v55, 10000.0
  %v134 = vmul.f32 %v56, 10000.0
  %v135 = vmul.f32 %v57, 10000.0
  %v136 = vmul.f32 %v58, 10000.0
  %v137 = vmul.f32 %v59, 10000.0
  %v138 = vmul.f32 %v60, 10000.0
  %v139 = vmul.f32 %v61, 10000.0
  %v140 = vmul.f32 %v62, 10000.0
  %v141 = vmul.f32 %v63, 10000.0
  %v142 = vmul.f32 %v64, 10000.0
  %v143 = vmul.f32 %v65, 10000.0
  %v144 = vmul.f32 %v66, 10000.0
  %v145 = vmul.f32 %v67, 10000.0
  %v146 = vmul.f32 %v68, 10000.0
  %v147 = vmul.f32 %v69, 10000.0
  %v148 = vmul.f32 %v70, 10000.0
  %v149 = vmul.f32 %v71, 10000.0
  %v150 = vmul.f32 %v72, 10000.0
  %v151 = vmul.f32 %v73, 10000.0
  %v152 = vmul.f32 %v74, 10000.0
  %v153 = vmul.f32 %v75, 10000.0
  %v154 = vmul.f32 %v76, 10000.0
  %v155 = vmul.f32 %v77, 10000.0
  %v156 = vmul.f32 %v78, 10000.0
  %v157 = vmul.f32 %v79, 10000.0
  %v158 = vmul.f32 %v80, 10000.0
  %v159 = vmul.f32 %v81, 10000.0
  %v160 = vmul.f32 %v82, 10000.0
  %v161 = vmul.f32 %v83, 10000.0
  %v162 = vmul.f32 %v84, 10000.0
  %v163 = vmul.f32 %v85, 10000.0
  %v164 = vmul.f32 %v86, 10000.0
  %v165 = vmul.f32 %v87, 10000.0
  %v166 = vmul.f32 %v88, 10000.0
  %v167 = vmul.f32 %v89, 10000.0
  %v168 = vmul.f32 %v90, 10000.0
  %v169 = vmul.f32 %v91, 10000.0
  %v170 = vmul.f32 %v92, 10000.0
  %v171 = vmul.f32 %v93, 10000.0
  %v172 = vmul.f32 %v94, 10000.0
  %v173 = vmul.f32 %v95, 10000.0
  %v174 = vmul.f32 %v96, 10000.0
  %v175 = vmul.f32 %v97, 10000.0
  %v176 = vmul.f32 %v98, 10000.0
  %v177 = vmul.f32 %v99, 10000.0
  %v178 = vmul.f32 %v100, 10000.0
  %vm179 = vcmask 80936
  %v180 = vsel %vm179, %v127, -inf
  %v181 = vsel %vm179, %v128, -inf
  %v182 = vmax.f32 %v180, %v181
  %v183 = vsel %vm179, %v129, -inf
  %v184 = vmax.f32 %v182, %v183
  %v185 = vsel %vm179, %v130, -inf
  %v186 = vmax.f32 %v184, %v185
  %v187 = vsel %vm179, %v131, -inf
  %v188 = vmax.f32 %v186, %v187
  %v189 = vsel %vm179, %v132, -inf
  %v190 = vmax.f32 %v188, %v189
  %v191 = vsel %vm179, %v133, -inf
  %v192 = vmax.f32 %v190, %v191
  %v193 = vsel %vm179, %v134, -inf
  %v194 = vmax.f32 %v192, %v193
  %v195 = vsel %vm179, %v135, -inf
  %v196 = vmax.f32 %v194, %v195
  %v197 = vsel %vm179, %v136, -inf
  %v198 = vmax.f32 %v196, %v197
  %v199 = vsel %vm179, %v137, -inf
  %v200 = vmax.f32 %v198, %v199
  %v201 = vsel %vm179, %v138, -inf
  %v202 = vmax.f32 %v200, %v201
  %vm203 = vcmask 76840
  %v204 = vsel %vm203, %v139, -inf
  %v205 = vmax.f32 %v202, %v204
  %v206 = vrot.slane %v205, 4
  %v207 = vmax.f32 %v205, %v206
  %v208 = vrot.slane %v207, 2
  %v209 = vmax.f32 %v207, %v208
  %v210 = vrot.slane %v209, 1
  %v211 = vmax.f32 %v209, %v210
  %v212 = vsel %vm179, %v140, -inf
  %v213 = vsel %vm179, %v141, -inf
  %v214 = vmax.f32 %v212, %v213
  %v215 = vsel %vm179, %v142, -inf
  %v216 = vmax.f32 %v214, %v215
  %v217 = vsel %vm179, %v143, -inf
  %v218 = vmax.f32 %v216, %v217
  %v219 = vsel %vm179, %v144, -inf
  %v220 = vmax.f32 %v218, %v219
  %v221 = vsel %vm179, %v145, -inf
  %v222 = vmax.f32 %v220, %v221
  %v223 = vsel %vm179, %v146, -inf
  %v224 = vmax.f32 %v222, %v223
  %v225 = vsel %vm179, %v147, -inf
  %v226 = vmax.f32 %v224, %v225
  %v227 = vsel %vm179, %v148, -inf
  %v228 = vmax.f32 %v226, %v227
  %v229 = vsel %vm179, %v149, -inf
  %v230 = vmax.f32 %v228, %v229
  %v231 = vsel %vm179, %v150, -inf
  %v232 = vmax.f32 %v230, %v231
  %v233 = vsel %vm179, %v151, -inf
  %v234 = vmax.f32 %v232, %v233
  %v235 = vsel %vm203, %v152, -inf
  %v236 = vmax.f32 %v234, %v235
  %v237 = vrot.slane %v236, 4
  %v238 = vmax.f32 %v236, %v237
  %v239 = vrot.slane %v238, 2
  %v240 = vmax.f32 %v238, %v239
  %v241 = vrot.slane %v240, 1
  %v242 = vmax.f32 %v240, %v241
  %v243 = vsel %vm179, %v153, -inf
  %v244 = vsel %vm179, %v154, -inf
  %v245 = vmax.f32 %v243, %v244
  %v246 = vsel %vm179, %v155, -inf
  %v247 = vmax.f32 %v245, %v246
  %v248 = vsel %vm179, %v156, -inf
  %v249 = vmax.f32 %v247, %v248
  %v250 = vsel %vm179, %v157, -inf
  %v251 = vmax.f32 %v249, %v250
  %v252 = vsel %vm179, %v158, -inf
  %v253 = vmax.f32 %v251, %v252
  %v254 = vsel %vm179, %v159, -inf
  %v255 = vmax.f32 %v253, %v254
  %v256 = vsel %vm179, %v160, -inf
  %v257 = vmax.f32 %v255, %v256
  %v258 = vsel %vm179, %v161, -inf
  %v259 = vmax.f32 %v257, %v258
  %v260 = vsel %vm179, %v162, -inf
  %v261 = vmax.f32 %v259, %v260
  %v262 = vsel %vm179, %v163, -inf
  %v263 = vmax.f32 %v261, %v262
  %v264 = vsel %vm179, %v164, -inf
  %v265 = vmax.f32 %v263, %v264
  %v266 = vsel %vm203, %v165, -inf
  %v267 = vmax.f32 %v265, %v266
  %v268 = vrot.slane %v267, 4
  %v269 = vmax.f32 %v267, %v268
  %v270 = vrot.slane %v269, 2
  %v271 = vmax.f32 %v269, %v270
  %v272 = vrot.slane %v271, 1
  %v273 = vmax.f32 %v271, %v272
  %v274 = vsel %vm179, %v166, -inf
  %v275 = vsel %vm179, %v167, -inf
  %v276 = vmax.f32 %v274, %v275
  %v277 = vsel %vm179, %v168, -inf
  %v278 = vmax.f32 %v276, %v277
  %v279 = vsel %vm179, %v169, -inf
  %v280 = vmax.f32 %v278, %v279
  %v281 = vsel %vm179, %v170, -inf
  %v282 = vmax.f32 %v280, %v281
  %v283 = vsel %vm179, %v171, -inf
  %v284 = vmax.f32 %v282, %v283
  %v285 = vsel %vm179, %v172, -inf
  %v286 = vmax.f32 %v284, %v285
  %v287 = vsel %vm179, %v173, -inf
  %v288 = vmax.f32 %v286, %v287
  %v289 = vsel %vm179, %v174, -inf
  %v290 = vmax.f32 %v288, %v289
  %v291 = vsel %vm179, %v175, -inf
  %v292 = vmax.f32 %v290, %v291
  %v293 = vsel %vm179, %v176, -inf
  %v294 = vmax.f32 %v292, %v293
  %v295 = vsel %vm179, %v177, -inf
  %v296 = vmax.f32 %v294, %v295
  %v297 = vsel %vm203, %v178, -inf
  %v298 = vmax.f32 %v296, %v297
  %v299 = vrot.slane %v298, 4
  %v300 = vmax.f32 %v298, %v299
  %v301 = vrot.slane %v300, 2
  %v302 = vmax.f32 %v300, %v301
  %v303 = vrot.slane %v302, 1
  %v304 = vmax.f32 %v302, %v303
  %v305 = vsub.f32 %v127, %v211
  %v306 = vsub.f32 %v128, %v211
  %v307 = vsub.f32 %v129, %v211
  %v308 = vsub.f32 %v130, %v211
  %v309 = vsub.f32 %v131, %v211
  %v310 = vsub.f32 %v132, %v211
  %v311 = vsub.f32 %v133, %v211
  %v312 = vsub.f32 %v134, %v211
  %v313 = vsub.f32 %v135, %v211
  %v314 = vsub.f32 %v136, %v211
  %v315 = vsub.f32 %v137, %v211
  %v316 = vsub.f32 %v138, %v211
  %v317 = vsub.f32 %v139, %v211
  %v318 = vsub.f32 %v140, %v242
  %v319 = vsub.f32 %v141, %v242
  %v320 = vsub.f32 %v142, %v242
  %v321 = vsub.f32 %v143, %v242
  %v322 = vsub.f32 %v144, %v242
  %v323 = vsub.f32 %v145, %v242
  %v324 = vsub.f32 %v146, %v242
  %v325 = vsub.f32 %v147, %v242
  %v326 = vsub.f32 %v148, %v242
  %v327 = vsub.f32 %v149, %v242
  %v328 = vsub.f32 %v150, %v242
  %v329 = vsub.f32 %v151, %v242
  %v330 = vsub.f32 %v152, %v242
  %v331 = vsub.f32 %v153, %v273
  %v332 = vsub.f32 %v154, %v273
  %v333 = vsub.f32 %v155, %v273
  %v334 = vsub.f32 %v156, %v273
  %v335 = vsub.f32 %v157, %v273
  %v336 = vsub.f32 %v158, %v273
  %v337 = vsub.f32 %v159, %v273
  %v338 = vsub.f32 %v160, %v273
  %v339 = vsub.f32 %v161, %v273
  %v340 = vsub.f32 %v162, %v273
  %v341 = vsub.f32 %v163, %v273
  %v342 = vsub.f32 %v164, %v273
  %v343 = vsub.f32 %v165, %v273
  %v344 = vsub.f32 %v166, %v304
  %v345 = vsub.f32 %v167, %v304
  %v346 = vsub.f32 %v168, %v304
  %v347 = vsub.f32 %v169, %v304
  %v348 = vsub.f32 %v170, %v304
  %v349 = vsub.f32 %v171, %v304
  %v350 = vsub.f32 %v172, %v304
  %v351 = vsub.f32 %v173, %v304
  %v352 = vsub.f32 %v174, %v304
  %v353 = vsub.f32 %v175, %v304
  %v354 = vsub.f32 %v176, %v304
  %v355 = vsub.f32 %v177, %v304
  %v356 = vsub.f32 %v178, %v304
  %v357 = vmul.f32 %v305, 1.442695
  %v358 = vpow.pop %v357
  %v359 = vmul.f32 %v306, 1.442695
  %v360 = vpow.pop %v359
  %v361 = vmul.f32 %v307, 1.442695
  %v362 = vpow.pop %v361
  %v363 = vmul.f32 %v308, 1.442695
  %v364 = vpow.pop %v363
  %v365 = vmul.f32 %v309, 1.442695
  %v366 = vpow.pop %v365
  %v367 = vmul.f32 %v310, 1.442695
  %v368 = vpow.pop %v367
  %v369 = vmul.f32 %v311, 1.442695
  %v370 = vpow.pop %v369
  %v371 = vmul.f32 %v312, 1.442695
  %v372 = vpow.pop %v371
  %v373 = vmul.f32 %v313, 1.442695
  %v374 = vpow.pop %v373
  %v375 = vmul.f32 %v314, 1.442695
  %v376 = vpow.pop %v375
  %v377 = vmul.f32 %v315, 1.442695
  %v378 = vpow.pop %v377
  %v379 = vmul.f32 %v316, 1.442695
  %v380 = vpow.pop %v379
  %v381 = vmul.f32 %v317, 1.442695
  %v382 = vpow.pop %v381
  %v383 = vmul.f32 %v318, 1.442695
  %v384 = vpow.pop %v383
  %v385 = vmul.f32 %v319, 1.442695
  %v386 = vpow.pop %v385
  %v387 = vmul.f32 %v320, 1.442695
  %v388 = vpow.pop %v387
  %v389 = vmul.f32 %v321, 1.442695
  %v390 = vpow.pop %v389
  %v391 = vmul.f32 %v322, 1.442695
  %v392 = vpow.pop %v391
  %v393 = vmul.f32 %v323, 1.442695
  %v394 = vpow.pop %v393
  %v395 = vmul.f32 %v324, 1.442695
  %v396 = vpow.pop %v395
  %v397 = vmul.f32 %v325, 1.442695
  %v398 = vpow.pop %v397
  %v399 = vmul.f32 %v326, 1.442695
  %v400 = vpow.pop %v399
  %v401 = vmul.f32 %v327, 1.442695
  %v402 = vpow.pop %v401
  %v403 = vmul.f32 %v328, 1.442695
  %v404 = vpow.pop %v403
  %v405 = vmul.f32 %v329, 1.442695
  %v406 = vpow.pop %v405
  %v407 = vmul.f32 %v330, 1.442695
  %v408 = vpow.pop %v407
  %v409 = vmul.f32 %v331, 1.442695
  %v410 = vpow.pop %v409
  %v411 = vmul.f32 %v332, 1.442695
  %v412 = vpow.pop %v411
  %v413 = vmul.f32 %v333, 1.442695
  %v414 = vpow.pop %v413
  %v415 = vmul.f32 %v334, 1.442695
  %v416 = vpow.pop %v415
  %v417 = vmul.f32 %v335, 1.442695
  %v418 = vpow.pop %v417
  %v419 = vmul.f32 %v336, 1.442695
  %v420 = vpow.pop %v419
  %v421 = vmul.f32 %v337, 1.442695
  %v422 = vpow.pop %v421
  %v423 = vmul.f32 %v338, 1.442695
  %v424 = vpow.pop %v423
  %v425 = vmul.f32 %v339, 1.442695
  %v426 = vpow.pop %v425
  %v427 = vmul.f32 %v340, 1.442695
  %v428 = vpow.pop %v427
  %v429 = vmul.f32 %v341, 1.442695
  %v430 = vpow.pop %v429
  %v431 = vmul.f32 %v342, 1.442695
  %v432 = vpow.pop %v431
  %v433 = vmul.f32 %v343, 1.442695
  %v434 = vpow.pop %v433
  %v435 = vmul.f32 %v344, 1.442695
  %v436 = vpow.pop %v435
  %v437 = vmul.f32 %v345, 1.442695
  %v438 = vpow.pop %v437
  %v439 = vmul.f32 %v346, 1.442695
  %v440 = vpow.pop %v439
  %v441 = vmul.f32 %v347, 1.442695
  %v442 = vpow.pop %v441
  %v443 = vmul.f32 %v348, 1.442695
  %v444 = vpow.pop %v443
  %v445 = vmul.f32 %v349, 1.442695
  %v446 = vpow.pop %v445
  %v447 = vmul.f32 %v350, 1.442695
  %v448 = vpow.pop %v447
  %v449 = vmul.f32 %v351, 1.442695
  %v450 = vpow.pop %v449
  %v451 = vmul.f32 %v352, 1.442695
  %v452 = vpow.pop %v451
  %v453 = vmul.f32 %v353, 1.442695
  %v454 = vpow.pop %v453
  %v455 = vmul.f32 %v354, 1.442695
  %v456 = vpow.pop %v455
  %v457 = vmul.f32 %v355, 1.442695
  %v458 = vpow.pop %v457
  %v459 = vmul.f32 %v356, 1.442695
  %v460 = vpow.pop %v459
  %v461 = vsel %vm179, %v358, 0.0
  %v462 = vsel %vm179, %v360, 0.0
  %v463 = vadd.f32 %v461, %v462
  %v464 = vsel %vm179, %v362, 0.0
  %v465 = vadd.f32 %v463, %v464
  %v466 = vsel %vm179, %v364, 0.0
  %v467 = vadd.f32 %v465, %v466
  %v468 = vsel %vm179, %v366, 0.0
  %v469 = vadd.f32 %v467, %v468
  %v470 = vsel %vm179, %v368, 0.0
  %v471 = vadd.f32 %v469, %v470
  %v472 = vsel %vm179, %v370, 0.0
  %v473 = vadd.f32 %v471, %v472
  %v474 = vsel %vm179, %v372, 0.0
  %v475 = vadd.f32 %v473, %v474
  %v476 = vsel %vm179, %v374, 0.0
  %v477 = vadd.f32 %v475, %v476
  %v478 = vsel %vm179, %v376, 0.0
  %v479 = vadd.f32 %v477, %v478
  %v480 = vsel %vm179, %v378, 0.0
  %v481 = vadd.f32 %v479, %v480
  %v482 = vsel %vm179, %v380, 0.0
  %v483 = vadd.f32 %v481, %v482
  %v484 = vsel %vm203, %v382, 0.0
  %v485 = vadd.f32 %v483, %v484
  %v486 = vrot.slane %v485, 4
  %v487 = vadd.f32 %v485, %v486
  %v488 = vrot.slane %v487, 2
  %v489 = vadd.f32 %v487, %v488
  %v490 = vrot.slane %v489, 1
  %v491 = vadd.f32 %v489, %v490
  %v492 = vsel %vm179, %v384, 0.0
  %v493 = vsel %vm179, %v386, 0.0
  %v494 = vadd.f32 %v492, %v493
  %v495 = vsel %vm179, %v388, 0.0
  %v496 = vadd.f32 %v494, %v495
  %v497 = vsel %vm179, %v390, 0.0
  %v498 = vadd.f32 %v496, %v497
  %v499 = vsel %vm179, %v392, 0.0
  %v500 = vadd.f32 %v498, %v499
  %v501 = vsel %vm179, %v394, 0.0
  %v502 = vadd.f32 %v500, %v501
  %v503 = vsel %vm179, %v396, 0.0
  %v504 = vadd.f32 %v502, %v503
  %v505 = vsel %vm179, %v398, 0.0
  %v506 = vadd.f32 %v504, %v505
  %v507 = vsel %vm179, %v400, 0.0
  %v508 = vadd.f32 %v506, %v507
  %v509 = vsel %vm179, %v402, 0.0
  %v510 = vadd.f32 %v508, %v509
  %v511 = vsel %vm179, %v404, 0.0
  %v512 = vadd.f32 %v510, %v511
  %v513 = vsel %vm179, %v406, 0.0
  %v514 = vadd.f32 %v512, %v513
  %v515 = vsel %vm203, %v408, 0.0
  %v516 = vadd.f32 %v514, %v515
  %v517 = vrot.slane %v516, 4
  %v518 = vadd.f32 %v516, %v517
  %v519 = vrot.slane %v518, 2
  %v520 = vadd.f32 %v518, %v519
  %v521 = vrot.slane %v520, 1
  %v522 = vadd.f32 %v520, %v521
  %v523 = vsel %vm179, %v410, 0.0
  %v524 = vsel %vm179, %v412, 0.0
  %v525 = vadd.f32 %v523, %v524
  %v526 = vsel %vm179, %v414, 0.0
  %v527 = vadd.f32 %v525, %v526
  %v528 = vsel %vm179, %v416, 0.0
  %v529 = vadd.f32 %v527, %v528
  %v530 = vsel %vm179, %v418, 0.0
  %v531 = vadd.f32 %v529, %v530
  %v532 = vsel %vm179, %v420, 0.0
  %v533 = vadd.f32 %v531, %v532
  %v534 = vsel %vm179, %v422, 0.0
  %v535 = vadd.f32 %v533, %v534
  %v536 = vsel %vm179, %v424, 0.0
  %v537 = vadd.f32 %v535, %v536
  %v538 = vsel %vm179, %v426, 0.0
  %v539 = vadd.f32 %v537, %v538
  %v540 = vsel %vm179, %v428, 0.0
  %v541 = vadd.f32 %v539, %v540
  %v542 = vsel %vm179, %v430, 0.0
  %v543 = vadd.f32 %v541, %v542
  %v544 = vsel %vm179, %v432, 0.0
  %v545 = vadd.f32 %v543, %v544
  %v546 = vsel %vm203, %v434, 0.0
  %v547 = vadd.f32 %v545, %v546
  %v548 = vrot.slane %v547, 4
  %v549 = vadd.f32 %v547, %v548
  %v550 = vrot.slane %v549, 2
  %v551 = vadd.f32 %v549, %v550
  %v552 = vrot.slane %v551, 1
  %v553 = vadd.f32 %v551, %v552
  %v554 = vsel %vm179, %v436, 0.0
  %v555 = vsel %vm179, %v438, 0.0
  %v556 = vadd.f32 %v554, %v555
  %v557 = vsel %vm179, %v440, 0.0
  %v558 = vadd.f32 %v556, %v557
  %v559 = vsel %vm179, %v442, 0.0
  %v560 = vadd.f32 %v558, %v559
  %v561 = vsel %vm179, %v444, 0.0
  %v562 = vadd.f32 %v560, %v561
  %v563 = vsel %vm179, %v446, 0.0
  %v564 = vadd.f32 %v562, %v563
  %v565 = vsel %vm179, %v448, 0.0
  %v566 = vadd.f32 %v564, %v565
  %v567 = vsel %vm179, %v450, 0.0
  %v568 = vadd.f32 %v566, %v567
  %v569 = vsel %vm179, %v452, 0.0
  %v570 = vadd.f32 %v568, %v569
  %v571 = vsel %vm179, %v454, 0.0
  %v572 = vadd.f32 %v570, %v571
  %v573 = vsel %vm179, %v456, 0.0
  %v574 = vadd.f32 %v572, %v573
  %v575 = vsel %vm179, %v458, 0.0
  %v576 = vadd.f32 %v574, %v575
  %v577 = vsel %vm203, %v460, 0.0
  %v578 = vadd.f32 %v576, %v577
  %v579 = vrot.slane %v578, 4
  %v580 = vadd.f32 %v578, %v579
  %v581 = vrot.slane %v580, 2
  %v582 = vadd.f32 %v580, %v581
  %v583 = vrot.slane %v582, 1
  %v584 = vadd.f32 %v582, %v583
  %v585 = vrcp.pop %v491
  %v586 = vrcp.pop %v522
  %v587 = vrcp.pop %v553
  %v588 = vrcp.pop %v584
  %602 = vrot.lane.b32.xlu0 %v101, 5
  %v603 = vpop.permute.xlu0 %602
  %604 = vrot.lane.b32.xlu0 %v102, 5
  %v605 = vpop.permute.xlu0 %604
  %606 = vrot.lane.b32.xlu0 %v103, 5
  %v607 = vpop.permute.xlu0 %606
  %608 = vrot.lane.b32.xlu0 %v104, 5
  %v609 = vpop.permute.xlu0 %608
  %610 = vrot.lane.b32.xlu0 %v105, 5
  %v611 = vpop.permute.xlu0 %610
  %612 = vrot.lane.b32.xlu0 %v106, 5
  %v613 = vpop.permute.xlu0 %612
  %614 = vrot.lane.b32.xlu0 %v107, 5
  %v615 = vpop.permute.xlu0 %614
  %616 = vrot.lane.b32.xlu0 %v108, 5
  %v617 = vpop.permute.xlu0 %616
  %618 = vrot.lane.b32.xlu0 %v109, 5
  %v619 = vpop.permute.xlu0 %618
  %620 = vrot.lane.b32.xlu0 %v110, 5
  %v621 = vpop.permute.xlu0 %620
  %622 = vrot.lane.b32.xlu0 %v111, 5
  %v623 = vpop.permute.xlu0 %622
  %624 = vrot.lane.b32.xlu0 %v112, 5
  %v625 = vpop.permute.xlu0 %624
  %626 = vrot.lane.b32.xlu0 %v113, 5
  %v627 = vpop.permute.xlu0 %626
  %v641 = vmul.f32 %v358, %v603
  %v642 = vmul.f32 %v360, %v605
  %v643 = vmul.f32 %v362, %v607
  %v644 = vmul.f32 %v364, %v609
  %v645 = vmul.f32 %v366, %v611
  %v646 = vmul.f32 %v368, %v613
  %v647 = vmul.f32 %v370, %v615
  %v648 = vmul.f32 %v372, %v617
  %v649 = vmul.f32 %v374, %v619
  %v650 = vmul.f32 %v376, %v621
  %v651 = vmul.f32 %v378, %v623
  %v652 = vmul.f32 %v380, %v625
  %v653 = vmul.f32 %v382, %v627
  %v654 = vmul.f32 %v384, %v603
  %v655 = vmul.f32 %v386, %v605
  %v656 = vmul.f32 %v388, %v607
  %v657 = vmul.f32 %v390, %v609
  %v658 = vmul.f32 %v392, %v611
  %v659 = vmul.f32 %v394, %v613
  %v660 = vmul.f32 %v396, %v615
  %v661 = vmul.f32 %v398, %v617
  %v662 = vmul.f32 %v400, %v619
  %v663 = vmul.f32 %v402, %v621
  %v664 = vmul.f32 %v404, %v623
  %v665 = vmul.f32 %v406, %v625
  %v666 = vmul.f32 %v408, %v627
  %v667 = vmul.f32 %v410, %v603
  %v668 = vmul.f32 %v412, %v605
  %v669 = vmul.f32 %v414, %v607
  %v670 = vmul.f32 %v416, %v609
  %v671 = vmul.f32 %v418, %v611
  %v672 = vmul.f32 %v420, %v613
  %v673 = vmul.f32 %v422, %v615
  %v674 = vmul.f32 %v424, %v617
  %v675 = vmul.f32 %v426, %v619
  %v676 = vmul.f32 %v428, %v621
  %v677 = vmul.f32 %v430, %v623
  %v678 = vmul.f32 %v432, %v625
  %v679 = vmul.f32 %v434, %v627
  %v680 = vmul.f32 %v436, %v603
  %v681 = vmul.f32 %v438, %v605
  %v682 = vmul.f32 %v440, %v607
  %v683 = vmul.f32 %v442, %v609
  %v684 = vmul.f32 %v444, %v611
  %v685 = vmul.f32 %v446, %v613
  %v686 = vmul.f32 %v448, %v615
  %v687 = vmul.f32 %v450, %v617
  %v688 = vmul.f32 %v452, %v619
  %v689 = vmul.f32 %v454, %v621
  %v690 = vmul.f32 %v456, %v623
  %v691 = vmul.f32 %v458, %v625
  %v692 = vmul.f32 %v460, %v627
  %v693 = vsel %vm179, %v641, 0.0
  %v694 = vsel %vm179, %v642, 0.0
  %v695 = vadd.f32 %v693, %v694
  %v696 = vsel %vm179, %v643, 0.0
  %v697 = vadd.f32 %v695, %v696
  %v698 = vsel %vm179, %v644, 0.0
  %v699 = vadd.f32 %v697, %v698
  %v700 = vsel %vm179, %v645, 0.0
  %v701 = vadd.f32 %v699, %v700
  %v702 = vsel %vm179, %v646, 0.0
  %v703 = vadd.f32 %v701, %v702
  %v704 = vsel %vm179, %v647, 0.0
  %v705 = vadd.f32 %v703, %v704
  %v706 = vsel %vm179, %v648, 0.0
  %v707 = vadd.f32 %v705, %v706
  %v708 = vsel %vm179, %v649, 0.0
  %v709 = vadd.f32 %v707, %v708
  %v710 = vsel %vm179, %v650, 0.0
  %v711 = vadd.f32 %v709, %v710
  %v712 = vsel %vm179, %v651, 0.0
  %v713 = vadd.f32 %v711, %v712
  %v714 = vsel %vm179, %v652, 0.0
  %v715 = vadd.f32 %v713, %v714
  %v716 = vsel %vm203, %v653, 0.0
  %v717 = vadd.f32 %v715, %v716
  %v718 = vrot.slane %v717, 4
  %v719 = vadd.f32 %v717, %v718
  %v720 = vrot.slane %v719, 2
  %v721 = vadd.f32 %v719, %v720
  %v722 = vrot.slane %v721, 1
  %v723 = vadd.f32 %v721, %v722
  %v724 = vsel %vm179, %v654, 0.0
  %v725 = vsel %vm179, %v655, 0.0
  %v726 = vadd.f32 %v724, %v725
  %v727 = vsel %vm179, %v656, 0.0
  %v728 = vadd.f32 %v726, %v727
  %v729 = vsel %vm179, %v657, 0.0
  %v730 = vadd.f32 %v728, %v729
  %v731 = vsel %vm179, %v658, 0.0
  %v732 = vadd.f32 %v730, %v731
  %v733 = vsel %vm179, %v659, 0.0
  %v734 = vadd.f32 %v732, %v733
  %v735 = vsel %vm179, %v660, 0.0
  %v736 = vadd.f32 %v734, %v735
  %v737 = vsel %vm179, %v661, 0.0
  %v738 = vadd.f32 %v736, %v737
  %v739 = vsel %vm179, %v662, 0.0
  %v740 = vadd.f32 %v738, %v739
  %v741 = vsel %vm179, %v663, 0.0
  %v742 = vadd.f32 %v740, %v741
  %v743 = vsel %vm179, %v664, 0.0
  %v744 = vadd.f32 %v742, %v743
  %v745 = vsel %vm179, %v665, 0.0
  %v746 = vadd.f32 %v744, %v745
  %v747 = vsel %vm203, %v666, 0.0
  %v748 = vadd.f32 %v746, %v747
  %v749 = vrot.slane %v748, 4
  %v750 = vadd.f32 %v748, %v749
  %v751 = vrot.slane %v750, 2
  %v752 = vadd.f32 %v750, %v751
  %v753 = vrot.slane %v752, 1
  %v754 = vadd.f32 %v752, %v753
  %v755 = vsel %vm179, %v667, 0.0
  %v756 = vsel %vm179, %v668, 0.0
  %v757 = vadd.f32 %v755, %v756
  %v758 = vsel %vm179, %v669, 0.0
  %v759 = vadd.f32 %v757, %v758
  %v760 = vsel %vm179, %v670, 0.0
  %v761 = vadd.f32 %v759, %v760
  %v762 = vsel %vm179, %v671, 0.0
  %v763 = vadd.f32 %v761, %v762
  %v764 = vsel %vm179, %v672, 0.0
  %v765 = vadd.f32 %v763, %v764
  %v766 = vsel %vm179, %v673, 0.0
  %v767 = vadd.f32 %v765, %v766
  %v768 = vsel %vm179, %v674, 0.0
  %v769 = vadd.f32 %v767, %v768
  %v770 = vsel %vm179, %v675, 0.0
  %v771 = vadd.f32 %v769, %v770
  %v772 = vsel %vm179, %v676, 0.0
  %v773 = vadd.f32 %v771, %v772
  %v774 = vsel %vm179, %v677, 0.0
  %v775 = vadd.f32 %v773, %v774
  %v776 = vsel %vm179, %v678, 0.0
  %v777 = vadd.f32 %v775, %v776
  %v778 = vsel %vm203, %v679, 0.0
  %v779 = vadd.f32 %v777, %v778
  %v780 = vrot.slane %v779, 4
  %v781 = vadd.f32 %v779, %v780
  %v782 = vrot.slane %v781, 2
  %v783 = vadd.f32 %v781, %v782
  %v784 = vrot.slane %v783, 1
  %v785 = vadd.f32 %v783, %v784
  %v786 = vsel %vm179, %v680, 0.0
  %v787 = vsel %vm179, %v681, 0.0
  %v788 = vadd.f32 %v786, %v787
  %v789 = vsel %vm179, %v682, 0.0
  %v790 = vadd.f32 %v788, %v789
  %v791 = vsel %vm179, %v683, 0.0
  %v792 = vadd.f32 %v790, %v791
  %v793 = vsel %vm179, %v684, 0.0
  %v794 = vadd.f32 %v792, %v793
  %v795 = vsel %vm179, %v685, 0.0
  %v796 = vadd.f32 %v794, %v795
  %v797 = vsel %vm179, %v686, 0.0
  %v798 = vadd.f32 %v796, %v797
  %v799 = vsel %vm179, %v687, 0.0
  %v800 = vadd.f32 %v798, %v799
  %v801 = vsel %vm179, %v688, 0.0
  %v802 = vadd.f32 %v800, %v801
  %v803 = vsel %vm179, %v689, 0.0
  %v804 = vadd.f32 %v802, %v803
  %v805 = vsel %vm179, %v690, 0.0
  %v806 = vadd.f32 %v804, %v805
  %v807 = vsel %vm179, %v691, 0.0
  %v808 = vadd.f32 %v806, %v807
  %v809 = vsel %vm203, %v692, 0.0
  %v810 = vadd.f32 %v808, %v809
  %v811 = vrot.slane %v810, 4
  %v812 = vadd.f32 %v810, %v811
  %v813 = vrot.slane %v812, 2
  %v814 = vadd.f32 %v812, %v813
  %v815 = vrot.slane %v814, 1
  %v816 = vadd.f32 %v814, %v815
  %v817 = vmul.f32 %v723, %v585
  %v818 = vmul.f32 %v754, %v586
  %v819 = vmul.f32 %v785, %v587
  %v820 = vmul.f32 %v816, %v588
  %834 = vrot.lane.b32.xlu0 %v114, 5
  %v835 = vpop.permute.xlu0 %834
  %836 = vrot.lane.b32.xlu0 %v115, 5
  %v837 = vpop.permute.xlu0 %836
  %838 = vrot.lane.b32.xlu0 %v116, 5
  %v839 = vpop.permute.xlu0 %838
  %840 = vrot.lane.b32.xlu0 %v117, 5
  %v841 = vpop.permute.xlu0 %840
  %842 = vrot.lane.b32.xlu0 %v118, 5
  %v843 = vpop.permute.xlu0 %842
  %844 = vrot.lane.b32.xlu0 %v119, 5
  %v845 = vpop.permute.xlu0 %844
  %846 = vrot.lane.b32.xlu0 %v120, 5
  %v847 = vpop.permute.xlu0 %846
  %848 = vrot.lane.b32.xlu0 %v121, 5
  %v849 = vpop.permute.xlu0 %848
  %850 = vrot.lane.b32.xlu0 %v122, 5
  %v851 = vpop.permute.xlu0 %850
  %852 = vrot.lane.b32.xlu0 %v123, 5
  %v853 = vpop.permute.xlu0 %852
  %854 = vrot.lane.b32.xlu0 %v124, 5
  %v855 = vpop.permute.xlu0 %854
  %856 = vrot.lane.b32.xlu0 %v125, 5
  %v857 = vpop.permute.xlu0 %856
  %858 = vrot.lane.b32.xlu0 %v126, 5
  %v859 = vpop.permute.xlu0 %858
  %v873 = vmul.f32 %v358, %v835
  %v874 = vmul.f32 %v360, %v837
  %v875 = vmul.f32 %v362, %v839
  %v876 = vmul.f32 %v364, %v841
  %v877 = vmul.f32 %v366, %v843
  %v878 = vmul.f32 %v368, %v845
  %v879 = vmul.f32 %v370, %v847
  %v880 = vmul.f32 %v372, %v849
  %v881 = vmul.f32 %v374, %v851
  %v882 = vmul.f32 %v376, %v853
  %v883 = vmul.f32 %v378, %v855
  %v884 = vmul.f32 %v380, %v857
  %v885 = vmul.f32 %v382, %v859
  %v886 = vmul.f32 %v384, %v835
  %v887 = vmul.f32 %v386, %v837
  %v888 = vmul.f32 %v388, %v839
  %v889 = vmul.f32 %v390, %v841
  %v890 = vmul.f32 %v392, %v843
  %v891 = vmul.f32 %v394, %v845
  %v892 = vmul.f32 %v396, %v847
  %v893 = vmul.f32 %v398, %v849
  %v894 = vmul.f32 %v400, %v851
  %v895 = vmul.f32 %v402, %v853
  %v896 = vmul.f32 %v404, %v855
  %v897 = vmul.f32 %v406, %v857
  %v898 = vmul.f32 %v408, %v859
  %v899 = vmul.f32 %v410, %v835
  %v900 = vmul.f32 %v412, %v837
  %v901 = vmul.f32 %v414, %v839
  %v902 = vmul.f32 %v416, %v841
  %v903 = vmul.f32 %v418, %v843
  %v904 = vmul.f32 %v420, %v845
  %v905 = vmul.f32 %v422, %v847
  %v906 = vmul.f32 %v424, %v849
  %v907 = vmul.f32 %v426, %v851
  %v908 = vmul.f32 %v428, %v853
  %v909 = vmul.f32 %v430, %v855
  %v910 = vmul.f32 %v432, %v857
  %v911 = vmul.f32 %v434, %v859
  %v912 = vmul.f32 %v436, %v835
  %v913 = vmul.f32 %v438, %v837
  %v914 = vmul.f32 %v440, %v839
  %v915 = vmul.f32 %v442, %v841
  %v916 = vmul.f32 %v444, %v843
  %v917 = vmul.f32 %v446, %v845
  %v918 = vmul.f32 %v448, %v847
  %v919 = vmul.f32 %v450, %v849
  %v920 = vmul.f32 %v452, %v851
  %v921 = vmul.f32 %v454, %v853
  %v922 = vmul.f32 %v456, %v855
  %v923 = vmul.f32 %v458, %v857
  %v924 = vmul.f32 %v460, %v859
  %v925 = vsel %vm179, %v873, 0.0
  %v926 = vsel %vm179, %v874, 0.0
  %v927 = vadd.f32 %v925, %v926
  %v928 = vsel %vm179, %v875, 0.0
  %v929 = vadd.f32 %v927, %v928
  %v930 = vsel %vm179, %v876, 0.0
  %v931 = vadd.f32 %v929, %v930
  %v932 = vsel %vm179, %v877, 0.0
  %v933 = vadd.f32 %v931, %v932
  %v934 = vsel %vm179, %v878, 0.0
  %v935 = vadd.f32 %v933, %v934
  %v936 = vsel %vm179, %v879, 0.0
  %v937 = vadd.f32 %v935, %v936
  %v938 = vsel %vm179, %v880, 0.0
  %v939 = vadd.f32 %v937, %v938
  %v940 = vsel %vm179, %v881, 0.0
  %v941 = vadd.f32 %v939, %v940
  %v942 = vsel %vm179, %v882, 0.0
  %v943 = vadd.f32 %v941, %v942
  %v944 = vsel %vm179, %v883, 0.0
  %v945 = vadd.f32 %v943, %v944
  %v946 = vsel %vm179, %v884, 0.0
  %v947 = vadd.f32 %v945, %v946
  %v948 = vsel %vm203, %v885, 0.0
  %v949 = vadd.f32 %v947, %v948
  %v950 = vrot.slane %v949, 4
  %v951 = vadd.f32 %v949, %v950
  %v952 = vrot.slane %v951, 2
  %v953 = vadd.f32 %v951, %v952
  %v954 = vrot.slane %v953, 1
  %v955 = vadd.f32 %v953, %v954
  %v956 = vsel %vm179, %v886, 0.0
  %v957 = vsel %vm179, %v887, 0.0
  %v958 = vadd.f32 %v956, %v957
  %v959 = vsel %vm179, %v888, 0.0
  %v960 = vadd.f32 %v958, %v959
  %v961 = vsel %vm179, %v889, 0.0
  %v962 = vadd.f32 %v960, %v961
  %v963 = vsel %vm179, %v890, 0.0
  %v964 = vadd.f32 %v962, %v963
  %v965 = vsel %vm179, %v891, 0.0
  %v966 = vadd.f32 %v964, %v965
  %v967 = vsel %vm179, %v892, 0.0
  %v968 = vadd.f32 %v966, %v967
  %v969 = vsel %vm179, %v893, 0.0
  %v970 = vadd.f32 %v968, %v969
  %v971 = vsel %vm179, %v894, 0.0
  %v972 = vadd.f32 %v970, %v971
  %v973 = vsel %vm179, %v895, 0.0
  %v974 = vadd.f32 %v972, %v973
  %v975 = vsel %vm179, %v896, 0.0
  %v976 = vadd.f32 %v974, %v975
  %v977 = vsel %vm179, %v897, 0.0
  %v978 = vadd.f32 %v976, %v977
  %v979 = vsel %vm203, %v898, 0.0
  %v980 = vadd.f32 %v978, %v979
  %v981 = vrot.slane %v980, 4
  %v982 = vadd.f32 %v980, %v981
  %v983 = vrot.slane %v982, 2
  %v984 = vadd.f32 %v982, %v983
  %v985 = vrot.slane %v984, 1
  %v986 = vadd.f32 %v984, %v985
  %v987 = vsel %vm179, %v899, 0.0
  %v988 = vsel %vm179, %v900, 0.0
  %v989 = vadd.f32 %v987, %v988
  %v990 = vsel %vm179, %v901, 0.0
  %v991 = vadd.f32 %v989, %v990
  %v992 = vsel %vm179, %v902, 0.0
  %v993 = vadd.f32 %v991, %v992
  %v994 = vsel %vm179, %v903, 0.0
  %v995 = vadd.f32 %v993, %v994
  %v996 = vsel %vm179, %v904, 0.0
  %v997 = vadd.f32 %v995, %v996
  %v998 = vsel %vm179, %v905, 0.0
  %v999 = vadd.f32 %v997, %v998
  %v1000 = vsel %vm179, %v906, 0.0
  %v1001 = vadd.f32 %v999, %v1000
  %v1002 = vsel %vm179, %v907, 0.0
  %v1003 = vadd.f32 %v1001, %v1002
  %v1004 = vsel %vm179, %v908, 0.0
  %v1005 = vadd.f32 %v1003, %v1004
  %v1006 = vsel %vm179, %v909, 0.0
  %v1007 = vadd.f32 %v1005, %v1006
  %v1008 = vsel %vm179, %v910, 0.0
  %v1009 = vadd.f32 %v1007, %v1008
  %v1010 = vsel %vm203, %v911, 0.0
  %v1011 = vadd.f32 %v1009, %v1010
  %v1012 = vrot.slane %v1011, 4
  %v1013 = vadd.f32 %v1011, %v1012
  %v1014 = vrot.slane %v1013, 2
  %v1015 = vadd.f32 %v1013, %v1014
  %v1016 = vrot.slane %v1015, 1
  %v1017 = vadd.f32 %v1015, %v1016
  %v1018 = vsel %vm179, %v912, 0.0
  %v1019 = vsel %vm179, %v913, 0.0
  %v1020 = vadd.f32 %v1018, %v1019
  %v1021 = vsel %vm179, %v914, 0.0
  %v1022 = vadd.f32 %v1020, %v1021
  %v1023 = vsel %vm179, %v915, 0.0
  %v1024 = vadd.f32 %v1022, %v1023
  %v1025 = vsel %vm179, %v916, 0.0
  %v1026 = vadd.f32 %v1024, %v1025
  %v1027 = vsel %vm179, %v917, 0.0
  %v1028 = vadd.f32 %v1026, %v1027
  %v1029 = vsel %vm179, %v918, 0.0
  %v1030 = vadd.f32 %v1028, %v1029
  %v1031 = vsel %vm179, %v919, 0.0
  %v1032 = vadd.f32 %v1030, %v1031
  %v1033 = vsel %vm179, %v920, 0.0
  %v1034 = vadd.f32 %v1032, %v1033
  %v1035 = vsel %vm179, %v921, 0.0
  %v1036 = vadd.f32 %v1034, %v1035
  %v1037 = vsel %vm179, %v922, 0.0
  %v1038 = vadd.f32 %v1036, %v1037
  %v1039 = vsel %vm179, %v923, 0.0
  %v1040 = vadd.f32 %v1038, %v1039
  %v1041 = vsel %vm203, %v924, 0.0
  %v1042 = vadd.f32 %v1040, %v1041
  %v1043 = vrot.slane %v1042, 4
  %v1044 = vadd.f32 %v1042, %v1043
  %v1045 = vrot.slane %v1044, 2
  %v1046 = vadd.f32 %v1044, %v1045
  %v1047 = vrot.slane %v1046, 1
  %v1048 = vadd.f32 %v1046, %v1047
  %v1049 = vmul.f32 %v955, %v585
  %v1050 = vmul.f32 %v986, %v586
  %v1051 = vmul.f32 %v1017, %v587
  %v1052 = vmul.f32 %v1048, %v588
  %vm1057 = vcmask 1041409
  %v1058 = vsel %vm1057, %v818, %v817
  %vm1059 = vcmask 1042434
  %v1060 = vsel %vm1059, %v819, %v1058
  %vm1061 = vcmask 1043459
  %v1062 = vsel %vm1061, %v820, %v1060
  %1063 = vrot.lane.b32.xlu0 %v1062, 123
  %v1064 = vpop.permute.xlu0 %1063
  %vm1066 = vcmask 35840
  %1067 = vst.msk [vmem:[%s15] sm:$0xf] %vm1066, %v1064
  %v1072 = vsel %vm1057, %v1050, %v1049
  %v1073 = vsel %vm1059, %v1051, %v1072
  %v1074 = vsel %vm1061, %v1052, %v1073
  %1075 = vrot.lane.b32.xlu0 %v1074, 123
  %v1076 = vpop.permute.xlu0 %1075
  %1078 = vst.msk [vmem:[%s16] sm:$0xf] %vm1066, %v1076
  %v1079 = vld [vmem:[%s3] sm:$0x3]
  %v1080 = vld [vmem:[%s6] sm:$0xff]
  %v1081 = vld [vmem:[%s6 + $0x8] sm:$0xff]
  %v1082 = vld [vmem:[%s6 + $0x10] sm:$0x3]
  %v1083 = vld [vmem:[%s6 + $0x18] sm:$0x3]
  %v1084 = vld [vmem:[%s7] sm:$0x1f]
  %v1085 = vld [vmem:[%s7 + $0x8] sm:$0x1f]
  %1086 = vrot.lane.b32.xlu0 %v1058, 123
  %v1087 = vpop.permute.xlu0 %1086
  %vm1088 = vcmask 39936
  %v1089 = vsel %vm1088, %v1087, 0
  %vm1091 = vcmask 1044480
  %v1093 = vsel %vm1091, %v1084, 0
  %v1096 = vsel %vm1091, %v1085, 0
  %1098 = vmatpush.msra.mxu0 0.0
  %1099 = vmatpush.msra.mxu0 0.0
  %1100 = vmatpush.msra.mxu0 0.0
  %1101 = vmatpush.msra.mxu0 0.0
  %1102 = vmatpush.msra.mxu0 0.0
  %1103 = vmatpush.msra.mxu0 0.0
  %1104 = vmatpush.msra.mxu0 0.0
  %1105 = vmatpush.msra.mxu0 0.0
  %1106 = vmatpush.msra.mxu0 0.0
  %1107 = vmatpush.msra.mxu0 0.0
  %1108 = vmatpush.msra.mxu0 0.0
  %1109 = vmatpush.msra.mxu0 0.0
  %1110 = vmatpush.msra.mxu0 0.0
  %1111 = vmatpush.msra.mxu0 0.0
  %1112 = vmatpush.msra.mxu0 0.0
  %1113 = vmatpush.msra.mxu0 %v1093
  %1114 = vmatmul.f32.gmra.mxu0 %v1089
  %v1115 = vpop.f32.mrf.mxu0
  %v1116 = vadd.f32 0.0, %v1115
  %1117 = vdwg.mxu0
  %1118 = vmatpush.msra.mxu0 0.0
  %1119 = vmatpush.msra.mxu0 0.0
  %1120 = vmatpush.msra.mxu0 0.0
  %1121 = vmatpush.msra.mxu0 0.0
  %1122 = vmatpush.msra.mxu0 0.0
  %1123 = vmatpush.msra.mxu0 0.0
  %1124 = vmatpush.msra.mxu0 0.0
  %1125 = vmatpush.msra.mxu0 0.0
  %1126 = vmatpush.msra.mxu0 0.0
  %1127 = vmatpush.msra.mxu0 0.0
  %1128 = vmatpush.msra.mxu0 0.0
  %1129 = vmatpush.msra.mxu0 0.0
  %1130 = vmatpush.msra.mxu0 0.0
  %1131 = vmatpush.msra.mxu0 0.0
  %1132 = vmatpush.msra.mxu0 0.0
  %1133 = vmatpush.msra.mxu0 %v1096
  %1134 = vmatmul.f32.gmra.mxu0 %v1089
  %v1135 = vpop.f32.mrf.mxu0
  %v1136 = vadd.f32 0.0, %v1135
  %1137 = vdwg.mxu0
  %vm1138 = vcmask 80896
  %v1140 = vsel %vm1138, %v1079, 0
  %vm1142 = vcmask 1041408
  %v1144 = vsel %vm1142, %v1082, 0
  %v1147 = vsel %vm1142, %v1083, 0
  %1149 = vmatpush.msra.mxu0 0.0
  %1150 = vmatpush.msra.mxu0 0.0
  %1151 = vmatpush.msra.mxu0 0.0
  %1152 = vmatpush.msra.mxu0 0.0
  %1153 = vmatpush.msra.mxu0 0.0
  %1154 = vmatpush.msra.mxu0 0.0
  %1155 = vmatpush.msra.mxu0 0.0
  %1156 = vmatpush.msra.mxu0 0.0
  %1157 = vmatpush.msra.mxu0 0.0
  %1158 = vmatpush.msra.mxu0 0.0
  %1159 = vmatpush.msra.mxu0 0.0
  %1160 = vmatpush.msra.mxu0 0.0
  %1161 = vmatpush.msra.mxu0 0.0
  %1162 = vmatpush.msra.mxu0 0.0
  %1163 = vmatpush.msra.mxu0 %v1144
  %1164 = vmatpush.msra.mxu0 %v1080
  %1165 = vmatmul.f32.gmra.mxu0 %v1140
  %v1166 = vpop.f32.mrf.mxu0
  %v1167 = vadd.f32 %v1116, %v1166
  %1168 = vdwg.mxu0
  %1169 = vmatpush.msra.mxu0 0.0
  %1170 = vmatpush.msra.mxu0 0.0
  %1171 = vmatpush.msra.mxu0 0.0
  %1172 = vmatpush.msra.mxu0 0.0
  %1173 = vmatpush.msra.mxu0 0.0
  %1174 = vmatpush.msra.mxu0 0.0
  %1175 = vmatpush.msra.mxu0 0.0
  %1176 = vmatpush.msra.mxu0 0.0
  %1177 = vmatpush.msra.mxu0 0.0
  %1178 = vmatpush.msra.mxu0 0.0
  %1179 = vmatpush.msra.mxu0 0.0
  %1180 = vmatpush.msra.mxu0 0.0
  %1181 = vmatpush.msra.mxu0 0.0
  %1182 = vmatpush.msra.mxu0 0.0
  %1183 = vmatpush.msra.mxu0 %v1147
  %1184 = vmatpush.msra.mxu0 %v1081
  %1185 = vmatmul.f32.gmra.mxu0 %v1140
  %v1186 = vpop.f32.mrf.mxu0
  %v1187 = vadd.f32 %v1136, %v1186
  %1188 = vdwg.mxu0
  %s1189 = scalar_lea.vmem %s7, 16
  %v1190 = vld [vmem:[%s1189] sm:$0x1f]
  %v1191 = vld [vmem:[%s1189 + $0x8] sm:$0x1f]
  %1192 = vrot.lane.b32.xlu0 %v1072, 123
  %v1193 = vpop.permute.xlu0 %1192
  %v1194 = vsel %vm1088, %v1193, 0
  %v1197 = vsel %vm1091, %v1190, 0
  %v1200 = vsel %vm1091, %v1191, 0
  %1202 = vmatpush.msra.mxu0 0.0
  %1203 = vmatpush.msra.mxu0 0.0
  %1204 = vmatpush.msra.mxu0 0.0
  %1205 = vmatpush.msra.mxu0 0.0
  %1206 = vmatpush.msra.mxu0 0.0
  %1207 = vmatpush.msra.mxu0 0.0
  %1208 = vmatpush.msra.mxu0 0.0
  %1209 = vmatpush.msra.mxu0 0.0
  %1210 = vmatpush.msra.mxu0 0.0
  %1211 = vmatpush.msra.mxu0 0.0
  %1212 = vmatpush.msra.mxu0 0.0
  %1213 = vmatpush.msra.mxu0 0.0
  %1214 = vmatpush.msra.mxu0 0.0
  %1215 = vmatpush.msra.mxu0 0.0
  %1216 = vmatpush.msra.mxu0 0.0
  %1217 = vmatpush.msra.mxu0 %v1197
  %1218 = vmatmul.f32.gmra.mxu0 %v1194
  %v1219 = vpop.f32.mrf.mxu0
  %v1220 = vadd.f32 0.0, %v1219
  %1221 = vdwg.mxu0
  %1222 = vmatpush.msra.mxu0 0.0
  %1223 = vmatpush.msra.mxu0 0.0
  %1224 = vmatpush.msra.mxu0 0.0
  %1225 = vmatpush.msra.mxu0 0.0
  %1226 = vmatpush.msra.mxu0 0.0
  %1227 = vmatpush.msra.mxu0 0.0
  %1228 = vmatpush.msra.mxu0 0.0
  %1229 = vmatpush.msra.mxu0 0.0
  %1230 = vmatpush.msra.mxu0 0.0
  %1231 = vmatpush.msra.mxu0 0.0
  %1232 = vmatpush.msra.mxu0 0.0
  %1233 = vmatpush.msra.mxu0 0.0
  %1234 = vmatpush.msra.mxu0 0.0
  %1235 = vmatpush.msra.mxu0 0.0
  %1236 = vmatpush.msra.mxu0 0.0
  %1237 = vmatpush.msra.mxu0 %v1200
  %1238 = vmatmul.f32.gmra.mxu0 %v1194
  %v1239 = vpop.f32.mrf.mxu0
  %v1240 = vadd.f32 0.0, %v1239
  %1241 = vdwg.mxu0
  %v1242 = vadd.f32 %v1167, %v1220
  %v1243 = vadd.f32 %v1187, %v1240
  %s1244 = scalar_lea.vmem %s7, 32
  %v1245 = vld [vmem:[%s1244] sm:$0x1f]
  %v1246 = vld [vmem:[%s1244 + $0x8] sm:$0x1f]
  %v1247 = vsel %vm1057, %v820, %v819
  %1248 = vrot.lane.b32.xlu0 %v1247, 123
  %v1249 = vpop.permute.xlu0 %1248
  %v1250 = vsel %vm1088, %v1249, 0
  %v1253 = vsel %vm1091, %v1245, 0
  %v1256 = vsel %vm1091, %v1246, 0
  %1258 = vmatpush.msra.mxu0 0.0
  %1259 = vmatpush.msra.mxu0 0.0
  %1260 = vmatpush.msra.mxu0 0.0
  %1261 = vmatpush.msra.mxu0 0.0
  %1262 = vmatpush.msra.mxu0 0.0
  %1263 = vmatpush.msra.mxu0 0.0
  %1264 = vmatpush.msra.mxu0 0.0
  %1265 = vmatpush.msra.mxu0 0.0
  %1266 = vmatpush.msra.mxu0 0.0
  %1267 = vmatpush.msra.mxu0 0.0
  %1268 = vmatpush.msra.mxu0 0.0
  %1269 = vmatpush.msra.mxu0 0.0
  %1270 = vmatpush.msra.mxu0 0.0
  %1271 = vmatpush.msra.mxu0 0.0
  %1272 = vmatpush.msra.mxu0 0.0
  %1273 = vmatpush.msra.mxu0 %v1253
  %1274 = vmatmul.f32.gmra.mxu0 %v1250
  %v1275 = vpop.f32.mrf.mxu0
  %v1276 = vadd.f32 0.0, %v1275
  %1277 = vdwg.mxu0
  %1278 = vmatpush.msra.mxu0 0.0
  %1279 = vmatpush.msra.mxu0 0.0
  %1280 = vmatpush.msra.mxu0 0.0
  %1281 = vmatpush.msra.mxu0 0.0
  %1282 = vmatpush.msra.mxu0 0.0
  %1283 = vmatpush.msra.mxu0 0.0
  %1284 = vmatpush.msra.mxu0 0.0
  %1285 = vmatpush.msra.mxu0 0.0
  %1286 = vmatpush.msra.mxu0 0.0
  %1287 = vmatpush.msra.mxu0 0.0
  %1288 = vmatpush.msra.mxu0 0.0
  %1289 = vmatpush.msra.mxu0 0.0
  %1290 = vmatpush.msra.mxu0 0.0
  %1291 = vmatpush.msra.mxu0 0.0
  %1292 = vmatpush.msra.mxu0 0.0
  %1293 = vmatpush.msra.mxu0 %v1256
  %1294 = vmatmul.f32.gmra.mxu0 %v1250
  %v1295 = vpop.f32.mrf.mxu0
  %v1296 = vadd.f32 0.0, %v1295
  %1297 = vdwg.mxu0
  %v1298 = vadd.f32 %v1242, %v1276
  %v1299 = vadd.f32 %v1243, %v1296
  %s1300 = scalar_lea.vmem %s7, 48
  %v1301 = vld [vmem:[%s1300] sm:$0x1f]
  %v1302 = vld [vmem:[%s1300 + $0x8] sm:$0x1f]
  %v1303 = vsel %vm1057, %v1052, %v1051
  %1304 = vrot.lane.b32.xlu0 %v1303, 123
  %v1305 = vpop.permute.xlu0 %1304
  %v1306 = vsel %vm1088, %v1305, 0
  %v1309 = vsel %vm1091, %v1301, 0
  %v1312 = vsel %vm1091, %v1302, 0
  %1314 = vmatpush.msra.mxu0 0.0
  %1315 = vmatpush.msra.mxu0 0.0
  %1316 = vmatpush.msra.mxu0 0.0
  %1317 = vmatpush.msra.mxu0 0.0
  %1318 = vmatpush.msra.mxu0 0.0
  %1319 = vmatpush.msra.mxu0 0.0
  %1320 = vmatpush.msra.mxu0 0.0
  %1321 = vmatpush.msra.mxu0 0.0
  %1322 = vmatpush.msra.mxu0 0.0
  %1323 = vmatpush.msra.mxu0 0.0
  %1324 = vmatpush.msra.mxu0 0.0
  %1325 = vmatpush.msra.mxu0 0.0
  %1326 = vmatpush.msra.mxu0 0.0
  %1327 = vmatpush.msra.mxu0 0.0
  %1328 = vmatpush.msra.mxu0 0.0
  %1329 = vmatpush.msra.mxu0 %v1309
  %1330 = vmatmul.f32.gmra.mxu0 %v1306
  %v1331 = vpop.f32.mrf.mxu0
  %v1332 = vadd.f32 0.0, %v1331
  %1333 = vdwg.mxu0
  %1334 = vmatpush.msra.mxu0 0.0
  %1335 = vmatpush.msra.mxu0 0.0
  %1336 = vmatpush.msra.mxu0 0.0
  %1337 = vmatpush.msra.mxu0 0.0
  %1338 = vmatpush.msra.mxu0 0.0
  %1339 = vmatpush.msra.mxu0 0.0
  %1340 = vmatpush.msra.mxu0 0.0
  %1341 = vmatpush.msra.mxu0 0.0
  %1342 = vmatpush.msra.mxu0 0.0
  %1343 = vmatpush.msra.mxu0 0.0
  %1344 = vmatpush.msra.mxu0 0.0
  %1345 = vmatpush.msra.mxu0 0.0
  %1346 = vmatpush.msra.mxu0 0.0
  %1347 = vmatpush.msra.mxu0 0.0
  %1348 = vmatpush.msra.mxu0 0.0
  %1349 = vmatpush.msra.mxu0 %v1312
  %1350 = vmatmul.f32.gmra.mxu0 %v1306
  %v1351 = vpop.f32.mrf.mxu0
  %v1352 = vadd.f32 0.0, %v1351
  %1353 = vdwg.mxu0
  %v1354 = vadd.f32 %v1298, %v1332
  %v1355 = vadd.f32 %v1299, %v1352
  %v1356 = vld [vmem:[%s4] sm:$0xf]
  %v1357 = vld [vmem:[%s8] sm:$0xff]
  %v1358 = vld [vmem:[%s8 + $0x8] sm:$0xff]
  %v1359 = vld [vmem:[%s8 + $0x10] sm:$0xff]
  %v1360 = vld [vmem:[%s8 + $0x18] sm:$0xff]
  %v1361 = vld [vmem:[%s8 + $0x20] sm:$0xff]
  %v1362 = vld [vmem:[%s8 + $0x28] sm:$0xff]
  %v1363 = vld [vmem:[%s8 + $0x30] sm:$0xff]
  %v1364 = vld [vmem:[%s8 + $0x38] sm:$0xff]
  %v1365 = vld [vmem:[%s8 + $0x40] sm:$0xff]
  %v1366 = vld [vmem:[%s8 + $0x48] sm:$0xff]
  %v1367 = vld [vmem:[%s8 + $0x50] sm:$0xff]
  %v1368 = vld [vmem:[%s8 + $0x58] sm:$0xff]
  %v1369 = vld [vmem:[%s8 + $0x60] sm:$0xff]
  %v1370 = vld [vmem:[%s8 + $0x68] sm:$0xff]
  %v1371 = vld [vmem:[%s8 + $0x70] sm:$0xff]
  %v1372 = vld [vmem:[%s8 + $0x78] sm:$0xff]
  %v1373 = vld [vmem:[%s8 + $0x80] sm:$0xff]
  %v1374 = vld [vmem:[%s8 + $0x88] sm:$0xff]
  %v1375 = vld [vmem:[%s8 + $0x90] sm:$0xff]
  %v1376 = vld [vmem:[%s8 + $0x98] sm:$0xff]
  %v1377 = vld [vmem:[%s8 + $0xa0] sm:$0xff]
  %v1378 = vld [vmem:[%s8 + $0xa8] sm:$0xff]
  %v1379 = vld [vmem:[%s8 + $0xb0] sm:$0xff]
  %v1380 = vld [vmem:[%s8 + $0xb8] sm:$0xff]
  %v1381 = vld [vmem:[%s8 + $0xc0] sm:$0xff]
  %v1382 = vld [vmem:[%s8 + $0xc8] sm:$0xff]
  %v1383 = vld [vmem:[%s8 + $0xd0] sm:$0xff]
  %v1384 = vld [vmem:[%s8 + $0xd8] sm:$0xff]
  %v1385 = vld [vmem:[%s8 + $0xe0] sm:$0xff]
  %v1386 = vld [vmem:[%s8 + $0xe8] sm:$0xff]
  %v1387 = vld [vmem:[%s8 + $0xf0] sm:$0xff]
  %v1388 = vld [vmem:[%s8 + $0xf8] sm:$0xff]
  %v1389 = vld [vmem:[%s8 + $0x100] sm:$0xff]
  %v1390 = vld [vmem:[%s8 + $0x108] sm:$0xff]
  %v1391 = vld [vmem:[%s8 + $0x110] sm:$0xff]
  %v1392 = vld [vmem:[%s8 + $0x118] sm:$0xff]
  %v1393 = vld [vmem:[%s8 + $0x120] sm:$0xff]
  %v1394 = vld [vmem:[%s8 + $0x128] sm:$0xff]
  %v1395 = vld [vmem:[%s8 + $0x130] sm:$0xff]
  %v1396 = vld [vmem:[%s8 + $0x138] sm:$0xff]
  %v1397 = vld [vmem:[%s8 + $0x140] sm:$0xff]
  %v1398 = vld [vmem:[%s8 + $0x148] sm:$0xff]
  %v1399 = vld [vmem:[%s8 + $0x150] sm:$0x3f]
  %v1400 = vld [vmem:[%s8 + $0x158] sm:$0x3f]
  %1402 = vst [vmem:[#allocation1] ss:$4 sm:$0xff] %v1356
  %v1403 = vld.sshfl [vmem:[#allocation1] sm:$0xff pattern:$0x73625140]
  %v1404 = vld.sshfl [vmem:[#allocation1 + $0x8] sm:$0xff pattern:$0x73625140]
  %vm1406 = vcmask 375808
  %v1407 = vsel %vm1406, %v1404, 0
  %vm1409 = vcmask 1045504
  %v1411 = vsel %vm1409, %v1399, 0
  %v1414 = vsel %vm1409, %v1400, 0
  %1416 = vmatpush.msra.mxu0 %v1387
  %1417 = vmatpush.msra.mxu0 %v1385
  %1418 = vmatpush.msra.mxu0 %v1383
  %1419 = vmatpush.msra.mxu0 %v1381
  %1420 = vmatpush.msra.mxu0 %v1379
  %1421 = vmatpush.msra.mxu0 %v1377
  %1422 = vmatpush.msra.mxu0 %v1375
  %1423 = vmatpush.msra.mxu0 %v1373
  %1424 = vmatpush.msra.mxu0 %v1371
  %1425 = vmatpush.msra.mxu0 %v1369
  %1426 = vmatpush.msra.mxu0 %v1367
  %1427 = vmatpush.msra.mxu0 %v1365
  %1428 = vmatpush.msra.mxu0 %v1363
  %1429 = vmatpush.msra.mxu0 %v1361
  %1430 = vmatpush.msra.mxu0 %v1359
  %1431 = vmatpush.msra.mxu0 %v1357
  %1432 = vmatmul.f32.gmra.mxu0 %v1403
  %v1433 = vpop.f32.mrf.mxu0
  %v1434 = vadd.f32 0.0, %v1433
  %1435 = vdwg.mxu0
  %1436 = vmatpush.msra.mxu0 0.0
  %1437 = vmatpush.msra.mxu0 0.0
  %1438 = vmatpush.msra.mxu0 0.0
  %1439 = vmatpush.msra.mxu0 0.0
  %1440 = vmatpush.msra.mxu0 0.0
  %1441 = vmatpush.msra.mxu0 0.0
  %1442 = vmatpush.msra.mxu0 0.0
  %1443 = vmatpush.msra.mxu0 0.0
  %1444 = vmatpush.msra.mxu0 0.0
  %1445 = vmatpush.msra.mxu0 0.0
  %1446 = vmatpush.msra.mxu0 %v1411
  %1447 = vmatpush.msra.mxu0 %v1397
  %1448 = vmatpush.msra.mxu0 %v1395
  %1449 = vmatpush.msra.mxu0 %v1393
  %1450 = vmatpush.msra.mxu0 %v1391
  %1451 = vmatpush.msra.mxu0 %v1389
  %1452 = vmatmul.f32.gmra.mxu0 %v1407
  %v1453 = vpop.f32.mrf.mxu0
  %v1454 = vadd.f32 %v1434, %v1453
  %1455 = vdwg.mxu0
  %1456 = vmatpush.msra.mxu0 %v1388
  %1457 = vmatpush.msra.mxu0 %v1386
  %1458 = vmatpush.msra.mxu0 %v1384
  %1459 = vmatpush.msra.mxu0 %v1382
  %1460 = vmatpush.msra.mxu0 %v1380
  %1461 = vmatpush.msra.mxu0 %v1378
  %1462 = vmatpush.msra.mxu0 %v1376
  %1463 = vmatpush.msra.mxu0 %v1374
  %1464 = vmatpush.msra.mxu0 %v1372
  %1465 = vmatpush.msra.mxu0 %v1370
  %1466 = vmatpush.msra.mxu0 %v1368
  %1467 = vmatpush.msra.mxu0 %v1366
  %1468 = vmatpush.msra.mxu0 %v1364
  %1469 = vmatpush.msra.mxu0 %v1362
  %1470 = vmatpush.msra.mxu0 %v1360
  %1471 = vmatpush.msra.mxu0 %v1358
  %1472 = vmatmul.f32.gmra.mxu0 %v1403
  %v1473 = vpop.f32.mrf.mxu0
  %v1474 = vadd.f32 0.0, %v1473
  %1475 = vdwg.mxu0
  %1476 = vmatpush.msra.mxu0 0.0
  %1477 = vmatpush.msra.mxu0 0.0
  %1478 = vmatpush.msra.mxu0 0.0
  %1479 = vmatpush.msra.mxu0 0.0
  %1480 = vmatpush.msra.mxu0 0.0
  %1481 = vmatpush.msra.mxu0 0.0
  %1482 = vmatpush.msra.mxu0 0.0
  %1483 = vmatpush.msra.mxu0 0.0
  %1484 = vmatpush.msra.mxu0 0.0
  %1485 = vmatpush.msra.mxu0 0.0
  %1486 = vmatpush.msra.mxu0 %v1414
  %1487 = vmatpush.msra.mxu0 %v1398
  %1488 = vmatpush.msra.mxu0 %v1396
  %1489 = vmatpush.msra.mxu0 %v1394
  %1490 = vmatpush.msra.mxu0 %v1392
  %1491 = vmatpush.msra.mxu0 %v1390
  %1492 = vmatmul.f32.gmra.mxu0 %v1407
  %v1493 = vpop.f32.mrf.mxu0
  %v1494 = vadd.f32 %v1474, %v1493
  %1495 = vdwg.mxu0
  %v1496 = vadd.f32 %v1354, %v1454
  %v1497 = vadd.f32 %v1355, %v1494
  %v1498 = vld [vmem:[%s9] sm:$0x3]
  %v1499 = vld [vmem:[%s5] sm:$0xf]
  %v1501 = vperm.slane %v1498, 0
  %v1502 = vperm.slane %v1498, 1
  %1506 = vst [vmem:[#allocation1] ss:$4 sm:$0xff] %v1499
  %v1507 = vld.sshfl [vmem:[#allocation1] sm:$0xff pattern:$0x73625140]
  %v1508 = vld.sshfl [vmem:[#allocation1 + $0x8] sm:$0xff pattern:$0x73625140]
  %v1511 = vmul.f32 %v1501, %v1507
  %v1512 = vmul.f32 %v1502, %v1508
  %v1513 = vld [vmem:[%s10] sm:$0x3]
  %v1515 = vperm.slane %v1513, 0
  %v1516 = vperm.slane %v1513, 1
  %v1519 = vmul.f32 %v1515, %v1496
  %v1520 = vmul.f32 %v1516, %v1497
  %v1521 = vadd.f32 %v1511, %v1519
  %v1522 = vadd.f32 %v1512, %v1520
  %vm1523 = vcmp.ge.f32.partialorder %v1521, 0.0
  %vm1524 = vcmp.ge.f32.partialorder %v1522, 0.0
  %v1525 = vmul.f32 %v1521, 0.01
  %v1526 = vmul.f32 %v1522, 0.01
  %v1527 = vsel %vm1523, %v1521, %v1525
  %v1528 = vsel %vm1524, %v1522, %v1526
  %v1531 = vrot.slane %v1522, 6
  %v1532 = vsel %vm1142, %v1521, %v1531
  %vm1534 = vcmask 371714
  %vm1535 = vmor %vm1534, %vm1142
  %1536 = vst.msk [vmem:[%s14] sm:$0xf] %vm1535, %v1532
  %v1539 = vrot.slane %v1528, 6
  %v1540 = vsel %vm1142, %v1527, %v1539
  %1542 = vst.msk [vmem:[%s13] sm:$0xf] %vm1535, %v1540
  %v1543 = vld [vmem:[%s11] sm:$0xff]
  %v1544 = vld [vmem:[%s11 + $0x8] sm:$0xff]
  %v1545 = vld [vmem:[%s11 + $0x10] sm:$0xff]
  %v1546 = vld [vmem:[%s11 + $0x18] sm:$0xff]
  %v1547 = vld [vmem:[%s11 + $0x20] sm:$0xff]
  %v1548 = vld [vmem:[%s11 + $0x28] sm:$0xff]
  %v1549 = vld [vmem:[%s11 + $0x30] sm:$0xff]
  %v1550 = vld [vmem:[%s11 + $0x38] sm:$0xff]
  %v1551 = vld [vmem:[%s11 + $0x40] sm:$0xff]
  %v1552 = vld [vmem:[%s11 + $0x48] sm:$0xff]
  %v1553 = vld [vmem:[%s11 + $0x50] sm:$0xff]
  %v1554 = vld [vmem:[%s11 + $0x58] sm:$0xff]
  %v1555 = vld [vmem:[%s11 + $0x60] sm:$0xff]
  %v1556 = vld [vmem:[%s11 + $0x68] sm:$0xff]
  %v1557 = vld [vmem:[%s11 + $0x70] sm:$0xff]
  %v1558 = vld [vmem:[%s11 + $0x78] sm:$0xff]
  %v1559 = vld [vmem:[%s11 + $0x80] sm:$0xff]
  %v1560 = vld [vmem:[%s11 + $0x88] sm:$0xff]
  %v1561 = vld [vmem:[%s11 + $0x90] sm:$0xff]
  %v1562 = vld [vmem:[%s11 + $0x98] sm:$0xff]
  %v1563 = vld [vmem:[%s12] sm:$0x1]
  %v1565 = vperm.slane %v1563, 0
  %vm1567 = vcmask 261120
  %v1568 = vsel %vm1567, %v1528, 0
  %1570 = vmatpush.msra.mxu0 %v1558
  %1571 = vmatpush.msra.mxu0 %v1557
  %1572 = vmatpush.msra.mxu0 %v1556
  %1573 = vmatpush.msra.mxu0 %v1555
  %1574 = vmatpush.msra.mxu0 %v1554
  %1575 = vmatpush.msra.mxu0 %v1553
  %1576 = vmatpush.msra.mxu0 %v1552
  %1577 = vmatpush.msra.mxu0 %v1551
  %1578 = vmatpush.msra.mxu0 %v1550
  %1579 = vmatpush.msra.mxu0 %v1549
  %1580 = vmatpush.msra.mxu0 %v1548
  %1581 = vmatpush.msra.mxu0 %v1547
  %1582 = vmatpush.msra.mxu0 %v1546
  %1583 = vmatpush.msra.mxu0 %v1545
  %1584 = vmatpush.msra.mxu0 %v1544
  %1585 = vmatpush.msra.mxu0 %v1543
  %1586 = vmatmul.f32.gmra.mxu0 %v1527
  %v1587 = vpop.f32.mrf.mxu0
  %v1588 = vadd.f32 %v1565, %v1587
  %1589 = vdwg.mxu0
  %1590 = vmatpush.msra.mxu0 0.0
  %1591 = vmatpush.msra.mxu0 0.0
  %1592 = vmatpush.msra.mxu0 0.0
  %1593 = vmatpush.msra.mxu0 0.0
  %1594 = vmatpush.msra.mxu0 0.0
  %1595 = vmatpush.msra.mxu0 0.0
  %1596 = vmatpush.msra.mxu0 0.0
  %1597 = vmatpush.msra.mxu0 0.0
  %1598 = vmatpush.msra.mxu0 0.0
  %1599 = vmatpush.msra.mxu0 0.0
  %1600 = vmatpush.msra.mxu0 0.0
  %1601 = vmatpush.msra.mxu0 0.0
  %1602 = vmatpush.msra.mxu0 %v1562
  %1603 = vmatpush.msra.mxu0 %v1561
  %1604 = vmatpush.msra.mxu0 %v1560
  %1605 = vmatpush.msra.mxu0 %v1559
  %1606 = vmatmul.f32.gmra.mxu0 %v1568
  %v1607 = vpop.f32.mrf.mxu0
  %v1608 = vadd.f32 %v1588, %v1607
  %1609 = vdwg.mxu0
  %vm1610 = vcmp.ge.f32.partialorder %v1608, 0.0
  %v1611 = vmul.f32 %v1608, 0.01
  %v1612 = vsel %vm1610, %v1608, %v1611
  %vm1613 = vcmask 402432
  %1614 = vst.msk [vmem:[%s17] sm:$0x3] %vm1613, %v1612
  // Predicated region
  $region54: #{mtrnn_forward.11} parent=0 // pred_check
    _
  $region55: #{mtrnn_forward.11} parent=0 // pred_check_branch
    %1616 = sbr.rel (0) target = $region57
  $region56: #{mtrnn_forward.11} parent=0 // pred_region
    _
  $region57: #{mtrnn_forward.11} parent=0 // pred_fallthru
    _
  // Predicated region
  $region58: #{mtrnn_forward.11} parent=0 // pred_check
    _
  $region59: #{mtrnn_forward.11} parent=0 // pred_check_branch
    %1618 = sbr.rel (0) target = $region61
  $region60: #{mtrnn_forward.11} parent=0 // pred_region
    _
  $region61: #{mtrnn_forward.11} parent=0 // pred_fallthru
    _
  // Predicated region
  $region62: #{mtrnn_forward.11} parent=0 // pred_check
    _
  $region63: #{mtrnn_forward.11} parent=0 // pred_check_branch
    %1620 = sbr.rel (0) target = $region65
  $region64: #{mtrnn_forward.11} parent=0 // pred_region
    _
  $region65: #{mtrnn_forward.11} parent=0 // pred_fallthru
    _
  // Predicated region
  $region66: #{mtrnn_forward.11} parent=0 // pred_check
    _
  $region67: #{mtrnn_forward.11} parent=0 // pred_check_branch
    %1622 = sbr.rel (0) target = $region69
  $region68: #{mtrnn_forward.11} parent=0 // pred_region
    _
  $region69: #{mtrnn_forward.11} parent=0 // pred_fallthru
    _
  // Predicated region
  $region70: #{mtrnn_forward.11} parent=0 // pred_check
    _
  $region71: #{mtrnn_forward.11} parent=0 // pred_check_branch
    %1624 = sbr.rel (0) target = $region73
  $region72: #{mtrnn_forward.11} parent=0 // pred_region
    _
  $region73: #{mtrnn_forward.11} parent=0 // pred_fallthru
    _
  // Predicated region
  $region74: #{mtrnn_forward.11} parent=0 // pred_check
    _
  $region75: #{mtrnn_forward.11} parent=0 // pred_check_branch
    %1626 = sbr.rel (0) target = $region77
  $region76: #{mtrnn_forward.11} parent=0 // pred_region
    _
  $region77: #{mtrnn_forward.11} parent=0 // pred_fallthru
    _
  // Predicated region
  $region78: #{mtrnn_forward.11} parent=0 // pred_check
    _
  $region79: #{mtrnn_forward.11} parent=0 // pred_check_branch
    %1628 = sbr.rel (0) target = $region81
  $region80: #{mtrnn_forward.11} parent=0 // pred_region
    _
  $region81: #{mtrnn_forward.11} parent=0 // pred_fallthru
    _
  // Predicated region
  $region82: #{mtrnn_forward.11} parent=0 // pred_check
    _
  $region83: #{mtrnn_forward.11} parent=0 // pred_check_branch
    %1630 = sbr.rel (0) target = $region85
  $region84: #{mtrnn_forward.11} parent=0 // pred_region
    _
  $region85: #{mtrnn_forward.11} parent=0 // pred_fallthru
    _
  // Predicated region
  $region86: #{mtrnn_forward.11} parent=0 // pred_check
    _
  $region87: #{mtrnn_forward.11} parent=0 // pred_check_branch
    %1632 = sbr.rel (0) target = $region89
  $region88: #{mtrnn_forward.11} parent=0 // pred_region
    _
  $region89: #{mtrnn_forward.11} parent=0 // pred_fallthru
    _
  // Predicated region
  $region90: #{mtrnn_forward.11} parent=0 // pred_check
    _
  $region91: #{mtrnn_forward.11} parent=0 // pred_check_branch
    %1634 = sbr.rel (0) target = $region93
  $region92: #{mtrnn_forward.11} parent=0 // pred_region
    _
  $region93: #{mtrnn_forward.11} parent=0 // pred_fallthru
    _

// kernel: mtrnn_forward.13
$region0: #{mtrnn_forward.13}
  #allocation0 [shape = 'u32[]', space=smem, size = 0x4, offset = 0x4, fixed_abs, tag = 'smem constant byte address 0x4 - core index']
  #allocation1 [shape = 'u32[72,128]{1,0:T(1,128)}', space=vmem, size = 0x9000, scoped, tag = 'internal scratch']
  %s0 = inlined_call_operand.vmem [shape: f32[576,45], index: 0, kind: input, shape index: {}]
  %s1 = inlined_call_operand.vmem [shape: f32[45,32], index: 1, kind: input, shape index: {}]
  %s2 = inlined_call_operand.vmem [shape: f32[1,32], index: 2, kind: input, shape index: {}]
  %s3 = inlined_call_operand.vmem [shape: f32[576,32], index: 3, kind: output, shape index: {}]
  %s4 = sld [smem:[#allocation0]]
  $region22: #{mtrnn_forward.13} parent=0
    _
  %s6 = ssub.s32 1, %s4
  %s7 = scalar_select 0, %s6, %s4
  // Predicated region
  $region2: #{mtrnn_forward.13} parent=0 // pred_check
    _
  $region3: #{mtrnn_forward.13} parent=0 // pred_check_branch
    %9 = sbr.rel (0) target = $region5
  $region4: #{mtrnn_forward.13} parent=0 // pred_region
    _
  $region5: #{mtrnn_forward.13} parent=0 // pred_fallthru
    _
  // Predicated region
  $region6: #{mtrnn_forward.13} parent=0 // pred_check
    _
  $region7: #{mtrnn_forward.13} parent=0 // pred_check_branch
    %11 = sbr.rel (0) target = $region9
  $region8: #{mtrnn_forward.13} parent=0 // pred_region
    _
  $region9: #{mtrnn_forward.13} parent=0 // pred_fallthru
    _
  // Predicated region
  $region10: #{mtrnn_forward.13} parent=0 // pred_check
    _
  $region11: #{mtrnn_forward.13} parent=0 // pred_check_branch
    %13 = sbr.rel (0) target = $region13
  $region12: #{mtrnn_forward.13} parent=0 // pred_region
    _
  $region13: #{mtrnn_forward.13} parent=0 // pred_fallthru
    _
  %v14 = vld [vmem:[%s0] sm:$0xff]
  %v15 = vld [vmem:[%s0 + $0x8] sm:$0xff]
  %v16 = vld [vmem:[%s0 + $0x10] sm:$0xff]
  %v17 = vld [vmem:[%s0 + $0x18] sm:$0xff]
  %v18 = vld [vmem:[%s0 + $0x20] sm:$0xff]
  %v19 = vld [vmem:[%s0 + $0x28] sm:$0xff]
  %v20 = vld [vmem:[%s0 + $0x30] sm:$0xff]
  %v21 = vld [vmem:[%s0 + $0x38] sm:$0xff]
  %v22 = vld [vmem:[%s0 + $0x40] sm:$0xff]
  %v23 = vld [vmem:[%s0 + $0x48] sm:$0xff]
  %v24 = vld [vmem:[%s0 + $0x50] sm:$0xff]
  %v25 = vld [vmem:[%s0 + $0x58] sm:$0xff]
  %v26 = vld [vmem:[%s0 + $0x60] sm:$0xff]
  %v27 = vld [vmem:[%s0 + $0x68] sm:$0xff]
  %v28 = vld [vmem:[%s0 + $0x70] sm:$0xff]
  %v29 = vld [vmem:[%s0 + $0x78] sm:$0xff]
  %v30 = vld [vmem:[%s0 + $0x80] sm:$0xff]
  %v31 = vld [vmem:[%s0 + $0x88] sm:$0xff]
  %v32 = vld [vmem:[%s0 + $0x90] sm:$0xff]
  %v33 = vld [vmem:[%s0 + $0x98] sm:$0xff]
  %v34 = vld [vmem:[%s0 + $0xa0] sm:$0xff]
  %v35 = vld [vmem:[%s0 + $0xa8] sm:$0xff]
  %v36 = vld [vmem:[%s0 + $0xb0] sm:$0xff]
  %v37 = vld [vmem:[%s0 + $0xb8] sm:$0xff]
  %v38 = vld [vmem:[%s0 + $0xc0] sm:$0xff]
  %v39 = vld [vmem:[%s0 + $0xc8] sm:$0xff]
  %v40 = vld [vmem:[%s0 + $0xd0] sm:$0xff]
  %v41 = vld [vmem:[%s0 + $0xd8] sm:$0xff]
  %v42 = vld [vmem:[%s0 + $0xe0] sm:$0xff]
  %v43 = vld [vmem:[%s0 + $0xe8] sm:$0xff]
  %v44 = vld [vmem:[%s0 + $0xf0] sm:$0xff]
  %v45 = vld [vmem:[%s0 + $0xf8] sm:$0xff]
  %v46 = vld [vmem:[%s0 + $0x100] sm:$0xff]
  %v47 = vld [vmem:[%s0 + $0x108] sm:$0xff]
  %v48 = vld [vmem:[%s0 + $0x110] sm:$0xff]
  %v49 = vld [vmem:[%s0 + $0x118] sm:$0xff]
  %v50 = vld [vmem:[%s0 + $0x120] sm:$0xff]
  %v51 = vld [vmem:[%s0 + $0x128] sm:$0xff]
  %v52 = vld [vmem:[%s0 + $0x130] sm:$0xff]
  %v53 = vld [vmem:[%s0 + $0x138] sm:$0xff]
  %v54 = vld [vmem:[%s0 + $0x140] sm:$0xff]
  %v55 = vld [vmem:[%s0 + $0x148] sm:$0xff]
  %v56 = vld [vmem:[%s0 + $0x150] sm:$0xff]
  %v57 = vld [vmem:[%s0 + $0x158] sm:$0xff]
  %v58 = vld [vmem:[%s0 + $0x160] sm:$0xff]
  %v59 = vld [vmem:[%s0 + $0x168] sm:$0xff]
  %v60 = vld [vmem:[%s0 + $0x170] sm:$0xff]
  %v61 = vld [vmem:[%s0 + $0x178] sm:$0xff]
  %v62 = vld [vmem:[%s0 + $0x180] sm:$0xff]
  %v63 = vld [vmem:[%s0 + $0x188] sm:$0xff]
  %v64 = vld [vmem:[%s0 + $0x190] sm:$0xff]
  %v65 = vld [vmem:[%s0 + $0x198] sm:$0xff]
  %v66 = vld [vmem:[%s0 + $0x1a0] sm:$0xff]
  %v67 = vld [vmem:[%s0 + $0x1a8] sm:$0xff]
  %v68 = vld [vmem:[%s0 + $0x1b0] sm:$0xff]
  %v69 = vld [vmem:[%s0 + $0x1b8] sm:$0xff]
  %v70 = vld [vmem:[%s0 + $0x1c0] sm:$0xff]
  %v71 = vld [vmem:[%s0 + $0x1c8] sm:$0xff]
  %v72 = vld [vmem:[%s0 + $0x1d0] sm:$0xff]
  %v73 = vld [vmem:[%s0 + $0x1d8] sm:$0xff]
  %v74 = vld [vmem:[%s0 + $0x1e0] sm:$0xff]
  %v75 = vld [vmem:[%s0 + $0x1e8] sm:$0xff]
  %v76 = vld [vmem:[%s0 + $0x1f0] sm:$0xff]
  %v77 = vld [vmem:[%s0 + $0x1f8] sm:$0xff]
  %v78 = vld [vmem:[%s0 + $0x200] sm:$0xff]
  %v79 = vld [vmem:[%s0 + $0x208] sm:$0xff]
  %v80 = vld [vmem:[%s0 + $0x210] sm:$0xff]
  %v81 = vld [vmem:[%s0 + $0x218] sm:$0xff]
  %v82 = vld [vmem:[%s0 + $0x220] sm:$0xff]
  %v83 = vld [vmem:[%s0 + $0x228] sm:$0xff]
  %v84 = vld [vmem:[%s0 + $0x230] sm:$0xff]
  %v85 = vld [vmem:[%s0 + $0x238] sm:$0xff]
  %v86 = vld [vmem:[%s1] sm:$0xff]
  %v87 = vld [vmem:[%s1 + $0x8] sm:$0xff]
  %v88 = vld [vmem:[%s1 + $0x10] sm:$0xff]
  %v89 = vld [vmem:[%s1 + $0x18] sm:$0xff]
  %v90 = vld [vmem:[%s1 + $0x20] sm:$0xff]
  %v91 = vld [vmem:[%s1 + $0x28] sm:$0x1f]
  %v92 = vld [vmem:[%s2] sm:$0x1]
  %v94 = vperm.slane %v92, 0
  %vm96 = vcmask 367616
  %v98 = vsel %vm96, %v14, 0
  %v101 = vsel %vm96, %v15, 0
  %v104 = vsel %vm96, %v16, 0
  %v107 = vsel %vm96, %v17, 0
  %v110 = vsel %vm96, %v18, 0
  %v113 = vsel %vm96, %v19, 0
  %v116 = vsel %vm96, %v20, 0
  %v119 = vsel %vm96, %v21, 0
  %v122 = vsel %vm96, %v22, 0
  %v125 = vsel %vm96, %v23, 0
  %v128 = vsel %vm96, %v24, 0
  %v131 = vsel %vm96, %v25, 0
  %v134 = vsel %vm96, %v26, 0
  %v137 = vsel %vm96, %v27, 0
  %v140 = vsel %vm96, %v28, 0
  %v143 = vsel %vm96, %v29, 0
  %v146 = vsel %vm96, %v30, 0
  %v149 = vsel %vm96, %v31, 0
  %v152 = vsel %vm96, %v32, 0
  %v155 = vsel %vm96, %v33, 0
  %v158 = vsel %vm96, %v34, 0
  %v161 = vsel %vm96, %v35, 0
  %v164 = vsel %vm96, %v36, 0
  %v167 = vsel %vm96, %v37, 0
  %v170 = vsel %vm96, %v38, 0
  %v173 = vsel %vm96, %v39, 0
  %v176 = vsel %vm96, %v40, 0
  %v179 = vsel %vm96, %v41, 0
  %v182 = vsel %vm96, %v42, 0
  %v185 = vsel %vm96, %v43, 0
  %v188 = vsel %vm96, %v44, 0
  %v191 = vsel %vm96, %v45, 0
  %v194 = vsel %vm96, %v46, 0
  %v197 = vsel %vm96, %v47, 0
  %v200 = vsel %vm96, %v48, 0
  %v203 = vsel %vm96, %v49, 0
  %v206 = vsel %vm96, %v50, 0
  %v209 = vsel %vm96, %v51, 0
  %v212 = vsel %vm96, %v52, 0
  %v215 = vsel %vm96, %v53, 0
  %v218 = vsel %vm96, %v54, 0
  %v221 = vsel %vm96, %v55, 0
  %v224 = vsel %vm96, %v56, 0
  %v227 = vsel %vm96, %v57, 0
  %v230 = vsel %vm96, %v58, 0
  %v233 = vsel %vm96, %v59, 0
  %v236 = vsel %vm96, %v60, 0
  %v239 = vsel %vm96, %v61, 0
  %v242 = vsel %vm96, %v62, 0
  %v245 = vsel %vm96, %v63, 0
  %v248 = vsel %vm96, %v64, 0
  %v251 = vsel %vm96, %v65, 0
  %v254 = vsel %vm96, %v66, 0
  %v257 = vsel %vm96, %v67, 0
  %v260 = vsel %vm96, %v68, 0
  %v263 = vsel %vm96, %v69, 0
  %v266 = vsel %vm96, %v70, 0
  %v269 = vsel %vm96, %v71, 0
  %v272 = vsel %vm96, %v72, 0
  %v275 = vsel %vm96, %v73, 0
  %v278 = vsel %vm96, %v74, 0
  %v281 = vsel %vm96, %v75, 0
  %v284 = vsel %vm96, %v76, 0
  %v287 = vsel %vm96, %v77, 0
  %v290 = vsel %vm96, %v78, 0
  %v293 = vsel %vm96, %v79, 0
  %v296 = vsel %vm96, %v80, 0
  %v299 = vsel %vm96, %v81, 0
  %v302 = vsel %vm96, %v82, 0
  %v305 = vsel %vm96, %v83, 0
  %v308 = vsel %vm96, %v84, 0
  %v311 = vsel %vm96, %v85, 0
  %vm313 = vcmask 1044480
  %v315 = vsel %vm313, %v91, 0
  %317 = vmatpush.msra.mxu0 0.0
  %318 = vmatpush.msra.mxu0 0.0
  %319 = vmatpush.msra.mxu0 0.0
  %320 = vmatpush.msra.mxu0 0.0
  %321 = vmatpush.msra.mxu0 0.0
  %322 = vmatpush.msra.mxu0 0.0
  %323 = vmatpush.msra.mxu0 0.0
  %324 = vmatpush.msra.mxu0 0.0
  %325 = vmatpush.msra.mxu0 0.0
  %326 = vmatpush.msra.mxu0 0.0
  %327 = vmatpush.msra.mxu0 %v315
  %328 = vmatpush.msra.mxu0 %v90
  %329 = vmatpush.msra.mxu0 %v89
  %330 = vmatpush.msra.mxu0 %v88
  %331 = vmatpush.msra.mxu0 %v87
  %332 = vmatpush.msra.mxu0 %v86
  %333 = vmatmul.f32.gmra.mxu0 %v98
  %v334 = vpop.f32.mrf.mxu0
  %v335 = vadd.f32 %v94, %v334
  %336 = vmatmul.f32.gmra.mxu0 %v101
  %v337 = vpop.f32.mrf.mxu0
  %v338 = vadd.f32 %v94, %v337
  %339 = vmatmul.f32.gmra.mxu0 %v104
  %v340 = vpop.f32.mrf.mxu0
  %v341 = vadd.f32 %v94, %v340
  %342 = vmatmul.f32.gmra.mxu0 %v107
  %v343 = vpop.f32.mrf.mxu0
  %v344 = vadd.f32 %v94, %v343
  %345 = vmatmul.f32.gmra.mxu0 %v110
  %v346 = vpop.f32.mrf.mxu0
  %v347 = vadd.f32 %v94, %v346
  %348 = vmatmul.f32.gmra.mxu0 %v113
  %v349 = vpop.f32.mrf.mxu0
  %v350 = vadd.f32 %v94, %v349
  %351 = vmatmul.f32.gmra.mxu0 %v116
  %v352 = vpop.f32.mrf.mxu0
  %v353 = vadd.f32 %v94, %v352
  %354 = vmatmul.f32.gmra.mxu0 %v119
  %v355 = vpop.f32.mrf.mxu0
  %v356 = vadd.f32 %v94, %v355
  %357 = vmatmul.f32.gmra.mxu0 %v122
  %v358 = vpop.f32.mrf.mxu0
  %v359 = vadd.f32 %v94, %v358
  %360 = vmatmul.f32.gmra.mxu0 %v125
  %v361 = vpop.f32.mrf.mxu0
  %v362 = vadd.f32 %v94, %v361
  %363 = vmatmul.f32.gmra.mxu0 %v128
  %v364 = vpop.f32.mrf.mxu0
  %v365 = vadd.f32 %v94, %v364
  %366 = vmatmul.f32.gmra.mxu0 %v131
  %v367 = vpop.f32.mrf.mxu0
  %v368 = vadd.f32 %v94, %v367
  %369 = vmatmul.f32.gmra.mxu0 %v134
  %v370 = vpop.f32.mrf.mxu0
  %v371 = vadd.f32 %v94, %v370
  %372 = vmatmul.f32.gmra.mxu0 %v137
  %v373 = vpop.f32.mrf.mxu0
  %v374 = vadd.f32 %v94, %v373
  %375 = vmatmul.f32.gmra.mxu0 %v140
  %v376 = vpop.f32.mrf.mxu0
  %v377 = vadd.f32 %v94, %v376
  %378 = vmatmul.f32.gmra.mxu0 %v143
  %v379 = vpop.f32.mrf.mxu0
  %v380 = vadd.f32 %v94, %v379
  %381 = vmatmul.f32.gmra.mxu0 %v146
  %v382 = vpop.f32.mrf.mxu0
  %v383 = vadd.f32 %v94, %v382
  %384 = vmatmul.f32.gmra.mxu0 %v149
  %v385 = vpop.f32.mrf.mxu0
  %v386 = vadd.f32 %v94, %v385
  %387 = vmatmul.f32.gmra.mxu0 %v152
  %v388 = vpop.f32.mrf.mxu0
  %v389 = vadd.f32 %v94, %v388
  %390 = vmatmul.f32.gmra.mxu0 %v155
  %v391 = vpop.f32.mrf.mxu0
  %v392 = vadd.f32 %v94, %v391
  %393 = vmatmul.f32.gmra.mxu0 %v158
  %v394 = vpop.f32.mrf.mxu0
  %v395 = vadd.f32 %v94, %v394
  %396 = vmatmul.f32.gmra.mxu0 %v161
  %v397 = vpop.f32.mrf.mxu0
  %v398 = vadd.f32 %v94, %v397
  %399 = vmatmul.f32.gmra.mxu0 %v164
  %v400 = vpop.f32.mrf.mxu0
  %v401 = vadd.f32 %v94, %v400
  %402 = vmatmul.f32.gmra.mxu0 %v167
  %v403 = vpop.f32.mrf.mxu0
  %v404 = vadd.f32 %v94, %v403
  %405 = vmatmul.f32.gmra.mxu0 %v170
  %v406 = vpop.f32.mrf.mxu0
  %v407 = vadd.f32 %v94, %v406
  %408 = vmatmul.f32.gmra.mxu0 %v173
  %v409 = vpop.f32.mrf.mxu0
  %v410 = vadd.f32 %v94, %v409
  %411 = vmatmul.f32.gmra.mxu0 %v176
  %v412 = vpop.f32.mrf.mxu0
  %v413 = vadd.f32 %v94, %v412
  %414 = vmatmul.f32.gmra.mxu0 %v179
  %v415 = vpop.f32.mrf.mxu0
  %v416 = vadd.f32 %v94, %v415
  %417 = vmatmul.f32.gmra.mxu0 %v182
  %v418 = vpop.f32.mrf.mxu0
  %v419 = vadd.f32 %v94, %v418
  %420 = vmatmul.f32.gmra.mxu0 %v185
  %v421 = vpop.f32.mrf.mxu0
  %v422 = vadd.f32 %v94, %v421
  %423 = vmatmul.f32.gmra.mxu0 %v188
  %v424 = vpop.f32.mrf.mxu0
  %v425 = vadd.f32 %v94, %v424
  %426 = vmatmul.f32.gmra.mxu0 %v191
  %v427 = vpop.f32.mrf.mxu0
  %v428 = vadd.f32 %v94, %v427
  %429 = vmatmul.f32.gmra.mxu0 %v194
  %v430 = vpop.f32.mrf.mxu0
  %v431 = vadd.f32 %v94, %v430
  %432 = vmatmul.f32.gmra.mxu0 %v197
  %v433 = vpop.f32.mrf.mxu0
  %v434 = vadd.f32 %v94, %v433
  %435 = vmatmul.f32.gmra.mxu0 %v200
  %v436 = vpop.f32.mrf.mxu0
  %v437 = vadd.f32 %v94, %v436
  %438 = vmatmul.f32.gmra.mxu0 %v203
  %v439 = vpop.f32.mrf.mxu0
  %v440 = vadd.f32 %v94, %v439
  %441 = vmatmul.f32.gmra.mxu0 %v206
  %v442 = vpop.f32.mrf.mxu0
  %v443 = vadd.f32 %v94, %v442
  %444 = vmatmul.f32.gmra.mxu0 %v209
  %v445 = vpop.f32.mrf.mxu0
  %v446 = vadd.f32 %v94, %v445
  %447 = vmatmul.f32.gmra.mxu0 %v212
  %v448 = vpop.f32.mrf.mxu0
  %v449 = vadd.f32 %v94, %v448
  %450 = vmatmul.f32.gmra.mxu0 %v215
  %v451 = vpop.f32.mrf.mxu0
  %v452 = vadd.f32 %v94, %v451
  %453 = vmatmul.f32.gmra.mxu0 %v218
  %v454 = vpop.f32.mrf.mxu0
  %v455 = vadd.f32 %v94, %v454
  %456 = vmatmul.f32.gmra.mxu0 %v221
  %v457 = vpop.f32.mrf.mxu0
  %v458 = vadd.f32 %v94, %v457
  %459 = vmatmul.f32.gmra.mxu0 %v224
  %v460 = vpop.f32.mrf.mxu0
  %v461 = vadd.f32 %v94, %v460
  %462 = vmatmul.f32.gmra.mxu0 %v227
  %v463 = vpop.f32.mrf.mxu0
  %v464 = vadd.f32 %v94, %v463
  %465 = vmatmul.f32.gmra.mxu0 %v230
  %v466 = vpop.f32.mrf.mxu0
  %v467 = vadd.f32 %v94, %v466
  %468 = vmatmul.f32.gmra.mxu0 %v233
  %v469 = vpop.f32.mrf.mxu0
  %v470 = vadd.f32 %v94, %v469
  %471 = vmatmul.f32.gmra.mxu0 %v236
  %v472 = vpop.f32.mrf.mxu0
  %v473 = vadd.f32 %v94, %v472
  %474 = vmatmul.f32.gmra.mxu0 %v239
  %v475 = vpop.f32.mrf.mxu0
  %v476 = vadd.f32 %v94, %v475
  %477 = vmatmul.f32.gmra.mxu0 %v242
  %v478 = vpop.f32.mrf.mxu0
  %v479 = vadd.f32 %v94, %v478
  %480 = vmatmul.f32.gmra.mxu0 %v245
  %v481 = vpop.f32.mrf.mxu0
  %v482 = vadd.f32 %v94, %v481
  %483 = vmatmul.f32.gmra.mxu0 %v248
  %v484 = vpop.f32.mrf.mxu0
  %v485 = vadd.f32 %v94, %v484
  %486 = vmatmul.f32.gmra.mxu0 %v251
  %v487 = vpop.f32.mrf.mxu0
  %v488 = vadd.f32 %v94, %v487
  %489 = vmatmul.f32.gmra.mxu0 %v254
  %v490 = vpop.f32.mrf.mxu0
  %v491 = vadd.f32 %v94, %v490
  %492 = vmatmul.f32.gmra.mxu0 %v257
  %v493 = vpop.f32.mrf.mxu0
  %v494 = vadd.f32 %v94, %v493
  %495 = vmatmul.f32.gmra.mxu0 %v260
  %v496 = vpop.f32.mrf.mxu0
  %v497 = vadd.f32 %v94, %v496
  %498 = vmatmul.f32.gmra.mxu0 %v263
  %v499 = vpop.f32.mrf.mxu0
  %v500 = vadd.f32 %v94, %v499
  %501 = vmatmul.f32.gmra.mxu0 %v266
  %v502 = vpop.f32.mrf.mxu0
  %v503 = vadd.f32 %v94, %v502
  %504 = vmatmul.f32.gmra.mxu0 %v269
  %v505 = vpop.f32.mrf.mxu0
  %v506 = vadd.f32 %v94, %v505
  %507 = vmatmul.f32.gmra.mxu0 %v272
  %v508 = vpop.f32.mrf.mxu0
  %v509 = vadd.f32 %v94, %v508
  %510 = vmatmul.f32.gmra.mxu0 %v275
  %v511 = vpop.f32.mrf.mxu0
  %v512 = vadd.f32 %v94, %v511
  %513 = vmatmul.f32.gmra.mxu0 %v278
  %v514 = vpop.f32.mrf.mxu0
  %v515 = vadd.f32 %v94, %v514
  %516 = vmatmul.f32.gmra.mxu0 %v281
  %v517 = vpop.f32.mrf.mxu0
  %v518 = vadd.f32 %v94, %v517
  %519 = vmatmul.f32.gmra.mxu0 %v284
  %v520 = vpop.f32.mrf.mxu0
  %v521 = vadd.f32 %v94, %v520
  %522 = vmatmul.f32.gmra.mxu0 %v287
  %v523 = vpop.f32.mrf.mxu0
  %v524 = vadd.f32 %v94, %v523
  %525 = vmatmul.f32.gmra.mxu0 %v290
  %v526 = vpop.f32.mrf.mxu0
  %v527 = vadd.f32 %v94, %v526
  %528 = vmatmul.f32.gmra.mxu0 %v293
  %v529 = vpop.f32.mrf.mxu0
  %v530 = vadd.f32 %v94, %v529
  %531 = vmatmul.f32.gmra.mxu0 %v296
  %v532 = vpop.f32.mrf.mxu0
  %v533 = vadd.f32 %v94, %v532
  %534 = vmatmul.f32.gmra.mxu0 %v299
  %v535 = vpop.f32.mrf.mxu0
  %v536 = vadd.f32 %v94, %v535
  %537 = vmatmul.f32.gmra.mxu0 %v302
  %v538 = vpop.f32.mrf.mxu0
  %v539 = vadd.f32 %v94, %v538
  %540 = vmatmul.f32.gmra.mxu0 %v305
  %v541 = vpop.f32.mrf.mxu0
  %v542 = vadd.f32 %v94, %v541
  %543 = vmatmul.f32.gmra.mxu0 %v308
  %v544 = vpop.f32.mrf.mxu0
  %v545 = vadd.f32 %v94, %v544
  %546 = vmatmul.f32.gmra.mxu0 %v311
  %v547 = vpop.f32.mrf.mxu0
  %v548 = vadd.f32 %v94, %v547
  %549 = vdwg.mxu0
  %vm550 = vcmp.ge.f32.partialorder %v335, 0.0
  %vm551 = vcmp.ge.f32.partialorder %v338, 0.0
  %vm552 = vcmp.ge.f32.partialorder %v341, 0.0
  %vm553 = vcmp.ge.f32.partialorder %v344, 0.0
  %vm554 = vcmp.ge.f32.partialorder %v347, 0.0
  %vm555 = vcmp.ge.f32.partialorder %v350, 0.0
  %vm556 = vcmp.ge.f32.partialorder %v353, 0.0
  %vm557 = vcmp.ge.f32.partialorder %v356, 0.0
  %vm558 = vcmp.ge.f32.partialorder %v359, 0.0
  %vm559 = vcmp.ge.f32.partialorder %v362, 0.0
  %vm560 = vcmp.ge.f32.partialorder %v365, 0.0
  %vm561 = vcmp.ge.f32.partialorder %v368, 0.0
  %vm562 = vcmp.ge.f32.partialorder %v371, 0.0
  %vm563 = vcmp.ge.f32.partialorder %v374, 0.0
  %vm564 = vcmp.ge.f32.partialorder %v377, 0.0
  %vm565 = vcmp.ge.f32.partialorder %v380, 0.0
  %vm566 = vcmp.ge.f32.partialorder %v383, 0.0
  %vm567 = vcmp.ge.f32.partialorder %v386, 0.0
  %vm568 = vcmp.ge.f32.partialorder %v389, 0.0
  %vm569 = vcmp.ge.f32.partialorder %v392, 0.0
  %vm570 = vcmp.ge.f32.partialorder %v395, 0.0
  %vm571 = vcmp.ge.f32.partialorder %v398, 0.0
  %vm572 = vcmp.ge.f32.partialorder %v401, 0.0
  %vm573 = vcmp.ge.f32.partialorder %v404, 0.0
  %vm574 = vcmp.ge.f32.partialorder %v407, 0.0
  %vm575 = vcmp.ge.f32.partialorder %v410, 0.0
  %vm576 = vcmp.ge.f32.partialorder %v413, 0.0
  %vm577 = vcmp.ge.f32.partialorder %v416, 0.0
  %vm578 = vcmp.ge.f32.partialorder %v419, 0.0
  %vm579 = vcmp.ge.f32.partialorder %v422, 0.0
  %vm580 = vcmp.ge.f32.partialorder %v425, 0.0
  %vm581 = vcmp.ge.f32.partialorder %v428, 0.0
  %vm582 = vcmp.ge.f32.partialorder %v431, 0.0
  %vm583 = vcmp.ge.f32.partialorder %v434, 0.0
  %vm584 = vcmp.ge.f32.partialorder %v437, 0.0
  %vm585 = vcmp.ge.f32.partialorder %v440, 0.0
  %vm586 = vcmp.ge.f32.partialorder %v443, 0.0
  %vm587 = vcmp.ge.f32.partialorder %v446, 0.0
  %vm588 = vcmp.ge.f32.partialorder %v449, 0.0
  %vm589 = vcmp.ge.f32.partialorder %v452, 0.0
  %vm590 = vcmp.ge.f32.partialorder %v455, 0.0
  %vm591 = vcmp.ge.f32.partialorder %v458, 0.0
  %vm592 = vcmp.ge.f32.partialorder %v461, 0.0
  %vm593 = vcmp.ge.f32.partialorder %v464, 0.0
  %vm594 = vcmp.ge.f32.partialorder %v467, 0.0
  %vm595 = vcmp.ge.f32.partialorder %v470, 0.0
  %vm596 = vcmp.ge.f32.partialorder %v473, 0.0
  %vm597 = vcmp.ge.f32.partialorder %v476, 0.0
  %vm598 = vcmp.ge.f32.partialorder %v479, 0.0
  %vm599 = vcmp.ge.f32.partialorder %v482, 0.0
  %vm600 = vcmp.ge.f32.partialorder %v485, 0.0
  %vm601 = vcmp.ge.f32.partialorder %v488, 0.0
  %vm602 = vcmp.ge.f32.partialorder %v491, 0.0
  %vm603 = vcmp.ge.f32.partialorder %v494, 0.0
  %vm604 = vcmp.ge.f32.partialorder %v497, 0.0
  %vm605 = vcmp.ge.f32.partialorder %v500, 0.0
  %vm606 = vcmp.ge.f32.partialorder %v503, 0.0
  %vm607 = vcmp.ge.f32.partialorder %v506, 0.0
  %vm608 = vcmp.ge.f32.partialorder %v509, 0.0
  %vm609 = vcmp.ge.f32.partialorder %v512, 0.0
  %vm610 = vcmp.ge.f32.partialorder %v515, 0.0
  %vm611 = vcmp.ge.f32.partialorder %v518, 0.0
  %vm612 = vcmp.ge.f32.partialorder %v521, 0.0
  %vm613 = vcmp.ge.f32.partialorder %v524, 0.0
  %vm614 = vcmp.ge.f32.partialorder %v527, 0.0
  %vm615 = vcmp.ge.f32.partialorder %v530, 0.0
  %vm616 = vcmp.ge.f32.partialorder %v533, 0.0
  %vm617 = vcmp.ge.f32.partialorder %v536, 0.0
  %vm618 = vcmp.ge.f32.partialorder %v539, 0.0
  %vm619 = vcmp.ge.f32.partialorder %v542, 0.0
  %vm620 = vcmp.ge.f32.partialorder %v545, 0.0
  %vm621 = vcmp.ge.f32.partialorder %v548, 0.0
  %v622 = vmul.f32 %v335, 0.01
  %v623 = vmul.f32 %v338, 0.01
  %v624 = vmul.f32 %v341, 0.01
  %v625 = vmul.f32 %v344, 0.01
  %v626 = vmul.f32 %v347, 0.01
  %v627 = vmul.f32 %v350, 0.01
  %v628 = vmul.f32 %v353, 0.01
  %v629 = vmul.f32 %v356, 0.01
  %v630 = vmul.f32 %v359, 0.01
  %v631 = vmul.f32 %v362, 0.01
  %v632 = vmul.f32 %v365, 0.01
  %v633 = vmul.f32 %v368, 0.01
  %v634 = vmul.f32 %v371, 0.01
  %v635 = vmul.f32 %v374, 0.01
  %v636 = vmul.f32 %v377, 0.01
  %v637 = vmul.f32 %v380, 0.01
  %v638 = vmul.f32 %v383, 0.01
  %v639 = vmul.f32 %v386, 0.01
  %v640 = vmul.f32 %v389, 0.01
  %v641 = vmul.f32 %v392, 0.01
  %v642 = vmul.f32 %v395, 0.01
  %v643 = vmul.f32 %v398, 0.01
  %v644 = vmul.f32 %v401, 0.01
  %v645 = vmul.f32 %v404, 0.01
  %v646 = vmul.f32 %v407, 0.01
  %v647 = vmul.f32 %v410, 0.01
  %v648 = vmul.f32 %v413, 0.01
  %v649 = vmul.f32 %v416, 0.01
  %v650 = vmul.f32 %v419, 0.01
  %v651 = vmul.f32 %v422, 0.01
  %v652 = vmul.f32 %v425, 0.01
  %v653 = vmul.f32 %v428, 0.01
  %v654 = vmul.f32 %v431, 0.01
  %v655 = vmul.f32 %v434, 0.01
  %v656 = vmul.f32 %v437, 0.01
  %v657 = vmul.f32 %v440, 0.01
  %v658 = vmul.f32 %v443, 0.01
  %v659 = vmul.f32 %v446, 0.01
  %v660 = vmul.f32 %v449, 0.01
  %v661 = vmul.f32 %v452, 0.01
  %v662 = vmul.f32 %v455, 0.01
  %v663 = vmul.f32 %v458, 0.01
  %v664 = vmul.f32 %v461, 0.01
  %v665 = vmul.f32 %v464, 0.01
  %v666 = vmul.f32 %v467, 0.01
  %v667 = vmul.f32 %v470, 0.01
  %v668 = vmul.f32 %v473, 0.01
  %v669 = vmul.f32 %v476, 0.01
  %v670 = vmul.f32 %v479, 0.01
  %v671 = vmul.f32 %v482, 0.01
  %v672 = vmul.f32 %v485, 0.01
  %v673 = vmul.f32 %v488, 0.01
  %v674 = vmul.f32 %v491, 0.01
  %v675 = vmul.f32 %v494, 0.01
  %v676 = vmul.f32 %v497, 0.01
  %v677 = vmul.f32 %v500, 0.01
  %v678 = vmul.f32 %v503, 0.01
  %v679 = vmul.f32 %v506, 0.01
  %v680 = vmul.f32 %v509, 0.01
  %v681 = vmul.f32 %v512, 0.01
  %v682 = vmul.f32 %v515, 0.01
  %v683 = vmul.f32 %v518, 0.01
  %v684 = vmul.f32 %v521, 0.01
  %v685 = vmul.f32 %v524, 0.01
  %v686 = vmul.f32 %v527, 0.01
  %v687 = vmul.f32 %v530, 0.01
  %v688 = vmul.f32 %v533, 0.01
  %v689 = vmul.f32 %v536, 0.01
  %v690 = vmul.f32 %v539, 0.01
  %v691 = vmul.f32 %v542, 0.01
  %v692 = vmul.f32 %v545, 0.01
  %v693 = vmul.f32 %v548, 0.01
  %v694 = vsel %vm550, %v335, %v622
  %v695 = vsel %vm551, %v338, %v623
  %v696 = vsel %vm552, %v341, %v624
  %v697 = vsel %vm553, %v344, %v625
  %v698 = vsel %vm554, %v347, %v626
  %v699 = vsel %vm555, %v350, %v627
  %v700 = vsel %vm556, %v353, %v628
  %v701 = vsel %vm557, %v356, %v629
  %v702 = vsel %vm558, %v359, %v630
  %v703 = vsel %vm559, %v362, %v631
  %v704 = vsel %vm560, %v365, %v632
  %v705 = vsel %vm561, %v368, %v633
  %v706 = vsel %vm562, %v371, %v634
  %v707 = vsel %vm563, %v374, %v635
  %v708 = vsel %vm564, %v377, %v636
  %v709 = vsel %vm565, %v380, %v637
  %v710 = vsel %vm566, %v383, %v638
  %v711 = vsel %vm567, %v386, %v639
  %v712 = vsel %vm568, %v389, %v640
  %v713 = vsel %vm569, %v392, %v641
  %v714 = vsel %vm570, %v395, %v642
  %v715 = vsel %vm571, %v398, %v643
  %v716 = vsel %vm572, %v401, %v644
  %v717 = vsel %vm573, %v404, %v645
  %v718 = vsel %vm574, %v407, %v646
  %v719 = vsel %vm575, %v410, %v647
  %v720 = vsel %vm576, %v413, %v648
  %v721 = vsel %vm577, %v416, %v649
  %v722 = vsel %vm578, %v419, %v650
  %v723 = vsel %vm579, %v422, %v651
  %v724 = vsel %vm580, %v425, %v652
  %v725 = vsel %vm581, %v428, %v653
  %v726 = vsel %vm582, %v431, %v654
  %v727 = vsel %vm583, %v434, %v655
  %v728 = vsel %vm584, %v437, %v656
  %v729 = vsel %vm585, %v440, %v657
  %v730 = vsel %vm586, %v443, %v658
  %v731 = vsel %vm587, %v446, %v659
  %v732 = vsel %vm588, %v449, %v660
  %v733 = vsel %vm589, %v452, %v661
  %v734 = vsel %vm590, %v455, %v662
  %v735 = vsel %vm591, %v458, %v663
  %v736 = vsel %vm592, %v461, %v664
  %v737 = vsel %vm593, %v464, %v665
  %v738 = vsel %vm594, %v467, %v666
  %v739 = vsel %vm595, %v470, %v667
  %v740 = vsel %vm596, %v473, %v668
  %v741 = vsel %vm597, %v476, %v669
  %v742 = vsel %vm598, %v479, %v670
  %v743 = vsel %vm599, %v482, %v671
  %v744 = vsel %vm600, %v485, %v672
  %v745 = vsel %vm601, %v488, %v673
  %v746 = vsel %vm602, %v491, %v674
  %v747 = vsel %vm603, %v494, %v675
  %v748 = vsel %vm604, %v497, %v676
  %v749 = vsel %vm605, %v500, %v677
  %v750 = vsel %vm606, %v503, %v678
  %v751 = vsel %vm607, %v506, %v679
  %v752 = vsel %vm608, %v509, %v680
  %v753 = vsel %vm609, %v512, %v681
  %v754 = vsel %vm610, %v515, %v682
  %v755 = vsel %vm611, %v518, %v683
  %v756 = vsel %vm612, %v521, %v684
  %v757 = vsel %vm613, %v524, %v685
  %v758 = vsel %vm614, %v527, %v686
  %v759 = vsel %vm615, %v530, %v687
  %v760 = vsel %vm616, %v533, %v688
  %v761 = vsel %vm617, %v536, %v689
  %v762 = vsel %vm618, %v539, %v690
  %v763 = vsel %vm619, %v542, %v691
  %v764 = vsel %vm620, %v545, %v692
  %v765 = vsel %vm621, %v548, %v693
  %vm766 = vcmask 261120
  %767 = vst.msk [vmem:[%s3] sm:$0xff] %vm766, %v694
  %768 = vst.msk [vmem:[%s3 + $0x8] sm:$0xff] %vm766, %v695
  %769 = vst.msk [vmem:[%s3 + $0x10] sm:$0xff] %vm766, %v696
  %770 = vst.msk [vmem:[%s3 + $0x18] sm:$0xff] %vm766, %v697
  %771 = vst.msk [vmem:[%s3 + $0x20] sm:$0xff] %vm766, %v698
  %772 = vst.msk [vmem:[%s3 + $0x28] sm:$0xff] %vm766, %v699
  %773 = vst.msk [vmem:[%s3 + $0x30] sm:$0xff] %vm766, %v700
  %774 = vst.msk [vmem:[%s3 + $0x38] sm:$0xff] %vm766, %v701
  %775 = vst.msk [vmem:[%s3 + $0x40] sm:$0xff] %vm766, %v702
  %776 = vst.msk [vmem:[%s3 + $0x48] sm:$0xff] %vm766, %v703
  %777 = vst.msk [vmem:[%s3 + $0x50] sm:$0xff] %vm766, %v704
  %778 = vst.msk [vmem:[%s3 + $0x58] sm:$0xff] %vm766, %v705
  %779 = vst.msk [vmem:[%s3 + $0x60] sm:$0xff] %vm766, %v706
  %780 = vst.msk [vmem:[%s3 + $0x68] sm:$0xff] %vm766, %v707
  %781 = vst.msk [vmem:[%s3 + $0x70] sm:$0xff] %vm766, %v708
  %782 = vst.msk [vmem:[%s3 + $0x78] sm:$0xff] %vm766, %v709
  %783 = vst.msk [vmem:[%s3 + $0x80] sm:$0xff] %vm766, %v710
  %784 = vst.msk [vmem:[%s3 + $0x88] sm:$0xff] %vm766, %v711
  %785 = vst.msk [vmem:[%s3 + $0x90] sm:$0xff] %vm766, %v712
  %786 = vst.msk [vmem:[%s3 + $0x98] sm:$0xff] %vm766, %v713
  %787 = vst.msk [vmem:[%s3 + $0xa0] sm:$0xff] %vm766, %v714
  %788 = vst.msk [vmem:[%s3 + $0xa8] sm:$0xff] %vm766, %v715
  %789 = vst.msk [vmem:[%s3 + $0xb0] sm:$0xff] %vm766, %v716
  %790 = vst.msk [vmem:[%s3 + $0xb8] sm:$0xff] %vm766, %v717
  %791 = vst.msk [vmem:[%s3 + $0xc0] sm:$0xff] %vm766, %v718
  %792 = vst.msk [vmem:[%s3 + $0xc8] sm:$0xff] %vm766, %v719
  %793 = vst.msk [vmem:[%s3 + $0xd0] sm:$0xff] %vm766, %v720
  %794 = vst.msk [vmem:[%s3 + $0xd8] sm:$0xff] %vm766, %v721
  %795 = vst.msk [vmem:[%s3 + $0xe0] sm:$0xff] %vm766, %v722
  %796 = vst.msk [vmem:[%s3 + $0xe8] sm:$0xff] %vm766, %v723
  %797 = vst.msk [vmem:[%s3 + $0xf0] sm:$0xff] %vm766, %v724
  %798 = vst.msk [vmem:[%s3 + $0xf8] sm:$0xff] %vm766, %v725
  %799 = vst.msk [vmem:[%s3 + $0x100] sm:$0xff] %vm766, %v726
  %800 = vst.msk [vmem:[%s3 + $0x108] sm:$0xff] %vm766, %v727
  %801 = vst.msk [vmem:[%s3 + $0x110] sm:$0xff] %vm766, %v728
  %802 = vst.msk [vmem:[%s3 + $0x118] sm:$0xff] %vm766, %v729
  %803 = vst.msk [vmem:[%s3 + $0x120] sm:$0xff] %vm766, %v730
  %804 = vst.msk [vmem:[%s3 + $0x128] sm:$0xff] %vm766, %v731
  %805 = vst.msk [vmem:[%s3 + $0x130] sm:$0xff] %vm766, %v732
  %806 = vst.msk [vmem:[%s3 + $0x138] sm:$0xff] %vm766, %v733
  %807 = vst.msk [vmem:[%s3 + $0x140] sm:$0xff] %vm766, %v734
  %808 = vst.msk [vmem:[%s3 + $0x148] sm:$0xff] %vm766, %v735
  %809 = vst.msk [vmem:[%s3 + $0x150] sm:$0xff] %vm766, %v736
  %810 = vst.msk [vmem:[%s3 + $0x158] sm:$0xff] %vm766, %v737
  %811 = vst.msk [vmem:[%s3 + $0x160] sm:$0xff] %vm766, %v738
  %812 = vst.msk [vmem:[%s3 + $0x168] sm:$0xff] %vm766, %v739
  %813 = vst.msk [vmem:[%s3 + $0x170] sm:$0xff] %vm766, %v740
  %814 = vst.msk [vmem:[%s3 + $0x178] sm:$0xff] %vm766, %v741
  %815 = vst.msk [vmem:[%s3 + $0x180] sm:$0xff] %vm766, %v742
  %816 = vst.msk [vmem:[%s3 + $0x188] sm:$0xff] %vm766, %v743
  %817 = vst.msk [vmem:[%s3 + $0x190] sm:$0xff] %vm766, %v744
  %818 = vst.msk [vmem:[%s3 + $0x198] sm:$0xff] %vm766, %v745
  %819 = vst.msk [vmem:[%s3 + $0x1a0] sm:$0xff] %vm766, %v746
  %820 = vst.msk [vmem:[%s3 + $0x1a8] sm:$0xff] %vm766, %v747
  %821 = vst.msk [vmem:[%s3 + $0x1b0] sm:$0xff] %vm766, %v748
  %822 = vst.msk [vmem:[%s3 + $0x1b8] sm:$0xff] %vm766, %v749
  %823 = vst.msk [vmem:[%s3 + $0x1c0] sm:$0xff] %vm766, %v750
  %824 = vst.msk [vmem:[%s3 + $0x1c8] sm:$0xff] %vm766, %v751
  %825 = vst.msk [vmem:[%s3 + $0x1d0] sm:$0xff] %vm766, %v752
  %826 = vst.msk [vmem:[%s3 + $0x1d8] sm:$0xff] %vm766, %v753
  %827 = vst.msk [vmem:[%s3 + $0x1e0] sm:$0xff] %vm766, %v754
  %828 = vst.msk [vmem:[%s3 + $0x1e8] sm:$0xff] %vm766, %v755
  %829 = vst.msk [vmem:[%s3 + $0x1f0] sm:$0xff] %vm766, %v756
  %830 = vst.msk [vmem:[%s3 + $0x1f8] sm:$0xff] %vm766, %v757
  %831 = vst.msk [vmem:[%s3 + $0x200] sm:$0xff] %vm766, %v758
  %832 = vst.msk [vmem:[%s3 + $0x208] sm:$0xff] %vm766, %v759
  %833 = vst.msk [vmem:[%s3 + $0x210] sm:$0xff] %vm766, %v760
  %834 = vst.msk [vmem:[%s3 + $0x218] sm:$0xff] %vm766, %v761
  %835 = vst.msk [vmem:[%s3 + $0x220] sm:$0xff] %vm766, %v762
  %836 = vst.msk [vmem:[%s3 + $0x228] sm:$0xff] %vm766, %v763
  %837 = vst.msk [vmem:[%s3 + $0x230] sm:$0xff] %vm766, %v764
  %838 = vst.msk [vmem:[%s3 + $0x238] sm:$0xff] %vm766, %v765
  // Predicated region
  $region14: #{mtrnn_forward.13} parent=0 // pred_check
    _
  $region15: #{mtrnn_forward.13} parent=0 // pred_check_branch
    %840 = sbr.rel (0) target = $region17
  $region16: #{mtrnn_forward.13} parent=0 // pred_region
    _
  $region17: #{mtrnn_forward.13} parent=0 // pred_fallthru
    _
  // Predicated region
  $region18: #{mtrnn_forward.13} parent=0 // pred_check
    _
  $region19: #{mtrnn_forward.13} parent=0 // pred_check_branch
    %842 = sbr.rel (0) target = $region21
  $region20: #{mtrnn_forward.13} parent=0 // pred_region
    _
  $region21: #{mtrnn_forward.13} parent=0 // pred_fallthru
    _

// kernel: mtrnn_forward.14
$region0: #{mtrnn_forward.14}
  #allocation0 [shape = 'u32[]', space=smem, size = 0x4, offset = 0x4, fixed_abs, tag = 'smem constant byte address 0x4 - core index']
  #allocation1 [shape = 'u32[72,128]{1,0:T(1,128)}', space=vmem, size = 0x9000, scoped, tag = 'internal scratch']
  %s0 = inlined_call_operand.vmem [shape: f32[784,288], index: 0, kind: input, shape index: {}]
  %s1 = inlined_call_operand.vmem [shape: f32[288,16], index: 1, kind: input, shape index: {}]
  %s2 = inlined_call_operand.vmem [shape: f32[1,16], index: 2, kind: input, shape index: {}]
  %s3 = inlined_call_operand.vmem [shape: f32[784,16], index: 3, kind: output, shape index: {}]
  %s4 = sld [smem:[#allocation0]]
  $region22: #{mtrnn_forward.14} parent=0
    _
  %s6 = ssub.s32 1, %s4
  %s7 = scalar_select 0, %s6, %s4
  // Predicated region
  $region2: #{mtrnn_forward.14} parent=0 // pred_check
    _
  $region3: #{mtrnn_forward.14} parent=0 // pred_check_branch
    %9 = sbr.rel (0) target = $region5
  $region4: #{mtrnn_forward.14} parent=0 // pred_region
    _
  $region5: #{mtrnn_forward.14} parent=0 // pred_fallthru
    _
  // Predicated region
  $region6: #{mtrnn_forward.14} parent=0 // pred_check
    _
  $region7: #{mtrnn_forward.14} parent=0 // pred_check_branch
    %11 = sbr.rel (0) target = $region9
  $region8: #{mtrnn_forward.14} parent=0 // pred_region
    _
  $region9: #{mtrnn_forward.14} parent=0 // pred_fallthru
    _
  // Predicated region
  $region10: #{mtrnn_forward.14} parent=0 // pred_check
    _
  $region11: #{mtrnn_forward.14} parent=0 // pred_check_branch
    %13 = sbr.rel (0) target = $region13
  $region12: #{mtrnn_forward.14} parent=0 // pred_region
    _
  $region13: #{mtrnn_forward.14} parent=0 // pred_fallthru
    _
  %v14 = vld [vmem:[%s0] sm:$0xff]
  %v15 = vld [vmem:[%s0 + $0x8] sm:$0xff]
  %v16 = vld [vmem:[%s0 + $0x10] sm:$0xff]
  %v17 = vld [vmem:[%s0 + $0x18] sm:$0xff]
  %v18 = vld [vmem:[%s0 + $0x20] sm:$0xff]
  %v19 = vld [vmem:[%s0 + $0x28] sm:$0xff]
  %v20 = vld [vmem:[%s0 + $0x30] sm:$0xff]
  %v21 = vld [vmem:[%s0 + $0x38] sm:$0xff]
  %v22 = vld [vmem:[%s0 + $0x40] sm:$0xff]
  %v23 = vld [vmem:[%s0 + $0x48] sm:$0xff]
  %v24 = vld [vmem:[%s0 + $0x50] sm:$0xff]
  %v25 = vld [vmem:[%s0 + $0x58] sm:$0xff]
  %v26 = vld [vmem:[%s0 + $0x60] sm:$0xff]
  %v27 = vld [vmem:[%s0 + $0x68] sm:$0xff]
  %v28 = vld [vmem:[%s0 + $0x70] sm:$0xff]
  %v29 = vld [vmem:[%s0 + $0x78] sm:$0xff]
  %v30 = vld [vmem:[%s0 + $0x80] sm:$0xff]
  %v31 = vld [vmem:[%s0 + $0x88] sm:$0xff]
  %v32 = vld [vmem:[%s0 + $0x90] sm:$0xff]
  %v33 = vld [vmem:[%s0 + $0x98] sm:$0xff]
  %v34 = vld [vmem:[%s0 + $0xa0] sm:$0xff]
  %v35 = vld [vmem:[%s0 + $0xa8] sm:$0xff]
  %v36 = vld [vmem:[%s0 + $0xb0] sm:$0xff]
  %v37 = vld [vmem:[%s0 + $0xb8] sm:$0xff]
  %v38 = vld [vmem:[%s0 + $0xc0] sm:$0xff]
  %v39 = vld [vmem:[%s0 + $0xc8] sm:$0xff]
  %v40 = vld [vmem:[%s0 + $0xd0] sm:$0xff]
  %v41 = vld [vmem:[%s0 + $0xd8] sm:$0xff]
  %v42 = vld [vmem:[%s0 + $0xe0] sm:$0xff]
  %v43 = vld [vmem:[%s0 + $0xe8] sm:$0xff]
  %v44 = vld [vmem:[%s0 + $0xf0] sm:$0xff]
  %v45 = vld [vmem:[%s0 + $0xf8] sm:$0xff]
  %v46 = vld [vmem:[%s0 + $0x100] sm:$0xff]
  %v47 = vld [vmem:[%s0 + $0x108] sm:$0xff]
  %v48 = vld [vmem:[%s0 + $0x110] sm:$0xff]
  %v49 = vld [vmem:[%s0 + $0x118] sm:$0xff]
  %v50 = vld [vmem:[%s0 + $0x120] sm:$0xff]
  %v51 = vld [vmem:[%s0 + $0x128] sm:$0xff]
  %v52 = vld [vmem:[%s0 + $0x130] sm:$0xff]
  %v53 = vld [vmem:[%s0 + $0x138] sm:$0xff]
  %v54 = vld [vmem:[%s0 + $0x140] sm:$0xff]
  %v55 = vld [vmem:[%s0 + $0x148] sm:$0xff]
  %v56 = vld [vmem:[%s0 + $0x150] sm:$0xff]
  %v57 = vld [vmem:[%s0 + $0x158] sm:$0xff]
  %v58 = vld [vmem:[%s0 + $0x160] sm:$0xff]
  %v59 = vld [vmem:[%s0 + $0x168] sm:$0xff]
  %v60 = vld [vmem:[%s0 + $0x170] sm:$0xff]
  %v61 = vld [vmem:[%s0 + $0x178] sm:$0xff]
  %v62 = vld [vmem:[%s0 + $0x180] sm:$0xff]
  %v63 = vld [vmem:[%s0 + $0x188] sm:$0xff]
  %v64 = vld [vmem:[%s0 + $0x190] sm:$0xff]
  %v65 = vld [vmem:[%s0 + $0x198] sm:$0xff]
  %v66 = vld [vmem:[%s0 + $0x1a0] sm:$0xff]
  %v67 = vld [vmem:[%s0 + $0x1a8] sm:$0xff]
  %v68 = vld [vmem:[%s0 + $0x1b0] sm:$0xff]
  %v69 = vld [vmem:[%s0 + $0x1b8] sm:$0xff]
  %v70 = vld [vmem:[%s0 + $0x1c0] sm:$0xff]
  %v71 = vld [vmem:[%s0 + $0x1c8] sm:$0xff]
  %v72 = vld [vmem:[%s0 + $0x1d0] sm:$0xff]
  %v73 = vld [vmem:[%s0 + $0x1d8] sm:$0xff]
  %v74 = vld [vmem:[%s0 + $0x1e0] sm:$0xff]
  %v75 = vld [vmem:[%s0 + $0x1e8] sm:$0xff]
  %v76 = vld [vmem:[%s0 + $0x1f0] sm:$0xff]
  %v77 = vld [vmem:[%s0 + $0x1f8] sm:$0xff]
  %v78 = vld [vmem:[%s0 + $0x200] sm:$0xff]
  %v79 = vld [vmem:[%s0 + $0x208] sm:$0xff]
  %v80 = vld [vmem:[%s0 + $0x210] sm:$0xff]
  %v81 = vld [vmem:[%s0 + $0x218] sm:$0xff]
  %v82 = vld [vmem:[%s0 + $0x220] sm:$0xff]
  %v83 = vld [vmem:[%s0 + $0x228] sm:$0xff]
  %v84 = vld [vmem:[%s0 + $0x230] sm:$0xff]
  %v85 = vld [vmem:[%s0 + $0x238] sm:$0xff]
  %v86 = vld [vmem:[%s0 + $0x240] sm:$0xff]
  %v87 = vld [vmem:[%s0 + $0x248] sm:$0xff]
  %v88 = vld [vmem:[%s0 + $0x250] sm:$0xff]
  %v89 = vld [vmem:[%s0 + $0x258] sm:$0xff]
  %v90 = vld [vmem:[%s0 + $0x260] sm:$0xff]
  %v91 = vld [vmem:[%s0 + $0x268] sm:$0xff]
  %v92 = vld [vmem:[%s0 + $0x270] sm:$0xff]
  %v93 = vld [vmem:[%s0 + $0x278] sm:$0xff]
  %v94 = vld [vmem:[%s0 + $0x280] sm:$0xff]
  %v95 = vld [vmem:[%s0 + $0x288] sm:$0xff]
  %v96 = vld [vmem:[%s0 + $0x290] sm:$0xff]
  %v97 = vld [vmem:[%s0 + $0x298] sm:$0xff]
  %v98 = vld [vmem:[%s0 + $0x2a0] sm:$0xff]
  %v99 = vld [vmem:[%s0 + $0x2a8] sm:$0xff]
  %v100 = vld [vmem:[%s0 + $0x2b0] sm:$0xff]
  %v101 = vld [vmem:[%s0 + $0x2b8] sm:$0xff]
  %v102 = vld [vmem:[%s0 + $0x2c0] sm:$0xff]
  %v103 = vld [vmem:[%s0 + $0x2c8] sm:$0xff]
  %v104 = vld [vmem:[%s0 + $0x2d0] sm:$0xff]
  %v105 = vld [vmem:[%s0 + $0x2d8] sm:$0xff]
  %v106 = vld [vmem:[%s0 + $0x2e0] sm:$0xff]
  %v107 = vld [vmem:[%s0 + $0x2e8] sm:$0xff]
  %v108 = vld [vmem:[%s0 + $0x2f0] sm:$0xff]
  %v109 = vld [vmem:[%s0 + $0x2f8] sm:$0xff]
  %v110 = vld [vmem:[%s0 + $0x300] sm:$0xff]
  %v111 = vld [vmem:[%s0 + $0x308] sm:$0xff]
  %v112 = vld [vmem:[%s0 + $0x310] sm:$0xff]
  %v113 = vld [vmem:[%s0 + $0x318] sm:$0xff]
  %v114 = vld [vmem:[%s0 + $0x320] sm:$0xff]
  %v115 = vld [vmem:[%s0 + $0x328] sm:$0xff]
  %v116 = vld [vmem:[%s0 + $0x330] sm:$0xff]
  %v117 = vld [vmem:[%s0 + $0x338] sm:$0xff]
  %v118 = vld [vmem:[%s0 + $0x340] sm:$0xff]
  %v119 = vld [vmem:[%s0 + $0x348] sm:$0xff]
  %v120 = vld [vmem:[%s0 + $0x350] sm:$0xff]
  %v121 = vld [vmem:[%s0 + $0x358] sm:$0xff]
  %v122 = vld [vmem:[%s0 + $0x360] sm:$0xff]
  %v123 = vld [vmem:[%s0 + $0x368] sm:$0xff]
  %v124 = vld [vmem:[%s0 + $0x370] sm:$0xff]
  %v125 = vld [vmem:[%s0 + $0x378] sm:$0xff]
  %v126 = vld [vmem:[%s0 + $0x380] sm:$0xff]
  %v127 = vld [vmem:[%s0 + $0x388] sm:$0xff]
  %v128 = vld [vmem:[%s0 + $0x390] sm:$0xff]
  %v129 = vld [vmem:[%s0 + $0x398] sm:$0xff]
  %v130 = vld [vmem:[%s0 + $0x3a0] sm:$0xff]
  %v131 = vld [vmem:[%s0 + $0x3a8] sm:$0xff]
  %v132 = vld [vmem:[%s0 + $0x3b0] sm:$0xff]
  %v133 = vld [vmem:[%s0 + $0x3b8] sm:$0xff]
  %v134 = vld [vmem:[%s0 + $0x3c0] sm:$0xff]
  %v135 = vld [vmem:[%s0 + $0x3c8] sm:$0xff]
  %v136 = vld [vmem:[%s0 + $0x3d0] sm:$0xff]
  %v137 = vld [vmem:[%s0 + $0x3d8] sm:$0xff]
  %v138 = vld [vmem:[%s0 + $0x3e0] sm:$0xff]
  %v139 = vld [vmem:[%s0 + $0x3e8] sm:$0xff]
  %v140 = vld [vmem:[%s0 + $0x3f0] sm:$0xff]
  %v141 = vld [vmem:[%s0 + $0x3f8] sm:$0xff]
  %v142 = vld [vmem:[%s0 + $0x400] sm:$0xff]
  %v143 = vld [vmem:[%s0 + $0x408] sm:$0xff]
  %v144 = vld [vmem:[%s0 + $0x410] sm:$0xff]
  %v145 = vld [vmem:[%s0 + $0x418] sm:$0xff]
  %v146 = vld [vmem:[%s0 + $0x420] sm:$0xff]
  %v147 = vld [vmem:[%s0 + $0x428] sm:$0xff]
  %v148 = vld [vmem:[%s0 + $0x430] sm:$0xff]
  %v149 = vld [vmem:[%s0 + $0x438] sm:$0xff]
  %v150 = vld [vmem:[%s0 + $0x440] sm:$0xff]
  %v151 = vld [vmem:[%s0 + $0x448] sm:$0xff]
  %v152 = vld [vmem:[%s0 + $0x450] sm:$0xff]
  %v153 = vld [vmem:[%s0 + $0x458] sm:$0xff]
  %v154 = vld [vmem:[%s0 + $0x460] sm:$0xff]
  %v155 = vld [vmem:[%s0 + $0x468] sm:$0xff]
  %v156 = vld [vmem:[%s0 + $0x470] sm:$0xff]
  %v157 = vld [vmem:[%s0 + $0x478] sm:$0xff]
  %v158 = vld [vmem:[%s0 + $0x480] sm:$0xff]
  %v159 = vld [vmem:[%s0 + $0x488] sm:$0xff]
  %v160 = vld [vmem:[%s0 + $0x490] sm:$0xff]
  %v161 = vld [vmem:[%s0 + $0x498] sm:$0xff]
  %v162 = vld [vmem:[%s0 + $0x4a0] sm:$0xff]
  %v163 = vld [vmem:[%s0 + $0x4a8] sm:$0xff]
  %v164 = vld [vmem:[%s0 + $0x4b0] sm:$0xff]
  %v165 = vld [vmem:[%s0 + $0x4b8] sm:$0xff]
  %v166 = vld [vmem:[%s0 + $0x4c0] sm:$0xff]
  %v167 = vld [vmem:[%s0 + $0x4c8] sm:$0xff]
  %v168 = vld [vmem:[%s0 + $0x4d0] sm:$0xff]
  %v169 = vld [vmem:[%s0 + $0x4d8] sm:$0xff]
  %v170 = vld [vmem:[%s0 + $0x4e0] sm:$0xff]
  %v171 = vld [vmem:[%s0 + $0x4e8] sm:$0xff]
  %v172 = vld [vmem:[%s0 + $0x4f0] sm:$0xff]
  %v173 = vld [vmem:[%s0 + $0x4f8] sm:$0xff]
  %v174 = vld [vmem:[%s0 + $0x500] sm:$0xff]
  %v175 = vld [vmem:[%s0 + $0x508] sm:$0xff]
  %v176 = vld [vmem:[%s0 + $0x510] sm:$0xff]
  %v177 = vld [vmem:[%s0 + $0x518] sm:$0xff]
  %v178 = vld [vmem:[%s0 + $0x520] sm:$0xff]
  %v179 = vld [vmem:[%s0 + $0x528] sm:$0xff]
  %v180 = vld [vmem:[%s0 + $0x530] sm:$0xff]
  %v181 = vld [vmem:[%s0 + $0x538] sm:$0xff]
  %v182 = vld [vmem:[%s0 + $0x540] sm:$0xff]
  %v183 = vld [vmem:[%s0 + $0x548] sm:$0xff]
  %v184 = vld [vmem:[%s0 + $0x550] sm:$0xff]
  %v185 = vld [vmem:[%s0 + $0x558] sm:$0xff]
  %v186 = vld [vmem:[%s0 + $0x560] sm:$0xff]
  %v187 = vld [vmem:[%s0 + $0x568] sm:$0xff]
  %v188 = vld [vmem:[%s0 + $0x570] sm:$0xff]
  %v189 = vld [vmem:[%s0 + $0x578] sm:$0xff]
  %v190 = vld [vmem:[%s0 + $0x580] sm:$0xff]
  %v191 = vld [vmem:[%s0 + $0x588] sm:$0xff]
  %v192 = vld [vmem:[%s0 + $0x590] sm:$0xff]
  %v193 = vld [vmem:[%s0 + $0x598] sm:$0xff]
  %v194 = vld [vmem:[%s0 + $0x5a0] sm:$0xff]
  %v195 = vld [vmem:[%s0 + $0x5a8] sm:$0xff]
  %v196 = vld [vmem:[%s0 + $0x5b0] sm:$0xff]
  %v197 = vld [vmem:[%s0 + $0x5b8] sm:$0xff]
  %v198 = vld [vmem:[%s0 + $0x5c0] sm:$0xff]
  %v199 = vld [vmem:[%s0 + $0x5c8] sm:$0xff]
  %v200 = vld [vmem:[%s0 + $0x5d0] sm:$0xff]
  %v201 = vld [vmem:[%s0 + $0x5d8] sm:$0xff]
  %v202 = vld [vmem:[%s0 + $0x5e0] sm:$0xff]
  %v203 = vld [vmem:[%s0 + $0x5e8] sm:$0xff]
  %v204 = vld [vmem:[%s0 + $0x5f0] sm:$0xff]
  %v205 = vld [vmem:[%s0 + $0x5f8] sm:$0xff]
  %v206 = vld [vmem:[%s0 + $0x600] sm:$0xff]
  %v207 = vld [vmem:[%s0 + $0x608] sm:$0xff]
  %v208 = vld [vmem:[%s0 + $0x610] sm:$0xff]
  %v209 = vld [vmem:[%s0 + $0x618] sm:$0xff]
  %v210 = vld [vmem:[%s0 + $0x620] sm:$0xff]
  %v211 = vld [vmem:[%s0 + $0x628] sm:$0xff]
  %v212 = vld [vmem:[%s0 + $0x630] sm:$0xff]
  %v213 = vld [vmem:[%s0 + $0x638] sm:$0xff]
  %v214 = vld [vmem:[%s0 + $0x640] sm:$0xff]
  %v215 = vld [vmem:[%s0 + $0x648] sm:$0xff]
  %v216 = vld [vmem:[%s0 + $0x650] sm:$0xff]
  %v217 = vld [vmem:[%s0 + $0x658] sm:$0xff]
  %v218 = vld [vmem:[%s0 + $0x660] sm:$0xff]
  %v219 = vld [vmem:[%s0 + $0x668] sm:$0xff]
  %v220 = vld [vmem:[%s0 + $0x670] sm:$0xff]
  %v221 = vld [vmem:[%s0 + $0x678] sm:$0xff]
  %v222 = vld [vmem:[%s0 + $0x680] sm:$0xff]
  %v223 = vld [vmem:[%s0 + $0x688] sm:$0xff]
  %v224 = vld [vmem:[%s0 + $0x690] sm:$0xff]
  %v225 = vld [vmem:[%s0 + $0x698] sm:$0xff]
  %v226 = vld [vmem:[%s0 + $0x6a0] sm:$0xff]
  %v227 = vld [vmem:[%s0 + $0x6a8] sm:$0xff]
  %v228 = vld [vmem:[%s0 + $0x6b0] sm:$0xff]
  %v229 = vld [vmem:[%s0 + $0x6b8] sm:$0xff]
  %v230 = vld [vmem:[%s0 + $0x6c0] sm:$0xff]
  %v231 = vld [vmem:[%s0 + $0x6c8] sm:$0xff]
  %v232 = vld [vmem:[%s0 + $0x6d0] sm:$0xff]
  %v233 = vld [vmem:[%s0 + $0x6d8] sm:$0xff]
  %v234 = vld [vmem:[%s0 + $0x6e0] sm:$0xff]
  %v235 = vld [vmem:[%s0 + $0x6e8] sm:$0xff]
  %v236 = vld [vmem:[%s0 + $0x6f0] sm:$0xff]
  %v237 = vld [vmem:[%s0 + $0x6f8] sm:$0xff]
  %v238 = vld [vmem:[%s0 + $0x700] sm:$0xff]
  %v239 = vld [vmem:[%s0 + $0x708] sm:$0xff]
  %v240 = vld [vmem:[%s0 + $0x710] sm:$0xff]
  %v241 = vld [vmem:[%s0 + $0x718] sm:$0xff]
  %v242 = vld [vmem:[%s0 + $0x720] sm:$0xff]
  %v243 = vld [vmem:[%s0 + $0x728] sm:$0xff]
  %v244 = vld [vmem:[%s0 + $0x730] sm:$0xff]
  %v245 = vld [vmem:[%s0 + $0x738] sm:$0xff]
  %v246 = vld [vmem:[%s0 + $0x740] sm:$0xff]
  %v247 = vld [vmem:[%s0 + $0x748] sm:$0xff]
  %v248 = vld [vmem:[%s0 + $0x750] sm:$0xff]
  %v249 = vld [vmem:[%s0 + $0x758] sm:$0xff]
  %v250 = vld [vmem:[%s0 + $0x760] sm:$0xff]
  %v251 = vld [vmem:[%s0 + $0x768] sm:$0xff]
  %v252 = vld [vmem:[%s0 + $0x770] sm:$0xff]
  %v253 = vld [vmem:[%s0 + $0x778] sm:$0xff]
  %v254 = vld [vmem:[%s0 + $0x780] sm:$0xff]
  %v255 = vld [vmem:[%s0 + $0x788] sm:$0xff]
  %v256 = vld [vmem:[%s0 + $0x790] sm:$0xff]
  %v257 = vld [vmem:[%s0 + $0x798] sm:$0xff]
  %v258 = vld [vmem:[%s0 + $0x7a0] sm:$0xff]
  %v259 = vld [vmem:[%s0 + $0x7a8] sm:$0xff]
  %v260 = vld [vmem:[%s0 + $0x7b0] sm:$0xff]
  %v261 = vld [vmem:[%s0 + $0x7b8] sm:$0xff]
  %v262 = vld [vmem:[%s0 + $0x7c0] sm:$0xff]
  %v263 = vld [vmem:[%s0 + $0x7c8] sm:$0xff]
  %v264 = vld [vmem:[%s0 + $0x7d0] sm:$0xff]
  %v265 = vld [vmem:[%s0 + $0x7d8] sm:$0xff]
  %v266 = vld [vmem:[%s0 + $0x7e0] sm:$0xff]
  %v267 = vld [vmem:[%s0 + $0x7e8] sm:$0xff]
  %v268 = vld [vmem:[%s0 + $0x7f0] sm:$0xff]
  %v269 = vld [vmem:[%s0 + $0x7f8] sm:$0xff]
  %v270 = vld [vmem:[%s0 + $0x800] sm:$0xff]
  %v271 = vld [vmem:[%s0 + $0x808] sm:$0xff]
  %v272 = vld [vmem:[%s0 + $0x810] sm:$0xff]
  %v273 = vld [vmem:[%s0 + $0x818] sm:$0xff]
  %v274 = vld [vmem:[%s0 + $0x820] sm:$0xff]
  %v275 = vld [vmem:[%s0 + $0x828] sm:$0xff]
  %v276 = vld [vmem:[%s0 + $0x830] sm:$0xff]
  %v277 = vld [vmem:[%s0 + $0x838] sm:$0xff]
  %v278 = vld [vmem:[%s0 + $0x840] sm:$0xff]
  %v279 = vld [vmem:[%s0 + $0x848] sm:$0xff]
  %v280 = vld [vmem:[%s0 + $0x850] sm:$0xff]
  %v281 = vld [vmem:[%s0 + $0x858] sm:$0xff]
  %v282 = vld [vmem:[%s0 + $0x860] sm:$0xff]
  %v283 = vld [vmem:[%s0 + $0x868] sm:$0xff]
  %v284 = vld [vmem:[%s0 + $0x870] sm:$0xff]
  %v285 = vld [vmem:[%s0 + $0x878] sm:$0xff]
  %v286 = vld [vmem:[%s0 + $0x880] sm:$0xff]
  %v287 = vld [vmem:[%s0 + $0x888] sm:$0xff]
  %v288 = vld [vmem:[%s0 + $0x890] sm:$0xff]
  %v289 = vld [vmem:[%s0 + $0x898] sm:$0xff]
  %v290 = vld [vmem:[%s0 + $0x8a0] sm:$0xff]
  %v291 = vld [vmem:[%s0 + $0x8a8] sm:$0xff]
  %v292 = vld [vmem:[%s0 + $0x8b0] sm:$0xff]
  %v293 = vld [vmem:[%s0 + $0x8b8] sm:$0xff]
  %v294 = vld [vmem:[%s0 + $0x8c0] sm:$0xff]
  %v295 = vld [vmem:[%s0 + $0x8c8] sm:$0xff]
  %v296 = vld [vmem:[%s0 + $0x8d0] sm:$0xff]
  %v297 = vld [vmem:[%s0 + $0x8d8] sm:$0xff]
  %v298 = vld [vmem:[%s0 + $0x8e0] sm:$0xff]
  %v299 = vld [vmem:[%s0 + $0x8e8] sm:$0xff]
  %v300 = vld [vmem:[%s0 + $0x8f0] sm:$0xff]
  %v301 = vld [vmem:[%s0 + $0x8f8] sm:$0xff]
  %v302 = vld [vmem:[%s0 + $0x900] sm:$0xff]
  %v303 = vld [vmem:[%s0 + $0x908] sm:$0xff]
  %v304 = vld [vmem:[%s0 + $0x910] sm:$0xff]
  %v305 = vld [vmem:[%s0 + $0x918] sm:$0xff]
  %v306 = vld [vmem:[%s0 + $0x920] sm:$0xff]
  %v307 = vld [vmem:[%s0 + $0x928] sm:$0xff]
  %v308 = vld [vmem:[%s1] sm:$0xff]
  %v309 = vld [vmem:[%s1 + $0x8] sm:$0xff]
  %v310 = vld [vmem:[%s1 + $0x10] sm:$0xff]
  %v311 = vld [vmem:[%s1 + $0x18] sm:$0xff]
  %v312 = vld [vmem:[%s1 + $0x20] sm:$0xff]
  %v313 = vld [vmem:[%s1 + $0x28] sm:$0xff]
  %v314 = vld [vmem:[%s1 + $0x30] sm:$0xff]
  %v315 = vld [vmem:[%s1 + $0x38] sm:$0xff]
  %v316 = vld [vmem:[%s1 + $0x40] sm:$0xff]
  %v317 = vld [vmem:[%s1 + $0x48] sm:$0xff]
  %v318 = vld [vmem:[%s1 + $0x50] sm:$0xff]
  %v319 = vld [vmem:[%s1 + $0x58] sm:$0xff]
  %v320 = vld [vmem:[%s1 + $0x60] sm:$0xff]
  %v321 = vld [vmem:[%s1 + $0x68] sm:$0xff]
  %v322 = vld [vmem:[%s1 + $0x70] sm:$0xff]
  %v323 = vld [vmem:[%s1 + $0x78] sm:$0xff]
  %v324 = vld [vmem:[%s1 + $0x80] sm:$0xff]
  %v325 = vld [vmem:[%s1 + $0x88] sm:$0xff]
  %v326 = vld [vmem:[%s1 + $0x90] sm:$0xff]
  %v327 = vld [vmem:[%s1 + $0x98] sm:$0xff]
  %v328 = vld [vmem:[%s1 + $0xa0] sm:$0xff]
  %v329 = vld [vmem:[%s1 + $0xa8] sm:$0xff]
  %v330 = vld [vmem:[%s1 + $0xb0] sm:$0xff]
  %v331 = vld [vmem:[%s1 + $0xb8] sm:$0xff]
  %v332 = vld [vmem:[%s1 + $0xc0] sm:$0xff]
  %v333 = vld [vmem:[%s1 + $0xc8] sm:$0xff]
  %v334 = vld [vmem:[%s1 + $0xd0] sm:$0xff]
  %v335 = vld [vmem:[%s1 + $0xd8] sm:$0xff]
  %v336 = vld [vmem:[%s1 + $0xe0] sm:$0xff]
  %v337 = vld [vmem:[%s1 + $0xe8] sm:$0xff]
  %v338 = vld [vmem:[%s1 + $0xf0] sm:$0xff]
  %v339 = vld [vmem:[%s1 + $0xf8] sm:$0xff]
  %v340 = vld [vmem:[%s1 + $0x100] sm:$0xff]
  %v341 = vld [vmem:[%s1 + $0x108] sm:$0xff]
  %v342 = vld [vmem:[%s1 + $0x110] sm:$0xff]
  %v343 = vld [vmem:[%s1 + $0x118] sm:$0xff]
  %v344 = vld [vmem:[%s2] sm:$0x1]
  %v346 = vperm.slane %v344, 0
  %vm348 = vcmask 261120
  %v350 = vsel %vm348, %v16, 0
  %v353 = vsel %vm348, %v19, 0
  %v356 = vsel %vm348, %v22, 0
  %v359 = vsel %vm348, %v25, 0
  %v362 = vsel %vm348, %v28, 0
  %v365 = vsel %vm348, %v31, 0
  %v368 = vsel %vm348, %v34, 0
  %v371 = vsel %vm348, %v37, 0
  %v374 = vsel %vm348, %v40, 0
  %v377 = vsel %vm348, %v43, 0
  %v380 = vsel %vm348, %v46, 0
  %v383 = vsel %vm348, %v49, 0
  %v386 = vsel %vm348, %v52, 0
  %v389 = vsel %vm348, %v55, 0
  %v392 = vsel %vm348, %v58, 0
  %v395 = vsel %vm348, %v61, 0
  %v398 = vsel %vm348, %v64, 0
  %v401 = vsel %vm348, %v67, 0
  %v404 = vsel %vm348, %v70, 0
  %v407 = vsel %vm348, %v73, 0
  %v410 = vsel %vm348, %v76, 0
  %v413 = vsel %vm348, %v79, 0
  %v416 = vsel %vm348, %v82, 0
  %v419 = vsel %vm348, %v85, 0
  %v422 = vsel %vm348, %v88, 0
  %v425 = vsel %vm348, %v91, 0
  %v428 = vsel %vm348, %v94, 0
  %v431 = vsel %vm348, %v97, 0
  %v434 = vsel %vm348, %v100, 0
  %v437 = vsel %vm348, %v103, 0
  %v440 = vsel %vm348, %v106, 0
  %v443 = vsel %vm348, %v109, 0
  %v446 = vsel %vm348, %v112, 0
  %v449 = vsel %vm348, %v115, 0
  %v452 = vsel %vm348, %v118, 0
  %v455 = vsel %vm348, %v121, 0
  %v458 = vsel %vm348, %v124, 0
  %v461 = vsel %vm348, %v127, 0
  %v464 = vsel %vm348, %v130, 0
  %v467 = vsel %vm348, %v133, 0
  %v470 = vsel %vm348, %v136, 0
  %v473 = vsel %vm348, %v139, 0
  %v476 = vsel %vm348, %v142, 0
  %v479 = vsel %vm348, %v145, 0
  %v482 = vsel %vm348, %v148, 0
  %v485 = vsel %vm348, %v151, 0
  %v488 = vsel %vm348, %v154, 0
  %v491 = vsel %vm348, %v157, 0
  %v494 = vsel %vm348, %v160, 0
  %v497 = vsel %vm348, %v163, 0
  %v500 = vsel %vm348, %v166, 0
  %v503 = vsel %vm348, %v169, 0
  %v506 = vsel %vm348, %v172, 0
  %v509 = vsel %vm348, %v175, 0
  %v512 = vsel %vm348, %v178, 0
  %v515 = vsel %vm348, %v181, 0
  %v518 = vsel %vm348, %v184, 0
  %v521 = vsel %vm348, %v187, 0
  %v524 = vsel %vm348, %v190, 0
  %v527 = vsel %vm348, %v193, 0
  %v530 = vsel %vm348, %v196, 0
  %v533 = vsel %vm348, %v199, 0
  %v536 = vsel %vm348, %v202, 0
  %v539 = vsel %vm348, %v205, 0
  %v542 = vsel %vm348, %v208, 0
  %v545 = vsel %vm348, %v211, 0
  %v548 = vsel %vm348, %v214, 0
  %v551 = vsel %vm348, %v217, 0
  %v554 = vsel %vm348, %v220, 0
  %v557 = vsel %vm348, %v223, 0
  %v560 = vsel %vm348, %v226, 0
  %v563 = vsel %vm348, %v229, 0
  %v566 = vsel %vm348, %v232, 0
  %v569 = vsel %vm348, %v235, 0
  %v572 = vsel %vm348, %v238, 0
  %v575 = vsel %vm348, %v241, 0
  %v578 = vsel %vm348, %v244, 0
  %v581 = vsel %vm348, %v247, 0
  %v584 = vsel %vm348, %v250, 0
  %v587 = vsel %vm348, %v253, 0
  %v590 = vsel %vm348, %v256, 0
  %v593 = vsel %vm348, %v259, 0
  %v596 = vsel %vm348, %v262, 0
  %v599 = vsel %vm348, %v265, 0
  %v602 = vsel %vm348, %v268, 0
  %v605 = vsel %vm348, %v271, 0
  %v608 = vsel %vm348, %v274, 0
  %v611 = vsel %vm348, %v277, 0
  %v614 = vsel %vm348, %v280, 0
  %v617 = vsel %vm348, %v283, 0
  %v620 = vsel %vm348, %v286, 0
  %v623 = vsel %vm348, %v289, 0
  %v626 = vsel %vm348, %v292, 0
  %v629 = vsel %vm348, %v295, 0
  %v632 = vsel %vm348, %v298, 0
  %v635 = vsel %vm348, %v301, 0
  %v638 = vsel %vm348, %v304, 0
  %v641 = vsel %vm348, %v307, 0
  %643 = vmatpush.msra.mxu0 %v323
  %644 = vmatpush.msra.mxu0 %v322
  %645 = vmatpush.msra.mxu0 %v321
  %646 = vmatpush.msra.mxu0 %v320
  %647 = vmatpush.msra.mxu0 %v319
  %648 = vmatpush.msra.mxu0 %v318
  %649 = vmatpush.msra.mxu0 %v317
  %650 = vmatpush.msra.mxu0 %v316
  %651 = vmatpush.msra.mxu0 %v315
  %652 = vmatpush.msra.mxu0 %v314
  %653 = vmatpush.msra.mxu0 %v313
  %654 = vmatpush.msra.mxu0 %v312
  %655 = vmatpush.msra.mxu0 %v311
  %656 = vmatpush.msra.mxu0 %v310
  %657 = vmatpush.msra.mxu0 %v309
  %658 = vmatpush.msra.mxu0 %v308
  %659 = vmatmul.f32.gmra.mxu0 %v14
  %v660 = vpop.f32.mrf.mxu0
  %v661 = vadd.f32 %v346, %v660
  %662 = vmatmul.f32.gmra.mxu0 %v17
  %v663 = vpop.f32.mrf.mxu0
  %v664 = vadd.f32 %v346, %v663
  %665 = vmatmul.f32.gmra.mxu0 %v20
  %v666 = vpop.f32.mrf.mxu0
  %v667 = vadd.f32 %v346, %v666
  %668 = vmatmul.f32.gmra.mxu0 %v23
  %v669 = vpop.f32.mrf.mxu0
  %v670 = vadd.f32 %v346, %v669
  %671 = vmatmul.f32.gmra.mxu0 %v26
  %v672 = vpop.f32.mrf.mxu0
  %v673 = vadd.f32 %v346, %v672
  %674 = vmatmul.f32.gmra.mxu0 %v29
  %v675 = vpop.f32.mrf.mxu0
  %v676 = vadd.f32 %v346, %v675
  %677 = vmatmul.f32.gmra.mxu0 %v32
  %v678 = vpop.f32.mrf.mxu0
  %v679 = vadd.f32 %v346, %v678
  %680 = vmatmul.f32.gmra.mxu0 %v35
  %v681 = vpop.f32.mrf.mxu0
  %v682 = vadd.f32 %v346, %v681
  %683 = vmatmul.f32.gmra.mxu0 %v38
  %v684 = vpop.f32.mrf.mxu0
  %v685 = vadd.f32 %v346, %v684
  %686 = vmatmul.f32.gmra.mxu0 %v41
  %v687 = vpop.f32.mrf.mxu0
  %v688 = vadd.f32 %v346, %v687
  %689 = vmatmul.f32.gmra.mxu0 %v44
  %v690 = vpop.f32.mrf.mxu0
  %v691 = vadd.f32 %v346, %v690
  %692 = vmatmul.f32.gmra.mxu0 %v47
  %v693 = vpop.f32.mrf.mxu0
  %v694 = vadd.f32 %v346, %v693
  %695 = vmatmul.f32.gmra.mxu0 %v50
  %v696 = vpop.f32.mrf.mxu0
  %v697 = vadd.f32 %v346, %v696
  %698 = vmatmul.f32.gmra.mxu0 %v53
  %v699 = vpop.f32.mrf.mxu0
  %v700 = vadd.f32 %v346, %v699
  %701 = vmatmul.f32.gmra.mxu0 %v56
  %v702 = vpop.f32.mrf.mxu0
  %v703 = vadd.f32 %v346, %v702
  %704 = vmatmul.f32.gmra.mxu0 %v59
  %v705 = vpop.f32.mrf.mxu0
  %v706 = vadd.f32 %v346, %v705
  %707 = vmatmul.f32.gmra.mxu0 %v62
  %v708 = vpop.f32.mrf.mxu0
  %v709 = vadd.f32 %v346, %v708
  %710 = vmatmul.f32.gmra.mxu0 %v65
  %v711 = vpop.f32.mrf.mxu0
  %v712 = vadd.f32 %v346, %v711
  %713 = vmatmul.f32.gmra.mxu0 %v68
  %v714 = vpop.f32.mrf.mxu0
  %v715 = vadd.f32 %v346, %v714
  %716 = vmatmul.f32.gmra.mxu0 %v71
  %v717 = vpop.f32.mrf.mxu0
  %v718 = vadd.f32 %v346, %v717
  %719 = vmatmul.f32.gmra.mxu0 %v74
  %v720 = vpop.f32.mrf.mxu0
  %v721 = vadd.f32 %v346, %v720
  %722 = vmatmul.f32.gmra.mxu0 %v77
  %v723 = vpop.f32.mrf.mxu0
  %v724 = vadd.f32 %v346, %v723
  %725 = vmatmul.f32.gmra.mxu0 %v80
  %v726 = vpop.f32.mrf.mxu0
  %v727 = vadd.f32 %v346, %v726
  %728 = vmatmul.f32.gmra.mxu0 %v83
  %v729 = vpop.f32.mrf.mxu0
  %v730 = vadd.f32 %v346, %v729
  %731 = vmatmul.f32.gmra.mxu0 %v86
  %v732 = vpop.f32.mrf.mxu0
  %v733 = vadd.f32 %v346, %v732
  %734 = vmatmul.f32.gmra.mxu0 %v89
  %v735 = vpop.f32.mrf.mxu0
  %v736 = vadd.f32 %v346, %v735
  %737 = vmatmul.f32.gmra.mxu0 %v92
  %v738 = vpop.f32.mrf.mxu0
  %v739 = vadd.f32 %v346, %v738
  %740 = vmatmul.f32.gmra.mxu0 %v95
  %v741 = vpop.f32.mrf.mxu0
  %v742 = vadd.f32 %v346, %v741
  %743 = vmatmul.f32.gmra.mxu0 %v98
  %v744 = vpop.f32.mrf.mxu0
  %v745 = vadd.f32 %v346, %v744
  %746 = vmatmul.f32.gmra.mxu0 %v101
  %v747 = vpop.f32.mrf.mxu0
  %v748 = vadd.f32 %v346, %v747
  %749 = vmatmul.f32.gmra.mxu0 %v104
  %v750 = vpop.f32.mrf.mxu0
  %v751 = vadd.f32 %v346, %v750
  %752 = vmatmul.f32.gmra.mxu0 %v107
  %v753 = vpop.f32.mrf.mxu0
  %v754 = vadd.f32 %v346, %v753
  %755 = vmatmul.f32.gmra.mxu0 %v110
  %v756 = vpop.f32.mrf.mxu0
  %v757 = vadd.f32 %v346, %v756
  %758 = vmatmul.f32.gmra.mxu0 %v113
  %v759 = vpop.f32.mrf.mxu0
  %v760 = vadd.f32 %v346, %v759
  %761 = vmatmul.f32.gmra.mxu0 %v116
  %v762 = vpop.f32.mrf.mxu0
  %v763 = vadd.f32 %v346, %v762
  %764 = vmatmul.f32.gmra.mxu0 %v119
  %v765 = vpop.f32.mrf.mxu0
  %v766 = vadd.f32 %v346, %v765
  %767 = vmatmul.f32.gmra.mxu0 %v122
  %v768 = vpop.f32.mrf.mxu0
  %v769 = vadd.f32 %v346, %v768
  %770 = vmatmul.f32.gmra.mxu0 %v125
  %v771 = vpop.f32.mrf.mxu0
  %v772 = vadd.f32 %v346, %v771
  %773 = vmatmul.f32.gmra.mxu0 %v128
  %v774 = vpop.f32.mrf.mxu0
  %v775 = vadd.f32 %v346, %v774
  %776 = vmatmul.f32.gmra.mxu0 %v131
  %v777 = vpop.f32.mrf.mxu0
  %v778 = vadd.f32 %v346, %v777
  %779 = vmatmul.f32.gmra.mxu0 %v134
  %v780 = vpop.f32.mrf.mxu0
  %v781 = vadd.f32 %v346, %v780
  %782 = vmatmul.f32.gmra.mxu0 %v137
  %v783 = vpop.f32.mrf.mxu0
  %v784 = vadd.f32 %v346, %v783
  %785 = vmatmul.f32.gmra.mxu0 %v140
  %v786 = vpop.f32.mrf.mxu0
  %v787 = vadd.f32 %v346, %v786
  %788 = vmatmul.f32.gmra.mxu0 %v143
  %v789 = vpop.f32.mrf.mxu0
  %v790 = vadd.f32 %v346, %v789
  %791 = vmatmul.f32.gmra.mxu0 %v146
  %v792 = vpop.f32.mrf.mxu0
  %v793 = vadd.f32 %v346, %v792
  %794 = vmatmul.f32.gmra.mxu0 %v149
  %v795 = vpop.f32.mrf.mxu0
  %v796 = vadd.f32 %v346, %v795
  %797 = vmatmul.f32.gmra.mxu0 %v152
  %v798 = vpop.f32.mrf.mxu0
  %v799 = vadd.f32 %v346, %v798
  %800 = vmatmul.f32.gmra.mxu0 %v155
  %v801 = vpop.f32.mrf.mxu0
  %v802 = vadd.f32 %v346, %v801
  %803 = vmatmul.f32.gmra.mxu0 %v158
  %v804 = vpop.f32.mrf.mxu0
  %v805 = vadd.f32 %v346, %v804
  %806 = vmatmul.f32.gmra.mxu0 %v161
  %v807 = vpop.f32.mrf.mxu0
  %v808 = vadd.f32 %v346, %v807
  %809 = vmatmul.f32.gmra.mxu0 %v164
  %v810 = vpop.f32.mrf.mxu0
  %v811 = vadd.f32 %v346, %v810
  %812 = vmatmul.f32.gmra.mxu0 %v167
  %v813 = vpop.f32.mrf.mxu0
  %v814 = vadd.f32 %v346, %v813
  %815 = vmatmul.f32.gmra.mxu0 %v170
  %v816 = vpop.f32.mrf.mxu0
  %v817 = vadd.f32 %v346, %v816
  %818 = vmatmul.f32.gmra.mxu0 %v173
  %v819 = vpop.f32.mrf.mxu0
  %v820 = vadd.f32 %v346, %v819
  %821 = vmatmul.f32.gmra.mxu0 %v176
  %v822 = vpop.f32.mrf.mxu0
  %v823 = vadd.f32 %v346, %v822
  %824 = vmatmul.f32.gmra.mxu0 %v179
  %v825 = vpop.f32.mrf.mxu0
  %v826 = vadd.f32 %v346, %v825
  %827 = vmatmul.f32.gmra.mxu0 %v182
  %v828 = vpop.f32.mrf.mxu0
  %v829 = vadd.f32 %v346, %v828
  %830 = vmatmul.f32.gmra.mxu0 %v185
  %v831 = vpop.f32.mrf.mxu0
  %v832 = vadd.f32 %v346, %v831
  %833 = vmatmul.f32.gmra.mxu0 %v188
  %v834 = vpop.f32.mrf.mxu0
  %v835 = vadd.f32 %v346, %v834
  %836 = vmatmul.f32.gmra.mxu0 %v191
  %v837 = vpop.f32.mrf.mxu0
  %v838 = vadd.f32 %v346, %v837
  %839 = vmatmul.f32.gmra.mxu0 %v194
  %v840 = vpop.f32.mrf.mxu0
  %v841 = vadd.f32 %v346, %v840
  %842 = vmatmul.f32.gmra.mxu0 %v197
  %v843 = vpop.f32.mrf.mxu0
  %v844 = vadd.f32 %v346, %v843
  %845 = vmatmul.f32.gmra.mxu0 %v200
  %v846 = vpop.f32.mrf.mxu0
  %v847 = vadd.f32 %v346, %v846
  %848 = vmatmul.f32.gmra.mxu0 %v203
  %v849 = vpop.f32.mrf.mxu0
  %v850 = vadd.f32 %v346, %v849
  %851 = vmatmul.f32.gmra.mxu0 %v206
  %v852 = vpop.f32.mrf.mxu0
  %v853 = vadd.f32 %v346, %v852
  %854 = vmatmul.f32.gmra.mxu0 %v209
  %v855 = vpop.f32.mrf.mxu0
  %v856 = vadd.f32 %v346, %v855
  %857 = vmatmul.f32.gmra.mxu0 %v212
  %v858 = vpop.f32.mrf.mxu0
  %v859 = vadd.f32 %v346, %v858
  %860 = vmatmul.f32.gmra.mxu0 %v215
  %v861 = vpop.f32.mrf.mxu0
  %v862 = vadd.f32 %v346, %v861
  %863 = vmatmul.f32.gmra.mxu0 %v218
  %v864 = vpop.f32.mrf.mxu0
  %v865 = vadd.f32 %v346, %v864
  %866 = vmatmul.f32.gmra.mxu0 %v221
  %v867 = vpop.f32.mrf.mxu0
  %v868 = vadd.f32 %v346, %v867
  %869 = vmatmul.f32.gmra.mxu0 %v224
  %v870 = vpop.f32.mrf.mxu0
  %v871 = vadd.f32 %v346, %v870
  %872 = vmatmul.f32.gmra.mxu0 %v227
  %v873 = vpop.f32.mrf.mxu0
  %v874 = vadd.f32 %v346, %v873
  %875 = vmatmul.f32.gmra.mxu0 %v230
  %v876 = vpop.f32.mrf.mxu0
  %v877 = vadd.f32 %v346, %v876
  %878 = vmatmul.f32.gmra.mxu0 %v233
  %v879 = vpop.f32.mrf.mxu0
  %v880 = vadd.f32 %v346, %v879
  %881 = vmatmul.f32.gmra.mxu0 %v236
  %v882 = vpop.f32.mrf.mxu0
  %v883 = vadd.f32 %v346, %v882
  %884 = vmatmul.f32.gmra.mxu0 %v239
  %v885 = vpop.f32.mrf.mxu0
  %v886 = vadd.f32 %v346, %v885
  %887 = vmatmul.f32.gmra.mxu0 %v242
  %v888 = vpop.f32.mrf.mxu0
  %v889 = vadd.f32 %v346, %v888
  %890 = vmatmul.f32.gmra.mxu0 %v245
  %v891 = vpop.f32.mrf.mxu0
  %v892 = vadd.f32 %v346, %v891
  %893 = vmatmul.f32.gmra.mxu0 %v248
  %v894 = vpop.f32.mrf.mxu0
  %v895 = vadd.f32 %v346, %v894
  %896 = vmatmul.f32.gmra.mxu0 %v251
  %v897 = vpop.f32.mrf.mxu0
  %v898 = vadd.f32 %v346, %v897
  %899 = vmatmul.f32.gmra.mxu0 %v254
  %v900 = vpop.f32.mrf.mxu0
  %v901 = vadd.f32 %v346, %v900
  %902 = vmatmul.f32.gmra.mxu0 %v257
  %v903 = vpop.f32.mrf.mxu0
  %v904 = vadd.f32 %v346, %v903
  %905 = vmatmul.f32.gmra.mxu0 %v260
  %v906 = vpop.f32.mrf.mxu0
  %v907 = vadd.f32 %v346, %v906
  %908 = vmatmul.f32.gmra.mxu0 %v263
  %v909 = vpop.f32.mrf.mxu0
  %v910 = vadd.f32 %v346, %v909
  %911 = vmatmul.f32.gmra.mxu0 %v266
  %v912 = vpop.f32.mrf.mxu0
  %v913 = vadd.f32 %v346, %v912
  %914 = vmatmul.f32.gmra.mxu0 %v269
  %v915 = vpop.f32.mrf.mxu0
  %v916 = vadd.f32 %v346, %v915
  %917 = vmatmul.f32.gmra.mxu0 %v272
  %v918 = vpop.f32.mrf.mxu0
  %v919 = vadd.f32 %v346, %v918
  %920 = vmatmul.f32.gmra.mxu0 %v275
  %v921 = vpop.f32.mrf.mxu0
  %v922 = vadd.f32 %v346, %v921
  %923 = vmatmul.f32.gmra.mxu0 %v278
  %v924 = vpop.f32.mrf.mxu0
  %v925 = vadd.f32 %v346, %v924
  %926 = vmatmul.f32.gmra.mxu0 %v281
  %v927 = vpop.f32.mrf.mxu0
  %v928 = vadd.f32 %v346, %v927
  %929 = vmatmul.f32.gmra.mxu0 %v284
  %v930 = vpop.f32.mrf.mxu0
  %v931 = vadd.f32 %v346, %v930
  %932 = vmatmul.f32.gmra.mxu0 %v287
  %v933 = vpop.f32.mrf.mxu0
  %v934 = vadd.f32 %v346, %v933
  %935 = vmatmul.f32.gmra.mxu0 %v290
  %v936 = vpop.f32.mrf.mxu0
  %v937 = vadd.f32 %v346, %v936
  %938 = vmatmul.f32.gmra.mxu0 %v293
  %v939 = vpop.f32.mrf.mxu0
  %v940 = vadd.f32 %v346, %v939
  %941 = vmatmul.f32.gmra.mxu0 %v296
  %v942 = vpop.f32.mrf.mxu0
  %v943 = vadd.f32 %v346, %v942
  %944 = vmatmul.f32.gmra.mxu0 %v299
  %v945 = vpop.f32.mrf.mxu0
  %v946 = vadd.f32 %v346, %v945
  %947 = vmatmul.f32.gmra.mxu0 %v302
  %v948 = vpop.f32.mrf.mxu0
  %v949 = vadd.f32 %v346, %v948
  %950 = vmatmul.f32.gmra.mxu0 %v305
  %v951 = vpop.f32.mrf.mxu0
  %v952 = vadd.f32 %v346, %v951
  %953 = vdwg.mxu0
  %954 = vmatpush.msra.mxu0 %v339
  %955 = vmatpush.msra.mxu0 %v338
  %956 = vmatpush.msra.mxu0 %v337
  %957 = vmatpush.msra.mxu0 %v336
  %958 = vmatpush.msra.mxu0 %v335
  %959 = vmatpush.msra.mxu0 %v334
  %960 = vmatpush.msra.mxu0 %v333
  %961 = vmatpush.msra.mxu0 %v332
  %962 = vmatpush.msra.mxu0 %v331
  %963 = vmatpush.msra.mxu0 %v330
  %964 = vmatpush.msra.mxu0 %v329
  %965 = vmatpush.msra.mxu0 %v328
  %966 = vmatpush.msra.mxu0 %v327
  %967 = vmatpush.msra.mxu0 %v326
  %968 = vmatpush.msra.mxu0 %v325
  %969 = vmatpush.msra.mxu0 %v324
  %970 = vmatmul.f32.gmra.mxu0 %v15
  %v971 = vpop.f32.mrf.mxu0
  %v972 = vadd.f32 %v661, %v971
  %973 = vmatmul.f32.gmra.mxu0 %v18
  %v974 = vpop.f32.mrf.mxu0
  %v975 = vadd.f32 %v664, %v974
  %976 = vmatmul.f32.gmra.mxu0 %v21
  %v977 = vpop.f32.mrf.mxu0
  %v978 = vadd.f32 %v667, %v977
  %979 = vmatmul.f32.gmra.mxu0 %v24
  %v980 = vpop.f32.mrf.mxu0
  %v981 = vadd.f32 %v670, %v980
  %982 = vmatmul.f32.gmra.mxu0 %v27
  %v983 = vpop.f32.mrf.mxu0
  %v984 = vadd.f32 %v673, %v983
  %985 = vmatmul.f32.gmra.mxu0 %v30
  %v986 = vpop.f32.mrf.mxu0
  %v987 = vadd.f32 %v676, %v986
  %988 = vmatmul.f32.gmra.mxu0 %v33
  %v989 = vpop.f32.mrf.mxu0
  %v990 = vadd.f32 %v679, %v989
  %991 = vmatmul.f32.gmra.mxu0 %v36
  %v992 = vpop.f32.mrf.mxu0
  %v993 = vadd.f32 %v682, %v992
  %994 = vmatmul.f32.gmra.mxu0 %v39
  %v995 = vpop.f32.mrf.mxu0
  %v996 = vadd.f32 %v685, %v995
  %997 = vmatmul.f32.gmra.mxu0 %v42
  %v998 = vpop.f32.mrf.mxu0
  %v999 = vadd.f32 %v688, %v998
  %1000 = vmatmul.f32.gmra.mxu0 %v45
  %v1001 = vpop.f32.mrf.mxu0
  %v1002 = vadd.f32 %v691, %v1001
  %1003 = vmatmul.f32.gmra.mxu0 %v48
  %v1004 = vpop.f32.mrf.mxu0
  %v1005 = vadd.f32 %v694, %v1004
  %1006 = vmatmul.f32.gmra.mxu0 %v51
  %v1007 = vpop.f32.mrf.mxu0
  %v1008 = vadd.f32 %v697, %v1007
  %1009 = vmatmul.f32.gmra.mxu0 %v54
  %v1010 = vpop.f32.mrf.mxu0
  %v1011 = vadd.f32 %v700, %v1010
  %1012 = vmatmul.f32.gmra.mxu0 %v57
  %v1013 = vpop.f32.mrf.mxu0
  %v1014 = vadd.f32 %v703, %v1013
  %1015 = vmatmul.f32.gmra.mxu0 %v60
  %v1016 = vpop.f32.mrf.mxu0
  %v1017 = vadd.f32 %v706, %v1016
  %1018 = vmatmul.f32.gmra.mxu0 %v63
  %v1019 = vpop.f32.mrf.mxu0
  %v1020 = vadd.f32 %v709, %v1019
  %1021 = vmatmul.f32.gmra.mxu0 %v66
  %v1022 = vpop.f32.mrf.mxu0
  %v1023 = vadd.f32 %v712, %v1022
  %1024 = vmatmul.f32.gmra.mxu0 %v69
  %v1025 = vpop.f32.mrf.mxu0
  %v1026 = vadd.f32 %v715, %v1025
  %1027 = vmatmul.f32.gmra.mxu0 %v72
  %v1028 = vpop.f32.mrf.mxu0
  %v1029 = vadd.f32 %v718, %v1028
  %1030 = vmatmul.f32.gmra.mxu0 %v75
  %v1031 = vpop.f32.mrf.mxu0
  %v1032 = vadd.f32 %v721, %v1031
  %1033 = vmatmul.f32.gmra.mxu0 %v78
  %v1034 = vpop.f32.mrf.mxu0
  %v1035 = vadd.f32 %v724, %v1034
  %1036 = vmatmul.f32.gmra.mxu0 %v81
  %v1037 = vpop.f32.mrf.mxu0
  %v1038 = vadd.f32 %v727, %v1037
  %1039 = vmatmul.f32.gmra.mxu0 %v84
  %v1040 = vpop.f32.mrf.mxu0
  %v1041 = vadd.f32 %v730, %v1040
  %1042 = vmatmul.f32.gmra.mxu0 %v87
  %v1043 = vpop.f32.mrf.mxu0
  %v1044 = vadd.f32 %v733, %v1043
  %1045 = vmatmul.f32.gmra.mxu0 %v90
  %v1046 = vpop.f32.mrf.mxu0
  %v1047 = vadd.f32 %v736, %v1046
  %1048 = vmatmul.f32.gmra.mxu0 %v93
  %v1049 = vpop.f32.mrf.mxu0
  %v1050 = vadd.f32 %v739, %v1049
  %1051 = vmatmul.f32.gmra.mxu0 %v96
  %v1052 = vpop.f32.mrf.mxu0
  %v1053 = vadd.f32 %v742, %v1052
  %1054 = vmatmul.f32.gmra.mxu0 %v99
  %v1055 = vpop.f32.mrf.mxu0
  %v1056 = vadd.f32 %v745, %v1055
  %1057 = vmatmul.f32.gmra.mxu0 %v102
  %v1058 = vpop.f32.mrf.mxu0
  %v1059 = vadd.f32 %v748, %v1058
  %1060 = vmatmul.f32.gmra.mxu0 %v105
  %v1061 = vpop.f32.mrf.mxu0
  %v1062 = vadd.f32 %v751, %v1061
  %1063 = vmatmul.f32.gmra.mxu0 %v108
  %v1064 = vpop.f32.mrf.mxu0
  %v1065 = vadd.f32 %v754, %v1064
  %1066 = vmatmul.f32.gmra.mxu0 %v111
  %v1067 = vpop.f32.mrf.mxu0
  %v1068 = vadd.f32 %v757, %v1067
  %1069 = vmatmul.f32.gmra.mxu0 %v114
  %v1070 = vpop.f32.mrf.mxu0
  %v1071 = vadd.f32 %v760, %v1070
  %1072 = vmatmul.f32.gmra.mxu0 %v117
  %v1073 = vpop.f32.mrf.mxu0
  %v1074 = vadd.f32 %v763, %v1073
  %1075 = vmatmul.f32.gmra.mxu0 %v120
  %v1076 = vpop.f32.mrf.mxu0
  %v1077 = vadd.f32 %v766, %v1076
  %1078 = vmatmul.f32.gmra.mxu0 %v123
  %v1079 = vpop.f32.mrf.mxu0
  %v1080 = vadd.f32 %v769, %v1079
  %1081 = vmatmul.f32.gmra.mxu0 %v126
  %v1082 = vpop.f32.mrf.mxu0
  %v1083 = vadd.f32 %v772, %v1082
  %1084 = vmatmul.f32.gmra.mxu0 %v129
  %v1085 = vpop.f32.mrf.mxu0
  %v1086 = vadd.f32 %v775, %v1085
  %1087 = vmatmul.f32.gmra.mxu0 %v132
  %v1088 = vpop.f32.mrf.mxu0
  %v1089 = vadd.f32 %v778, %v1088
  %1090 = vmatmul.f32.gmra.mxu0 %v135
  %v1091 = vpop.f32.mrf.mxu0
  %v1092 = vadd.f32 %v781, %v1091
  %1093 = vmatmul.f32.gmra.mxu0 %v138
  %v1094 = vpop.f32.mrf.mxu0
  %v1095 = vadd.f32 %v784, %v1094
  %1096 = vmatmul.f32.gmra.mxu0 %v141
  %v1097 = vpop.f32.mrf.mxu0
  %v1098 = vadd.f32 %v787, %v1097
  %1099 = vmatmul.f32.gmra.mxu0 %v144
  %v1100 = vpop.f32.mrf.mxu0
  %v1101 = vadd.f32 %v790, %v1100
  %1102 = vmatmul.f32.gmra.mxu0 %v147
  %v1103 = vpop.f32.mrf.mxu0
  %v1104 = vadd.f32 %v793, %v1103
  %1105 = vmatmul.f32.gmra.mxu0 %v150
  %v1106 = vpop.f32.mrf.mxu0
  %v1107 = vadd.f32 %v796, %v1106
  %1108 = vmatmul.f32.gmra.mxu0 %v153
  %v1109 = vpop.f32.mrf.mxu0
  %v1110 = vadd.f32 %v799, %v1109
  %1111 = vmatmul.f32.gmra.mxu0 %v156
  %v1112 = vpop.f32.mrf.mxu0
  %v1113 = vadd.f32 %v802, %v1112
  %1114 = vmatmul.f32.gmra.mxu0 %v159
  %v1115 = vpop.f32.mrf.mxu0
  %v1116 = vadd.f32 %v805, %v1115
  %1117 = vmatmul.f32.gmra.mxu0 %v162
  %v1118 = vpop.f32.mrf.mxu0
  %v1119 = vadd.f32 %v808, %v1118
  %1120 = vmatmul.f32.gmra.mxu0 %v165
  %v1121 = vpop.f32.mrf.mxu0
  %v1122 = vadd.f32 %v811, %v1121
  %1123 = vmatmul.f32.gmra.mxu0 %v168
  %v1124 = vpop.f32.mrf.mxu0
  %v1125 = vadd.f32 %v814, %v1124
  %1126 = vmatmul.f32.gmra.mxu0 %v171
  %v1127 = vpop.f32.mrf.mxu0
  %v1128 = vadd.f32 %v817, %v1127
  %1129 = vmatmul.f32.gmra.mxu0 %v174
  %v1130 = vpop.f32.mrf.mxu0
  %v1131 = vadd.f32 %v820, %v1130
  %1132 = vmatmul.f32.gmra.mxu0 %v177
  %v1133 = vpop.f32.mrf.mxu0
  %v1134 = vadd.f32 %v823, %v1133
  %1135 = vmatmul.f32.gmra.mxu0 %v180
  %v1136 = vpop.f32.mrf.mxu0
  %v1137 = vadd.f32 %v826, %v1136
  %1138 = vmatmul.f32.gmra.mxu0 %v183
  %v1139 = vpop.f32.mrf.mxu0
  %v1140 = vadd.f32 %v829, %v1139
  %1141 = vmatmul.f32.gmra.mxu0 %v186
  %v1142 = vpop.f32.mrf.mxu0
  %v1143 = vadd.f32 %v832, %v1142
  %1144 = vmatmul.f32.gmra.mxu0 %v189
  %v1145 = vpop.f32.mrf.mxu0
  %v1146 = vadd.f32 %v835, %v1145
  %1147 = vmatmul.f32.gmra.mxu0 %v192
  %v1148 = vpop.f32.mrf.mxu0
  %v1149 = vadd.f32 %v838, %v1148
  %1150 = vmatmul.f32.gmra.mxu0 %v195
  %v1151 = vpop.f32.mrf.mxu0
  %v1152 = vadd.f32 %v841, %v1151
  %1153 = vmatmul.f32.gmra.mxu0 %v198
  %v1154 = vpop.f32.mrf.mxu0
  %v1155 = vadd.f32 %v844, %v1154
  %1156 = vmatmul.f32.gmra.mxu0 %v201
  %v1157 = vpop.f32.mrf.mxu0
  %v1158 = vadd.f32 %v847, %v1157
  %1159 = vmatmul.f32.gmra.mxu0 %v204
  %v1160 = vpop.f32.mrf.mxu0
  %v1161 = vadd.f32 %v850, %v1160
  %1162 = vmatmul.f32.gmra.mxu0 %v207
  %v1163 = vpop.f32.mrf.mxu0
  %v1164 = vadd.f32 %v853, %v1163
  %1165 = vmatmul.f32.gmra.mxu0 %v210
  %v1166 = vpop.f32.mrf.mxu0
  %v1167 = vadd.f32 %v856, %v1166
  %1168 = vmatmul.f32.gmra.mxu0 %v213
  %v1169 = vpop.f32.mrf.mxu0
  %v1170 = vadd.f32 %v859, %v1169
  %1171 = vmatmul.f32.gmra.mxu0 %v216
  %v1172 = vpop.f32.mrf.mxu0
  %v1173 = vadd.f32 %v862, %v1172
  %1174 = vmatmul.f32.gmra.mxu0 %v219
  %v1175 = vpop.f32.mrf.mxu0
  %v1176 = vadd.f32 %v865, %v1175
  %1177 = vmatmul.f32.gmra.mxu0 %v222
  %v1178 = vpop.f32.mrf.mxu0
  %v1179 = vadd.f32 %v868, %v1178
  %1180 = vmatmul.f32.gmra.mxu0 %v225
  %v1181 = vpop.f32.mrf.mxu0
  %v1182 = vadd.f32 %v871, %v1181
  %1183 = vmatmul.f32.gmra.mxu0 %v228
  %v1184 = vpop.f32.mrf.mxu0
  %v1185 = vadd.f32 %v874, %v1184
  %1186 = vmatmul.f32.gmra.mxu0 %v231
  %v1187 = vpop.f32.mrf.mxu0
  %v1188 = vadd.f32 %v877, %v1187
  %1189 = vmatmul.f32.gmra.mxu0 %v234
  %v1190 = vpop.f32.mrf.mxu0
  %v1191 = vadd.f32 %v880, %v1190
  %1192 = vmatmul.f32.gmra.mxu0 %v237
  %v1193 = vpop.f32.mrf.mxu0
  %v1194 = vadd.f32 %v883, %v1193
  %1195 = vmatmul.f32.gmra.mxu0 %v240
  %v1196 = vpop.f32.mrf.mxu0
  %v1197 = vadd.f32 %v886, %v1196
  %1198 = vmatmul.f32.gmra.mxu0 %v243
  %v1199 = vpop.f32.mrf.mxu0
  %v1200 = vadd.f32 %v889, %v1199
  %1201 = vmatmul.f32.gmra.mxu0 %v246
  %v1202 = vpop.f32.mrf.mxu0
  %v1203 = vadd.f32 %v892, %v1202
  %1204 = vmatmul.f32.gmra.mxu0 %v249
  %v1205 = vpop.f32.mrf.mxu0
  %v1206 = vadd.f32 %v895, %v1205
  %1207 = vmatmul.f32.gmra.mxu0 %v252
  %v1208 = vpop.f32.mrf.mxu0
  %v1209 = vadd.f32 %v898, %v1208
  %1210 = vmatmul.f32.gmra.mxu0 %v255
  %v1211 = vpop.f32.mrf.mxu0
  %v1212 = vadd.f32 %v901, %v1211
  %1213 = vmatmul.f32.gmra.mxu0 %v258
  %v1214 = vpop.f32.mrf.mxu0
  %v1215 = vadd.f32 %v904, %v1214
  %1216 = vmatmul.f32.gmra.mxu0 %v261
  %v1217 = vpop.f32.mrf.mxu0
  %v1218 = vadd.f32 %v907, %v1217
  %1219 = vmatmul.f32.gmra.mxu0 %v264
  %v1220 = vpop.f32.mrf.mxu0
  %v1221 = vadd.f32 %v910, %v1220
  %1222 = vmatmul.f32.gmra.mxu0 %v267
  %v1223 = vpop.f32.mrf.mxu0
  %v1224 = vadd.f32 %v913, %v1223
  %1225 = vmatmul.f32.gmra.mxu0 %v270
  %v1226 = vpop.f32.mrf.mxu0
  %v1227 = vadd.f32 %v916, %v1226
  %1228 = vmatmul.f32.gmra.mxu0 %v273
  %v1229 = vpop.f32.mrf.mxu0
  %v1230 = vadd.f32 %v919, %v1229
  %1231 = vmatmul.f32.gmra.mxu0 %v276
  %v1232 = vpop.f32.mrf.mxu0
  %v1233 = vadd.f32 %v922, %v1232
  %1234 = vmatmul.f32.gmra.mxu0 %v279
  %v1235 = vpop.f32.mrf.mxu0
  %v1236 = vadd.f32 %v925, %v1235
  %1237 = vmatmul.f32.gmra.mxu0 %v282
  %v1238 = vpop.f32.mrf.mxu0
  %v1239 = vadd.f32 %v928, %v1238
  %1240 = vmatmul.f32.gmra.mxu0 %v285
  %v1241 = vpop.f32.mrf.mxu0
  %v1242 = vadd.f32 %v931, %v1241
  %1243 = vmatmul.f32.gmra.mxu0 %v288
  %v1244 = vpop.f32.mrf.mxu0
  %v1245 = vadd.f32 %v934, %v1244
  %1246 = vmatmul.f32.gmra.mxu0 %v291
  %v1247 = vpop.f32.mrf.mxu0
  %v1248 = vadd.f32 %v937, %v1247
  %1249 = vmatmul.f32.gmra.mxu0 %v294
  %v1250 = vpop.f32.mrf.mxu0
  %v1251 = vadd.f32 %v940, %v1250
  %1252 = vmatmul.f32.gmra.mxu0 %v297
  %v1253 = vpop.f32.mrf.mxu0
  %v1254 = vadd.f32 %v943, %v1253
  %1255 = vmatmul.f32.gmra.mxu0 %v300
  %v1256 = vpop.f32.mrf.mxu0
  %v1257 = vadd.f32 %v946, %v1256
  %1258 = vmatmul.f32.gmra.mxu0 %v303
  %v1259 = vpop.f32.mrf.mxu0
  %v1260 = vadd.f32 %v949, %v1259
  %1261 = vmatmul.f32.gmra.mxu0 %v306
  %v1262 = vpop.f32.mrf.mxu0
  %v1263 = vadd.f32 %v952, %v1262
  %1264 = vdwg.mxu0
  %1265 = vmatpush.msra.mxu0 0.0
  %1266 = vmatpush.msra.mxu0 0.0
  %1267 = vmatpush.msra.mxu0 0.0
  %1268 = vmatpush.msra.mxu0 0.0
  %1269 = vmatpush.msra.mxu0 0.0
  %1270 = vmatpush.msra.mxu0 0.0
  %1271 = vmatpush.msra.mxu0 0.0
  %1272 = vmatpush.msra.mxu0 0.0
  %1273 = vmatpush.msra.mxu0 0.0
  %1274 = vmatpush.msra.mxu0 0.0
  %1275 = vmatpush.msra.mxu0 0.0
  %1276 = vmatpush.msra.mxu0 0.0
  %1277 = vmatpush.msra.mxu0 %v343
  %1278 = vmatpush.msra.mxu0 %v342
  %1279 = vmatpush.msra.mxu0 %v341
  %1280 = vmatpush.msra.mxu0 %v340
  %1281 = vmatmul.f32.gmra.mxu0 %v350
  %v1282 = vpop.f32.mrf.mxu0
  %v1283 = vadd.f32 %v972, %v1282
  %1284 = vmatmul.f32.gmra.mxu0 %v353
  %v1285 = vpop.f32.mrf.mxu0
  %v1286 = vadd.f32 %v975, %v1285
  %1287 = vmatmul.f32.gmra.mxu0 %v356
  %v1288 = vpop.f32.mrf.mxu0
  %v1289 = vadd.f32 %v978, %v1288
  %1290 = vmatmul.f32.gmra.mxu0 %v359
  %v1291 = vpop.f32.mrf.mxu0
  %v1292 = vadd.f32 %v981, %v1291
  %1293 = vmatmul.f32.gmra.mxu0 %v362
  %v1294 = vpop.f32.mrf.mxu0
  %v1295 = vadd.f32 %v984, %v1294
  %1296 = vmatmul.f32.gmra.mxu0 %v365
  %v1297 = vpop.f32.mrf.mxu0
  %v1298 = vadd.f32 %v987, %v1297
  %1299 = vmatmul.f32.gmra.mxu0 %v368
  %v1300 = vpop.f32.mrf.mxu0
  %v1301 = vadd.f32 %v990, %v1300
  %1302 = vmatmul.f32.gmra.mxu0 %v371
  %v1303 = vpop.f32.mrf.mxu0
  %v1304 = vadd.f32 %v993, %v1303
  %1305 = vmatmul.f32.gmra.mxu0 %v374
  %v1306 = vpop.f32.mrf.mxu0
  %v1307 = vadd.f32 %v996, %v1306
  %1308 = vmatmul.f32.gmra.mxu0 %v377
  %v1309 = vpop.f32.mrf.mxu0
  %v1310 = vadd.f32 %v999, %v1309
  %1311 = vmatmul.f32.gmra.mxu0 %v380
  %v1312 = vpop.f32.mrf.mxu0
  %v1313 = vadd.f32 %v1002, %v1312
  %1314 = vmatmul.f32.gmra.mxu0 %v383
  %v1315 = vpop.f32.mrf.mxu0
  %v1316 = vadd.f32 %v1005, %v1315
  %1317 = vmatmul.f32.gmra.mxu0 %v386
  %v1318 = vpop.f32.mrf.mxu0
  %v1319 = vadd.f32 %v1008, %v1318
  %1320 = vmatmul.f32.gmra.mxu0 %v389
  %v1321 = vpop.f32.mrf.mxu0
  %v1322 = vadd.f32 %v1011, %v1321
  %1323 = vmatmul.f32.gmra.mxu0 %v392
  %v1324 = vpop.f32.mrf.mxu0
  %v1325 = vadd.f32 %v1014, %v1324
  %1326 = vmatmul.f32.gmra.mxu0 %v395
  %v1327 = vpop.f32.mrf.mxu0
  %v1328 = vadd.f32 %v1017, %v1327
  %1329 = vmatmul.f32.gmra.mxu0 %v398
  %v1330 = vpop.f32.mrf.mxu0
  %v1331 = vadd.f32 %v1020, %v1330
  %1332 = vmatmul.f32.gmra.mxu0 %v401
  %v1333 = vpop.f32.mrf.mxu0
  %v1334 = vadd.f32 %v1023, %v1333
  %1335 = vmatmul.f32.gmra.mxu0 %v404
  %v1336 = vpop.f32.mrf.mxu0
  %v1337 = vadd.f32 %v1026, %v1336
  %1338 = vmatmul.f32.gmra.mxu0 %v407
  %v1339 = vpop.f32.mrf.mxu0
  %v1340 = vadd.f32 %v1029, %v1339
  %1341 = vmatmul.f32.gmra.mxu0 %v410
  %v1342 = vpop.f32.mrf.mxu0
  %v1343 = vadd.f32 %v1032, %v1342
  %1344 = vmatmul.f32.gmra.mxu0 %v413
  %v1345 = vpop.f32.mrf.mxu0
  %v1346 = vadd.f32 %v1035, %v1345
  %1347 = vmatmul.f32.gmra.mxu0 %v416
  %v1348 = vpop.f32.mrf.mxu0
  %v1349 = vadd.f32 %v1038, %v1348
  %1350 = vmatmul.f32.gmra.mxu0 %v419
  %v1351 = vpop.f32.mrf.mxu0
  %v1352 = vadd.f32 %v1041, %v1351
  %1353 = vmatmul.f32.gmra.mxu0 %v422
  %v1354 = vpop.f32.mrf.mxu0
  %v1355 = vadd.f32 %v1044, %v1354
  %1356 = vmatmul.f32.gmra.mxu0 %v425
  %v1357 = vpop.f32.mrf.mxu0
  %v1358 = vadd.f32 %v1047, %v1357
  %1359 = vmatmul.f32.gmra.mxu0 %v428
  %v1360 = vpop.f32.mrf.mxu0
  %v1361 = vadd.f32 %v1050, %v1360
  %1362 = vmatmul.f32.gmra.mxu0 %v431
  %v1363 = vpop.f32.mrf.mxu0
  %v1364 = vadd.f32 %v1053, %v1363
  %1365 = vmatmul.f32.gmra.mxu0 %v434
  %v1366 = vpop.f32.mrf.mxu0
  %v1367 = vadd.f32 %v1056, %v1366
  %1368 = vmatmul.f32.gmra.mxu0 %v437
  %v1369 = vpop.f32.mrf.mxu0
  %v1370 = vadd.f32 %v1059, %v1369
  %1371 = vmatmul.f32.gmra.mxu0 %v440
  %v1372 = vpop.f32.mrf.mxu0
  %v1373 = vadd.f32 %v1062, %v1372
  %1374 = vmatmul.f32.gmra.mxu0 %v443
  %v1375 = vpop.f32.mrf.mxu0
  %v1376 = vadd.f32 %v1065, %v1375
  %1377 = vmatmul.f32.gmra.mxu0 %v446
  %v1378 = vpop.f32.mrf.mxu0
  %v1379 = vadd.f32 %v1068, %v1378
  %1380 = vmatmul.f32.gmra.mxu0 %v449
  %v1381 = vpop.f32.mrf.mxu0
  %v1382 = vadd.f32 %v1071, %v1381
  %1383 = vmatmul.f32.gmra.mxu0 %v452
  %v1384 = vpop.f32.mrf.mxu0
  %v1385 = vadd.f32 %v1074, %v1384
  %1386 = vmatmul.f32.gmra.mxu0 %v455
  %v1387 = vpop.f32.mrf.mxu0
  %v1388 = vadd.f32 %v1077, %v1387
  %1389 = vmatmul.f32.gmra.mxu0 %v458
  %v1390 = vpop.f32.mrf.mxu0
  %v1391 = vadd.f32 %v1080, %v1390
  %1392 = vmatmul.f32.gmra.mxu0 %v461
  %v1393 = vpop.f32.mrf.mxu0
  %v1394 = vadd.f32 %v1083, %v1393
  %1395 = vmatmul.f32.gmra.mxu0 %v464
  %v1396 = vpop.f32.mrf.mxu0
  %v1397 = vadd.f32 %v1086, %v1396
  %1398 = vmatmul.f32.gmra.mxu0 %v467
  %v1399 = vpop.f32.mrf.mxu0
  %v1400 = vadd.f32 %v1089, %v1399
  %1401 = vmatmul.f32.gmra.mxu0 %v470
  %v1402 = vpop.f32.mrf.mxu0
  %v1403 = vadd.f32 %v1092, %v1402
  %1404 = vmatmul.f32.gmra.mxu0 %v473
  %v1405 = vpop.f32.mrf.mxu0
  %v1406 = vadd.f32 %v1095, %v1405
  %1407 = vmatmul.f32.gmra.mxu0 %v476
  %v1408 = vpop.f32.mrf.mxu0
  %v1409 = vadd.f32 %v1098, %v1408
  %1410 = vmatmul.f32.gmra.mxu0 %v479
  %v1411 = vpop.f32.mrf.mxu0
  %v1412 = vadd.f32 %v1101, %v1411
  %1413 = vmatmul.f32.gmra.mxu0 %v482
  %v1414 = vpop.f32.mrf.mxu0
  %v1415 = vadd.f32 %v1104, %v1414
  %1416 = vmatmul.f32.gmra.mxu0 %v485
  %v1417 = vpop.f32.mrf.mxu0
  %v1418 = vadd.f32 %v1107, %v1417
  %1419 = vmatmul.f32.gmra.mxu0 %v488
  %v1420 = vpop.f32.mrf.mxu0
  %v1421 = vadd.f32 %v1110, %v1420
  %1422 = vmatmul.f32.gmra.mxu0 %v491
  %v1423 = vpop.f32.mrf.mxu0
  %v1424 = vadd.f32 %v1113, %v1423
  %1425 = vmatmul.f32.gmra.mxu0 %v494
  %v1426 = vpop.f32.mrf.mxu0
  %v1427 = vadd.f32 %v1116, %v1426
  %1428 = vmatmul.f32.gmra.mxu0 %v497
  %v1429 = vpop.f32.mrf.mxu0
  %v1430 = vadd.f32 %v1119, %v1429
  %1431 = vmatmul.f32.gmra.mxu0 %v500
  %v1432 = vpop.f32.mrf.mxu0
  %v1433 = vadd.f32 %v1122, %v1432
  %1434 = vmatmul.f32.gmra.mxu0 %v503
  %v1435 = vpop.f32.mrf.mxu0
  %v1436 = vadd.f32 %v1125, %v1435
  %1437 = vmatmul.f32.gmra.mxu0 %v506
  %v1438 = vpop.f32.mrf.mxu0
  %v1439 = vadd.f32 %v1128, %v1438
  %1440 = vmatmul.f32.gmra.mxu0 %v509
  %v1441 = vpop.f32.mrf.mxu0
  %v1442 = vadd.f32 %v1131, %v1441
  %1443 = vmatmul.f32.gmra.mxu0 %v512
  %v1444 = vpop.f32.mrf.mxu0
  %v1445 = vadd.f32 %v1134, %v1444
  %1446 = vmatmul.f32.gmra.mxu0 %v515
  %v1447 = vpop.f32.mrf.mxu0
  %v1448 = vadd.f32 %v1137, %v1447
  %1449 = vmatmul.f32.gmra.mxu0 %v518
  %v1450 = vpop.f32.mrf.mxu0
  %v1451 = vadd.f32 %v1140, %v1450
  %1452 = vmatmul.f32.gmra.mxu0 %v521
  %v1453 = vpop.f32.mrf.mxu0
  %v1454 = vadd.f32 %v1143, %v1453
  %1455 = vmatmul.f32.gmra.mxu0 %v524
  %v1456 = vpop.f32.mrf.mxu0
  %v1457 = vadd.f32 %v1146, %v1456
  %1458 = vmatmul.f32.gmra.mxu0 %v527
  %v1459 = vpop.f32.mrf.mxu0
  %v1460 = vadd.f32 %v1149, %v1459
  %1461 = vmatmul.f32.gmra.mxu0 %v530
  %v1462 = vpop.f32.mrf.mxu0
  %v1463 = vadd.f32 %v1152, %v1462
  %1464 = vmatmul.f32.gmra.mxu0 %v533
  %v1465 = vpop.f32.mrf.mxu0
  %v1466 = vadd.f32 %v1155, %v1465
  %1467 = vmatmul.f32.gmra.mxu0 %v536
  %v1468 = vpop.f32.mrf.mxu0
  %v1469 = vadd.f32 %v1158, %v1468
  %1470 = vmatmul.f32.gmra.mxu0 %v539
  %v1471 = vpop.f32.mrf.mxu0
  %v1472 = vadd.f32 %v1161, %v1471
  %1473 = vmatmul.f32.gmra.mxu0 %v542
  %v1474 = vpop.f32.mrf.mxu0
  %v1475 = vadd.f32 %v1164, %v1474
  %1476 = vmatmul.f32.gmra.mxu0 %v545
  %v1477 = vpop.f32.mrf.mxu0
  %v1478 = vadd.f32 %v1167, %v1477
  %1479 = vmatmul.f32.gmra.mxu0 %v548
  %v1480 = vpop.f32.mrf.mxu0
  %v1481 = vadd.f32 %v1170, %v1480
  %1482 = vmatmul.f32.gmra.mxu0 %v551
  %v1483 = vpop.f32.mrf.mxu0
  %v1484 = vadd.f32 %v1173, %v1483
  %1485 = vmatmul.f32.gmra.mxu0 %v554
  %v1486 = vpop.f32.mrf.mxu0
  %v1487 = vadd.f32 %v1176, %v1486
  %1488 = vmatmul.f32.gmra.mxu0 %v557
  %v1489 = vpop.f32.mrf.mxu0
  %v1490 = vadd.f32 %v1179, %v1489
  %1491 = vmatmul.f32.gmra.mxu0 %v560
  %v1492 = vpop.f32.mrf.mxu0
  %v1493 = vadd.f32 %v1182, %v1492
  %1494 = vmatmul.f32.gmra.mxu0 %v563
  %v1495 = vpop.f32.mrf.mxu0
  %v1496 = vadd.f32 %v1185, %v1495
  %1497 = vmatmul.f32.gmra.mxu0 %v566
  %v1498 = vpop.f32.mrf.mxu0
  %v1499 = vadd.f32 %v1188, %v1498
  %1500 = vmatmul.f32.gmra.mxu0 %v569
  %v1501 = vpop.f32.mrf.mxu0
  %v1502 = vadd.f32 %v1191, %v1501
  %1503 = vmatmul.f32.gmra.mxu0 %v572
  %v1504 = vpop.f32.mrf.mxu0
  %v1505 = vadd.f32 %v1194, %v1504
  %1506 = vmatmul.f32.gmra.mxu0 %v575
  %v1507 = vpop.f32.mrf.mxu0
  %v1508 = vadd.f32 %v1197, %v1507
  %1509 = vmatmul.f32.gmra.mxu0 %v578
  %v1510 = vpop.f32.mrf.mxu0
  %v1511 = vadd.f32 %v1200, %v1510
  %1512 = vmatmul.f32.gmra.mxu0 %v581
  %v1513 = vpop.f32.mrf.mxu0
  %v1514 = vadd.f32 %v1203, %v1513
  %1515 = vmatmul.f32.gmra.mxu0 %v584
  %v1516 = vpop.f32.mrf.mxu0
  %v1517 = vadd.f32 %v1206, %v1516
  %1518 = vmatmul.f32.gmra.mxu0 %v587
  %v1519 = vpop.f32.mrf.mxu0
  %v1520 = vadd.f32 %v1209, %v1519
  %1521 = vmatmul.f32.gmra.mxu0 %v590
  %v1522 = vpop.f32.mrf.mxu0
  %v1523 = vadd.f32 %v1212, %v1522
  %1524 = vmatmul.f32.gmra.mxu0 %v593
  %v1525 = vpop.f32.mrf.mxu0
  %v1526 = vadd.f32 %v1215, %v1525
  %1527 = vmatmul.f32.gmra.mxu0 %v596
  %v1528 = vpop.f32.mrf.mxu0
  %v1529 = vadd.f32 %v1218, %v1528
  %1530 = vmatmul.f32.gmra.mxu0 %v599
  %v1531 = vpop.f32.mrf.mxu0
  %v1532 = vadd.f32 %v1221, %v1531
  %1533 = vmatmul.f32.gmra.mxu0 %v602
  %v1534 = vpop.f32.mrf.mxu0
  %v1535 = vadd.f32 %v1224, %v1534
  %1536 = vmatmul.f32.gmra.mxu0 %v605
  %v1537 = vpop.f32.mrf.mxu0
  %v1538 = vadd.f32 %v1227, %v1537
  %1539 = vmatmul.f32.gmra.mxu0 %v608
  %v1540 = vpop.f32.mrf.mxu0
  %v1541 = vadd.f32 %v1230, %v1540
  %1542 = vmatmul.f32.gmra.mxu0 %v611
  %v1543 = vpop.f32.mrf.mxu0
  %v1544 = vadd.f32 %v1233, %v1543
  %1545 = vmatmul.f32.gmra.mxu0 %v614
  %v1546 = vpop.f32.mrf.mxu0
  %v1547 = vadd.f32 %v1236, %v1546
  %1548 = vmatmul.f32.gmra.mxu0 %v617
  %v1549 = vpop.f32.mrf.mxu0
  %v1550 = vadd.f32 %v1239, %v1549
  %1551 = vmatmul.f32.gmra.mxu0 %v620
  %v1552 = vpop.f32.mrf.mxu0
  %v1553 = vadd.f32 %v1242, %v1552
  %1554 = vmatmul.f32.gmra.mxu0 %v623
  %v1555 = vpop.f32.mrf.mxu0
  %v1556 = vadd.f32 %v1245, %v1555
  %1557 = vmatmul.f32.gmra.mxu0 %v626
  %v1558 = vpop.f32.mrf.mxu0
  %v1559 = vadd.f32 %v1248, %v1558
  %1560 = vmatmul.f32.gmra.mxu0 %v629
  %v1561 = vpop.f32.mrf.mxu0
  %v1562 = vadd.f32 %v1251, %v1561
  %1563 = vmatmul.f32.gmra.mxu0 %v632
  %v1564 = vpop.f32.mrf.mxu0
  %v1565 = vadd.f32 %v1254, %v1564
  %1566 = vmatmul.f32.gmra.mxu0 %v635
  %v1567 = vpop.f32.mrf.mxu0
  %v1568 = vadd.f32 %v1257, %v1567
  %1569 = vmatmul.f32.gmra.mxu0 %v638
  %v1570 = vpop.f32.mrf.mxu0
  %v1571 = vadd.f32 %v1260, %v1570
  %1572 = vmatmul.f32.gmra.mxu0 %v641
  %v1573 = vpop.f32.mrf.mxu0
  %v1574 = vadd.f32 %v1263, %v1573
  %1575 = vdwg.mxu0
  %vm1576 = vcmp.ge.f32.partialorder %v1283, 0.0
  %vm1577 = vcmp.ge.f32.partialorder %v1286, 0.0
  %vm1578 = vcmp.ge.f32.partialorder %v1289, 0.0
  %vm1579 = vcmp.ge.f32.partialorder %v1292, 0.0
  %vm1580 = vcmp.ge.f32.partialorder %v1295, 0.0
  %vm1581 = vcmp.ge.f32.partialorder %v1298, 0.0
  %vm1582 = vcmp.ge.f32.partialorder %v1301, 0.0
  %vm1583 = vcmp.ge.f32.partialorder %v1304, 0.0
  %vm1584 = vcmp.ge.f32.partialorder %v1307, 0.0
  %vm1585 = vcmp.ge.f32.partialorder %v1310, 0.0
  %vm1586 = vcmp.ge.f32.partialorder %v1313, 0.0
  %vm1587 = vcmp.ge.f32.partialorder %v1316, 0.0
  %vm1588 = vcmp.ge.f32.partialorder %v1319, 0.0
  %vm1589 = vcmp.ge.f32.partialorder %v1322, 0.0
  %vm1590 = vcmp.ge.f32.partialorder %v1325, 0.0
  %vm1591 = vcmp.ge.f32.partialorder %v1328, 0.0
  %vm1592 = vcmp.ge.f32.partialorder %v1331, 0.0
  %vm1593 = vcmp.ge.f32.partialorder %v1334, 0.0
  %vm1594 = vcmp.ge.f32.partialorder %v1337, 0.0
  %vm1595 = vcmp.ge.f32.partialorder %v1340, 0.0
  %vm1596 = vcmp.ge.f32.partialorder %v1343, 0.0
  %vm1597 = vcmp.ge.f32.partialorder %v1346, 0.0
  %vm1598 = vcmp.ge.f32.partialorder %v1349, 0.0
  %vm1599 = vcmp.ge.f32.partialorder %v1352, 0.0
  %vm1600 = vcmp.ge.f32.partialorder %v1355, 0.0
  %vm1601 = vcmp.ge.f32.partialorder %v1358, 0.0
  %vm1602 = vcmp.ge.f32.partialorder %v1361, 0.0
  %vm1603 = vcmp.ge.f32.partialorder %v1364, 0.0
  %vm1604 = vcmp.ge.f32.partialorder %v1367, 0.0
  %vm1605 = vcmp.ge.f32.partialorder %v1370, 0.0
  %vm1606 = vcmp.ge.f32.partialorder %v1373, 0.0
  %vm1607 = vcmp.ge.f32.partialorder %v1376, 0.0
  %vm1608 = vcmp.ge.f32.partialorder %v1379, 0.0
  %vm1609 = vcmp.ge.f32.partialorder %v1382, 0.0
  %vm1610 = vcmp.ge.f32.partialorder %v1385, 0.0
  %vm1611 = vcmp.ge.f32.partialorder %v1388, 0.0
  %vm1612 = vcmp.ge.f32.partialorder %v1391, 0.0
  %vm1613 = vcmp.ge.f32.partialorder %v1394, 0.0
  %vm1614 = vcmp.ge.f32.partialorder %v1397, 0.0
  %vm1615 = vcmp.ge.f32.partialorder %v1400, 0.0
  %vm1616 = vcmp.ge.f32.partialorder %v1403, 0.0
  %vm1617 = vcmp.ge.f32.partialorder %v1406, 0.0
  %vm1618 = vcmp.ge.f32.partialorder %v1409, 0.0
  %vm1619 = vcmp.ge.f32.partialorder %v1412, 0.0
  %vm1620 = vcmp.ge.f32.partialorder %v1415, 0.0
  %vm1621 = vcmp.ge.f32.partialorder %v1418, 0.0
  %vm1622 = vcmp.ge.f32.partialorder %v1421, 0.0
  %vm1623 = vcmp.ge.f32.partialorder %v1424, 0.0
  %vm1624 = vcmp.ge.f32.partialorder %v1427, 0.0
  %vm1625 = vcmp.ge.f32.partialorder %v1430, 0.0
  %vm1626 = vcmp.ge.f32.partialorder %v1433, 0.0
  %vm1627 = vcmp.ge.f32.partialorder %v1436, 0.0
  %vm1628 = vcmp.ge.f32.partialorder %v1439, 0.0
  %vm1629 = vcmp.ge.f32.partialorder %v1442, 0.0
  %vm1630 = vcmp.ge.f32.partialorder %v1445, 0.0
  %vm1631 = vcmp.ge.f32.partialorder %v1448, 0.0
  %vm1632 = vcmp.ge.f32.partialorder %v1451, 0.0
  %vm1633 = vcmp.ge.f32.partialorder %v1454, 0.0
  %vm1634 = vcmp.ge.f32.partialorder %v1457, 0.0
  %vm1635 = vcmp.ge.f32.partialorder %v1460, 0.0
  %vm1636 = vcmp.ge.f32.partialorder %v1463, 0.0
  %vm1637 = vcmp.ge.f32.partialorder %v1466, 0.0
  %vm1638 = vcmp.ge.f32.partialorder %v1469, 0.0
  %vm1639 = vcmp.ge.f32.partialorder %v1472, 0.0
  %vm1640 = vcmp.ge.f32.partialorder %v1475, 0.0
  %vm1641 = vcmp.ge.f32.partialorder %v1478, 0.0
  %vm1642 = vcmp.ge.f32.partialorder %v1481, 0.0
  %vm1643 = vcmp.ge.f32.partialorder %v1484, 0.0
  %vm1644 = vcmp.ge.f32.partialorder %v1487, 0.0
  %vm1645 = vcmp.ge.f32.partialorder %v1490, 0.0
  %vm1646 = vcmp.ge.f32.partialorder %v1493, 0.0
  %vm1647 = vcmp.ge.f32.partialorder %v1496, 0.0
  %vm1648 = vcmp.ge.f32.partialorder %v1499, 0.0
  %vm1649 = vcmp.ge.f32.partialorder %v1502, 0.0
  %vm1650 = vcmp.ge.f32.partialorder %v1505, 0.0
  %vm1651 = vcmp.ge.f32.partialorder %v1508, 0.0
  %vm1652 = vcmp.ge.f32.partialorder %v1511, 0.0
  %vm1653 = vcmp.ge.f32.partialorder %v1514, 0.0
  %vm1654 = vcmp.ge.f32.partialorder %v1517, 0.0
  %vm1655 = vcmp.ge.f32.partialorder %v1520, 0.0
  %vm1656 = vcmp.ge.f32.partialorder %v1523, 0.0
  %vm1657 = vcmp.ge.f32.partialorder %v1526, 0.0
  %vm1658 = vcmp.ge.f32.partialorder %v1529, 0.0
  %vm1659 = vcmp.ge.f32.partialorder %v1532, 0.0
  %vm1660 = vcmp.ge.f32.partialorder %v1535, 0.0
  %vm1661 = vcmp.ge.f32.partialorder %v1538, 0.0
  %vm1662 = vcmp.ge.f32.partialorder %v1541, 0.0
  %vm1663 = vcmp.ge.f32.partialorder %v1544, 0.0
  %vm1664 = vcmp.ge.f32.partialorder %v1547, 0.0
  %vm1665 = vcmp.ge.f32.partialorder %v1550, 0.0
  %vm1666 = vcmp.ge.f32.partialorder %v1553, 0.0
  %vm1667 = vcmp.ge.f32.partialorder %v1556, 0.0
  %vm1668 = vcmp.ge.f32.partialorder %v1559, 0.0
  %vm1669 = vcmp.ge.f32.partialorder %v1562, 0.0
  %vm1670 = vcmp.ge.f32.partialorder %v1565, 0.0
  %vm1671 = vcmp.ge.f32.partialorder %v1568, 0.0
  %vm1672 = vcmp.ge.f32.partialorder %v1571, 0.0
  %vm1673 = vcmp.ge.f32.partialorder %v1574, 0.0
  %v1674 = vmul.f32 %v1283, 0.01
  %v1675 = vmul.f32 %v1286, 0.01
  %v1676 = vmul.f32 %v1289, 0.01
  %v1677 = vmul.f32 %v1292, 0.01
  %v1678 = vmul.f32 %v1295, 0.01
  %v1679 = vmul.f32 %v1298, 0.01
  %v1680 = vmul.f32 %v1301, 0.01
  %v1681 = vmul.f32 %v1304, 0.01
  %v1682 = vmul.f32 %v1307, 0.01
  %v1683 = vmul.f32 %v1310, 0.01
  %v1684 = vmul.f32 %v1313, 0.01
  %v1685 = vmul.f32 %v1316, 0.01
  %v1686 = vmul.f32 %v1319, 0.01
  %v1687 = vmul.f32 %v1322, 0.01
  %v1688 = vmul.f32 %v1325, 0.01
  %v1689 = vmul.f32 %v1328, 0.01
  %v1690 = vmul.f32 %v1331, 0.01
  %v1691 = vmul.f32 %v1334, 0.01
  %v1692 = vmul.f32 %v1337, 0.01
  %v1693 = vmul.f32 %v1340, 0.01
  %v1694 = vmul.f32 %v1343, 0.01
  %v1695 = vmul.f32 %v1346, 0.01
  %v1696 = vmul.f32 %v1349, 0.01
  %v1697 = vmul.f32 %v1352, 0.01
  %v1698 = vmul.f32 %v1355, 0.01
  %v1699 = vmul.f32 %v1358, 0.01
  %v1700 = vmul.f32 %v1361, 0.01
  %v1701 = vmul.f32 %v1364, 0.01
  %v1702 = vmul.f32 %v1367, 0.01
  %v1703 = vmul.f32 %v1370, 0.01
  %v1704 = vmul.f32 %v1373, 0.01
  %v1705 = vmul.f32 %v1376, 0.01
  %v1706 = vmul.f32 %v1379, 0.01
  %v1707 = vmul.f32 %v1382, 0.01
  %v1708 = vmul.f32 %v1385, 0.01
  %v1709 = vmul.f32 %v1388, 0.01
  %v1710 = vmul.f32 %v1391, 0.01
  %v1711 = vmul.f32 %v1394, 0.01
  %v1712 = vmul.f32 %v1397, 0.01
  %v1713 = vmul.f32 %v1400, 0.01
  %v1714 = vmul.f32 %v1403, 0.01
  %v1715 = vmul.f32 %v1406, 0.01
  %v1716 = vmul.f32 %v1409, 0.01
  %v1717 = vmul.f32 %v1412, 0.01
  %v1718 = vmul.f32 %v1415, 0.01
  %v1719 = vmul.f32 %v1418, 0.01
  %v1720 = vmul.f32 %v1421, 0.01
  %v1721 = vmul.f32 %v1424, 0.01
  %v1722 = vmul.f32 %v1427, 0.01
  %v1723 = vmul.f32 %v1430, 0.01
  %v1724 = vmul.f32 %v1433, 0.01
  %v1725 = vmul.f32 %v1436, 0.01
  %v1726 = vmul.f32 %v1439, 0.01
  %v1727 = vmul.f32 %v1442, 0.01
  %v1728 = vmul.f32 %v1445, 0.01
  %v1729 = vmul.f32 %v1448, 0.01
  %v1730 = vmul.f32 %v1451, 0.01
  %v1731 = vmul.f32 %v1454, 0.01
  %v1732 = vmul.f32 %v1457, 0.01
  %v1733 = vmul.f32 %v1460, 0.01
  %v1734 = vmul.f32 %v1463, 0.01
  %v1735 = vmul.f32 %v1466, 0.01
  %v1736 = vmul.f32 %v1469, 0.01
  %v1737 = vmul.f32 %v1472, 0.01
  %v1738 = vmul.f32 %v1475, 0.01
  %v1739 = vmul.f32 %v1478, 0.01
  %v1740 = vmul.f32 %v1481, 0.01
  %v1741 = vmul.f32 %v1484, 0.01
  %v1742 = vmul.f32 %v1487, 0.01
  %v1743 = vmul.f32 %v1490, 0.01
  %v1744 = vmul.f32 %v1493, 0.01
  %v1745 = vmul.f32 %v1496, 0.01
  %v1746 = vmul.f32 %v1499, 0.01
  %v1747 = vmul.f32 %v1502, 0.01
  %v1748 = vmul.f32 %v1505, 0.01
  %v1749 = vmul.f32 %v1508, 0.01
  %v1750 = vmul.f32 %v1511, 0.01
  %v1751 = vmul.f32 %v1514, 0.01
  %v1752 = vmul.f32 %v1517, 0.01
  %v1753 = vmul.f32 %v1520, 0.01
  %v1754 = vmul.f32 %v1523, 0.01
  %v1755 = vmul.f32 %v1526, 0.01
  %v1756 = vmul.f32 %v1529, 0.01
  %v1757 = vmul.f32 %v1532, 0.01
  %v1758 = vmul.f32 %v1535, 0.01
  %v1759 = vmul.f32 %v1538, 0.01
  %v1760 = vmul.f32 %v1541, 0.01
  %v1761 = vmul.f32 %v1544, 0.01
  %v1762 = vmul.f32 %v1547, 0.01
  %v1763 = vmul.f32 %v1550, 0.01
  %v1764 = vmul.f32 %v1553, 0.01
  %v1765 = vmul.f32 %v1556, 0.01
  %v1766 = vmul.f32 %v1559, 0.01
  %v1767 = vmul.f32 %v1562, 0.01
  %v1768 = vmul.f32 %v1565, 0.01
  %v1769 = vmul.f32 %v1568, 0.01
  %v1770 = vmul.f32 %v1571, 0.01
  %v1771 = vmul.f32 %v1574, 0.01
  %v1772 = vsel %vm1576, %v1283, %v1674
  %v1773 = vsel %vm1577, %v1286, %v1675
  %v1774 = vsel %vm1578, %v1289, %v1676
  %v1775 = vsel %vm1579, %v1292, %v1677
  %v1776 = vsel %vm1580, %v1295, %v1678
  %v1777 = vsel %vm1581, %v1298, %v1679
  %v1778 = vsel %vm1582, %v1301, %v1680
  %v1779 = vsel %vm1583, %v1304, %v1681
  %v1780 = vsel %vm1584, %v1307, %v1682
  %v1781 = vsel %vm1585, %v1310, %v1683
  %v1782 = vsel %vm1586, %v1313, %v1684
  %v1783 = vsel %vm1587, %v1316, %v1685
  %v1784 = vsel %vm1588, %v1319, %v1686
  %v1785 = vsel %vm1589, %v1322, %v1687
  %v1786 = vsel %vm1590, %v1325, %v1688
  %v1787 = vsel %vm1591, %v1328, %v1689
  %v1788 = vsel %vm1592, %v1331, %v1690
  %v1789 = vsel %vm1593, %v1334, %v1691
  %v1790 = vsel %vm1594, %v1337, %v1692
  %v1791 = vsel %vm1595, %v1340, %v1693
  %v1792 = vsel %vm1596, %v1343, %v1694
  %v1793 = vsel %vm1597, %v1346, %v1695
  %v1794 = vsel %vm1598, %v1349, %v1696
  %v1795 = vsel %vm1599, %v1352, %v1697
  %v1796 = vsel %vm1600, %v1355, %v1698
  %v1797 = vsel %vm1601, %v1358, %v1699
  %v1798 = vsel %vm1602, %v1361, %v1700
  %v1799 = vsel %vm1603, %v1364, %v1701
  %v1800 = vsel %vm1604, %v1367, %v1702
  %v1801 = vsel %vm1605, %v1370, %v1703
  %v1802 = vsel %vm1606, %v1373, %v1704
  %v1803 = vsel %vm1607, %v1376, %v1705
  %v1804 = vsel %vm1608, %v1379, %v1706
  %v1805 = vsel %vm1609, %v1382, %v1707
  %v1806 = vsel %vm1610, %v1385, %v1708
  %v1807 = vsel %vm1611, %v1388, %v1709
  %v1808 = vsel %vm1612, %v1391, %v1710
  %v1809 = vsel %vm1613, %v1394, %v1711
  %v1810 = vsel %vm1614, %v1397, %v1712
  %v1811 = vsel %vm1615, %v1400, %v1713
  %v1812 = vsel %vm1616, %v1403, %v1714
  %v1813 = vsel %vm1617, %v1406, %v1715
  %v1814 = vsel %vm1618, %v1409, %v1716
  %v1815 = vsel %vm1619, %v1412, %v1717
  %v1816 = vsel %vm1620, %v1415, %v1718
  %v1817 = vsel %vm1621, %v1418, %v1719
  %v1818 = vsel %vm1622, %v1421, %v1720
  %v1819 = vsel %vm1623, %v1424, %v1721
  %v1820 = vsel %vm1624, %v1427, %v1722
  %v1821 = vsel %vm1625, %v1430, %v1723
  %v1822 = vsel %vm1626, %v1433, %v1724
  %v1823 = vsel %vm1627, %v1436, %v1725
  %v1824 = vsel %vm1628, %v1439, %v1726
  %v1825 = vsel %vm1629, %v1442, %v1727
  %v1826 = vsel %vm1630, %v1445, %v1728
  %v1827 = vsel %vm1631, %v1448, %v1729
  %v1828 = vsel %vm1632, %v1451, %v1730
  %v1829 = vsel %vm1633, %v1454, %v1731
  %v1830 = vsel %vm1634, %v1457, %v1732
  %v1831 = vsel %vm1635, %v1460, %v1733
  %v1832 = vsel %vm1636, %v1463, %v1734
  %v1833 = vsel %vm1637, %v1466, %v1735
  %v1834 = vsel %vm1638, %v1469, %v1736
  %v1835 = vsel %vm1639, %v1472, %v1737
  %v1836 = vsel %vm1640, %v1475, %v1738
  %v1837 = vsel %vm1641, %v1478, %v1739
  %v1838 = vsel %vm1642, %v1481, %v1740
  %v1839 = vsel %vm1643, %v1484, %v1741
  %v1840 = vsel %vm1644, %v1487, %v1742
  %v1841 = vsel %vm1645, %v1490, %v1743
  %v1842 = vsel %vm1646, %v1493, %v1744
  %v1843 = vsel %vm1647, %v1496, %v1745
  %v1844 = vsel %vm1648, %v1499, %v1746
  %v1845 = vsel %vm1649, %v1502, %v1747
  %v1846 = vsel %vm1650, %v1505, %v1748
  %v1847 = vsel %vm1651, %v1508, %v1749
  %v1848 = vsel %vm1652, %v1511, %v1750
  %v1849 = vsel %vm1653, %v1514, %v1751
  %v1850 = vsel %vm1654, %v1517, %v1752
  %v1851 = vsel %vm1655, %v1520, %v1753
  %v1852 = vsel %vm1656, %v1523, %v1754
  %v1853 = vsel %vm1657, %v1526, %v1755
  %v1854 = vsel %vm1658, %v1529, %v1756
  %v1855 = vsel %vm1659, %v1532, %v1757
  %v1856 = vsel %vm1660, %v1535, %v1758
  %v1857 = vsel %vm1661, %v1538, %v1759
  %v1858 = vsel %vm1662, %v1541, %v1760
  %v1859 = vsel %vm1663, %v1544, %v1761
  %v1860 = vsel %vm1664, %v1547, %v1762
  %v1861 = vsel %vm1665, %v1550, %v1763
  %v1862 = vsel %vm1666, %v1553, %v1764
  %v1863 = vsel %vm1667, %v1556, %v1765
  %v1864 = vsel %vm1668, %v1559, %v1766
  %v1865 = vsel %vm1669, %v1562, %v1767
  %v1866 = vsel %vm1670, %v1565, %v1768
  %v1867 = vsel %vm1671, %v1568, %v1769
  %v1868 = vsel %vm1672, %v1571, %v1770
  %v1869 = vsel %vm1673, %v1574, %v1771
  %vm1870 = vcmask 130048
  %1871 = vst.msk [vmem:[%s3] sm:$0xff] %vm1870, %v1772
  %1872 = vst.msk [vmem:[%s3 + $0x8] sm:$0xff] %vm1870, %v1773
  %1873 = vst.msk [vmem:[%s3 + $0x10] sm:$0xff] %vm1870, %v1774
  %1874 = vst.msk [vmem:[%s3 + $0x18] sm:$0xff] %vm1870, %v1775
  %1875 = vst.msk [vmem:[%s3 + $0x20] sm:$0xff] %vm1870, %v1776
  %1876 = vst.msk [vmem:[%s3 + $0x28] sm:$0xff] %vm1870, %v1777
  %1877 = vst.msk [vmem:[%s3 + $0x30] sm:$0xff] %vm1870, %v1778
  %1878 = vst.msk [vmem:[%s3 + $0x38] sm:$0xff] %vm1870, %v1779
  %1879 = vst.msk [vmem:[%s3 + $0x40] sm:$0xff] %vm1870, %v1780
  %1880 = vst.msk [vmem:[%s3 + $0x48] sm:$0xff] %vm1870, %v1781
  %1881 = vst.msk [vmem:[%s3 + $0x50] sm:$0xff] %vm1870, %v1782
  %1882 = vst.msk [vmem:[%s3 + $0x58] sm:$0xff] %vm1870, %v1783
  %1883 = vst.msk [vmem:[%s3 + $0x60] sm:$0xff] %vm1870, %v1784
  %1884 = vst.msk [vmem:[%s3 + $0x68] sm:$0xff] %vm1870, %v1785
  %1885 = vst.msk [vmem:[%s3 + $0x70] sm:$0xff] %vm1870, %v1786
  %1886 = vst.msk [vmem:[%s3 + $0x78] sm:$0xff] %vm1870, %v1787
  %1887 = vst.msk [vmem:[%s3 + $0x80] sm:$0xff] %vm1870, %v1788
  %1888 = vst.msk [vmem:[%s3 + $0x88] sm:$0xff] %vm1870, %v1789
  %1889 = vst.msk [vmem:[%s3 + $0x90] sm:$0xff] %vm1870, %v1790
  %1890 = vst.msk [vmem:[%s3 + $0x98] sm:$0xff] %vm1870, %v1791
  %1891 = vst.msk [vmem:[%s3 + $0xa0] sm:$0xff] %vm1870, %v1792
  %1892 = vst.msk [vmem:[%s3 + $0xa8] sm:$0xff] %vm1870, %v1793
  %1893 = vst.msk [vmem:[%s3 + $0xb0] sm:$0xff] %vm1870, %v1794
  %1894 = vst.msk [vmem:[%s3 + $0xb8] sm:$0xff] %vm1870, %v1795
  %1895 = vst.msk [vmem:[%s3 + $0xc0] sm:$0xff] %vm1870, %v1796
  %1896 = vst.msk [vmem:[%s3 + $0xc8] sm:$0xff] %vm1870, %v1797
  %1897 = vst.msk [vmem:[%s3 + $0xd0] sm:$0xff] %vm1870, %v1798
  %1898 = vst.msk [vmem:[%s3 + $0xd8] sm:$0xff] %vm1870, %v1799
  %1899 = vst.msk [vmem:[%s3 + $0xe0] sm:$0xff] %vm1870, %v1800
  %1900 = vst.msk [vmem:[%s3 + $0xe8] sm:$0xff] %vm1870, %v1801
  %1901 = vst.msk [vmem:[%s3 + $0xf0] sm:$0xff] %vm1870, %v1802
  %1902 = vst.msk [vmem:[%s3 + $0xf8] sm:$0xff] %vm1870, %v1803
  %1903 = vst.msk [vmem:[%s3 + $0x100] sm:$0xff] %vm1870, %v1804
  %1904 = vst.msk [vmem:[%s3 + $0x108] sm:$0xff] %vm1870, %v1805
  %1905 = vst.msk [vmem:[%s3 + $0x110] sm:$0xff] %vm1870, %v1806
  %1906 = vst.msk [vmem:[%s3 + $0x118] sm:$0xff] %vm1870, %v1807
  %1907 = vst.msk [vmem:[%s3 + $0x120] sm:$0xff] %vm1870, %v1808
  %1908 = vst.msk [vmem:[%s3 + $0x128] sm:$0xff] %vm1870, %v1809
  %1909 = vst.msk [vmem:[%s3 + $0x130] sm:$0xff] %vm1870, %v1810
  %1910 = vst.msk [vmem:[%s3 + $0x138] sm:$0xff] %vm1870, %v1811
  %1911 = vst.msk [vmem:[%s3 + $0x140] sm:$0xff] %vm1870, %v1812
  %1912 = vst.msk [vmem:[%s3 + $0x148] sm:$0xff] %vm1870, %v1813
  %1913 = vst.msk [vmem:[%s3 + $0x150] sm:$0xff] %vm1870, %v1814
  %1914 = vst.msk [vmem:[%s3 + $0x158] sm:$0xff] %vm1870, %v1815
  %1915 = vst.msk [vmem:[%s3 + $0x160] sm:$0xff] %vm1870, %v1816
  %1916 = vst.msk [vmem:[%s3 + $0x168] sm:$0xff] %vm1870, %v1817
  %1917 = vst.msk [vmem:[%s3 + $0x170] sm:$0xff] %vm1870, %v1818
  %1918 = vst.msk [vmem:[%s3 + $0x178] sm:$0xff] %vm1870, %v1819
  %1919 = vst.msk [vmem:[%s3 + $0x180] sm:$0xff] %vm1870, %v1820
  %1920 = vst.msk [vmem:[%s3 + $0x188] sm:$0xff] %vm1870, %v1821
  %1921 = vst.msk [vmem:[%s3 + $0x190] sm:$0xff] %vm1870, %v1822
  %1922 = vst.msk [vmem:[%s3 + $0x198] sm:$0xff] %vm1870, %v1823
  %1923 = vst.msk [vmem:[%s3 + $0x1a0] sm:$0xff] %vm1870, %v1824
  %1924 = vst.msk [vmem:[%s3 + $0x1a8] sm:$0xff] %vm1870, %v1825
  %1925 = vst.msk [vmem:[%s3 + $0x1b0] sm:$0xff] %vm1870, %v1826
  %1926 = vst.msk [vmem:[%s3 + $0x1b8] sm:$0xff] %vm1870, %v1827
  %1927 = vst.msk [vmem:[%s3 + $0x1c0] sm:$0xff] %vm1870, %v1828
  %1928 = vst.msk [vmem:[%s3 + $0x1c8] sm:$0xff] %vm1870, %v1829
  %1929 = vst.msk [vmem:[%s3 + $0x1d0] sm:$0xff] %vm1870, %v1830
  %1930 = vst.msk [vmem:[%s3 + $0x1d8] sm:$0xff] %vm1870, %v1831
  %1931 = vst.msk [vmem:[%s3 + $0x1e0] sm:$0xff] %vm1870, %v1832
  %1932 = vst.msk [vmem:[%s3 + $0x1e8] sm:$0xff] %vm1870, %v1833
  %1933 = vst.msk [vmem:[%s3 + $0x1f0] sm:$0xff] %vm1870, %v1834
  %1934 = vst.msk [vmem:[%s3 + $0x1f8] sm:$0xff] %vm1870, %v1835
  %1935 = vst.msk [vmem:[%s3 + $0x200] sm:$0xff] %vm1870, %v1836
  %1936 = vst.msk [vmem:[%s3 + $0x208] sm:$0xff] %vm1870, %v1837
  %1937 = vst.msk [vmem:[%s3 + $0x210] sm:$0xff] %vm1870, %v1838
  %1938 = vst.msk [vmem:[%s3 + $0x218] sm:$0xff] %vm1870, %v1839
  %1939 = vst.msk [vmem:[%s3 + $0x220] sm:$0xff] %vm1870, %v1840
  %1940 = vst.msk [vmem:[%s3 + $0x228] sm:$0xff] %vm1870, %v1841
  %1941 = vst.msk [vmem:[%s3 + $0x230] sm:$0xff] %vm1870, %v1842
  %1942 = vst.msk [vmem:[%s3 + $0x238] sm:$0xff] %vm1870, %v1843
  %1943 = vst.msk [vmem:[%s3 + $0x240] sm:$0xff] %vm1870, %v1844
  %1944 = vst.msk [vmem:[%s3 + $0x248] sm:$0xff] %vm1870, %v1845
  %1945 = vst.msk [vmem:[%s3 + $0x250] sm:$0xff] %vm1870, %v1846
  %1946 = vst.msk [vmem:[%s3 + $0x258] sm:$0xff] %vm1870, %v1847
  %1947 = vst.msk [vmem:[%s3 + $0x260] sm:$0xff] %vm1870, %v1848
  %1948 = vst.msk [vmem:[%s3 + $0x268] sm:$0xff] %vm1870, %v1849
  %1949 = vst.msk [vmem:[%s3 + $0x270] sm:$0xff] %vm1870, %v1850
  %1950 = vst.msk [vmem:[%s3 + $0x278] sm:$0xff] %vm1870, %v1851
  %1951 = vst.msk [vmem:[%s3 + $0x280] sm:$0xff] %vm1870, %v1852
  %1952 = vst.msk [vmem:[%s3 + $0x288] sm:$0xff] %vm1870, %v1853
  %1953 = vst.msk [vmem:[%s3 + $0x290] sm:$0xff] %vm1870, %v1854
  %1954 = vst.msk [vmem:[%s3 + $0x298] sm:$0xff] %vm1870, %v1855
  %1955 = vst.msk [vmem:[%s3 + $0x2a0] sm:$0xff] %vm1870, %v1856
  %1956 = vst.msk [vmem:[%s3 + $0x2a8] sm:$0xff] %vm1870, %v1857
  %1957 = vst.msk [vmem:[%s3 + $0x2b0] sm:$0xff] %vm1870, %v1858
  %1958 = vst.msk [vmem:[%s3 + $0x2b8] sm:$0xff] %vm1870, %v1859
  %1959 = vst.msk [vmem:[%s3 + $0x2c0] sm:$0xff] %vm1870, %v1860
  %1960 = vst.msk [vmem:[%s3 + $0x2c8] sm:$0xff] %vm1870, %v1861
  %1961 = vst.msk [vmem:[%s3 + $0x2d0] sm:$0xff] %vm1870, %v1862
  %1962 = vst.msk [vmem:[%s3 + $0x2d8] sm:$0xff] %vm1870, %v1863
  %1963 = vst.msk [vmem:[%s3 + $0x2e0] sm:$0xff] %vm1870, %v1864
  %1964 = vst.msk [vmem:[%s3 + $0x2e8] sm:$0xff] %vm1870, %v1865
  %1965 = vst.msk [vmem:[%s3 + $0x2f0] sm:$0xff] %vm1870, %v1866
  %1966 = vst.msk [vmem:[%s3 + $0x2f8] sm:$0xff] %vm1870, %v1867
  %1967 = vst.msk [vmem:[%s3 + $0x300] sm:$0xff] %vm1870, %v1868
  %1968 = vst.msk [vmem:[%s3 + $0x308] sm:$0xff] %vm1870, %v1869
  // Predicated region
  $region14: #{mtrnn_forward.14} parent=0 // pred_check
    _
  $region15: #{mtrnn_forward.14} parent=0 // pred_check_branch
    %1970 = sbr.rel (0) target = $region17
  $region16: #{mtrnn_forward.14} parent=0 // pred_region
    _
  $region17: #{mtrnn_forward.14} parent=0 // pred_fallthru
    _
  // Predicated region
  $region18: #{mtrnn_forward.14} parent=0 // pred_check
    _
  $region19: #{mtrnn_forward.14} parent=0 // pred_check_branch
    %1972 = sbr.rel (0) target = $region21
  $region20: #{mtrnn_forward.14} parent=0 // pred_region
    _
  $region21: #{mtrnn_forward.14} parent=0 // pred_fallthru
    _

// kernel: mtrnn_forward.15
$region0: #{mtrnn_forward.15}
  #allocation0 [shape = 'u32[]', space=smem, size = 0x4, offset = 0x4, fixed_abs, tag = 'smem constant byte address 0x4 - core index']
  #allocation1 [shape = 'u32[72,128]{1,0:T(1,128)}', space=vmem, size = 0x9000, scoped, tag = 'internal scratch']
  %s0 = inlined_call_operand.vmem [shape: f32[1024,144], index: 0, kind: input, shape index: {}]
  %s1 = inlined_call_operand.vmem [shape: f32[144,3], index: 1, kind: input, shape index: {}]
  %s2 = inlined_call_operand.vmem [shape: f32[1,3], index: 2, kind: input, shape index: {}]
  %s3 = inlined_call_operand.vmem [shape: f32[1024,3], index: 3, kind: output, shape index: {}]
  %s4 = sld [smem:[#allocation0]]
  $region22: #{mtrnn_forward.15} parent=0
    _
  %s6 = ssub.s32 1, %s4
  %s7 = scalar_select 0, %s6, %s4
  // Predicated region
  $region2: #{mtrnn_forward.15} parent=0 // pred_check
    _
  $region3: #{mtrnn_forward.15} parent=0 // pred_check_branch
    %9 = sbr.rel (0) target = $region5
  $region4: #{mtrnn_forward.15} parent=0 // pred_region
    _
  $region5: #{mtrnn_forward.15} parent=0 // pred_fallthru
    _
  // Predicated region
  $region6: #{mtrnn_forward.15} parent=0 // pred_check
    _
  $region7: #{mtrnn_forward.15} parent=0 // pred_check_branch
    %11 = sbr.rel (0) target = $region9
  $region8: #{mtrnn_forward.15} parent=0 // pred_region
    _
  $region9: #{mtrnn_forward.15} parent=0 // pred_fallthru
    _
  // Predicated region
  $region10: #{mtrnn_forward.15} parent=0 // pred_check
    _
  $region11: #{mtrnn_forward.15} parent=0 // pred_check_branch
    %13 = sbr.rel (0) target = $region13
  $region12: #{mtrnn_forward.15} parent=0 // pred_region
    _
  $region13: #{mtrnn_forward.15} parent=0 // pred_fallthru
    _
  %v14 = vld [vmem:[%s0] sm:$0xff]
  %v15 = vld [vmem:[%s0 + $0x8] sm:$0xff]
  %v16 = vld [vmem:[%s0 + $0x10] sm:$0xff]
  %v17 = vld [vmem:[%s0 + $0x18] sm:$0xff]
  %v18 = vld [vmem:[%s0 + $0x20] sm:$0xff]
  %v19 = vld [vmem:[%s0 + $0x28] sm:$0xff]
  %v20 = vld [vmem:[%s0 + $0x30] sm:$0xff]
  %v21 = vld [vmem:[%s0 + $0x38] sm:$0xff]
  %v22 = vld [vmem:[%s0 + $0x40] sm:$0xff]
  %v23 = vld [vmem:[%s0 + $0x48] sm:$0xff]
  %v24 = vld [vmem:[%s0 + $0x50] sm:$0xff]
  %v25 = vld [vmem:[%s0 + $0x58] sm:$0xff]
  %v26 = vld [vmem:[%s0 + $0x60] sm:$0xff]
  %v27 = vld [vmem:[%s0 + $0x68] sm:$0xff]
  %v28 = vld [vmem:[%s0 + $0x70] sm:$0xff]
  %v29 = vld [vmem:[%s0 + $0x78] sm:$0xff]
  %v30 = vld [vmem:[%s0 + $0x80] sm:$0xff]
  %v31 = vld [vmem:[%s0 + $0x88] sm:$0xff]
  %v32 = vld [vmem:[%s0 + $0x90] sm:$0xff]
  %v33 = vld [vmem:[%s0 + $0x98] sm:$0xff]
  %v34 = vld [vmem:[%s0 + $0xa0] sm:$0xff]
  %v35 = vld [vmem:[%s0 + $0xa8] sm:$0xff]
  %v36 = vld [vmem:[%s0 + $0xb0] sm:$0xff]
  %v37 = vld [vmem:[%s0 + $0xb8] sm:$0xff]
  %v38 = vld [vmem:[%s0 + $0xc0] sm:$0xff]
  %v39 = vld [vmem:[%s0 + $0xc8] sm:$0xff]
  %v40 = vld [vmem:[%s0 + $0xd0] sm:$0xff]
  %v41 = vld [vmem:[%s0 + $0xd8] sm:$0xff]
  %v42 = vld [vmem:[%s0 + $0xe0] sm:$0xff]
  %v43 = vld [vmem:[%s0 + $0xe8] sm:$0xff]
  %v44 = vld [vmem:[%s0 + $0xf0] sm:$0xff]
  %v45 = vld [vmem:[%s0 + $0xf8] sm:$0xff]
  %v46 = vld [vmem:[%s0 + $0x100] sm:$0xff]
  %v47 = vld [vmem:[%s0 + $0x108] sm:$0xff]
  %v48 = vld [vmem:[%s0 + $0x110] sm:$0xff]
  %v49 = vld [vmem:[%s0 + $0x118] sm:$0xff]
  %v50 = vld [vmem:[%s0 + $0x120] sm:$0xff]
  %v51 = vld [vmem:[%s0 + $0x128] sm:$0xff]
  %v52 = vld [vmem:[%s0 + $0x130] sm:$0xff]
  %v53 = vld [vmem:[%s0 + $0x138] sm:$0xff]
  %v54 = vld [vmem:[%s0 + $0x140] sm:$0xff]
  %v55 = vld [vmem:[%s0 + $0x148] sm:$0xff]
  %v56 = vld [vmem:[%s0 + $0x150] sm:$0xff]
  %v57 = vld [vmem:[%s0 + $0x158] sm:$0xff]
  %v58 = vld [vmem:[%s0 + $0x160] sm:$0xff]
  %v59 = vld [vmem:[%s0 + $0x168] sm:$0xff]
  %v60 = vld [vmem:[%s0 + $0x170] sm:$0xff]
  %v61 = vld [vmem:[%s0 + $0x178] sm:$0xff]
  %v62 = vld [vmem:[%s0 + $0x180] sm:$0xff]
  %v63 = vld [vmem:[%s0 + $0x188] sm:$0xff]
  %v64 = vld [vmem:[%s0 + $0x190] sm:$0xff]
  %v65 = vld [vmem:[%s0 + $0x198] sm:$0xff]
  %v66 = vld [vmem:[%s0 + $0x1a0] sm:$0xff]
  %v67 = vld [vmem:[%s0 + $0x1a8] sm:$0xff]
  %v68 = vld [vmem:[%s0 + $0x1b0] sm:$0xff]
  %v69 = vld [vmem:[%s0 + $0x1b8] sm:$0xff]
  %v70 = vld [vmem:[%s0 + $0x1c0] sm:$0xff]
  %v71 = vld [vmem:[%s0 + $0x1c8] sm:$0xff]
  %v72 = vld [vmem:[%s0 + $0x1d0] sm:$0xff]
  %v73 = vld [vmem:[%s0 + $0x1d8] sm:$0xff]
  %v74 = vld [vmem:[%s0 + $0x1e0] sm:$0xff]
  %v75 = vld [vmem:[%s0 + $0x1e8] sm:$0xff]
  %v76 = vld [vmem:[%s0 + $0x1f0] sm:$0xff]
  %v77 = vld [vmem:[%s0 + $0x1f8] sm:$0xff]
  %v78 = vld [vmem:[%s0 + $0x200] sm:$0xff]
  %v79 = vld [vmem:[%s0 + $0x208] sm:$0xff]
  %v80 = vld [vmem:[%s0 + $0x210] sm:$0xff]
  %v81 = vld [vmem:[%s0 + $0x218] sm:$0xff]
  %v82 = vld [vmem:[%s0 + $0x220] sm:$0xff]
  %v83 = vld [vmem:[%s0 + $0x228] sm:$0xff]
  %v84 = vld [vmem:[%s0 + $0x230] sm:$0xff]
  %v85 = vld [vmem:[%s0 + $0x238] sm:$0xff]
  %v86 = vld [vmem:[%s0 + $0x240] sm:$0xff]
  %v87 = vld [vmem:[%s0 + $0x248] sm:$0xff]
  %v88 = vld [vmem:[%s0 + $0x250] sm:$0xff]
  %v89 = vld [vmem:[%s0 + $0x258] sm:$0xff]
  %v90 = vld [vmem:[%s0 + $0x260] sm:$0xff]
  %v91 = vld [vmem:[%s0 + $0x268] sm:$0xff]
  %v92 = vld [vmem:[%s0 + $0x270] sm:$0xff]
  %v93 = vld [vmem:[%s0 + $0x278] sm:$0xff]
  %v94 = vld [vmem:[%s0 + $0x280] sm:$0xff]
  %v95 = vld [vmem:[%s0 + $0x288] sm:$0xff]
  %v96 = vld [vmem:[%s0 + $0x290] sm:$0xff]
  %v97 = vld [vmem:[%s0 + $0x298] sm:$0xff]
  %v98 = vld [vmem:[%s0 + $0x2a0] sm:$0xff]
  %v99 = vld [vmem:[%s0 + $0x2a8] sm:$0xff]
  %v100 = vld [vmem:[%s0 + $0x2b0] sm:$0xff]
  %v101 = vld [vmem:[%s0 + $0x2b8] sm:$0xff]
  %v102 = vld [vmem:[%s0 + $0x2c0] sm:$0xff]
  %v103 = vld [vmem:[%s0 + $0x2c8] sm:$0xff]
  %v104 = vld [vmem:[%s0 + $0x2d0] sm:$0xff]
  %v105 = vld [vmem:[%s0 + $0x2d8] sm:$0xff]
  %v106 = vld [vmem:[%s0 + $0x2e0] sm:$0xff]
  %v107 = vld [vmem:[%s0 + $0x2e8] sm:$0xff]
  %v108 = vld [vmem:[%s0 + $0x2f0] sm:$0xff]
  %v109 = vld [vmem:[%s0 + $0x2f8] sm:$0xff]
  %v110 = vld [vmem:[%s0 + $0x300] sm:$0xff]
  %v111 = vld [vmem:[%s0 + $0x308] sm:$0xff]
  %v112 = vld [vmem:[%s0 + $0x310] sm:$0xff]
  %v113 = vld [vmem:[%s0 + $0x318] sm:$0xff]
  %v114 = vld [vmem:[%s0 + $0x320] sm:$0xff]
  %v115 = vld [vmem:[%s0 + $0x328] sm:$0xff]
  %v116 = vld [vmem:[%s0 + $0x330] sm:$0xff]
  %v117 = vld [vmem:[%s0 + $0x338] sm:$0xff]
  %v118 = vld [vmem:[%s0 + $0x340] sm:$0xff]
  %v119 = vld [vmem:[%s0 + $0x348] sm:$0xff]
  %v120 = vld [vmem:[%s0 + $0x350] sm:$0xff]
  %v121 = vld [vmem:[%s0 + $0x358] sm:$0xff]
  %v122 = vld [vmem:[%s0 + $0x360] sm:$0xff]
  %v123 = vld [vmem:[%s0 + $0x368] sm:$0xff]
  %v124 = vld [vmem:[%s0 + $0x370] sm:$0xff]
  %v125 = vld [vmem:[%s0 + $0x378] sm:$0xff]
  %v126 = vld [vmem:[%s0 + $0x380] sm:$0xff]
  %v127 = vld [vmem:[%s0 + $0x388] sm:$0xff]
  %v128 = vld [vmem:[%s0 + $0x390] sm:$0xff]
  %v129 = vld [vmem:[%s0 + $0x398] sm:$0xff]
  %v130 = vld [vmem:[%s0 + $0x3a0] sm:$0xff]
  %v131 = vld [vmem:[%s0 + $0x3a8] sm:$0xff]
  %v132 = vld [vmem:[%s0 + $0x3b0] sm:$0xff]
  %v133 = vld [vmem:[%s0 + $0x3b8] sm:$0xff]
  %v134 = vld [vmem:[%s0 + $0x3c0] sm:$0xff]
  %v135 = vld [vmem:[%s0 + $0x3c8] sm:$0xff]
  %v136 = vld [vmem:[%s0 + $0x3d0] sm:$0xff]
  %v137 = vld [vmem:[%s0 + $0x3d8] sm:$0xff]
  %v138 = vld [vmem:[%s0 + $0x3e0] sm:$0xff]
  %v139 = vld [vmem:[%s0 + $0x3e8] sm:$0xff]
  %v140 = vld [vmem:[%s0 + $0x3f0] sm:$0xff]
  %v141 = vld [vmem:[%s0 + $0x3f8] sm:$0xff]
  %v142 = vld [vmem:[%s0 + $0x400] sm:$0xff]
  %v143 = vld [vmem:[%s0 + $0x408] sm:$0xff]
  %v144 = vld [vmem:[%s0 + $0x410] sm:$0xff]
  %v145 = vld [vmem:[%s0 + $0x418] sm:$0xff]
  %v146 = vld [vmem:[%s0 + $0x420] sm:$0xff]
  %v147 = vld [vmem:[%s0 + $0x428] sm:$0xff]
  %v148 = vld [vmem:[%s0 + $0x430] sm:$0xff]
  %v149 = vld [vmem:[%s0 + $0x438] sm:$0xff]
  %v150 = vld [vmem:[%s0 + $0x440] sm:$0xff]
  %v151 = vld [vmem:[%s0 + $0x448] sm:$0xff]
  %v152 = vld [vmem:[%s0 + $0x450] sm:$0xff]
  %v153 = vld [vmem:[%s0 + $0x458] sm:$0xff]
  %v154 = vld [vmem:[%s0 + $0x460] sm:$0xff]
  %v155 = vld [vmem:[%s0 + $0x468] sm:$0xff]
  %v156 = vld [vmem:[%s0 + $0x470] sm:$0xff]
  %v157 = vld [vmem:[%s0 + $0x478] sm:$0xff]
  %v158 = vld [vmem:[%s0 + $0x480] sm:$0xff]
  %v159 = vld [vmem:[%s0 + $0x488] sm:$0xff]
  %v160 = vld [vmem:[%s0 + $0x490] sm:$0xff]
  %v161 = vld [vmem:[%s0 + $0x498] sm:$0xff]
  %v162 = vld [vmem:[%s0 + $0x4a0] sm:$0xff]
  %v163 = vld [vmem:[%s0 + $0x4a8] sm:$0xff]
  %v164 = vld [vmem:[%s0 + $0x4b0] sm:$0xff]
  %v165 = vld [vmem:[%s0 + $0x4b8] sm:$0xff]
  %v166 = vld [vmem:[%s0 + $0x4c0] sm:$0xff]
  %v167 = vld [vmem:[%s0 + $0x4c8] sm:$0xff]
  %v168 = vld [vmem:[%s0 + $0x4d0] sm:$0xff]
  %v169 = vld [vmem:[%s0 + $0x4d8] sm:$0xff]
  %v170 = vld [vmem:[%s0 + $0x4e0] sm:$0xff]
  %v171 = vld [vmem:[%s0 + $0x4e8] sm:$0xff]
  %v172 = vld [vmem:[%s0 + $0x4f0] sm:$0xff]
  %v173 = vld [vmem:[%s0 + $0x4f8] sm:$0xff]
  %v174 = vld [vmem:[%s0 + $0x500] sm:$0xff]
  %v175 = vld [vmem:[%s0 + $0x508] sm:$0xff]
  %v176 = vld [vmem:[%s0 + $0x510] sm:$0xff]
  %v177 = vld [vmem:[%s0 + $0x518] sm:$0xff]
  %v178 = vld [vmem:[%s0 + $0x520] sm:$0xff]
  %v179 = vld [vmem:[%s0 + $0x528] sm:$0xff]
  %v180 = vld [vmem:[%s0 + $0x530] sm:$0xff]
  %v181 = vld [vmem:[%s0 + $0x538] sm:$0xff]
  %v182 = vld [vmem:[%s0 + $0x540] sm:$0xff]
  %v183 = vld [vmem:[%s0 + $0x548] sm:$0xff]
  %v184 = vld [vmem:[%s0 + $0x550] sm:$0xff]
  %v185 = vld [vmem:[%s0 + $0x558] sm:$0xff]
  %v186 = vld [vmem:[%s0 + $0x560] sm:$0xff]
  %v187 = vld [vmem:[%s0 + $0x568] sm:$0xff]
  %v188 = vld [vmem:[%s0 + $0x570] sm:$0xff]
  %v189 = vld [vmem:[%s0 + $0x578] sm:$0xff]
  %v190 = vld [vmem:[%s0 + $0x580] sm:$0xff]
  %v191 = vld [vmem:[%s0 + $0x588] sm:$0xff]
  %v192 = vld [vmem:[%s0 + $0x590] sm:$0xff]
  %v193 = vld [vmem:[%s0 + $0x598] sm:$0xff]
  %v194 = vld [vmem:[%s0 + $0x5a0] sm:$0xff]
  %v195 = vld [vmem:[%s0 + $0x5a8] sm:$0xff]
  %v196 = vld [vmem:[%s0 + $0x5b0] sm:$0xff]
  %v197 = vld [vmem:[%s0 + $0x5b8] sm:$0xff]
  %v198 = vld [vmem:[%s0 + $0x5c0] sm:$0xff]
  %v199 = vld [vmem:[%s0 + $0x5c8] sm:$0xff]
  %v200 = vld [vmem:[%s0 + $0x5d0] sm:$0xff]
  %v201 = vld [vmem:[%s0 + $0x5d8] sm:$0xff]
  %v202 = vld [vmem:[%s0 + $0x5e0] sm:$0xff]
  %v203 = vld [vmem:[%s0 + $0x5e8] sm:$0xff]
  %v204 = vld [vmem:[%s0 + $0x5f0] sm:$0xff]
  %v205 = vld [vmem:[%s0 + $0x5f8] sm:$0xff]
  %v206 = vld [vmem:[%s0 + $0x600] sm:$0xff]
  %v207 = vld [vmem:[%s0 + $0x608] sm:$0xff]
  %v208 = vld [vmem:[%s0 + $0x610] sm:$0xff]
  %v209 = vld [vmem:[%s0 + $0x618] sm:$0xff]
  %v210 = vld [vmem:[%s0 + $0x620] sm:$0xff]
  %v211 = vld [vmem:[%s0 + $0x628] sm:$0xff]
  %v212 = vld [vmem:[%s0 + $0x630] sm:$0xff]
  %v213 = vld [vmem:[%s0 + $0x638] sm:$0xff]
  %v214 = vld [vmem:[%s0 + $0x640] sm:$0xff]
  %v215 = vld [vmem:[%s0 + $0x648] sm:$0xff]
  %v216 = vld [vmem:[%s0 + $0x650] sm:$0xff]
  %v217 = vld [vmem:[%s0 + $0x658] sm:$0xff]
  %v218 = vld [vmem:[%s0 + $0x660] sm:$0xff]
  %v219 = vld [vmem:[%s0 + $0x668] sm:$0xff]
  %v220 = vld [vmem:[%s0 + $0x670] sm:$0xff]
  %v221 = vld [vmem:[%s0 + $0x678] sm:$0xff]
  %v222 = vld [vmem:[%s0 + $0x680] sm:$0xff]
  %v223 = vld [vmem:[%s0 + $0x688] sm:$0xff]
  %v224 = vld [vmem:[%s0 + $0x690] sm:$0xff]
  %v225 = vld [vmem:[%s0 + $0x698] sm:$0xff]
  %v226 = vld [vmem:[%s0 + $0x6a0] sm:$0xff]
  %v227 = vld [vmem:[%s0 + $0x6a8] sm:$0xff]
  %v228 = vld [vmem:[%s0 + $0x6b0] sm:$0xff]
  %v229 = vld [vmem:[%s0 + $0x6b8] sm:$0xff]
  %v230 = vld [vmem:[%s0 + $0x6c0] sm:$0xff]
  %v231 = vld [vmem:[%s0 + $0x6c8] sm:$0xff]
  %v232 = vld [vmem:[%s0 + $0x6d0] sm:$0xff]
  %v233 = vld [vmem:[%s0 + $0x6d8] sm:$0xff]
  %v234 = vld [vmem:[%s0 + $0x6e0] sm:$0xff]
  %v235 = vld [vmem:[%s0 + $0x6e8] sm:$0xff]
  %v236 = vld [vmem:[%s0 + $0x6f0] sm:$0xff]
  %v237 = vld [vmem:[%s0 + $0x6f8] sm:$0xff]
  %v238 = vld [vmem:[%s0 + $0x700] sm:$0xff]
  %v239 = vld [vmem:[%s0 + $0x708] sm:$0xff]
  %v240 = vld [vmem:[%s0 + $0x710] sm:$0xff]
  %v241 = vld [vmem:[%s0 + $0x718] sm:$0xff]
  %v242 = vld [vmem:[%s0 + $0x720] sm:$0xff]
  %v243 = vld [vmem:[%s0 + $0x728] sm:$0xff]
  %v244 = vld [vmem:[%s0 + $0x730] sm:$0xff]
  %v245 = vld [vmem:[%s0 + $0x738] sm:$0xff]
  %v246 = vld [vmem:[%s0 + $0x740] sm:$0xff]
  %v247 = vld [vmem:[%s0 + $0x748] sm:$0xff]
  %v248 = vld [vmem:[%s0 + $0x750] sm:$0xff]
  %v249 = vld [vmem:[%s0 + $0x758] sm:$0xff]
  %v250 = vld [vmem:[%s0 + $0x760] sm:$0xff]
  %v251 = vld [vmem:[%s0 + $0x768] sm:$0xff]
  %v252 = vld [vmem:[%s0 + $0x770] sm:$0xff]
  %v253 = vld [vmem:[%s0 + $0x778] sm:$0xff]
  %v254 = vld [vmem:[%s0 + $0x780] sm:$0xff]
  %v255 = vld [vmem:[%s0 + $0x788] sm:$0xff]
  %v256 = vld [vmem:[%s0 + $0x790] sm:$0xff]
  %v257 = vld [vmem:[%s0 + $0x798] sm:$0xff]
  %v258 = vld [vmem:[%s0 + $0x7a0] sm:$0xff]
  %v259 = vld [vmem:[%s0 + $0x7a8] sm:$0xff]
  %v260 = vld [vmem:[%s0 + $0x7b0] sm:$0xff]
  %v261 = vld [vmem:[%s0 + $0x7b8] sm:$0xff]
  %v262 = vld [vmem:[%s0 + $0x7c0] sm:$0xff]
  %v263 = vld [vmem:[%s0 + $0x7c8] sm:$0xff]
  %v264 = vld [vmem:[%s0 + $0x7d0] sm:$0xff]
  %v265 = vld [vmem:[%s0 + $0x7d8] sm:$0xff]
  %v266 = vld [vmem:[%s0 + $0x7e0] sm:$0xff]
  %v267 = vld [vmem:[%s0 + $0x7e8] sm:$0xff]
  %v268 = vld [vmem:[%s0 + $0x7f0] sm:$0xff]
  %v269 = vld [vmem:[%s0 + $0x7f8] sm:$0xff]
  %v270 = vld [vmem:[%s1] sm:$0xff]
  %v271 = vld [vmem:[%s1 + $0x8] sm:$0xff]
  %v272 = vld [vmem:[%s1 + $0x10] sm:$0xff]
  %v273 = vld [vmem:[%s1 + $0x18] sm:$0xff]
  %v274 = vld [vmem:[%s1 + $0x20] sm:$0xff]
  %v275 = vld [vmem:[%s1 + $0x28] sm:$0xff]
  %v276 = vld [vmem:[%s1 + $0x30] sm:$0xff]
  %v277 = vld [vmem:[%s1 + $0x38] sm:$0xff]
  %v278 = vld [vmem:[%s1 + $0x40] sm:$0xff]
  %v279 = vld [vmem:[%s1 + $0x48] sm:$0xff]
  %v280 = vld [vmem:[%s1 + $0x50] sm:$0xff]
  %v281 = vld [vmem:[%s1 + $0x58] sm:$0xff]
  %v282 = vld [vmem:[%s1 + $0x60] sm:$0xff]
  %v283 = vld [vmem:[%s1 + $0x68] sm:$0xff]
  %v284 = vld [vmem:[%s1 + $0x70] sm:$0xff]
  %v285 = vld [vmem:[%s1 + $0x78] sm:$0xff]
  %v286 = vld [vmem:[%s1 + $0x80] sm:$0xff]
  %v287 = vld [vmem:[%s1 + $0x88] sm:$0xff]
  %v288 = vld [vmem:[%s2] sm:$0x1]
  %v290 = vperm.slane %v288, 0
  %vm292 = vcmask 130048
  %v294 = vsel %vm292, %v15, 0
  %v297 = vsel %vm292, %v17, 0
  %v300 = vsel %vm292, %v19, 0
  %v303 = vsel %vm292, %v21, 0
  %v306 = vsel %vm292, %v23, 0
  %v309 = vsel %vm292, %v25, 0
  %v312 = vsel %vm292, %v27, 0
  %v315 = vsel %vm292, %v29, 0
  %v318 = vsel %vm292, %v31, 0
  %v321 = vsel %vm292, %v33, 0
  %v324 = vsel %vm292, %v35, 0
  %v327 = vsel %vm292, %v37, 0
  %v330 = vsel %vm292, %v39, 0
  %v333 = vsel %vm292, %v41, 0
  %v336 = vsel %vm292, %v43, 0
  %v339 = vsel %vm292, %v45, 0
  %v342 = vsel %vm292, %v47, 0
  %v345 = vsel %vm292, %v49, 0
  %v348 = vsel %vm292, %v51, 0
  %v351 = vsel %vm292, %v53, 0
  %v354 = vsel %vm292, %v55, 0
  %v357 = vsel %vm292, %v57, 0
  %v360 = vsel %vm292, %v59, 0
  %v363 = vsel %vm292, %v61, 0
  %v366 = vsel %vm292, %v63, 0
  %v369 = vsel %vm292, %v65, 0
  %v372 = vsel %vm292, %v67, 0
  %v375 = vsel %vm292, %v69, 0
  %v378 = vsel %vm292, %v71, 0
  %v381 = vsel %vm292, %v73, 0
  %v384 = vsel %vm292, %v75, 0
  %v387 = vsel %vm292, %v77, 0
  %v390 = vsel %vm292, %v79, 0
  %v393 = vsel %vm292, %v81, 0
  %v396 = vsel %vm292, %v83, 0
  %v399 = vsel %vm292, %v85, 0
  %v402 = vsel %vm292, %v87, 0
  %v405 = vsel %vm292, %v89, 0
  %v408 = vsel %vm292, %v91, 0
  %v411 = vsel %vm292, %v93, 0
  %v414 = vsel %vm292, %v95, 0
  %v417 = vsel %vm292, %v97, 0
  %v420 = vsel %vm292, %v99, 0
  %v423 = vsel %vm292, %v101, 0
  %v426 = vsel %vm292, %v103, 0
  %v429 = vsel %vm292, %v105, 0
  %v432 = vsel %vm292, %v107, 0
  %v435 = vsel %vm292, %v109, 0
  %v438 = vsel %vm292, %v111, 0
  %v441 = vsel %vm292, %v113, 0
  %v444 = vsel %vm292, %v115, 0
  %v447 = vsel %vm292, %v117, 0
  %v450 = vsel %vm292, %v119, 0
  %v453 = vsel %vm292, %v121, 0
  %v456 = vsel %vm292, %v123, 0
  %v459 = vsel %vm292, %v125, 0
  %v462 = vsel %vm292, %v127, 0
  %v465 = vsel %vm292, %v129, 0
  %v468 = vsel %vm292, %v131, 0
  %v471 = vsel %vm292, %v133, 0
  %v474 = vsel %vm292, %v135, 0
  %v477 = vsel %vm292, %v137, 0
  %v480 = vsel %vm292, %v139, 0
  %v483 = vsel %vm292, %v141, 0
  %v486 = vsel %vm292, %v143, 0
  %v489 = vsel %vm292, %v145, 0
  %v492 = vsel %vm292, %v147, 0
  %v495 = vsel %vm292, %v149, 0
  %v498 = vsel %vm292, %v151, 0
  %v501 = vsel %vm292, %v153, 0
  %v504 = vsel %vm292, %v155, 0
  %v507 = vsel %vm292, %v157, 0
  %v510 = vsel %vm292, %v159, 0
  %v513 = vsel %vm292, %v161, 0
  %v516 = vsel %vm292, %v163, 0
  %v519 = vsel %vm292, %v165, 0
  %v522 = vsel %vm292, %v167, 0
  %v525 = vsel %vm292, %v169, 0
  %v528 = vsel %vm292, %v171, 0
  %v531 = vsel %vm292, %v173, 0
  %v534 = vsel %vm292, %v175, 0
  %v537 = vsel %vm292, %v177, 0
  %v540 = vsel %vm292, %v179, 0
  %v543 = vsel %vm292, %v181, 0
  %v546 = vsel %vm292, %v183, 0
  %v549 = vsel %vm292, %v185, 0
  %v552 = vsel %vm292, %v187, 0
  %v555 = vsel %vm292, %v189, 0
  %v558 = vsel %vm292, %v191, 0
  %v561 = vsel %vm292, %v193, 0
  %v564 = vsel %vm292, %v195, 0
  %v567 = vsel %vm292, %v197, 0
  %v570 = vsel %vm292, %v199, 0
  %v573 = vsel %vm292, %v201, 0
  %v576 = vsel %vm292, %v203, 0
  %v579 = vsel %vm292, %v205, 0
  %v582 = vsel %vm292, %v207, 0
  %v585 = vsel %vm292, %v209, 0
  %v588 = vsel %vm292, %v211, 0
  %v591 = vsel %vm292, %v213, 0
  %v594 = vsel %vm292, %v215, 0
  %v597 = vsel %vm292, %v217, 0
  %v600 = vsel %vm292, %v219, 0
  %v603 = vsel %vm292, %v221, 0
  %v606 = vsel %vm292, %v223, 0
  %v609 = vsel %vm292, %v225, 0
  %v612 = vsel %vm292, %v227, 0
  %v615 = vsel %vm292, %v229, 0
  %v618 = vsel %vm292, %v231, 0
  %v621 = vsel %vm292, %v233, 0
  %v624 = vsel %vm292, %v235, 0
  %v627 = vsel %vm292, %v237, 0
  %v630 = vsel %vm292, %v239, 0
  %v633 = vsel %vm292, %v241, 0
  %v636 = vsel %vm292, %v243, 0
  %v639 = vsel %vm292, %v245, 0
  %v642 = vsel %vm292, %v247, 0
  %v645 = vsel %vm292, %v249, 0
  %v648 = vsel %vm292, %v251, 0
  %v651 = vsel %vm292, %v253, 0
  %v654 = vsel %vm292, %v255, 0
  %v657 = vsel %vm292, %v257, 0
  %v660 = vsel %vm292, %v259, 0
  %v663 = vsel %vm292, %v261, 0
  %v666 = vsel %vm292, %v263, 0
  %v669 = vsel %vm292, %v265, 0
  %v672 = vsel %vm292, %v267, 0
  %v675 = vsel %vm292, %v269, 0
  %677 = vmatpush.msra.mxu0 %v285
  %678 = vmatpush.msra.mxu0 %v284
  %679 = vmatpush.msra.mxu0 %v283
  %680 = vmatpush.msra.mxu0 %v282
  %681 = vmatpush.msra.mxu0 %v281
  %682 = vmatpush.msra.mxu0 %v280
  %683 = vmatpush.msra.mxu0 %v279
  %684 = vmatpush.msra.mxu0 %v278
  %685 = vmatpush.msra.mxu0 %v277
  %686 = vmatpush.msra.mxu0 %v276
  %687 = vmatpush.msra.mxu0 %v275
  %688 = vmatpush.msra.mxu0 %v274
  %689 = vmatpush.msra.mxu0 %v273
  %690 = vmatpush.msra.mxu0 %v272
  %691 = vmatpush.msra.mxu0 %v271
  %692 = vmatpush.msra.mxu0 %v270
  %693 = vmatmul.f32.gmra.mxu0 %v14
  %v694 = vpop.f32.mrf.mxu0
  %v695 = vadd.f32 %v290, %v694
  %696 = vmatmul.f32.gmra.mxu0 %v16
  %v697 = vpop.f32.mrf.mxu0
  %v698 = vadd.f32 %v290, %v697
  %699 = vmatmul.f32.gmra.mxu0 %v18
  %v700 = vpop.f32.mrf.mxu0
  %v701 = vadd.f32 %v290, %v700
  %702 = vmatmul.f32.gmra.mxu0 %v20
  %v703 = vpop.f32.mrf.mxu0
  %v704 = vadd.f32 %v290, %v703
  %705 = vmatmul.f32.gmra.mxu0 %v22
  %v706 = vpop.f32.mrf.mxu0
  %v707 = vadd.f32 %v290, %v706
  %708 = vmatmul.f32.gmra.mxu0 %v24
  %v709 = vpop.f32.mrf.mxu0
  %v710 = vadd.f32 %v290, %v709
  %711 = vmatmul.f32.gmra.mxu0 %v26
  %v712 = vpop.f32.mrf.mxu0
  %v713 = vadd.f32 %v290, %v712
  %714 = vmatmul.f32.gmra.mxu0 %v28
  %v715 = vpop.f32.mrf.mxu0
  %v716 = vadd.f32 %v290, %v715
  %717 = vmatmul.f32.gmra.mxu0 %v30
  %v718 = vpop.f32.mrf.mxu0
  %v719 = vadd.f32 %v290, %v718
  %720 = vmatmul.f32.gmra.mxu0 %v32
  %v721 = vpop.f32.mrf.mxu0
  %v722 = vadd.f32 %v290, %v721
  %723 = vmatmul.f32.gmra.mxu0 %v34
  %v724 = vpop.f32.mrf.mxu0
  %v725 = vadd.f32 %v290, %v724
  %726 = vmatmul.f32.gmra.mxu0 %v36
  %v727 = vpop.f32.mrf.mxu0
  %v728 = vadd.f32 %v290, %v727
  %729 = vmatmul.f32.gmra.mxu0 %v38
  %v730 = vpop.f32.mrf.mxu0
  %v731 = vadd.f32 %v290, %v730
  %732 = vmatmul.f32.gmra.mxu0 %v40
  %v733 = vpop.f32.mrf.mxu0
  %v734 = vadd.f32 %v290, %v733
  %735 = vmatmul.f32.gmra.mxu0 %v42
  %v736 = vpop.f32.mrf.mxu0
  %v737 = vadd.f32 %v290, %v736
  %738 = vmatmul.f32.gmra.mxu0 %v44
  %v739 = vpop.f32.mrf.mxu0
  %v740 = vadd.f32 %v290, %v739
  %741 = vmatmul.f32.gmra.mxu0 %v46
  %v742 = vpop.f32.mrf.mxu0
  %v743 = vadd.f32 %v290, %v742
  %744 = vmatmul.f32.gmra.mxu0 %v48
  %v745 = vpop.f32.mrf.mxu0
  %v746 = vadd.f32 %v290, %v745
  %747 = vmatmul.f32.gmra.mxu0 %v50
  %v748 = vpop.f32.mrf.mxu0
  %v749 = vadd.f32 %v290, %v748
  %750 = vmatmul.f32.gmra.mxu0 %v52
  %v751 = vpop.f32.mrf.mxu0
  %v752 = vadd.f32 %v290, %v751
  %753 = vmatmul.f32.gmra.mxu0 %v54
  %v754 = vpop.f32.mrf.mxu0
  %v755 = vadd.f32 %v290, %v754
  %756 = vmatmul.f32.gmra.mxu0 %v56
  %v757 = vpop.f32.mrf.mxu0
  %v758 = vadd.f32 %v290, %v757
  %759 = vmatmul.f32.gmra.mxu0 %v58
  %v760 = vpop.f32.mrf.mxu0
  %v761 = vadd.f32 %v290, %v760
  %762 = vmatmul.f32.gmra.mxu0 %v60
  %v763 = vpop.f32.mrf.mxu0
  %v764 = vadd.f32 %v290, %v763
  %765 = vmatmul.f32.gmra.mxu0 %v62
  %v766 = vpop.f32.mrf.mxu0
  %v767 = vadd.f32 %v290, %v766
  %768 = vmatmul.f32.gmra.mxu0 %v64
  %v769 = vpop.f32.mrf.mxu0
  %v770 = vadd.f32 %v290, %v769
  %771 = vmatmul.f32.gmra.mxu0 %v66
  %v772 = vpop.f32.mrf.mxu0
  %v773 = vadd.f32 %v290, %v772
  %774 = vmatmul.f32.gmra.mxu0 %v68
  %v775 = vpop.f32.mrf.mxu0
  %v776 = vadd.f32 %v290, %v775
  %777 = vmatmul.f32.gmra.mxu0 %v70
  %v778 = vpop.f32.mrf.mxu0
  %v779 = vadd.f32 %v290, %v778
  %780 = vmatmul.f32.gmra.mxu0 %v72
  %v781 = vpop.f32.mrf.mxu0
  %v782 = vadd.f32 %v290, %v781
  %783 = vmatmul.f32.gmra.mxu0 %v74
  %v784 = vpop.f32.mrf.mxu0
  %v785 = vadd.f32 %v290, %v784
  %786 = vmatmul.f32.gmra.mxu0 %v76
  %v787 = vpop.f32.mrf.mxu0
  %v788 = vadd.f32 %v290, %v787
  %789 = vmatmul.f32.gmra.mxu0 %v78
  %v790 = vpop.f32.mrf.mxu0
  %v791 = vadd.f32 %v290, %v790
  %792 = vmatmul.f32.gmra.mxu0 %v80
  %v793 = vpop.f32.mrf.mxu0
  %v794 = vadd.f32 %v290, %v793
  %795 = vmatmul.f32.gmra.mxu0 %v82
  %v796 = vpop.f32.mrf.mxu0
  %v797 = vadd.f32 %v290, %v796
  %798 = vmatmul.f32.gmra.mxu0 %v84
  %v799 = vpop.f32.mrf.mxu0
  %v800 = vadd.f32 %v290, %v799
  %801 = vmatmul.f32.gmra.mxu0 %v86
  %v802 = vpop.f32.mrf.mxu0
  %v803 = vadd.f32 %v290, %v802
  %804 = vmatmul.f32.gmra.mxu0 %v88
  %v805 = vpop.f32.mrf.mxu0
  %v806 = vadd.f32 %v290, %v805
  %807 = vmatmul.f32.gmra.mxu0 %v90
  %v808 = vpop.f32.mrf.mxu0
  %v809 = vadd.f32 %v290, %v808
  %810 = vmatmul.f32.gmra.mxu0 %v92
  %v811 = vpop.f32.mrf.mxu0
  %v812 = vadd.f32 %v290, %v811
  %813 = vmatmul.f32.gmra.mxu0 %v94
  %v814 = vpop.f32.mrf.mxu0
  %v815 = vadd.f32 %v290, %v814
  %816 = vmatmul.f32.gmra.mxu0 %v96
  %v817 = vpop.f32.mrf.mxu0
  %v818 = vadd.f32 %v290, %v817
  %819 = vmatmul.f32.gmra.mxu0 %v98
  %v820 = vpop.f32.mrf.mxu0
  %v821 = vadd.f32 %v290, %v820
  %822 = vmatmul.f32.gmra.mxu0 %v100
  %v823 = vpop.f32.mrf.mxu0
  %v824 = vadd.f32 %v290, %v823
  %825 = vmatmul.f32.gmra.mxu0 %v102
  %v826 = vpop.f32.mrf.mxu0
  %v827 = vadd.f32 %v290, %v826
  %828 = vmatmul.f32.gmra.mxu0 %v104
  %v829 = vpop.f32.mrf.mxu0
  %v830 = vadd.f32 %v290, %v829
  %831 = vmatmul.f32.gmra.mxu0 %v106
  %v832 = vpop.f32.mrf.mxu0
  %v833 = vadd.f32 %v290, %v832
  %834 = vmatmul.f32.gmra.mxu0 %v108
  %v835 = vpop.f32.mrf.mxu0
  %v836 = vadd.f32 %v290, %v835
  %837 = vmatmul.f32.gmra.mxu0 %v110
  %v838 = vpop.f32.mrf.mxu0
  %v839 = vadd.f32 %v290, %v838
  %840 = vmatmul.f32.gmra.mxu0 %v112
  %v841 = vpop.f32.mrf.mxu0
  %v842 = vadd.f32 %v290, %v841
  %843 = vmatmul.f32.gmra.mxu0 %v114
  %v844 = vpop.f32.mrf.mxu0
  %v845 = vadd.f32 %v290, %v844
  %846 = vmatmul.f32.gmra.mxu0 %v116
  %v847 = vpop.f32.mrf.mxu0
  %v848 = vadd.f32 %v290, %v847
  %849 = vmatmul.f32.gmra.mxu0 %v118
  %v850 = vpop.f32.mrf.mxu0
  %v851 = vadd.f32 %v290, %v850
  %852 = vmatmul.f32.gmra.mxu0 %v120
  %v853 = vpop.f32.mrf.mxu0
  %v854 = vadd.f32 %v290, %v853
  %855 = vmatmul.f32.gmra.mxu0 %v122
  %v856 = vpop.f32.mrf.mxu0
  %v857 = vadd.f32 %v290, %v856
  %858 = vmatmul.f32.gmra.mxu0 %v124
  %v859 = vpop.f32.mrf.mxu0
  %v860 = vadd.f32 %v290, %v859
  %861 = vmatmul.f32.gmra.mxu0 %v126
  %v862 = vpop.f32.mrf.mxu0
  %v863 = vadd.f32 %v290, %v862
  %864 = vmatmul.f32.gmra.mxu0 %v128
  %v865 = vpop.f32.mrf.mxu0
  %v866 = vadd.f32 %v290, %v865
  %867 = vmatmul.f32.gmra.mxu0 %v130
  %v868 = vpop.f32.mrf.mxu0
  %v869 = vadd.f32 %v290, %v868
  %870 = vmatmul.f32.gmra.mxu0 %v132
  %v871 = vpop.f32.mrf.mxu0
  %v872 = vadd.f32 %v290, %v871
  %873 = vmatmul.f32.gmra.mxu0 %v134
  %v874 = vpop.f32.mrf.mxu0
  %v875 = vadd.f32 %v290, %v874
  %876 = vmatmul.f32.gmra.mxu0 %v136
  %v877 = vpop.f32.mrf.mxu0
  %v878 = vadd.f32 %v290, %v877
  %879 = vmatmul.f32.gmra.mxu0 %v138
  %v880 = vpop.f32.mrf.mxu0
  %v881 = vadd.f32 %v290, %v880
  %882 = vmatmul.f32.gmra.mxu0 %v140
  %v883 = vpop.f32.mrf.mxu0
  %v884 = vadd.f32 %v290, %v883
  %885 = vmatmul.f32.gmra.mxu0 %v142
  %v886 = vpop.f32.mrf.mxu0
  %v887 = vadd.f32 %v290, %v886
  %888 = vmatmul.f32.gmra.mxu0 %v144
  %v889 = vpop.f32.mrf.mxu0
  %v890 = vadd.f32 %v290, %v889
  %891 = vmatmul.f32.gmra.mxu0 %v146
  %v892 = vpop.f32.mrf.mxu0
  %v893 = vadd.f32 %v290, %v892
  %894 = vmatmul.f32.gmra.mxu0 %v148
  %v895 = vpop.f32.mrf.mxu0
  %v896 = vadd.f32 %v290, %v895
  %897 = vmatmul.f32.gmra.mxu0 %v150
  %v898 = vpop.f32.mrf.mxu0
  %v899 = vadd.f32 %v290, %v898
  %900 = vmatmul.f32.gmra.mxu0 %v152
  %v901 = vpop.f32.mrf.mxu0
  %v902 = vadd.f32 %v290, %v901
  %903 = vmatmul.f32.gmra.mxu0 %v154
  %v904 = vpop.f32.mrf.mxu0
  %v905 = vadd.f32 %v290, %v904
  %906 = vmatmul.f32.gmra.mxu0 %v156
  %v907 = vpop.f32.mrf.mxu0
  %v908 = vadd.f32 %v290, %v907
  %909 = vmatmul.f32.gmra.mxu0 %v158
  %v910 = vpop.f32.mrf.mxu0
  %v911 = vadd.f32 %v290, %v910
  %912 = vmatmul.f32.gmra.mxu0 %v160
  %v913 = vpop.f32.mrf.mxu0
  %v914 = vadd.f32 %v290, %v913
  %915 = vmatmul.f32.gmra.mxu0 %v162
  %v916 = vpop.f32.mrf.mxu0
  %v917 = vadd.f32 %v290, %v916
  %918 = vmatmul.f32.gmra.mxu0 %v164
  %v919 = vpop.f32.mrf.mxu0
  %v920 = vadd.f32 %v290, %v919
  %921 = vmatmul.f32.gmra.mxu0 %v166
  %v922 = vpop.f32.mrf.mxu0
  %v923 = vadd.f32 %v290, %v922
  %924 = vmatmul.f32.gmra.mxu0 %v168
  %v925 = vpop.f32.mrf.mxu0
  %v926 = vadd.f32 %v290, %v925
  %927 = vmatmul.f32.gmra.mxu0 %v170
  %v928 = vpop.f32.mrf.mxu0
  %v929 = vadd.f32 %v290, %v928
  %930 = vmatmul.f32.gmra.mxu0 %v172
  %v931 = vpop.f32.mrf.mxu0
  %v932 = vadd.f32 %v290, %v931
  %933 = vmatmul.f32.gmra.mxu0 %v174
  %v934 = vpop.f32.mrf.mxu0
  %v935 = vadd.f32 %v290, %v934
  %936 = vmatmul.f32.gmra.mxu0 %v176
  %v937 = vpop.f32.mrf.mxu0
  %v938 = vadd.f32 %v290, %v937
  %939 = vmatmul.f32.gmra.mxu0 %v178
  %v940 = vpop.f32.mrf.mxu0
  %v941 = vadd.f32 %v290, %v940
  %942 = vmatmul.f32.gmra.mxu0 %v180
  %v943 = vpop.f32.mrf.mxu0
  %v944 = vadd.f32 %v290, %v943
  %945 = vmatmul.f32.gmra.mxu0 %v182
  %v946 = vpop.f32.mrf.mxu0
  %v947 = vadd.f32 %v290, %v946
  %948 = vmatmul.f32.gmra.mxu0 %v184
  %v949 = vpop.f32.mrf.mxu0
  %v950 = vadd.f32 %v290, %v949
  %951 = vmatmul.f32.gmra.mxu0 %v186
  %v952 = vpop.f32.mrf.mxu0
  %v953 = vadd.f32 %v290, %v952
  %954 = vmatmul.f32.gmra.mxu0 %v188
  %v955 = vpop.f32.mrf.mxu0
  %v956 = vadd.f32 %v290, %v955
  %957 = vmatmul.f32.gmra.mxu0 %v190
  %v958 = vpop.f32.mrf.mxu0
  %v959 = vadd.f32 %v290, %v958
  %960 = vmatmul.f32.gmra.mxu0 %v192
  %v961 = vpop.f32.mrf.mxu0
  %v962 = vadd.f32 %v290, %v961
  %963 = vmatmul.f32.gmra.mxu0 %v194
  %v964 = vpop.f32.mrf.mxu0
  %v965 = vadd.f32 %v290, %v964
  %966 = vmatmul.f32.gmra.mxu0 %v196
  %v967 = vpop.f32.mrf.mxu0
  %v968 = vadd.f32 %v290, %v967
  %969 = vmatmul.f32.gmra.mxu0 %v198
  %v970 = vpop.f32.mrf.mxu0
  %v971 = vadd.f32 %v290, %v970
  %972 = vmatmul.f32.gmra.mxu0 %v200
  %v973 = vpop.f32.mrf.mxu0
  %v974 = vadd.f32 %v290, %v973
  %975 = vmatmul.f32.gmra.mxu0 %v202
  %v976 = vpop.f32.mrf.mxu0
  %v977 = vadd.f32 %v290, %v976
  %978 = vmatmul.f32.gmra.mxu0 %v204
  %v979 = vpop.f32.mrf.mxu0
  %v980 = vadd.f32 %v290, %v979
  %981 = vmatmul.f32.gmra.mxu0 %v206
  %v982 = vpop.f32.mrf.mxu0
  %v983 = vadd.f32 %v290, %v982
  %984 = vmatmul.f32.gmra.mxu0 %v208
  %v985 = vpop.f32.mrf.mxu0
  %v986 = vadd.f32 %v290, %v985
  %987 = vmatmul.f32.gmra.mxu0 %v210
  %v988 = vpop.f32.mrf.mxu0
  %v989 = vadd.f32 %v290, %v988
  %990 = vmatmul.f32.gmra.mxu0 %v212
  %v991 = vpop.f32.mrf.mxu0
  %v992 = vadd.f32 %v290, %v991
  %993 = vmatmul.f32.gmra.mxu0 %v214
  %v994 = vpop.f32.mrf.mxu0
  %v995 = vadd.f32 %v290, %v994
  %996 = vmatmul.f32.gmra.mxu0 %v216
  %v997 = vpop.f32.mrf.mxu0
  %v998 = vadd.f32 %v290, %v997
  %999 = vmatmul.f32.gmra.mxu0 %v218
  %v1000 = vpop.f32.mrf.mxu0
  %v1001 = vadd.f32 %v290, %v1000
  %1002 = vmatmul.f32.gmra.mxu0 %v220
  %v1003 = vpop.f32.mrf.mxu0
  %v1004 = vadd.f32 %v290, %v1003
  %1005 = vmatmul.f32.gmra.mxu0 %v222
  %v1006 = vpop.f32.mrf.mxu0
  %v1007 = vadd.f32 %v290, %v1006
  %1008 = vmatmul.f32.gmra.mxu0 %v224
  %v1009 = vpop.f32.mrf.mxu0
  %v1010 = vadd.f32 %v290, %v1009
  %1011 = vmatmul.f32.gmra.mxu0 %v226
  %v1012 = vpop.f32.mrf.mxu0
  %v1013 = vadd.f32 %v290, %v1012
  %1014 = vmatmul.f32.gmra.mxu0 %v228
  %v1015 = vpop.f32.mrf.mxu0
  %v1016 = vadd.f32 %v290, %v1015
  %1017 = vmatmul.f32.gmra.mxu0 %v230
  %v1018 = vpop.f32.mrf.mxu0
  %v1019 = vadd.f32 %v290, %v1018
  %1020 = vmatmul.f32.gmra.mxu0 %v232
  %v1021 = vpop.f32.mrf.mxu0
  %v1022 = vadd.f32 %v290, %v1021
  %1023 = vmatmul.f32.gmra.mxu0 %v234
  %v1024 = vpop.f32.mrf.mxu0
  %v1025 = vadd.f32 %v290, %v1024
  %1026 = vmatmul.f32.gmra.mxu0 %v236
  %v1027 = vpop.f32.mrf.mxu0
  %v1028 = vadd.f32 %v290, %v1027
  %1029 = vmatmul.f32.gmra.mxu0 %v238
  %v1030 = vpop.f32.mrf.mxu0
  %v1031 = vadd.f32 %v290, %v1030
  %1032 = vmatmul.f32.gmra.mxu0 %v240
  %v1033 = vpop.f32.mrf.mxu0
  %v1034 = vadd.f32 %v290, %v1033
  %1035 = vmatmul.f32.gmra.mxu0 %v242
  %v1036 = vpop.f32.mrf.mxu0
  %v1037 = vadd.f32 %v290, %v1036
  %1038 = vmatmul.f32.gmra.mxu0 %v244
  %v1039 = vpop.f32.mrf.mxu0
  %v1040 = vadd.f32 %v290, %v1039
  %1041 = vmatmul.f32.gmra.mxu0 %v246
  %v1042 = vpop.f32.mrf.mxu0
  %v1043 = vadd.f32 %v290, %v1042
  %1044 = vmatmul.f32.gmra.mxu0 %v248
  %v1045 = vpop.f32.mrf.mxu0
  %v1046 = vadd.f32 %v290, %v1045
  %1047 = vmatmul.f32.gmra.mxu0 %v250
  %v1048 = vpop.f32.mrf.mxu0
  %v1049 = vadd.f32 %v290, %v1048
  %1050 = vmatmul.f32.gmra.mxu0 %v252
  %v1051 = vpop.f32.mrf.mxu0
  %v1052 = vadd.f32 %v290, %v1051
  %1053 = vmatmul.f32.gmra.mxu0 %v254
  %v1054 = vpop.f32.mrf.mxu0
  %v1055 = vadd.f32 %v290, %v1054
  %1056 = vmatmul.f32.gmra.mxu0 %v256
  %v1057 = vpop.f32.mrf.mxu0
  %v1058 = vadd.f32 %v290, %v1057
  %1059 = vmatmul.f32.gmra.mxu0 %v258
  %v1060 = vpop.f32.mrf.mxu0
  %v1061 = vadd.f32 %v290, %v1060
  %1062 = vmatmul.f32.gmra.mxu0 %v260
  %v1063 = vpop.f32.mrf.mxu0
  %v1064 = vadd.f32 %v290, %v1063
  %1065 = vmatmul.f32.gmra.mxu0 %v262
  %v1066 = vpop.f32.mrf.mxu0
  %v1067 = vadd.f32 %v290, %v1066
  %1068 = vmatmul.f32.gmra.mxu0 %v264
  %v1069 = vpop.f32.mrf.mxu0
  %v1070 = vadd.f32 %v290, %v1069
  %1071 = vmatmul.f32.gmra.mxu0 %v266
  %v1072 = vpop.f32.mrf.mxu0
  %v1073 = vadd.f32 %v290, %v1072
  %1074 = vmatmul.f32.gmra.mxu0 %v268
  %v1075 = vpop.f32.mrf.mxu0
  %v1076 = vadd.f32 %v290, %v1075
  %1077 = vdwg.mxu0
  %1078 = vmatpush.msra.mxu0 0.0
  %1079 = vmatpush.msra.mxu0 0.0
  %1080 = vmatpush.msra.mxu0 0.0
  %1081 = vmatpush.msra.mxu0 0.0
  %1082 = vmatpush.msra.mxu0 0.0
  %1083 = vmatpush.msra.mxu0 0.0
  %1084 = vmatpush.msra.mxu0 0.0
  %1085 = vmatpush.msra.mxu0 0.0
  %1086 = vmatpush.msra.mxu0 0.0
  %1087 = vmatpush.msra.mxu0 0.0
  %1088 = vmatpush.msra.mxu0 0.0
  %1089 = vmatpush.msra.mxu0 0.0
  %1090 = vmatpush.msra.mxu0 0.0
  %1091 = vmatpush.msra.mxu0 0.0
  %1092 = vmatpush.msra.mxu0 %v287
  %1093 = vmatpush.msra.mxu0 %v286
  %1094 = vmatmul.f32.gmra.mxu0 %v294
  %v1095 = vpop.f32.mrf.mxu0
  %v1096 = vadd.f32 %v695, %v1095
  %1097 = vmatmul.f32.gmra.mxu0 %v297
  %v1098 = vpop.f32.mrf.mxu0
  %v1099 = vadd.f32 %v698, %v1098
  %1100 = vmatmul.f32.gmra.mxu0 %v300
  %v1101 = vpop.f32.mrf.mxu0
  %v1102 = vadd.f32 %v701, %v1101
  %1103 = vmatmul.f32.gmra.mxu0 %v303
  %v1104 = vpop.f32.mrf.mxu0
  %v1105 = vadd.f32 %v704, %v1104
  %1106 = vmatmul.f32.gmra.mxu0 %v306
  %v1107 = vpop.f32.mrf.mxu0
  %v1108 = vadd.f32 %v707, %v1107
  %1109 = vmatmul.f32.gmra.mxu0 %v309
  %v1110 = vpop.f32.mrf.mxu0
  %v1111 = vadd.f32 %v710, %v1110
  %1112 = vmatmul.f32.gmra.mxu0 %v312
  %v1113 = vpop.f32.mrf.mxu0
  %v1114 = vadd.f32 %v713, %v1113
  %1115 = vmatmul.f32.gmra.mxu0 %v315
  %v1116 = vpop.f32.mrf.mxu0
  %v1117 = vadd.f32 %v716, %v1116
  %1118 = vmatmul.f32.gmra.mxu0 %v318
  %v1119 = vpop.f32.mrf.mxu0
  %v1120 = vadd.f32 %v719, %v1119
  %1121 = vmatmul.f32.gmra.mxu0 %v321
  %v1122 = vpop.f32.mrf.mxu0
  %v1123 = vadd.f32 %v722, %v1122
  %1124 = vmatmul.f32.gmra.mxu0 %v324
  %v1125 = vpop.f32.mrf.mxu0
  %v1126 = vadd.f32 %v725, %v1125
  %1127 = vmatmul.f32.gmra.mxu0 %v327
  %v1128 = vpop.f32.mrf.mxu0
  %v1129 = vadd.f32 %v728, %v1128
  %1130 = vmatmul.f32.gmra.mxu0 %v330
  %v1131 = vpop.f32.mrf.mxu0
  %v1132 = vadd.f32 %v731, %v1131
  %1133 = vmatmul.f32.gmra.mxu0 %v333
  %v1134 = vpop.f32.mrf.mxu0
  %v1135 = vadd.f32 %v734, %v1134
  %1136 = vmatmul.f32.gmra.mxu0 %v336
  %v1137 = vpop.f32.mrf.mxu0
  %v1138 = vadd.f32 %v737, %v1137
  %1139 = vmatmul.f32.gmra.mxu0 %v339
  %v1140 = vpop.f32.mrf.mxu0
  %v1141 = vadd.f32 %v740, %v1140
  %1142 = vmatmul.f32.gmra.mxu0 %v342
  %v1143 = vpop.f32.mrf.mxu0
  %v1144 = vadd.f32 %v743, %v1143
  %1145 = vmatmul.f32.gmra.mxu0 %v345
  %v1146 = vpop.f32.mrf.mxu0
  %v1147 = vadd.f32 %v746, %v1146
  %1148 = vmatmul.f32.gmra.mxu0 %v348
  %v1149 = vpop.f32.mrf.mxu0
  %v1150 = vadd.f32 %v749, %v1149
  %1151 = vmatmul.f32.gmra.mxu0 %v351
  %v1152 = vpop.f32.mrf.mxu0
  %v1153 = vadd.f32 %v752, %v1152
  %1154 = vmatmul.f32.gmra.mxu0 %v354
  %v1155 = vpop.f32.mrf.mxu0
  %v1156 = vadd.f32 %v755, %v1155
  %1157 = vmatmul.f32.gmra.mxu0 %v357
  %v1158 = vpop.f32.mrf.mxu0
  %v1159 = vadd.f32 %v758, %v1158
  %1160 = vmatmul.f32.gmra.mxu0 %v360
  %v1161 = vpop.f32.mrf.mxu0
  %v1162 = vadd.f32 %v761, %v1161
  %1163 = vmatmul.f32.gmra.mxu0 %v363
  %v1164 = vpop.f32.mrf.mxu0
  %v1165 = vadd.f32 %v764, %v1164
  %1166 = vmatmul.f32.gmra.mxu0 %v366
  %v1167 = vpop.f32.mrf.mxu0
  %v1168 = vadd.f32 %v767, %v1167
  %1169 = vmatmul.f32.gmra.mxu0 %v369
  %v1170 = vpop.f32.mrf.mxu0
  %v1171 = vadd.f32 %v770, %v1170
  %1172 = vmatmul.f32.gmra.mxu0 %v372
  %v1173 = vpop.f32.mrf.mxu0
  %v1174 = vadd.f32 %v773, %v1173
  %1175 = vmatmul.f32.gmra.mxu0 %v375
  %v1176 = vpop.f32.mrf.mxu0
  %v1177 = vadd.f32 %v776, %v1176
  %1178 = vmatmul.f32.gmra.mxu0 %v378
  %v1179 = vpop.f32.mrf.mxu0
  %v1180 = vadd.f32 %v779, %v1179
  %1181 = vmatmul.f32.gmra.mxu0 %v381
  %v1182 = vpop.f32.mrf.mxu0
  %v1183 = vadd.f32 %v782, %v1182
  %1184 = vmatmul.f32.gmra.mxu0 %v384
  %v1185 = vpop.f32.mrf.mxu0
  %v1186 = vadd.f32 %v785, %v1185
  %1187 = vmatmul.f32.gmra.mxu0 %v387
  %v1188 = vpop.f32.mrf.mxu0
  %v1189 = vadd.f32 %v788, %v1188
  %1190 = vmatmul.f32.gmra.mxu0 %v390
  %v1191 = vpop.f32.mrf.mxu0
  %v1192 = vadd.f32 %v791, %v1191
  %1193 = vmatmul.f32.gmra.mxu0 %v393
  %v1194 = vpop.f32.mrf.mxu0
  %v1195 = vadd.f32 %v794, %v1194
  %1196 = vmatmul.f32.gmra.mxu0 %v396
  %v1197 = vpop.f32.mrf.mxu0
  %v1198 = vadd.f32 %v797, %v1197
  %1199 = vmatmul.f32.gmra.mxu0 %v399
  %v1200 = vpop.f32.mrf.mxu0
  %v1201 = vadd.f32 %v800, %v1200
  %1202 = vmatmul.f32.gmra.mxu0 %v402
  %v1203 = vpop.f32.mrf.mxu0
  %v1204 = vadd.f32 %v803, %v1203
  %1205 = vmatmul.f32.gmra.mxu0 %v405
  %v1206 = vpop.f32.mrf.mxu0
  %v1207 = vadd.f32 %v806, %v1206
  %1208 = vmatmul.f32.gmra.mxu0 %v408
  %v1209 = vpop.f32.mrf.mxu0
  %v1210 = vadd.f32 %v809, %v1209
  %1211 = vmatmul.f32.gmra.mxu0 %v411
  %v1212 = vpop.f32.mrf.mxu0
  %v1213 = vadd.f32 %v812, %v1212
  %1214 = vmatmul.f32.gmra.mxu0 %v414
  %v1215 = vpop.f32.mrf.mxu0
  %v1216 = vadd.f32 %v815, %v1215
  %1217 = vmatmul.f32.gmra.mxu0 %v417
  %v1218 = vpop.f32.mrf.mxu0
  %v1219 = vadd.f32 %v818, %v1218
  %1220 = vmatmul.f32.gmra.mxu0 %v420
  %v1221 = vpop.f32.mrf.mxu0
  %v1222 = vadd.f32 %v821, %v1221
  %1223 = vmatmul.f32.gmra.mxu0 %v423
  %v1224 = vpop.f32.mrf.mxu0
  %v1225 = vadd.f32 %v824, %v1224
  %1226 = vmatmul.f32.gmra.mxu0 %v426
  %v1227 = vpop.f32.mrf.mxu0
  %v1228 = vadd.f32 %v827, %v1227
  %1229 = vmatmul.f32.gmra.mxu0 %v429
  %v1230 = vpop.f32.mrf.mxu0
  %v1231 = vadd.f32 %v830, %v1230
  %1232 = vmatmul.f32.gmra.mxu0 %v432
  %v1233 = vpop.f32.mrf.mxu0
  %v1234 = vadd.f32 %v833, %v1233
  %1235 = vmatmul.f32.gmra.mxu0 %v435
  %v1236 = vpop.f32.mrf.mxu0
  %v1237 = vadd.f32 %v836, %v1236
  %1238 = vmatmul.f32.gmra.mxu0 %v438
  %v1239 = vpop.f32.mrf.mxu0
  %v1240 = vadd.f32 %v839, %v1239
  %1241 = vmatmul.f32.gmra.mxu0 %v441
  %v1242 = vpop.f32.mrf.mxu0
  %v1243 = vadd.f32 %v842, %v1242
  %1244 = vmatmul.f32.gmra.mxu0 %v444
  %v1245 = vpop.f32.mrf.mxu0
  %v1246 = vadd.f32 %v845, %v1245
  %1247 = vmatmul.f32.gmra.mxu0 %v447
  %v1248 = vpop.f32.mrf.mxu0
  %v1249 = vadd.f32 %v848, %v1248
  %1250 = vmatmul.f32.gmra.mxu0 %v450
  %v1251 = vpop.f32.mrf.mxu0
  %v1252 = vadd.f32 %v851, %v1251
  %1253 = vmatmul.f32.gmra.mxu0 %v453
  %v1254 = vpop.f32.mrf.mxu0
  %v1255 = vadd.f32 %v854, %v1254
  %1256 = vmatmul.f32.gmra.mxu0 %v456
  %v1257 = vpop.f32.mrf.mxu0
  %v1258 = vadd.f32 %v857, %v1257
  %1259 = vmatmul.f32.gmra.mxu0 %v459
  %v1260 = vpop.f32.mrf.mxu0
  %v1261 = vadd.f32 %v860, %v1260
  %1262 = vmatmul.f32.gmra.mxu0 %v462
  %v1263 = vpop.f32.mrf.mxu0
  %v1264 = vadd.f32 %v863, %v1263
  %1265 = vmatmul.f32.gmra.mxu0 %v465
  %v1266 = vpop.f32.mrf.mxu0
  %v1267 = vadd.f32 %v866, %v1266
  %1268 = vmatmul.f32.gmra.mxu0 %v468
  %v1269 = vpop.f32.mrf.mxu0
  %v1270 = vadd.f32 %v869, %v1269
  %1271 = vmatmul.f32.gmra.mxu0 %v471
  %v1272 = vpop.f32.mrf.mxu0
  %v1273 = vadd.f32 %v872, %v1272
  %1274 = vmatmul.f32.gmra.mxu0 %v474
  %v1275 = vpop.f32.mrf.mxu0
  %v1276 = vadd.f32 %v875, %v1275
  %1277 = vmatmul.f32.gmra.mxu0 %v477
  %v1278 = vpop.f32.mrf.mxu0
  %v1279 = vadd.f32 %v878, %v1278
  %1280 = vmatmul.f32.gmra.mxu0 %v480
  %v1281 = vpop.f32.mrf.mxu0
  %v1282 = vadd.f32 %v881, %v1281
  %1283 = vmatmul.f32.gmra.mxu0 %v483
  %v1284 = vpop.f32.mrf.mxu0
  %v1285 = vadd.f32 %v884, %v1284
  %1286 = vmatmul.f32.gmra.mxu0 %v486
  %v1287 = vpop.f32.mrf.mxu0
  %v1288 = vadd.f32 %v887, %v1287
  %1289 = vmatmul.f32.gmra.mxu0 %v489
  %v1290 = vpop.f32.mrf.mxu0
  %v1291 = vadd.f32 %v890, %v1290
  %1292 = vmatmul.f32.gmra.mxu0 %v492
  %v1293 = vpop.f32.mrf.mxu0
  %v1294 = vadd.f32 %v893, %v1293
  %1295 = vmatmul.f32.gmra.mxu0 %v495
  %v1296 = vpop.f32.mrf.mxu0
  %v1297 = vadd.f32 %v896, %v1296
  %1298 = vmatmul.f32.gmra.mxu0 %v498
  %v1299 = vpop.f32.mrf.mxu0
  %v1300 = vadd.f32 %v899, %v1299
  %1301 = vmatmul.f32.gmra.mxu0 %v501
  %v1302 = vpop.f32.mrf.mxu0
  %v1303 = vadd.f32 %v902, %v1302
  %1304 = vmatmul.f32.gmra.mxu0 %v504
  %v1305 = vpop.f32.mrf.mxu0
  %v1306 = vadd.f32 %v905, %v1305
  %1307 = vmatmul.f32.gmra.mxu0 %v507
  %v1308 = vpop.f32.mrf.mxu0
  %v1309 = vadd.f32 %v908, %v1308
  %1310 = vmatmul.f32.gmra.mxu0 %v510
  %v1311 = vpop.f32.mrf.mxu0
  %v1312 = vadd.f32 %v911, %v1311
  %1313 = vmatmul.f32.gmra.mxu0 %v513
  %v1314 = vpop.f32.mrf.mxu0
  %v1315 = vadd.f32 %v914, %v1314
  %1316 = vmatmul.f32.gmra.mxu0 %v516
  %v1317 = vpop.f32.mrf.mxu0
  %v1318 = vadd.f32 %v917, %v1317
  %1319 = vmatmul.f32.gmra.mxu0 %v519
  %v1320 = vpop.f32.mrf.mxu0
  %v1321 = vadd.f32 %v920, %v1320
  %1322 = vmatmul.f32.gmra.mxu0 %v522
  %v1323 = vpop.f32.mrf.mxu0
  %v1324 = vadd.f32 %v923, %v1323
  %1325 = vmatmul.f32.gmra.mxu0 %v525
  %v1326 = vpop.f32.mrf.mxu0
  %v1327 = vadd.f32 %v926, %v1326
  %1328 = vmatmul.f32.gmra.mxu0 %v528
  %v1329 = vpop.f32.mrf.mxu0
  %v1330 = vadd.f32 %v929, %v1329
  %1331 = vmatmul.f32.gmra.mxu0 %v531
  %v1332 = vpop.f32.mrf.mxu0
  %v1333 = vadd.f32 %v932, %v1332
  %1334 = vmatmul.f32.gmra.mxu0 %v534
  %v1335 = vpop.f32.mrf.mxu0
  %v1336 = vadd.f32 %v935, %v1335
  %1337 = vmatmul.f32.gmra.mxu0 %v537
  %v1338 = vpop.f32.mrf.mxu0
  %v1339 = vadd.f32 %v938, %v1338
  %1340 = vmatmul.f32.gmra.mxu0 %v540
  %v1341 = vpop.f32.mrf.mxu0
  %v1342 = vadd.f32 %v941, %v1341
  %1343 = vmatmul.f32.gmra.mxu0 %v543
  %v1344 = vpop.f32.mrf.mxu0
  %v1345 = vadd.f32 %v944, %v1344
  %1346 = vmatmul.f32.gmra.mxu0 %v546
  %v1347 = vpop.f32.mrf.mxu0
  %v1348 = vadd.f32 %v947, %v1347
  %1349 = vmatmul.f32.gmra.mxu0 %v549
  %v1350 = vpop.f32.mrf.mxu0
  %v1351 = vadd.f32 %v950, %v1350
  %1352 = vmatmul.f32.gmra.mxu0 %v552
  %v1353 = vpop.f32.mrf.mxu0
  %v1354 = vadd.f32 %v953, %v1353
  %1355 = vmatmul.f32.gmra.mxu0 %v555
  %v1356 = vpop.f32.mrf.mxu0
  %v1357 = vadd.f32 %v956, %v1356
  %1358 = vmatmul.f32.gmra.mxu0 %v558
  %v1359 = vpop.f32.mrf.mxu0
  %v1360 = vadd.f32 %v959, %v1359
  %1361 = vmatmul.f32.gmra.mxu0 %v561
  %v1362 = vpop.f32.mrf.mxu0
  %v1363 = vadd.f32 %v962, %v1362
  %1364 = vmatmul.f32.gmra.mxu0 %v564
  %v1365 = vpop.f32.mrf.mxu0
  %v1366 = vadd.f32 %v965, %v1365
  %1367 = vmatmul.f32.gmra.mxu0 %v567
  %v1368 = vpop.f32.mrf.mxu0
  %v1369 = vadd.f32 %v968, %v1368
  %1370 = vmatmul.f32.gmra.mxu0 %v570
  %v1371 = vpop.f32.mrf.mxu0
  %v1372 = vadd.f32 %v971, %v1371
  %1373 = vmatmul.f32.gmra.mxu0 %v573
  %v1374 = vpop.f32.mrf.mxu0
  %v1375 = vadd.f32 %v974, %v1374
  %1376 = vmatmul.f32.gmra.mxu0 %v576
  %v1377 = vpop.f32.mrf.mxu0
  %v1378 = vadd.f32 %v977, %v1377
  %1379 = vmatmul.f32.gmra.mxu0 %v579
  %v1380 = vpop.f32.mrf.mxu0
  %v1381 = vadd.f32 %v980, %v1380
  %1382 = vmatmul.f32.gmra.mxu0 %v582
  %v1383 = vpop.f32.mrf.mxu0
  %v1384 = vadd.f32 %v983, %v1383
  %1385 = vmatmul.f32.gmra.mxu0 %v585
  %v1386 = vpop.f32.mrf.mxu0
  %v1387 = vadd.f32 %v986, %v1386
  %1388 = vmatmul.f32.gmra.mxu0 %v588
  %v1389 = vpop.f32.mrf.mxu0
  %v1390 = vadd.f32 %v989, %v1389
  %1391 = vmatmul.f32.gmra.mxu0 %v591
  %v1392 = vpop.f32.mrf.mxu0
  %v1393 = vadd.f32 %v992, %v1392
  %1394 = vmatmul.f32.gmra.mxu0 %v594
  %v1395 = vpop.f32.mrf.mxu0
  %v1396 = vadd.f32 %v995, %v1395
  %1397 = vmatmul.f32.gmra.mxu0 %v597
  %v1398 = vpop.f32.mrf.mxu0
  %v1399 = vadd.f32 %v998, %v1398
  %1400 = vmatmul.f32.gmra.mxu0 %v600
  %v1401 = vpop.f32.mrf.mxu0
  %v1402 = vadd.f32 %v1001, %v1401
  %1403 = vmatmul.f32.gmra.mxu0 %v603
  %v1404 = vpop.f32.mrf.mxu0
  %v1405 = vadd.f32 %v1004, %v1404
  %1406 = vmatmul.f32.gmra.mxu0 %v606
  %v1407 = vpop.f32.mrf.mxu0
  %v1408 = vadd.f32 %v1007, %v1407
  %1409 = vmatmul.f32.gmra.mxu0 %v609
  %v1410 = vpop.f32.mrf.mxu0
  %v1411 = vadd.f32 %v1010, %v1410
  %1412 = vmatmul.f32.gmra.mxu0 %v612
  %v1413 = vpop.f32.mrf.mxu0
  %v1414 = vadd.f32 %v1013, %v1413
  %1415 = vmatmul.f32.gmra.mxu0 %v615
  %v1416 = vpop.f32.mrf.mxu0
  %v1417 = vadd.f32 %v1016, %v1416
  %1418 = vmatmul.f32.gmra.mxu0 %v618
  %v1419 = vpop.f32.mrf.mxu0
  %v1420 = vadd.f32 %v1019, %v1419
  %1421 = vmatmul.f32.gmra.mxu0 %v621
  %v1422 = vpop.f32.mrf.mxu0
  %v1423 = vadd.f32 %v1022, %v1422
  %1424 = vmatmul.f32.gmra.mxu0 %v624
  %v1425 = vpop.f32.mrf.mxu0
  %v1426 = vadd.f32 %v1025, %v1425
  %1427 = vmatmul.f32.gmra.mxu0 %v627
  %v1428 = vpop.f32.mrf.mxu0
  %v1429 = vadd.f32 %v1028, %v1428
  %1430 = vmatmul.f32.gmra.mxu0 %v630
  %v1431 = vpop.f32.mrf.mxu0
  %v1432 = vadd.f32 %v1031, %v1431
  %1433 = vmatmul.f32.gmra.mxu0 %v633
  %v1434 = vpop.f32.mrf.mxu0
  %v1435 = vadd.f32 %v1034, %v1434
  %1436 = vmatmul.f32.gmra.mxu0 %v636
  %v1437 = vpop.f32.mrf.mxu0
  %v1438 = vadd.f32 %v1037, %v1437
  %1439 = vmatmul.f32.gmra.mxu0 %v639
  %v1440 = vpop.f32.mrf.mxu0
  %v1441 = vadd.f32 %v1040, %v1440
  %1442 = vmatmul.f32.gmra.mxu0 %v642
  %v1443 = vpop.f32.mrf.mxu0
  %v1444 = vadd.f32 %v1043, %v1443
  %1445 = vmatmul.f32.gmra.mxu0 %v645
  %v1446 = vpop.f32.mrf.mxu0
  %v1447 = vadd.f32 %v1046, %v1446
  %1448 = vmatmul.f32.gmra.mxu0 %v648
  %v1449 = vpop.f32.mrf.mxu0
  %v1450 = vadd.f32 %v1049, %v1449
  %1451 = vmatmul.f32.gmra.mxu0 %v651
  %v1452 = vpop.f32.mrf.mxu0
  %v1453 = vadd.f32 %v1052, %v1452
  %1454 = vmatmul.f32.gmra.mxu0 %v654
  %v1455 = vpop.f32.mrf.mxu0
  %v1456 = vadd.f32 %v1055, %v1455
  %1457 = vmatmul.f32.gmra.mxu0 %v657
  %v1458 = vpop.f32.mrf.mxu0
  %v1459 = vadd.f32 %v1058, %v1458
  %1460 = vmatmul.f32.gmra.mxu0 %v660
  %v1461 = vpop.f32.mrf.mxu0
  %v1462 = vadd.f32 %v1061, %v1461
  %1463 = vmatmul.f32.gmra.mxu0 %v663
  %v1464 = vpop.f32.mrf.mxu0
  %v1465 = vadd.f32 %v1064, %v1464
  %1466 = vmatmul.f32.gmra.mxu0 %v666
  %v1467 = vpop.f32.mrf.mxu0
  %v1468 = vadd.f32 %v1067, %v1467
  %1469 = vmatmul.f32.gmra.mxu0 %v669
  %v1470 = vpop.f32.mrf.mxu0
  %v1471 = vadd.f32 %v1070, %v1470
  %1472 = vmatmul.f32.gmra.mxu0 %v672
  %v1473 = vpop.f32.mrf.mxu0
  %v1474 = vadd.f32 %v1073, %v1473
  %1475 = vmatmul.f32.gmra.mxu0 %v675
  %v1476 = vpop.f32.mrf.mxu0
  %v1477 = vadd.f32 %v1076, %v1476
  %1478 = vdwg.mxu0
  %vm1479 = vcmp.ge.f32.partialorder %v1096, 0.0
  %vm1480 = vcmp.ge.f32.partialorder %v1099, 0.0
  %vm1481 = vcmp.ge.f32.partialorder %v1102, 0.0
  %vm1482 = vcmp.ge.f32.partialorder %v1105, 0.0
  %vm1483 = vcmp.ge.f32.partialorder %v1108, 0.0
  %vm1484 = vcmp.ge.f32.partialorder %v1111, 0.0
  %vm1485 = vcmp.ge.f32.partialorder %v1114, 0.0
  %vm1486 = vcmp.ge.f32.partialorder %v1117, 0.0
  %vm1487 = vcmp.ge.f32.partialorder %v1120, 0.0
  %vm1488 = vcmp.ge.f32.partialorder %v1123, 0.0
  %vm1489 = vcmp.ge.f32.partialorder %v1126, 0.0
  %vm1490 = vcmp.ge.f32.partialorder %v1129, 0.0
  %vm1491 = vcmp.ge.f32.partialorder %v1132, 0.0
  %vm1492 = vcmp.ge.f32.partialorder %v1135, 0.0
  %vm1493 = vcmp.ge.f32.partialorder %v1138, 0.0
  %vm1494 = vcmp.ge.f32.partialorder %v1141, 0.0
  %vm1495 = vcmp.ge.f32.partialorder %v1144, 0.0
  %vm1496 = vcmp.ge.f32.partialorder %v1147, 0.0
  %vm1497 = vcmp.ge.f32.partialorder %v1150, 0.0
  %vm1498 = vcmp.ge.f32.partialorder %v1153, 0.0
  %vm1499 = vcmp.ge.f32.partialorder %v1156, 0.0
  %vm1500 = vcmp.ge.f32.partialorder %v1159, 0.0
  %vm1501 = vcmp.ge.f32.partialorder %v1162, 0.0
  %vm1502 = vcmp.ge.f32.partialorder %v1165, 0.0
  %vm1503 = vcmp.ge.f32.partialorder %v1168, 0.0
  %vm1504 = vcmp.ge.f32.partialorder %v1171, 0.0
  %vm1505 = vcmp.ge.f32.partialorder %v1174, 0.0
  %vm1506 = vcmp.ge.f32.partialorder %v1177, 0.0
  %vm1507 = vcmp.ge.f32.partialorder %v1180, 0.0
  %vm1508 = vcmp.ge.f32.partialorder %v1183, 0.0
  %vm1509 = vcmp.ge.f32.partialorder %v1186, 0.0
  %vm1510 = vcmp.ge.f32.partialorder %v1189, 0.0
  %vm1511 = vcmp.ge.f32.partialorder %v1192, 0.0
  %vm1512 = vcmp.ge.f32.partialorder %v1195, 0.0
  %vm1513 = vcmp.ge.f32.partialorder %v1198, 0.0
  %vm1514 = vcmp.ge.f32.partialorder %v1201, 0.0
  %vm1515 = vcmp.ge.f32.partialorder %v1204, 0.0
  %vm1516 = vcmp.ge.f32.partialorder %v1207, 0.0
  %vm1517 = vcmp.ge.f32.partialorder %v1210, 0.0
  %vm1518 = vcmp.ge.f32.partialorder %v1213, 0.0
  %vm1519 = vcmp.ge.f32.partialorder %v1216, 0.0
  %vm1520 = vcmp.ge.f32.partialorder %v1219, 0.0
  %vm1521 = vcmp.ge.f32.partialorder %v1222, 0.0
  %vm1522 = vcmp.ge.f32.partialorder %v1225, 0.0
  %vm1523 = vcmp.ge.f32.partialorder %v1228, 0.0
  %vm1524 = vcmp.ge.f32.partialorder %v1231, 0.0
  %vm1525 = vcmp.ge.f32.partialorder %v1234, 0.0
  %vm1526 = vcmp.ge.f32.partialorder %v1237, 0.0
  %vm1527 = vcmp.ge.f32.partialorder %v1240, 0.0
  %vm1528 = vcmp.ge.f32.partialorder %v1243, 0.0
  %vm1529 = vcmp.ge.f32.partialorder %v1246, 0.0
  %vm1530 = vcmp.ge.f32.partialorder %v1249, 0.0
  %vm1531 = vcmp.ge.f32.partialorder %v1252, 0.0
  %vm1532 = vcmp.ge.f32.partialorder %v1255, 0.0
  %vm1533 = vcmp.ge.f32.partialorder %v1258, 0.0
  %vm1534 = vcmp.ge.f32.partialorder %v1261, 0.0
  %vm1535 = vcmp.ge.f32.partialorder %v1264, 0.0
  %vm1536 = vcmp.ge.f32.partialorder %v1267, 0.0
  %vm1537 = vcmp.ge.f32.partialorder %v1270, 0.0
  %vm1538 = vcmp.ge.f32.partialorder %v1273, 0.0
  %vm1539 = vcmp.ge.f32.partialorder %v1276, 0.0
  %vm1540 = vcmp.ge.f32.partialorder %v1279, 0.0
  %vm1541 = vcmp.ge.f32.partialorder %v1282, 0.0
  %vm1542 = vcmp.ge.f32.partialorder %v1285, 0.0
  %vm1543 = vcmp.ge.f32.partialorder %v1288, 0.0
  %vm1544 = vcmp.ge.f32.partialorder %v1291, 0.0
  %vm1545 = vcmp.ge.f32.partialorder %v1294, 0.0
  %vm1546 = vcmp.ge.f32.partialorder %v1297, 0.0
  %vm1547 = vcmp.ge.f32.partialorder %v1300, 0.0
  %vm1548 = vcmp.ge.f32.partialorder %v1303, 0.0
  %vm1549 = vcmp.ge.f32.partialorder %v1306, 0.0
  %vm1550 = vcmp.ge.f32.partialorder %v1309, 0.0
  %vm1551 = vcmp.ge.f32.partialorder %v1312, 0.0
  %vm1552 = vcmp.ge.f32.partialorder %v1315, 0.0
  %vm1553 = vcmp.ge.f32.partialorder %v1318, 0.0
  %vm1554 = vcmp.ge.f32.partialorder %v1321, 0.0
  %vm1555 = vcmp.ge.f32.partialorder %v1324, 0.0
  %vm1556 = vcmp.ge.f32.partialorder %v1327, 0.0
  %vm1557 = vcmp.ge.f32.partialorder %v1330, 0.0
  %vm1558 = vcmp.ge.f32.partialorder %v1333, 0.0
  %vm1559 = vcmp.ge.f32.partialorder %v1336, 0.0
  %vm1560 = vcmp.ge.f32.partialorder %v1339, 0.0
  %vm1561 = vcmp.ge.f32.partialorder %v1342, 0.0
  %vm1562 = vcmp.ge.f32.partialorder %v1345, 0.0
  %vm1563 = vcmp.ge.f32.partialorder %v1348, 0.0
  %vm1564 = vcmp.ge.f32.partialorder %v1351, 0.0
  %vm1565 = vcmp.ge.f32.partialorder %v1354, 0.0
  %vm1566 = vcmp.ge.f32.partialorder %v1357, 0.0
  %vm1567 = vcmp.ge.f32.partialorder %v1360, 0.0
  %vm1568 = vcmp.ge.f32.partialorder %v1363, 0.0
  %vm1569 = vcmp.ge.f32.partialorder %v1366, 0.0
  %vm1570 = vcmp.ge.f32.partialorder %v1369, 0.0
  %vm1571 = vcmp.ge.f32.partialorder %v1372, 0.0
  %vm1572 = vcmp.ge.f32.partialorder %v1375, 0.0
  %vm1573 = vcmp.ge.f32.partialorder %v1378, 0.0
  %vm1574 = vcmp.ge.f32.partialorder %v1381, 0.0
  %vm1575 = vcmp.ge.f32.partialorder %v1384, 0.0
  %vm1576 = vcmp.ge.f32.partialorder %v1387, 0.0
  %vm1577 = vcmp.ge.f32.partialorder %v1390, 0.0
  %vm1578 = vcmp.ge.f32.partialorder %v1393, 0.0
  %vm1579 = vcmp.ge.f32.partialorder %v1396, 0.0
  %vm1580 = vcmp.ge.f32.partialorder %v1399, 0.0
  %vm1581 = vcmp.ge.f32.partialorder %v1402, 0.0
  %vm1582 = vcmp.ge.f32.partialorder %v1405, 0.0
  %vm1583 = vcmp.ge.f32.partialorder %v1408, 0.0
  %vm1584 = vcmp.ge.f32.partialorder %v1411, 0.0
  %vm1585 = vcmp.ge.f32.partialorder %v1414, 0.0
  %vm1586 = vcmp.ge.f32.partialorder %v1417, 0.0
  %vm1587 = vcmp.ge.f32.partialorder %v1420, 0.0
  %vm1588 = vcmp.ge.f32.partialorder %v1423, 0.0
  %vm1589 = vcmp.ge.f32.partialorder %v1426, 0.0
  %vm1590 = vcmp.ge.f32.partialorder %v1429, 0.0
  %vm1591 = vcmp.ge.f32.partialorder %v1432, 0.0
  %vm1592 = vcmp.ge.f32.partialorder %v1435, 0.0
  %vm1593 = vcmp.ge.f32.partialorder %v1438, 0.0
  %vm1594 = vcmp.ge.f32.partialorder %v1441, 0.0
  %vm1595 = vcmp.ge.f32.partialorder %v1444, 0.0
  %vm1596 = vcmp.ge.f32.partialorder %v1447, 0.0
  %vm1597 = vcmp.ge.f32.partialorder %v1450, 0.0
  %vm1598 = vcmp.ge.f32.partialorder %v1453, 0.0
  %vm1599 = vcmp.ge.f32.partialorder %v1456, 0.0
  %vm1600 = vcmp.ge.f32.partialorder %v1459, 0.0
  %vm1601 = vcmp.ge.f32.partialorder %v1462, 0.0
  %vm1602 = vcmp.ge.f32.partialorder %v1465, 0.0
  %vm1603 = vcmp.ge.f32.partialorder %v1468, 0.0
  %vm1604 = vcmp.ge.f32.partialorder %v1471, 0.0
  %vm1605 = vcmp.ge.f32.partialorder %v1474, 0.0
  %vm1606 = vcmp.ge.f32.partialorder %v1477, 0.0
  %v1607 = vmul.f32 %v1096, 0.01
  %v1608 = vmul.f32 %v1099, 0.01
  %v1609 = vmul.f32 %v1102, 0.01
  %v1610 = vmul.f32 %v1105, 0.01
  %v1611 = vmul.f32 %v1108, 0.01
  %v1612 = vmul.f32 %v1111, 0.01
  %v1613 = vmul.f32 %v1114, 0.01
  %v1614 = vmul.f32 %v1117, 0.01
  %v1615 = vmul.f32 %v1120, 0.01
  %v1616 = vmul.f32 %v1123, 0.01
  %v1617 = vmul.f32 %v1126, 0.01
  %v1618 = vmul.f32 %v1129, 0.01
  %v1619 = vmul.f32 %v1132, 0.01
  %v1620 = vmul.f32 %v1135, 0.01
  %v1621 = vmul.f32 %v1138, 0.01
  %v1622 = vmul.f32 %v1141, 0.01
  %v1623 = vmul.f32 %v1144, 0.01
  %v1624 = vmul.f32 %v1147, 0.01
  %v1625 = vmul.f32 %v1150, 0.01
  %v1626 = vmul.f32 %v1153, 0.01
  %v1627 = vmul.f32 %v1156, 0.01
  %v1628 = vmul.f32 %v1159, 0.01
  %v1629 = vmul.f32 %v1162, 0.01
  %v1630 = vmul.f32 %v1165, 0.01
  %v1631 = vmul.f32 %v1168, 0.01
  %v1632 = vmul.f32 %v1171, 0.01
  %v1633 = vmul.f32 %v1174, 0.01
  %v1634 = vmul.f32 %v1177, 0.01
  %v1635 = vmul.f32 %v1180, 0.01
  %v1636 = vmul.f32 %v1183, 0.01
  %v1637 = vmul.f32 %v1186, 0.01
  %v1638 = vmul.f32 %v1189, 0.01
  %v1639 = vmul.f32 %v1192, 0.01
  %v1640 = vmul.f32 %v1195, 0.01
  %v1641 = vmul.f32 %v1198, 0.01
  %v1642 = vmul.f32 %v1201, 0.01
  %v1643 = vmul.f32 %v1204, 0.01
  %v1644 = vmul.f32 %v1207, 0.01
  %v1645 = vmul.f32 %v1210, 0.01
  %v1646 = vmul.f32 %v1213, 0.01
  %v1647 = vmul.f32 %v1216, 0.01
  %v1648 = vmul.f32 %v1219, 0.01
  %v1649 = vmul.f32 %v1222, 0.01
  %v1650 = vmul.f32 %v1225, 0.01
  %v1651 = vmul.f32 %v1228, 0.01
  %v1652 = vmul.f32 %v1231, 0.01
  %v1653 = vmul.f32 %v1234, 0.01
  %v1654 = vmul.f32 %v1237, 0.01
  %v1655 = vmul.f32 %v1240, 0.01
  %v1656 = vmul.f32 %v1243, 0.01
  %v1657 = vmul.f32 %v1246, 0.01
  %v1658 = vmul.f32 %v1249, 0.01
  %v1659 = vmul.f32 %v1252, 0.01
  %v1660 = vmul.f32 %v1255, 0.01
  %v1661 = vmul.f32 %v1258, 0.01
  %v1662 = vmul.f32 %v1261, 0.01
  %v1663 = vmul.f32 %v1264, 0.01
  %v1664 = vmul.f32 %v1267, 0.01
  %v1665 = vmul.f32 %v1270, 0.01
  %v1666 = vmul.f32 %v1273, 0.01
  %v1667 = vmul.f32 %v1276, 0.01
  %v1668 = vmul.f32 %v1279, 0.01
  %v1669 = vmul.f32 %v1282, 0.01
  %v1670 = vmul.f32 %v1285, 0.01
  %v1671 = vmul.f32 %v1288, 0.01
  %v1672 = vmul.f32 %v1291, 0.01
  %v1673 = vmul.f32 %v1294, 0.01
  %v1674 = vmul.f32 %v1297, 0.01
  %v1675 = vmul.f32 %v1300, 0.01
  %v1676 = vmul.f32 %v1303, 0.01
  %v1677 = vmul.f32 %v1306, 0.01
  %v1678 = vmul.f32 %v1309, 0.01
  %v1679 = vmul.f32 %v1312, 0.01
  %v1680 = vmul.f32 %v1315, 0.01
  %v1681 = vmul.f32 %v1318, 0.01
  %v1682 = vmul.f32 %v1321, 0.01
  %v1683 = vmul.f32 %v1324, 0.01
  %v1684 = vmul.f32 %v1327, 0.01
  %v1685 = vmul.f32 %v1330, 0.01
  %v1686 = vmul.f32 %v1333, 0.01
  %v1687 = vmul.f32 %v1336, 0.01
  %v1688 = vmul.f32 %v1339, 0.01
  %v1689 = vmul.f32 %v1342, 0.01
  %v1690 = vmul.f32 %v1345, 0.01
  %v1691 = vmul.f32 %v1348, 0.01
  %v1692 = vmul.f32 %v1351, 0.01
  %v1693 = vmul.f32 %v1354, 0.01
  %v1694 = vmul.f32 %v1357, 0.01
  %v1695 = vmul.f32 %v1360, 0.01
  %v1696 = vmul.f32 %v1363, 0.01
  %v1697 = vmul.f32 %v1366, 0.01
  %v1698 = vmul.f32 %v1369, 0.01
  %v1699 = vmul.f32 %v1372, 0.01
  %v1700 = vmul.f32 %v1375, 0.01
  %v1701 = vmul.f32 %v1378, 0.01
  %v1702 = vmul.f32 %v1381, 0.01
  %v1703 = vmul.f32 %v1384, 0.01
  %v1704 = vmul.f32 %v1387, 0.01
  %v1705 = vmul.f32 %v1390, 0.01
  %v1706 = vmul.f32 %v1393, 0.01
  %v1707 = vmul.f32 %v1396, 0.01
  %v1708 = vmul.f32 %v1399, 0.01
  %v1709 = vmul.f32 %v1402, 0.01
  %v1710 = vmul.f32 %v1405, 0.01
  %v1711 = vmul.f32 %v1408, 0.01
  %v1712 = vmul.f32 %v1411, 0.01
  %v1713 = vmul.f32 %v1414, 0.01
  %v1714 = vmul.f32 %v1417, 0.01
  %v1715 = vmul.f32 %v1420, 0.01
  %v1716 = vmul.f32 %v1423, 0.01
  %v1717 = vmul.f32 %v1426, 0.01
  %v1718 = vmul.f32 %v1429, 0.01
  %v1719 = vmul.f32 %v1432, 0.01
  %v1720 = vmul.f32 %v1435, 0.01
  %v1721 = vmul.f32 %v1438, 0.01
  %v1722 = vmul.f32 %v1441, 0.01
  %v1723 = vmul.f32 %v1444, 0.01
  %v1724 = vmul.f32 %v1447, 0.01
  %v1725 = vmul.f32 %v1450, 0.01
  %v1726 = vmul.f32 %v1453, 0.01
  %v1727 = vmul.f32 %v1456, 0.01
  %v1728 = vmul.f32 %v1459, 0.01
  %v1729 = vmul.f32 %v1462, 0.01
  %v1730 = vmul.f32 %v1465, 0.01
  %v1731 = vmul.f32 %v1468, 0.01
  %v1732 = vmul.f32 %v1471, 0.01
  %v1733 = vmul.f32 %v1474, 0.01
  %v1734 = vmul.f32 %v1477, 0.01
  %v1735 = vsel %vm1479, %v1096, %v1607
  %v1736 = vsel %vm1480, %v1099, %v1608
  %v1737 = vsel %vm1481, %v1102, %v1609
  %v1738 = vsel %vm1482, %v1105, %v1610
  %v1739 = vsel %vm1483, %v1108, %v1611
  %v1740 = vsel %vm1484, %v1111, %v1612
  %v1741 = vsel %vm1485, %v1114, %v1613
  %v1742 = vsel %vm1486, %v1117, %v1614
  %v1743 = vsel %vm1487, %v1120, %v1615
  %v1744 = vsel %vm1488, %v1123, %v1616
  %v1745 = vsel %vm1489, %v1126, %v1617
  %v1746 = vsel %vm1490, %v1129, %v1618
  %v1747 = vsel %vm1491, %v1132, %v1619
  %v1748 = vsel %vm1492, %v1135, %v1620
  %v1749 = vsel %vm1493, %v1138, %v1621
  %v1750 = vsel %vm1494, %v1141, %v1622
  %v1751 = vsel %vm1495, %v1144, %v1623
  %v1752 = vsel %vm1496, %v1147, %v1624
  %v1753 = vsel %vm1497, %v1150, %v1625
  %v1754 = vsel %vm1498, %v1153, %v1626
  %v1755 = vsel %vm1499, %v1156, %v1627
  %v1756 = vsel %vm1500, %v1159, %v1628
  %v1757 = vsel %vm1501, %v1162, %v1629
  %v1758 = vsel %vm1502, %v1165, %v1630
  %v1759 = vsel %vm1503, %v1168, %v1631
  %v1760 = vsel %vm1504, %v1171, %v1632
  %v1761 = vsel %vm1505, %v1174, %v1633
  %v1762 = vsel %vm1506, %v1177, %v1634
  %v1763 = vsel %vm1507, %v1180, %v1635
  %v1764 = vsel %vm1508, %v1183, %v1636
  %v1765 = vsel %vm1509, %v1186, %v1637
  %v1766 = vsel %vm1510, %v1189, %v1638
  %v1767 = vsel %vm1511, %v1192, %v1639
  %v1768 = vsel %vm1512, %v1195, %v1640
  %v1769 = vsel %vm1513, %v1198, %v1641
  %v1770 = vsel %vm1514, %v1201, %v1642
  %v1771 = vsel %vm1515, %v1204, %v1643
  %v1772 = vsel %vm1516, %v1207, %v1644
  %v1773 = vsel %vm1517, %v1210, %v1645
  %v1774 = vsel %vm1518, %v1213, %v1646
  %v1775 = vsel %vm1519, %v1216, %v1647
  %v1776 = vsel %vm1520, %v1219, %v1648
  %v1777 = vsel %vm1521, %v1222, %v1649
  %v1778 = vsel %vm1522, %v1225, %v1650
  %v1779 = vsel %vm1523, %v1228, %v1651
  %v1780 = vsel %vm1524, %v1231, %v1652
  %v1781 = vsel %vm1525, %v1234, %v1653
  %v1782 = vsel %vm1526, %v1237, %v1654
  %v1783 = vsel %vm1527, %v1240, %v1655
  %v1784 = vsel %vm1528, %v1243, %v1656
  %v1785 = vsel %vm1529, %v1246, %v1657
  %v1786 = vsel %vm1530, %v1249, %v1658
  %v1787 = vsel %vm1531, %v1252, %v1659
  %v1788 = vsel %vm1532, %v1255, %v1660
  %v1789 = vsel %vm1533, %v1258, %v1661
  %v1790 = vsel %vm1534, %v1261, %v1662
  %v1791 = vsel %vm1535, %v1264, %v1663
  %v1792 = vsel %vm1536, %v1267, %v1664
  %v1793 = vsel %vm1537, %v1270, %v1665
  %v1794 = vsel %vm1538, %v1273, %v1666
  %v1795 = vsel %vm1539, %v1276, %v1667
  %v1796 = vsel %vm1540, %v1279, %v1668
  %v1797 = vsel %vm1541, %v1282, %v1669
  %v1798 = vsel %vm1542, %v1285, %v1670
  %v1799 = vsel %vm1543, %v1288, %v1671
  %v1800 = vsel %vm1544, %v1291, %v1672
  %v1801 = vsel %vm1545, %v1294, %v1673
  %v1802 = vsel %vm1546, %v1297, %v1674
  %v1803 = vsel %vm1547, %v1300, %v1675
  %v1804 = vsel %vm1548, %v1303, %v1676
  %v1805 = vsel %vm1549, %v1306, %v1677
  %v1806 = vsel %vm1550, %v1309, %v1678
  %v1807 = vsel %vm1551, %v1312, %v1679
  %v1808 = vsel %vm1552, %v1315, %v1680
  %v1809 = vsel %vm1553, %v1318, %v1681
  %v1810 = vsel %vm1554, %v1321, %v1682
  %v1811 = vsel %vm1555, %v1324, %v1683
  %v1812 = vsel %vm1556, %v1327, %v1684
  %v1813 = vsel %vm1557, %v1330, %v1685
  %v1814 = vsel %vm1558, %v1333, %v1686
  %v1815 = vsel %vm1559, %v1336, %v1687
  %v1816 = vsel %vm1560, %v1339, %v1688
  %v1817 = vsel %vm1561, %v1342, %v1689
  %v1818 = vsel %vm1562, %v1345, %v1690
  %v1819 = vsel %vm1563, %v1348, %v1691
  %v1820 = vsel %vm1564, %v1351, %v1692
  %v1821 = vsel %vm1565, %v1354, %v1693
  %v1822 = vsel %vm1566, %v1357, %v1694
  %v1823 = vsel %vm1567, %v1360, %v1695
  %v1824 = vsel %vm1568, %v1363, %v1696
  %v1825 = vsel %vm1569, %v1366, %v1697
  %v1826 = vsel %vm1570, %v1369, %v1698
  %v1827 = vsel %vm1571, %v1372, %v1699
  %v1828 = vsel %vm1572, %v1375, %v1700
  %v1829 = vsel %vm1573, %v1378, %v1701
  %v1830 = vsel %vm1574, %v1381, %v1702
  %v1831 = vsel %vm1575, %v1384, %v1703
  %v1832 = vsel %vm1576, %v1387, %v1704
  %v1833 = vsel %vm1577, %v1390, %v1705
  %v1834 = vsel %vm1578, %v1393, %v1706
  %v1835 = vsel %vm1579, %v1396, %v1707
  %v1836 = vsel %vm1580, %v1399, %v1708
  %v1837 = vsel %vm1581, %v1402, %v1709
  %v1838 = vsel %vm1582, %v1405, %v1710
  %v1839 = vsel %vm1583, %v1408, %v1711
  %v1840 = vsel %vm1584, %v1411, %v1712
  %v1841 = vsel %vm1585, %v1414, %v1713
  %v1842 = vsel %vm1586, %v1417, %v1714
  %v1843 = vsel %vm1587, %v1420, %v1715
  %v1844 = vsel %vm1588, %v1423, %v1716
  %v1845 = vsel %vm1589, %v1426, %v1717
  %v1846 = vsel %vm1590, %v1429, %v1718
  %v1847 = vsel %vm1591, %v1432, %v1719
  %v1848 = vsel %vm1592, %v1435, %v1720
  %v1849 = vsel %vm1593, %v1438, %v1721
  %v1850 = vsel %vm1594, %v1441, %v1722
  %v1851 = vsel %vm1595, %v1444, %v1723
  %v1852 = vsel %vm1596, %v1447, %v1724
  %v1853 = vsel %vm1597, %v1450, %v1725
  %v1854 = vsel %vm1598, %v1453, %v1726
  %v1855 = vsel %vm1599, %v1456, %v1727
  %v1856 = vsel %vm1600, %v1459, %v1728
  %v1857 = vsel %vm1601, %v1462, %v1729
  %v1858 = vsel %vm1602, %v1465, %v1730
  %v1859 = vsel %vm1603, %v1468, %v1731
  %v1860 = vsel %vm1604, %v1471, %v1732
  %v1861 = vsel %vm1605, %v1474, %v1733
  %v1862 = vsel %vm1606, %v1477, %v1734
  %vm1863 = vcmask 23552
  %1864 = vst.msk [vmem:[%s3] sm:$0xff] %vm1863, %v1735
  %1865 = vst.msk [vmem:[%s3 + $0x8] sm:$0xff] %vm1863, %v1736
  %1866 = vst.msk [vmem:[%s3 + $0x10] sm:$0xff] %vm1863, %v1737
  %1867 = vst.msk [vmem:[%s3 + $0x18] sm:$0xff] %vm1863, %v1738
  %1868 = vst.msk [vmem:[%s3 + $0x20] sm:$0xff] %vm1863, %v1739
  %1869 = vst.msk [vmem:[%s3 + $0x28] sm:$0xff] %vm1863, %v1740
  %1870 = vst.msk [vmem:[%s3 + $0x30] sm:$0xff] %vm1863, %v1741
  %1871 = vst.msk [vmem:[%s3 + $0x38] sm:$0xff] %vm1863, %v1742
  %1872 = vst.msk [vmem:[%s3 + $0x40] sm:$0xff] %vm1863, %v1743
  %1873 = vst.msk [vmem:[%s3 + $0x48] sm:$0xff] %vm1863, %v1744
  %1874 = vst.msk [vmem:[%s3 + $0x50] sm:$0xff] %vm1863, %v1745
  %1875 = vst.msk [vmem:[%s3 + $0x58] sm:$0xff] %vm1863, %v1746
  %1876 = vst.msk [vmem:[%s3 + $0x60] sm:$0xff] %vm1863, %v1747
  %1877 = vst.msk [vmem:[%s3 + $0x68] sm:$0xff] %vm1863, %v1748
  %1878 = vst.msk [vmem:[%s3 + $0x70] sm:$0xff] %vm1863, %v1749
  %1879 = vst.msk [vmem:[%s3 + $0x78] sm:$0xff] %vm1863, %v1750
  %1880 = vst.msk [vmem:[%s3 + $0x80] sm:$0xff] %vm1863, %v1751
  %1881 = vst.msk [vmem:[%s3 + $0x88] sm:$0xff] %vm1863, %v1752
  %1882 = vst.msk [vmem:[%s3 + $0x90] sm:$0xff] %vm1863, %v1753
  %1883 = vst.msk [vmem:[%s3 + $0x98] sm:$0xff] %vm1863, %v1754
  %1884 = vst.msk [vmem:[%s3 + $0xa0] sm:$0xff] %vm1863, %v1755
  %1885 = vst.msk [vmem:[%s3 + $0xa8] sm:$0xff] %vm1863, %v1756
  %1886 = vst.msk [vmem:[%s3 + $0xb0] sm:$0xff] %vm1863, %v1757
  %1887 = vst.msk [vmem:[%s3 + $0xb8] sm:$0xff] %vm1863, %v1758
  %1888 = vst.msk [vmem:[%s3 + $0xc0] sm:$0xff] %vm1863, %v1759
  %1889 = vst.msk [vmem:[%s3 + $0xc8] sm:$0xff] %vm1863, %v1760
  %1890 = vst.msk [vmem:[%s3 + $0xd0] sm:$0xff] %vm1863, %v1761
  %1891 = vst.msk [vmem:[%s3 + $0xd8] sm:$0xff] %vm1863, %v1762
  %1892 = vst.msk [vmem:[%s3 + $0xe0] sm:$0xff] %vm1863, %v1763
  %1893 = vst.msk [vmem:[%s3 + $0xe8] sm:$0xff] %vm1863, %v1764
  %1894 = vst.msk [vmem:[%s3 + $0xf0] sm:$0xff] %vm1863, %v1765
  %1895 = vst.msk [vmem:[%s3 + $0xf8] sm:$0xff] %vm1863, %v1766
  %1896 = vst.msk [vmem:[%s3 + $0x100] sm:$0xff] %vm1863, %v1767
  %1897 = vst.msk [vmem:[%s3 + $0x108] sm:$0xff] %vm1863, %v1768
  %1898 = vst.msk [vmem:[%s3 + $0x110] sm:$0xff] %vm1863, %v1769
  %1899 = vst.msk [vmem:[%s3 + $0x118] sm:$0xff] %vm1863, %v1770
  %1900 = vst.msk [vmem:[%s3 + $0x120] sm:$0xff] %vm1863, %v1771
  %1901 = vst.msk [vmem:[%s3 + $0x128] sm:$0xff] %vm1863, %v1772
  %1902 = vst.msk [vmem:[%s3 + $0x130] sm:$0xff] %vm1863, %v1773
  %1903 = vst.msk [vmem:[%s3 + $0x138] sm:$0xff] %vm1863, %v1774
  %1904 = vst.msk [vmem:[%s3 + $0x140] sm:$0xff] %vm1863, %v1775
  %1905 = vst.msk [vmem:[%s3 + $0x148] sm:$0xff] %vm1863, %v1776
  %1906 = vst.msk [vmem:[%s3 + $0x150] sm:$0xff] %vm1863, %v1777
  %1907 = vst.msk [vmem:[%s3 + $0x158] sm:$0xff] %vm1863, %v1778
  %1908 = vst.msk [vmem:[%s3 + $0x160] sm:$0xff] %vm1863, %v1779
  %1909 = vst.msk [vmem:[%s3 + $0x168] sm:$0xff] %vm1863, %v1780
  %1910 = vst.msk [vmem:[%s3 + $0x170] sm:$0xff] %vm1863, %v1781
  %1911 = vst.msk [vmem:[%s3 + $0x178] sm:$0xff] %vm1863, %v1782
  %1912 = vst.msk [vmem:[%s3 + $0x180] sm:$0xff] %vm1863, %v1783
  %1913 = vst.msk [vmem:[%s3 + $0x188] sm:$0xff] %vm1863, %v1784
  %1914 = vst.msk [vmem:[%s3 + $0x190] sm:$0xff] %vm1863, %v1785
  %1915 = vst.msk [vmem:[%s3 + $0x198] sm:$0xff] %vm1863, %v1786
  %1916 = vst.msk [vmem:[%s3 + $0x1a0] sm:$0xff] %vm1863, %v1787
  %1917 = vst.msk [vmem:[%s3 + $0x1a8] sm:$0xff] %vm1863, %v1788
  %1918 = vst.msk [vmem:[%s3 + $0x1b0] sm:$0xff] %vm1863, %v1789
  %1919 = vst.msk [vmem:[%s3 + $0x1b8] sm:$0xff] %vm1863, %v1790
  %1920 = vst.msk [vmem:[%s3 + $0x1c0] sm:$0xff] %vm1863, %v1791
  %1921 = vst.msk [vmem:[%s3 + $0x1c8] sm:$0xff] %vm1863, %v1792
  %1922 = vst.msk [vmem:[%s3 + $0x1d0] sm:$0xff] %vm1863, %v1793
  %1923 = vst.msk [vmem:[%s3 + $0x1d8] sm:$0xff] %vm1863, %v1794
  %1924 = vst.msk [vmem:[%s3 + $0x1e0] sm:$0xff] %vm1863, %v1795
  %1925 = vst.msk [vmem:[%s3 + $0x1e8] sm:$0xff] %vm1863, %v1796
  %1926 = vst.msk [vmem:[%s3 + $0x1f0] sm:$0xff] %vm1863, %v1797
  %1927 = vst.msk [vmem:[%s3 + $0x1f8] sm:$0xff] %vm1863, %v1798
  %1928 = vst.msk [vmem:[%s3 + $0x200] sm:$0xff] %vm1863, %v1799
  %1929 = vst.msk [vmem:[%s3 + $0x208] sm:$0xff] %vm1863, %v1800
  %1930 = vst.msk [vmem:[%s3 + $0x210] sm:$0xff] %vm1863, %v1801
  %1931 = vst.msk [vmem:[%s3 + $0x218] sm:$0xff] %vm1863, %v1802
  %1932 = vst.msk [vmem:[%s3 + $0x220] sm:$0xff] %vm1863, %v1803
  %1933 = vst.msk [vmem:[%s3 + $0x228] sm:$0xff] %vm1863, %v1804
  %1934 = vst.msk [vmem:[%s3 + $0x230] sm:$0xff] %vm1863, %v1805
  %1935 = vst.msk [vmem:[%s3 + $0x238] sm:$0xff] %vm1863, %v1806
  %1936 = vst.msk [vmem:[%s3 + $0x240] sm:$0xff] %vm1863, %v1807
  %1937 = vst.msk [vmem:[%s3 + $0x248] sm:$0xff] %vm1863, %v1808
  %1938 = vst.msk [vmem:[%s3 + $0x250] sm:$0xff] %vm1863, %v1809
  %1939 = vst.msk [vmem:[%s3 + $0x258] sm:$0xff] %vm1863, %v1810
  %1940 = vst.msk [vmem:[%s3 + $0x260] sm:$0xff] %vm1863, %v1811
  %1941 = vst.msk [vmem:[%s3 + $0x268] sm:$0xff] %vm1863, %v1812
  %1942 = vst.msk [vmem:[%s3 + $0x270] sm:$0xff] %vm1863, %v1813
  %1943 = vst.msk [vmem:[%s3 + $0x278] sm:$0xff] %vm1863, %v1814
  %1944 = vst.msk [vmem:[%s3 + $0x280] sm:$0xff] %vm1863, %v1815
  %1945 = vst.msk [vmem:[%s3 + $0x288] sm:$0xff] %vm1863, %v1816
  %1946 = vst.msk [vmem:[%s3 + $0x290] sm:$0xff] %vm1863, %v1817
  %1947 = vst.msk [vmem:[%s3 + $0x298] sm:$0xff] %vm1863, %v1818
  %1948 = vst.msk [vmem:[%s3 + $0x2a0] sm:$0xff] %vm1863, %v1819
  %1949 = vst.msk [vmem:[%s3 + $0x2a8] sm:$0xff] %vm1863, %v1820
  %1950 = vst.msk [vmem:[%s3 + $0x2b0] sm:$0xff] %vm1863, %v1821
  %1951 = vst.msk [vmem:[%s3 + $0x2b8] sm:$0xff] %vm1863, %v1822
  %1952 = vst.msk [vmem:[%s3 + $0x2c0] sm:$0xff] %vm1863, %v1823
  %1953 = vst.msk [vmem:[%s3 + $0x2c8] sm:$0xff] %vm1863, %v1824
  %1954 = vst.msk [vmem:[%s3 + $0x2d0] sm:$0xff] %vm1863, %v1825
  %1955 = vst.msk [vmem:[%s3 + $0x2d8] sm:$0xff] %vm1863, %v1826
  %1956 = vst.msk [vmem:[%s3 + $0x2e0] sm:$0xff] %vm1863, %v1827
  %1957 = vst.msk [vmem:[%s3 + $0x2e8] sm:$0xff] %vm1863, %v1828
  %1958 = vst.msk [vmem:[%s3 + $0x2f0] sm:$0xff] %vm1863, %v1829
  %1959 = vst.msk [vmem:[%s3 + $0x2f8] sm:$0xff] %vm1863, %v1830
  %1960 = vst.msk [vmem:[%s3 + $0x300] sm:$0xff] %vm1863, %v1831
  %1961 = vst.msk [vmem:[%s3 + $0x308] sm:$0xff] %vm1863, %v1832
  %1962 = vst.msk [vmem:[%s3 + $0x310] sm:$0xff] %vm1863, %v1833
  %1963 = vst.msk [vmem:[%s3 + $0x318] sm:$0xff] %vm1863, %v1834
  %1964 = vst.msk [vmem:[%s3 + $0x320] sm:$0xff] %vm1863, %v1835
  %1965 = vst.msk [vmem:[%s3 + $0x328] sm:$0xff] %vm1863, %v1836
  %1966 = vst.msk [vmem:[%s3 + $0x330] sm:$0xff] %vm1863, %v1837
  %1967 = vst.msk [vmem:[%s3 + $0x338] sm:$0xff] %vm1863, %v1838
  %1968 = vst.msk [vmem:[%s3 + $0x340] sm:$0xff] %vm1863, %v1839
  %1969 = vst.msk [vmem:[%s3 + $0x348] sm:$0xff] %vm1863, %v1840
  %1970 = vst.msk [vmem:[%s3 + $0x350] sm:$0xff] %vm1863, %v1841
  %1971 = vst.msk [vmem:[%s3 + $0x358] sm:$0xff] %vm1863, %v1842
  %1972 = vst.msk [vmem:[%s3 + $0x360] sm:$0xff] %vm1863, %v1843
  %1973 = vst.msk [vmem:[%s3 + $0x368] sm:$0xff] %vm1863, %v1844
  %1974 = vst.msk [vmem:[%s3 + $0x370] sm:$0xff] %vm1863, %v1845
  %1975 = vst.msk [vmem:[%s3 + $0x378] sm:$0xff] %vm1863, %v1846
  %1976 = vst.msk [vmem:[%s3 + $0x380] sm:$0xff] %vm1863, %v1847
  %1977 = vst.msk [vmem:[%s3 + $0x388] sm:$0xff] %vm1863, %v1848
  %1978 = vst.msk [vmem:[%s3 + $0x390] sm:$0xff] %vm1863, %v1849
  %1979 = vst.msk [vmem:[%s3 + $0x398] sm:$0xff] %vm1863, %v1850
  %1980 = vst.msk [vmem:[%s3 + $0x3a0] sm:$0xff] %vm1863, %v1851
  %1981 = vst.msk [vmem:[%s3 + $0x3a8] sm:$0xff] %vm1863, %v1852
  %1982 = vst.msk [vmem:[%s3 + $0x3b0] sm:$0xff] %vm1863, %v1853
  %1983 = vst.msk [vmem:[%s3 + $0x3b8] sm:$0xff] %vm1863, %v1854
  %1984 = vst.msk [vmem:[%s3 + $0x3c0] sm:$0xff] %vm1863, %v1855
  %1985 = vst.msk [vmem:[%s3 + $0x3c8] sm:$0xff] %vm1863, %v1856
  %1986 = vst.msk [vmem:[%s3 + $0x3d0] sm:$0xff] %vm1863, %v1857
  %1987 = vst.msk [vmem:[%s3 + $0x3d8] sm:$0xff] %vm1863, %v1858
  %1988 = vst.msk [vmem:[%s3 + $0x3e0] sm:$0xff] %vm1863, %v1859
  %1989 = vst.msk [vmem:[%s3 + $0x3e8] sm:$0xff] %vm1863, %v1860
  %1990 = vst.msk [vmem:[%s3 + $0x3f0] sm:$0xff] %vm1863, %v1861
  %1991 = vst.msk [vmem:[%s3 + $0x3f8] sm:$0xff] %vm1863, %v1862
  // Predicated region
  $region14: #{mtrnn_forward.15} parent=0 // pred_check
    _
  $region15: #{mtrnn_forward.15} parent=0 // pred_check_branch
    %1993 = sbr.rel (0) target = $region17
  $region16: #{mtrnn_forward.15} parent=0 // pred_region
    _
  $region17: #{mtrnn_forward.15} parent=0 // pred_fallthru
    _
  // Predicated region
  $region18: #{mtrnn_forward.15} parent=0 // pred_check
    _
  $region19: #{mtrnn_forward.15} parent=0 // pred_check_branch
    %1995 = sbr.rel (0) target = $region21
  $region20: #{mtrnn_forward.15} parent=0 // pred_region
    _
  $region21: #{mtrnn_forward.15} parent=0 // pred_fallthru
    _

</llo_original>
